<compile_context>
chip_gen: v5e
topology: v5e:2x2
jax: 0.10.0
libtpu: 0.0.40
codegen_flags: <defaults>
</compile_context>

<pallas_src>
import functools

import jax
import jax.numpy as jnp
from jax.experimental import pallas as pl
from jax.experimental.pallas import tpu as pltpu

# ----------------------- synthetic (small) generator config -----------------------
DIM_Z = 32
BOTTOM_WIDTH = 4
CH = 16                                  # per-block channel width (G_arch collapsed)
NUM_BLOCKS = 2                           # num_layers = 4, final image = 4 * 2**2 = 16
NUM_CONV_IN_BLOCK = 2
NUM_LAYERS = NUM_BLOCKS * NUM_CONV_IN_BLOCK
IN_CHANNELS = [CH] * NUM_BLOCKS
OUT_CHANNELS = [CH] * NUM_BLOCKS
UPSAMPLE = [True] * NUM_BLOCKS
UPSAMPLE_LAYER_IDX = [NUM_CONV_IN_BLOCK * l for l in range(NUM_LAYERS // NUM_CONV_IN_BLOCK)]
OPS_KS = (1, 3, 5)                       # ops = ['conv_1x1', 'conv_3x3', 'conv_5x5']
NUM_OPS = len(OPS_KS)
MAX_K = max(OPS_KS)
BN_EPS = 1e-5


# --------------------------------- Pallas kernels ----------------------------------
def _matmul_bias_kernel(a_ref, b_ref, bias_ref, o_ref):
    o_ref[...] = (
        jnp.dot(a_ref[...], b_ref[...], preferred_element_type=jnp.float32)
        + bias_ref[...]
    )


def _matmul_bias_tanh_kernel(a_ref, b_ref, bias_ref, o_ref):
    y = jnp.dot(a_ref[...], b_ref[...], preferred_element_type=jnp.float32) + bias_ref[...]
    o_ref[...] = jnp.tanh(y)             # fused epilogue: EUP slot, no extra pallas_call


def _mixed_conv_kernel(arc_ref, a_ref, w_ref, bias_ref, o_ref):
    # arc_ref (scalar prefetch) is consumed by the index_maps, not here.
    y = jnp.dot(a_ref[0], w_ref[0], preferred_element_type=jnp.float32)
    o_ref[0] = y + bias_ref[0]


def _mixed_conv_res_kernel(arc_ref, a_ref, w_ref, bias_ref, skip_ref, o_ref):
    y = jnp.dot(a_ref[0], w_ref[0], preferred_element_type=jnp.float32)
    o_ref[0] = y + bias_ref[0] + skip_ref[0]      # fused residual add


def _bn_relu_kernel(x_ref, g_ref, b_ref, o_ref):
    x = x_ref[...]                                           # f32
    mean = jnp.mean(x, axis=0, keepdims=True)
    var = jnp.mean(jnp.square(x - mean), axis=0, keepdims=True)   # biased var (BN fwd)
    inv = jax.lax.rsqrt(var + BN_EPS)
    y = (x - mean) * (inv * g_ref[...]) + b_ref[...]
    o_ref[...] = jnp.maximum(y, 0.0).astype(o_ref.dtype)     # store bf16 (MXU operand)


# --------------------------------- Pallas wrappers ----------------------------------
def _pick_row_tile(M, K, N, budget_bytes=8 * 1024 * 1024):
    """Row tile for (M,K)@(K,N). Single full block when the whole problem fits
    comfortably in VMEM (always the case at these toy sizes -> one grid step, no
    per-step overhead). Otherwise the largest power-of-two row tile that divides M and
    whose double-buffered bf16 A tile + resident B + f32 out tile fit the budget."""
    if M * K * 2 + K * N * 2 + M * N * 4 <= budget_bytes:
        return M
    for cand in (4096, 2048, 1024, 512, 256, 128, 64, 32, 16, 8):
        if M % cand == 0 and 2 * cand * K * 2 + K * N * 2 + 2 * cand * N * 4 <= budget_bytes:
            return cand
    return M   # fallback: one big block (block == full dims is always legal)


def matmul_bias(a, b, bias, activation=None):
    """(M, K) @ (K, N) + bias[N] on the MXU (bf16 operands, f32 accumulate).
    activation='tanh' fuses tanh into the epilogue."""
    M, K = a.shape
    _, N = b.shape
    a = a.astype(jnp.bfloat16)
    b = b.astype(jnp.bfloat16)
    bias2d = bias.astype(jnp.float32).reshape(1, N)
    tm = _pick_row_tile(M, K, N)
    kernel = _matmul_bias_tanh_kernel if activation == "tanh" else _matmul_bias_kernel
    return pl.pallas_call(
        kernel,
        out_shape=jax.ShapeDtypeStruct((M, N), jnp.float32),
        grid=(M // tm,),
        in_specs=[
            pl.BlockSpec((tm, K), lambda i: (i, 0)),
            pl.BlockSpec((K, N), lambda i: (0, 0)),
            pl.BlockSpec((1, N), lambda i: (0, 0)),
        ],
        out_specs=pl.BlockSpec((tm, N), lambda i: (i, 0)),
        compiler_params=pltpu.CompilerParams(dimension_semantics=("parallel",)),
    )(a, b, bias2d)


def mixed_conv_select(cols3d, w_stacked, b_stacked, sample_arc, skip3d=None):
    """Per-sample op-selected conv as one matmul per batch sample.

    cols3d:    (B, HW, MAX_K*MAX_K*Cin)  bf16 im2col patches
    w_stacked: (n_ops, MAX_K*MAX_K*Cin, Cout) bf16  (1x1/3x3 ops zero-padded to 5x5)
    b_stacked: (n_ops, 1, Cout) f32
    sample_arc:(B,) int32 -- scalar-prefetched; the weight/bias index_map picks the
               chosen op's block so only 1/3 of the candidate FLOPs are executed.
    skip3d:    optional (B, HW, Cout) f32 residual, added in the epilogue.
    """
    B, HW, K = cols3d.shape
    Cout = w_stacked.shape[-1]
    arc = sample_arc.astype(jnp.int32)

    in_specs = [
        pl.BlockSpec((1, HW, K), lambda b, arc_ref: (b, 0, 0)),
        pl.BlockSpec((1, K, Cout), lambda b, arc_ref: (arc_ref[b], 0, 0)),
        pl.BlockSpec((1, 1, Cout), lambda b, arc_ref: (arc_ref[b], 0, 0)),
    ]
    operands = [cols3d, w_stacked, b_stacked]
    if skip3d is None:
        kernel = _mixed_conv_kernel
    else:
        kernel = _mixed_conv_res_kernel
        in_specs.append(pl.BlockSpec((1, HW, Cout), lambda b, arc_ref: (b, 0, 0)))
        operands.append(skip3d.astype(jnp.float32))

    return pl.pallas_call(
        kernel,
        out_shape=jax.ShapeDtypeStruct((B, HW, Cout), jnp.float32),
        grid_spec=pltpu.PrefetchScalarGridSpec(
            num_scalar_prefetch=1,
            grid=(B,),
            in_specs=in_specs,
            out_specs=pl.BlockSpec((1, HW, Cout), lambda b, arc_ref: (b, 0, 0)),
        ),
        compiler_params=pltpu.CompilerParams(dimension_semantics=("parallel",)),
    )(arc, *operands)


def bn_relu(x2d, gamma, beta):
    """Fused BatchNorm (batch statistics over rows, track_running_stats=False) + ReLU.
    x2d: (B*H*W, C) f32 -> (B*H*W, C) bf16.
    # TODO(synk): one full-slab call is fine at these sizes (<=512x16); a two-pass scheme
    # (global-stats reduce kernel + row-tiled normalize) is needed before B*H*W scales
    # beyond the v7x 64 MiB VMEM budget.
    """
    M, C = x2d.shape
    return pl.pallas_call(
        _bn_relu_kernel,
        out_shape=jax.ShapeDtypeStruct((M, C), jnp.bfloat16),
    )(x2d.astype(jnp.float32), gamma.reshape(1, C), beta.reshape(1, C))


# ------------------------------------ JAX glue --------------------------------------
def nearest_upsample2x(x):
    """NHWC nearest-neighbor 2x upsample (nn.Upsample(scale_factor=2)); pure data movement."""
    return jnp.repeat(jnp.repeat(x, 2, axis=1), 2, axis=2)


def im2col(x, k):
    """NHWC -> (B, H, W, k*k*C) 'same' padded, stride-1 patches (pure data movement)."""
    B, H, W, C = x.shape
    p = (k - 1) // 2
    xp = jnp.pad(x, ((0, 0), (p, p), (p, p), (0, 0)))
    cols = [xp[:, di:di + H, dj:dj + W, :] for di in range(k) for dj in range(k)]
    return jnp.concatenate(cols, axis=-1)


def mixed_layer(x, sample_arc, lp, do_upsample, skip=None):
    """BN -> ReLU -> (optional 2x upsample) -> per-sample conv-op (+ fused residual add)."""
    B, H, W, C = x.shape
    h = bn_relu(x.reshape(B * H * W, C), lp["gamma"], lp["beta"]).reshape(B, H, W, C)
    if do_upsample:
        h = nearest_upsample2x(h)
    Hh, Wh = h.shape[1], h.shape[2]
    cols = im2col(h, MAX_K).reshape(B, Hh * Wh, MAX_K * MAX_K * C)        # bf16
    skip3d = None if skip is None else skip.reshape(B, Hh * Wh, -1)
    out = mixed_conv_select(cols, lp["w_stacked"], lp["b_stacked"], sample_arc, skip3d)
    return out.reshape(B, Hh, Wh, -1)


# ---------------------------------- forward pass ------------------------------------
def path_aware_resnet_gen_forward(params, z, sample_arcs):
    B = z.shape[0]
    c0 = IN_CHANNELS[0]

    # linear + view(B, C0, bw, bw) (PyTorch NCHW view), then to NHWC
    x2d = matmul_bias(z, params["lin_w"], params["lin_b"])               # (B, c0*bw*bw)
    x = jnp.transpose(x2d.reshape(B, c0, BOTTOM_WIDTH, BOTTOM_WIDTH), (0, 2, 3, 1))

    prev = x
    skip_idx = 0
    for layer_id in range(NUM_LAYERS):
        block = layer_id // NUM_CONV_IN_BLOCK
        do_up = UPSAMPLE[block] and (layer_id in UPSAMPLE_LAYER_IDX)
        is_res_layer = (layer_id - 1) in UPSAMPLE_LAYER_IDX

        skip = None
        if is_res_layer:
            sp = params["skips"][skip_idx]
            skip_idx += 1
            if UPSAMPLE[block]:
                # 1x1 conv commutes with nearest upsample -> conv at LOW resolution
                # (plain matmul, no im2col), then upsample: 4x fewer rows / HBM bytes.
                Bp, hp, wp, cp = prev.shape
                s_low = matmul_bias(prev.reshape(Bp * hp * wp, cp), sp["w"], sp["b"])
                skip = nearest_upsample2x(s_low.reshape(Bp, hp, wp, -1))
            else:
                skip = prev                                             # Identity skip

        x = mixed_layer(x, sample_arcs[:, layer_id], params["layers"][layer_id],
                        do_up, skip)
        if is_res_layer:
            prev = x

    # output layer ('snconv'): BN -> ReLU -> 3x3 conv to 3 channels, tanh fused in epilogue
    B, H, W, C = x.shape
    h = bn_relu(x.reshape(B * H * W, C),
                params["out_gamma"], params["out_beta"]).reshape(B, H, W, C)
    cols = im2col(h, 3).reshape(B * H * W, 9 * C)
    o2d = matmul_bias(cols, params["out_w"].reshape(9 * C, 3), params["out_b"],
                      activation="tanh")
    return jnp.transpose(o2d.reshape(B, H, W, 3), (0, 3, 1, 2))          # back to NCHW


# -------------------------------- parameter setup ------------------------------------
def init_params(key):
    keys = iter(jax.random.split(key, 64))

    def w_init(shape):
        # TODO(synk): original uses orthogonal init; deterministic scaled normal here.
        return 0.02 * jax.random.normal(next(keys), shape, jnp.float32)

    def stack_ops(cin, cout):
        """Zero-pad each kxk HWIO kernel to MAX_KxMAX_K (exactly equivalent for 'same'
        padding) and stack along the op axis for per-sample weight selection."""
        ws, bs = [], []
        for k in OPS_KS:
            w = w_init((k, k, cin, cout))
            off = (MAX_K - k) // 2
            wp = jnp.zeros((MAX_K, MAX_K, cin, cout), jnp.float32)
            wp = wp.at[off:off + k, off:off + k].set(w)
            ws.append(wp.reshape(MAX_K * MAX_K * cin, cout))
            bs.append(jnp.zeros((cout,), jnp.float32))
        w_stacked = jnp.stack(ws, axis=0).astype(jnp.bfloat16)   # (n_ops, 25*cin, cout)
        b_stacked = jnp.stack(bs, axis=0).reshape(NUM_OPS, 1, cout)
        return w_stacked, b_stacked

    params = {
        "lin_w": w_init((DIM_Z, IN_CHANNELS[0] * BOTTOM_WIDTH ** 2)),
        "lin_b": jnp.zeros((IN_CHANNELS[0] * BOTTOM_WIDTH ** 2,), jnp.float32),
        "layers": [],
        "skips": [],
        "out_gamma": jnp.ones((OUT_CHANNELS[-1],), jnp.float32),
        "out_beta": jnp.zeros((OUT_CHANNELS[-1],), jnp.float32),
        "out_w": w_init((3, 3, OUT_CHANNELS[-1], 3)),
        "out_b": jnp.zeros((3,), jnp.float32),
    }
    for layer_id in range(NUM_LAYERS):
        block = layer_id // NUM_CONV_IN_BLOCK
        cin = IN_CHANNELS[block] if layer_id % NUM_CONV_IN_BLOCK == 0 else OUT_CHANNELS[block]
        cout = OUT_CHANNELS[block]
        w_stacked, b_stacked = stack_ops(cin, cout)
        params["layers"].append({
            "gamma": jnp.ones((cin,), jnp.float32),
            "beta": jnp.zeros((cin,), jnp.float32),
            "w_stacked": w_stacked,
            "b_stacked": b_stacked,
        })
    for block in range(NUM_BLOCKS):
        if UPSAMPLE[block]:
            params["skips"].append({
                # 1x1 conv == channel matmul: store directly as (Cin, Cout)
                "w": w_init((IN_CHANNELS[block], OUT_CHANNELS[block])),
                "b": jnp.zeros((OUT_CHANNELS[block],), jnp.float32),
            })
        else:
            params["skips"].append({"w": None, "b": None})
    return params


# --------------------------------------- main ----------------------------------------
if __name__ == "__main__":
    key = jax.random.PRNGKey(0)
    kp, kz, ka = jax.random.split(key, 3)
    params = init_params(kp)

    B = 2
    z = jax.random.normal(kz, (B, DIM_Z), dtype=jnp.float32)
    sample_arcs = jax.random.randint(ka, (B, NUM_LAYERS), 0, NUM_OPS, dtype=jnp.int32)

    fwd = jax.jit(functools.partial(path_aware_resnet_gen_forward, params))
    out = fwd(z, sample_arcs)
    jax.block_until_ready(out)

    img = BOTTOM_WIDTH * (2 ** NUM_BLOCKS)
    assert out.shape == (B, 3, img, img), out.shape
    assert bool(jnp.all(jnp.isfinite(out)))
    print("KERNEL_OK")
</pallas_src>

<mosaic_0001>
module attributes {stable_mosaic.version = 11 : i64} {
  func.func @_matmul_bias_kernel(%arg0: i32, %arg1: memref<2x32xbf16, #tpu.memory_space<vmem>>, %arg2: memref<32x256xbf16, #tpu.memory_space<vmem>>, %arg3: memref<1x256xf32, #tpu.memory_space<vmem>>, %arg4: memref<2x256xf32, #tpu.memory_space<vmem>>) attributes {dimension_semantics = [#tpu.dimension_semantics<parallel>], iteration_bounds = array<i64: 1>, scalar_prefetch = 0 : i64, scratch_operands = 0 : i64, tpu.core_type = #tpu.core_type<tc>, window_params = [{transform_indices = @transform_0, window_bounds = array<i64: 2, 32>}, {pipeline_mode = #tpu.pipeline_mode<synchronous>, transform_indices = @transform_1, window_bounds = array<i64: 32, 256>}, {pipeline_mode = #tpu.pipeline_mode<synchronous>, transform_indices = @transform_2, window_bounds = array<i64: 1, 256>}, {transform_indices = @transform_3, window_bounds = array<i64: 2, 256>}]} {
    %c0 = arith.constant 0 : index
    %c0_0 = arith.constant 0 : index
    %0 = vector.load %arg1[%c0, %c0_0] : memref<2x32xbf16, #tpu.memory_space<vmem>>, vector<2x32xbf16>
    %c0_1 = arith.constant 0 : index
    %c0_2 = arith.constant 0 : index
    %1 = vector.load %arg2[%c0_1, %c0_2] : memref<32x256xbf16, #tpu.memory_space<vmem>>, vector<32x256xbf16>
    %cst = arith.constant dense<0.000000e+00> : vector<2x256xf32>
    %2 = tpu.matmul %0, %1, %cst {dimension_numbers = #tpu.dot_dimension_numbers<[1], [0], [0], [1], [0, 0, 1, 1], [], []>} : vector<2x32xbf16>, vector<32x256xbf16>, vector<2x256xf32> -> vector<2x256xf32>
    %c0_3 = arith.constant 0 : index
    %c0_4 = arith.constant 0 : index
    %3 = vector.load %arg3[%c0_3, %c0_4] : memref<1x256xf32, #tpu.memory_space<vmem>>, vector<1x256xf32>
    %4 = vector.broadcast %3 : vector<1x256xf32> to vector<2x256xf32>
    %5 = arith.addf %2, %4 : vector<2x256xf32>
    %c0_5 = arith.constant 0 : index
    %c0_6 = arith.constant 0 : index
    %6 = vector.load %arg4[%c0_5, %c0_6] : memref<2x256xf32, #tpu.memory_space<vmem>>, vector<2x256xf32>
    tpu.vector_store %arg4[%c0_5, %c0_6], %5 {strides = array<i32>} : memref<2x256xf32, #tpu.memory_space<vmem>>, vector<2x256xf32>,
    return
  }
  func.func @transform_0(%arg0: i32) -> (i32, i32) {
    %c0_i32 = arith.constant 0 : i32
    %c0_i32_0 = arith.constant 0 : i32
    return %arg0, %c0_i32 : i32, i32
  }
  func.func @transform_1(%arg0: i32) -> (i32, i32) {
    %c0_i32 = arith.constant 0 : i32
    %c0_i32_0 = arith.constant 0 : i32
    %c0_i32_1 = arith.constant 0 : i32
    return %c0_i32, %c0_i32_0 : i32, i32
  }
  func.func @transform_2(%arg0: i32) -> (i32, i32) {
    %c0_i32 = arith.constant 0 : i32
    %c0_i32_0 = arith.constant 0 : i32
    %c0_i32_1 = arith.constant 0 : i32
    return %c0_i32, %c0_i32_0 : i32, i32
  }
  func.func @transform_3(%arg0: i32) -> (i32, i32) {
    %c0_i32 = arith.constant 0 : i32
    %c0_i32_0 = arith.constant 0 : i32
    return %arg0, %c0_i32 : i32, i32
  }
}

module attributes {stable_mosaic.version = 11 : i64} {
  func.func @_bn_relu_kernel(%arg0: memref<32x16xf32, #tpu.memory_space<vmem>>, %arg1: memref<1x16xf32, #tpu.memory_space<vmem>>, %arg2: memref<1x16xf32, #tpu.memory_space<vmem>>, %arg3: memref<32x16xbf16, #tpu.memory_space<vmem>>) attributes {dimension_semantics = [], scalar_prefetch = 0 : i64, scratch_operands = 0 : i64, tpu.core_type = #tpu.core_type<tc>} {
    %c0 = arith.constant 0 : index
    %c0_0 = arith.constant 0 : index
    %0 = vector.load %arg0[%c0, %c0_0] : memref<32x16xf32, #tpu.memory_space<vmem>>, vector<32x16xf32>
    %cst = arith.constant dense<0.000000e+00> : vector<16xf32>
    %1 = vector.multi_reduction <add>, %0, %cst [0] : vector<32x16xf32> to vector<16xf32>
    %2 = vector.shape_cast %1 : vector<16xf32> to vector<1x16xf32>
    %cst_1 = arith.constant 3.200000e+01 : f32
    %3 = vector.broadcast %cst_1 : f32 to vector<1x16xf32>
    %4 = arith.divf %2, %3 : vector<1x16xf32>
    %5 = vector.broadcast %4 : vector<1x16xf32> to vector<32x16xf32>
    %6 = arith.subf %0, %5 : vector<32x16xf32>
    %7 = arith.mulf %6, %6 : vector<32x16xf32>
    %cst_2 = arith.constant dense<0.000000e+00> : vector<16xf32>
    %8 = vector.multi_reduction <add>, %7, %cst_2 [0] : vector<32x16xf32> to vector<16xf32>
    %9 = vector.shape_cast %8 : vector<16xf32> to vector<1x16xf32>
    %cst_3 = arith.constant 3.200000e+01 : f32
    %10 = vector.broadcast %cst_3 : f32 to vector<1x16xf32>
    %11 = arith.divf %9, %10 : vector<1x16xf32>
    %cst_4 = arith.constant 9.99999974E-6 : f32
    %12 = vector.broadcast %cst_4 : f32 to vector<1x16xf32>
    %13 = arith.addf %11, %12 : vector<1x16xf32>
    %14 = math.rsqrt %13 : vector<1x16xf32>
    %15 = vector.broadcast %4 : vector<1x16xf32> to vector<32x16xf32>
    %16 = arith.subf %0, %15 : vector<32x16xf32>
    %c0_5 = arith.constant 0 : index
    %c0_6 = arith.constant 0 : index
    %17 = vector.load %arg1[%c0_5, %c0_6] : memref<1x16xf32, #tpu.memory_space<vmem>>, vector<1x16xf32>
    %18 = arith.mulf %14, %17 : vector<1x16xf32>
    %19 = vector.broadcast %18 : vector<1x16xf32> to vector<32x16xf32>
    %20 = arith.mulf %16, %19 : vector<32x16xf32>
    %c0_7 = arith.constant 0 : index
    %c0_8 = arith.constant 0 : index
    %21 = vector.load %arg2[%c0_7, %c0_8] : memref<1x16xf32, #tpu.memory_space<vmem>>, vector<1x16xf32>
    %22 = vector.broadcast %21 : vector<1x16xf32> to vector<32x16xf32>
    %23 = arith.addf %20, %22 : vector<32x16xf32>
    %cst_9 = arith.constant 0.000000e+00 : f32
    %24 = vector.broadcast %cst_9 : f32 to vector<32x16xf32>
    %25 = arith.maximumf %23, %24 : vector<32x16xf32>
    %26 = arith.truncf %25 : vector<32x16xf32> to vector<32x16xbf16>
    %c0_10 = arith.constant 0 : index
    %c0_11 = arith.constant 0 : index
    %27 = vector.load %arg3[%c0_10, %c0_11] : memref<32x16xbf16, #tpu.memory_space<vmem>>, vector<32x16xbf16>
    tpu.vector_store %arg3[%c0_10, %c0_11], %26 {strides = array<i32>} : memref<32x16xbf16, #tpu.memory_space<vmem>>, vector<32x16xbf16>,
    return
  }
}

module attributes {stable_mosaic.version = 11 : i64} {
  func.func @_mixed_conv_kernel(%arg0: i32, %arg1: memref<2xi32, #tpu.memory_space<smem>>, %arg2: memref<1x64x400xbf16, #tpu.memory_space<vmem>>, %arg3: memref<1x400x16xbf16, #tpu.memory_space<vmem>>, %arg4: memref<1x1x16xf32, #tpu.memory_space<vmem>>, %arg5: memref<1x64x16xf32, #tpu.memory_space<vmem>>) attributes {dimension_semantics = [#tpu.dimension_semantics<parallel>], iteration_bounds = array<i64: 2>, scalar_prefetch = 1 : i64, scratch_operands = 0 : i64, tpu.core_type = #tpu.core_type<tc>, window_params = [{transform_indices = @transform_0, window_bounds = array<i64: 1, 64, 400>}, {transform_indices = @transform_1, window_bounds = array<i64: 1, 400, 16>}, {transform_indices = @transform_2, window_bounds = array<i64: 1, 1, 16>}, {transform_indices = @transform_3, window_bounds = array<i64: 1, 64, 16>}]} {
    %c0 = arith.constant 0 : index
    %c0_0 = arith.constant 0 : index
    %c0_1 = arith.constant 0 : index
    %0 = vector.load %arg2[%c0, %c0_0, %c0_1] : memref<1x64x400xbf16, #tpu.memory_space<vmem>>, vector<1x64x400xbf16>
    %1 = vector.shape_cast %0 : vector<1x64x400xbf16> to vector<64x400xbf16>
    %c0_2 = arith.constant 0 : index
    %c0_3 = arith.constant 0 : index
    %c0_4 = arith.constant 0 : index
    %2 = vector.load %arg3[%c0_2, %c0_3, %c0_4] : memref<1x400x16xbf16, #tpu.memory_space<vmem>>, vector<1x400x16xbf16>
    %3 = vector.shape_cast %2 : vector<1x400x16xbf16> to vector<400x16xbf16>
    %cst = arith.constant dense<0.000000e+00> : vector<64x16xf32>
    %4 = tpu.matmul %1, %3, %cst {dimension_numbers = #tpu.dot_dimension_numbers<[1], [0], [0], [1], [0, 0, 1, 1], [], []>} : vector<64x400xbf16>, vector<400x16xbf16>, vector<64x16xf32> -> vector<64x16xf32>
    %c0_5 = arith.constant 0 : index
    %c0_6 = arith.constant 0 : index
    %c0_7 = arith.constant 0 : index
    %5 = vector.load %arg4[%c0_5, %c0_6, %c0_7] : memref<1x1x16xf32, #tpu.memory_space<vmem>>, vector<1x1x16xf32>
    %6 = vector.shape_cast %5 : vector<1x1x16xf32> to vector<1x16xf32>
    %7 = vector.broadcast %6 : vector<1x16xf32> to vector<64x16xf32>
    %8 = arith.addf %4, %7 : vector<64x16xf32>
    %c0_8 = arith.constant 0 : index
    %c0_9 = arith.constant 0 : index
    %c0_10 = arith.constant 0 : index
    %9 = vector.load %arg5[%c0_8, %c0_9, %c0_10] : memref<1x64x16xf32, #tpu.memory_space<vmem>>, vector<1x64x16xf32>
    %10 = vector.shape_cast %9 : vector<1x64x16xf32> to vector<64x16xf32>
    %11 = vector.shape_cast %8 : vector<64x16xf32> to vector<1x64x16xf32>
    tpu.vector_store %arg5[%c0_8, %c0_9, %c0_10], %11 {strides = array<i32>} : memref<1x64x16xf32, #tpu.memory_space<vmem>>, vector<1x64x16xf32>,
    return
  }
  func.func @transform_0(%arg0: i32, %arg1: memref<2xi32, #tpu.memory_space<smem>>) -> (i32, i32, i32) {
    %c0_i32 = arith.constant 0 : i32
    %c0_i32_0 = arith.constant 0 : i32
    %c0_i32_1 = arith.constant 0 : i32
    return %arg0, %c0_i32, %c0_i32_0 : i32, i32, i32
  }
  func.func @transform_1(%arg0: i32, %arg1: memref<2xi32, #tpu.memory_space<smem>>) -> (i32, i32, i32) {
    %0 = arith.index_cast %arg0 : i32 to index
    %1 = memref.load %arg1[%0] : memref<2xi32, #tpu.memory_space<smem>>
    %c0_i32 = arith.constant 0 : i32
    %c0_i32_0 = arith.constant 0 : i32
    %c0_i32_1 = arith.constant 0 : i32
    return %1, %c0_i32, %c0_i32_0 : i32, i32, i32
  }
  func.func @transform_2(%arg0: i32, %arg1: memref<2xi32, #tpu.memory_space<smem>>) -> (i32, i32, i32) {
    %0 = arith.index_cast %arg0 : i32 to index
    %1 = memref.load %arg1[%0] : memref<2xi32, #tpu.memory_space<smem>>
    %c0_i32 = arith.constant 0 : i32
    %c0_i32_0 = arith.constant 0 : i32
    %c0_i32_1 = arith.constant 0 : i32
    return %1, %c0_i32, %c0_i32_0 : i32, i32, i32
  }
  func.func @transform_3(%arg0: i32, %arg1: memref<2xi32, #tpu.memory_space<smem>>) -> (i32, i32, i32) {
    %c0_i32 = arith.constant 0 : i32
    %c0_i32_0 = arith.constant 0 : i32
    %c0_i32_1 = arith.constant 0 : i32
    return %arg0, %c0_i32, %c0_i32_0 : i32, i32, i32
  }
}

module attributes {stable_mosaic.version = 11 : i64} {
  func.func @_bn_relu_kernel(%arg0: memref<128x16xf32, #tpu.memory_space<vmem>>, %arg1: memref<1x16xf32, #tpu.memory_space<vmem>>, %arg2: memref<1x16xf32, #tpu.memory_space<vmem>>, %arg3: memref<128x16xbf16, #tpu.memory_space<vmem>>) attributes {dimension_semantics = [], scalar_prefetch = 0 : i64, scratch_operands = 0 : i64, tpu.core_type = #tpu.core_type<tc>} {
    %c0 = arith.constant 0 : index
    %c0_0 = arith.constant 0 : index
    %0 = vector.load %arg0[%c0, %c0_0] : memref<128x16xf32, #tpu.memory_space<vmem>>, vector<128x16xf32>
    %cst = arith.constant dense<0.000000e+00> : vector<16xf32>
    %1 = vector.multi_reduction <add>, %0, %cst [0] : vector<128x16xf32> to vector<16xf32>
    %2 = vector.shape_cast %1 : vector<16xf32> to vector<1x16xf32>
    %cst_1 = arith.constant 1.280000e+02 : f32
    %3 = vector.broadcast %cst_1 : f32 to vector<1x16xf32>
    %4 = arith.divf %2, %3 : vector<1x16xf32>
    %5 = vector.broadcast %4 : vector<1x16xf32> to vector<128x16xf32>
    %6 = arith.subf %0, %5 : vector<128x16xf32>
    %7 = arith.mulf %6, %6 : vector<128x16xf32>
    %cst_2 = arith.constant dense<0.000000e+00> : vector<16xf32>
    %8 = vector.multi_reduction <add>, %7, %cst_2 [0] : vector<128x16xf32> to vector<16xf32>
    %9 = vector.shape_cast %8 : vector<16xf32> to vector<1x16xf32>
    %cst_3 = arith.constant 1.280000e+02 : f32
    %10 = vector.broadcast %cst_3 : f32 to vector<1x16xf32>
    %11 = arith.divf %9, %10 : vector<1x16xf32>
    %cst_4 = arith.constant 9.99999974E-6 : f32
    %12 = vector.broadcast %cst_4 : f32 to vector<1x16xf32>
    %13 = arith.addf %11, %12 : vector<1x16xf32>
    %14 = math.rsqrt %13 : vector<1x16xf32>
    %15 = vector.broadcast %4 : vector<1x16xf32> to vector<128x16xf32>
    %16 = arith.subf %0, %15 : vector<128x16xf32>
    %c0_5 = arith.constant 0 : index
    %c0_6 = arith.constant 0 : index
    %17 = vector.load %arg1[%c0_5, %c0_6] : memref<1x16xf32, #tpu.memory_space<vmem>>, vector<1x16xf32>
    %18 = arith.mulf %14, %17 : vector<1x16xf32>
    %19 = vector.broadcast %18 : vector<1x16xf32> to vector<128x16xf32>
    %20 = arith.mulf %16, %19 : vector<128x16xf32>
    %c0_7 = arith.constant 0 : index
    %c0_8 = arith.constant 0 : index
    %21 = vector.load %arg2[%c0_7, %c0_8] : memref<1x16xf32, #tpu.memory_space<vmem>>, vector<1x16xf32>
    %22 = vector.broadcast %21 : vector<1x16xf32> to vector<128x16xf32>
    %23 = arith.addf %20, %22 : vector<128x16xf32>
    %cst_9 = arith.constant 0.000000e+00 : f32
    %24 = vector.broadcast %cst_9 : f32 to vector<128x16xf32>
    %25 = arith.maximumf %23, %24 : vector<128x16xf32>
    %26 = arith.truncf %25 : vector<128x16xf32> to vector<128x16xbf16>
    %c0_10 = arith.constant 0 : index
    %c0_11 = arith.constant 0 : index
    %27 = vector.load %arg3[%c0_10, %c0_11] : memref<128x16xbf16, #tpu.memory_space<vmem>>, vector<128x16xbf16>
    tpu.vector_store %arg3[%c0_10, %c0_11], %26 {strides = array<i32>} : memref<128x16xbf16, #tpu.memory_space<vmem>>, vector<128x16xbf16>,
    return
  }
}

module attributes {stable_mosaic.version = 11 : i64} {
  func.func @_matmul_bias_kernel(%arg0: i32, %arg1: memref<32x16xbf16, #tpu.memory_space<vmem>>, %arg2: memref<16x16xbf16, #tpu.memory_space<vmem>>, %arg3: memref<1x16xf32, #tpu.memory_space<vmem>>, %arg4: memref<32x16xf32, #tpu.memory_space<vmem>>) attributes {dimension_semantics = [#tpu.dimension_semantics<parallel>], iteration_bounds = array<i64: 1>, scalar_prefetch = 0 : i64, scratch_operands = 0 : i64, tpu.core_type = #tpu.core_type<tc>, window_params = [{transform_indices = @transform_0, window_bounds = array<i64: 32, 16>}, {pipeline_mode = #tpu.pipeline_mode<synchronous>, transform_indices = @transform_1, window_bounds = array<i64: 16, 16>}, {pipeline_mode = #tpu.pipeline_mode<synchronous>, transform_indices = @transform_2, window_bounds = array<i64: 1, 16>}, {transform_indices = @transform_3, window_bounds = array<i64: 32, 16>}]} {
    %c0 = arith.constant 0 : index
    %c0_0 = arith.constant 0 : index
    %0 = vector.load %arg1[%c0, %c0_0] : memref<32x16xbf16, #tpu.memory_space<vmem>>, vector<32x16xbf16>
    %c0_1 = arith.constant 0 : index
    %c0_2 = arith.constant 0 : index
    %1 = vector.load %arg2[%c0_1, %c0_2] : memref<16x16xbf16, #tpu.memory_space<vmem>>, vector<16x16xbf16>
    %cst = arith.constant dense<0.000000e+00> : vector<32x16xf32>
    %2 = tpu.matmul %0, %1, %cst {dimension_numbers = #tpu.dot_dimension_numbers<[1], [0], [0], [1], [0, 0, 1, 1], [], []>} : vector<32x16xbf16>, vector<16x16xbf16>, vector<32x16xf32> -> vector<32x16xf32>
    %c0_3 = arith.constant 0 : index
    %c0_4 = arith.constant 0 : index
    %3 = vector.load %arg3[%c0_3, %c0_4] : memref<1x16xf32, #tpu.memory_space<vmem>>, vector<1x16xf32>
    %4 = vector.broadcast %3 : vector<1x16xf32> to vector<32x16xf32>
    %5 = arith.addf %2, %4 : vector<32x16xf32>
    %c0_5 = arith.constant 0 : index
    %c0_6 = arith.constant 0 : index
    %6 = vector.load %arg4[%c0_5, %c0_6] : memref<32x16xf32, #tpu.memory_space<vmem>>, vector<32x16xf32>
    tpu.vector_store %arg4[%c0_5, %c0_6], %5 {strides = array<i32>} : memref<32x16xf32, #tpu.memory_space<vmem>>, vector<32x16xf32>,
    return
  }
  func.func @transform_0(%arg0: i32) -> (i32, i32) {
    %c0_i32 = arith.constant 0 : i32
    %c0_i32_0 = arith.constant 0 : i32
    return %arg0, %c0_i32 : i32, i32
  }
  func.func @transform_1(%arg0: i32) -> (i32, i32) {
    %c0_i32 = arith.constant 0 : i32
    %c0_i32_0 = arith.constant 0 : i32
    %c0_i32_1 = arith.constant 0 : i32
    return %c0_i32, %c0_i32_0 : i32, i32
  }
  func.func @transform_2(%arg0: i32) -> (i32, i32) {
    %c0_i32 = arith.constant 0 : i32
    %c0_i32_0 = arith.constant 0 : i32
    %c0_i32_1 = arith.constant 0 : i32
    return %c0_i32, %c0_i32_0 : i32, i32
  }
  func.func @transform_3(%arg0: i32) -> (i32, i32) {
    %c0_i32 = arith.constant 0 : i32
    %c0_i32_0 = arith.constant 0 : i32
    return %arg0, %c0_i32 : i32, i32
  }
}

module attributes {stable_mosaic.version = 11 : i64} {
  func.func @_mixed_conv_res_kernel(%arg0: i32, %arg1: memref<2xi32, #tpu.memory_space<smem>>, %arg2: memref<1x64x400xbf16, #tpu.memory_space<vmem>>, %arg3: memref<1x400x16xbf16, #tpu.memory_space<vmem>>, %arg4: memref<1x1x16xf32, #tpu.memory_space<vmem>>, %arg5: memref<1x64x16xf32, #tpu.memory_space<vmem>>, %arg6: memref<1x64x16xf32, #tpu.memory_space<vmem>>) attributes {dimension_semantics = [#tpu.dimension_semantics<parallel>], iteration_bounds = array<i64: 2>, scalar_prefetch = 1 : i64, scratch_operands = 0 : i64, tpu.core_type = #tpu.core_type<tc>, window_params = [{transform_indices = @transform_0, window_bounds = array<i64: 1, 64, 400>}, {transform_indices = @transform_1, window_bounds = array<i64: 1, 400, 16>}, {transform_indices = @transform_2, window_bounds = array<i64: 1, 1, 16>}, {transform_indices = @transform_3, window_bounds = array<i64: 1, 64, 16>}, {transform_indices = @transform_4, window_bounds = array<i64: 1, 64, 16>}]} {
    %c0 = arith.constant 0 : index
    %c0_0 = arith.constant 0 : index
    %c0_1 = arith.constant 0 : index
    %0 = vector.load %arg2[%c0, %c0_0, %c0_1] : memref<1x64x400xbf16, #tpu.memory_space<vmem>>, vector<1x64x400xbf16>
    %1 = vector.shape_cast %0 : vector<1x64x400xbf16> to vector<64x400xbf16>
    %c0_2 = arith.constant 0 : index
    %c0_3 = arith.constant 0 : index
    %c0_4 = arith.constant 0 : index
    %2 = vector.load %arg3[%c0_2, %c0_3, %c0_4] : memref<1x400x16xbf16, #tpu.memory_space<vmem>>, vector<1x400x16xbf16>
    %3 = vector.shape_cast %2 : vector<1x400x16xbf16> to vector<400x16xbf16>
    %cst = arith.constant dense<0.000000e+00> : vector<64x16xf32>
    %4 = tpu.matmul %1, %3, %cst {dimension_numbers = #tpu.dot_dimension_numbers<[1], [0], [0], [1], [0, 0, 1, 1], [], []>} : vector<64x400xbf16>, vector<400x16xbf16>, vector<64x16xf32> -> vector<64x16xf32>
    %c0_5 = arith.constant 0 : index
    %c0_6 = arith.constant 0 : index
    %c0_7 = arith.constant 0 : index
    %5 = vector.load %arg4[%c0_5, %c0_6, %c0_7] : memref<1x1x16xf32, #tpu.memory_space<vmem>>, vector<1x1x16xf32>
    %6 = vector.shape_cast %5 : vector<1x1x16xf32> to vector<1x16xf32>
    %7 = vector.broadcast %6 : vector<1x16xf32> to vector<64x16xf32>
    %8 = arith.addf %4, %7 : vector<64x16xf32>
    %c0_8 = arith.constant 0 : index
    %c0_9 = arith.constant 0 : index
    %c0_10 = arith.constant 0 : index
    %9 = vector.load %arg5[%c0_8, %c0_9, %c0_10] : memref<1x64x16xf32, #tpu.memory_space<vmem>>, vector<1x64x16xf32>
    %10 = vector.shape_cast %9 : vector<1x64x16xf32> to vector<64x16xf32>
    %11 = arith.addf %8, %10 : vector<64x16xf32>
    %c0_11 = arith.constant 0 : index
    %c0_12 = arith.constant 0 : index
    %c0_13 = arith.constant 0 : index
    %12 = vector.load %arg6[%c0_11, %c0_12, %c0_13] : memref<1x64x16xf32, #tpu.memory_space<vmem>>, vector<1x64x16xf32>
    %13 = vector.shape_cast %12 : vector<1x64x16xf32> to vector<64x16xf32>
    %14 = vector.shape_cast %11 : vector<64x16xf32> to vector<1x64x16xf32>
    tpu.vector_store %arg6[%c0_11, %c0_12, %c0_13], %14 {strides = array<i32>} : memref<1x64x16xf32, #tpu.memory_space<vmem>>, vector<1x64x16xf32>,
    return
  }
  func.func @transform_0(%arg0: i32, %arg1: memref<2xi32, #tpu.memory_space<smem>>) -> (i32, i32, i32) {
    %c0_i32 = arith.constant 0 : i32
    %c0_i32_0 = arith.constant 0 : i32
    %c0_i32_1 = arith.constant 0 : i32
    return %arg0, %c0_i32, %c0_i32_0 : i32, i32, i32
  }
  func.func @transform_1(%arg0: i32, %arg1: memref<2xi32, #tpu.memory_space<smem>>) -> (i32, i32, i32) {
    %0 = arith.index_cast %arg0 : i32 to index
    %1 = memref.load %arg1[%0] : memref<2xi32, #tpu.memory_space<smem>>
    %c0_i32 = arith.constant 0 : i32
    %c0_i32_0 = arith.constant 0 : i32
    %c0_i32_1 = arith.constant 0 : i32
    return %1, %c0_i32, %c0_i32_0 : i32, i32, i32
  }
  func.func @transform_2(%arg0: i32, %arg1: memref<2xi32, #tpu.memory_space<smem>>) -> (i32, i32, i32) {
    %0 = arith.index_cast %arg0 : i32 to index
    %1 = memref.load %arg1[%0] : memref<2xi32, #tpu.memory_space<smem>>
    %c0_i32 = arith.constant 0 : i32
    %c0_i32_0 = arith.constant 0 : i32
    %c0_i32_1 = arith.constant 0 : i32
    return %1, %c0_i32, %c0_i32_0 : i32, i32, i32
  }
  func.func @transform_3(%arg0: i32, %arg1: memref<2xi32, #tpu.memory_space<smem>>) -> (i32, i32, i32) {
    %c0_i32 = arith.constant 0 : i32
    %c0_i32_0 = arith.constant 0 : i32
    %c0_i32_1 = arith.constant 0 : i32
    return %arg0, %c0_i32, %c0_i32_0 : i32, i32, i32
  }
  func.func @transform_4(%arg0: i32, %arg1: memref<2xi32, #tpu.memory_space<smem>>) -> (i32, i32, i32) {
    %c0_i32 = arith.constant 0 : i32
    %c0_i32_0 = arith.constant 0 : i32
    %c0_i32_1 = arith.constant 0 : i32
    return %arg0, %c0_i32, %c0_i32_0 : i32, i32, i32
  }
}

module attributes {stable_mosaic.version = 11 : i64} {
  func.func @_mixed_conv_kernel(%arg0: i32, %arg1: memref<2xi32, #tpu.memory_space<smem>>, %arg2: memref<1x256x400xbf16, #tpu.memory_space<vmem>>, %arg3: memref<1x400x16xbf16, #tpu.memory_space<vmem>>, %arg4: memref<1x1x16xf32, #tpu.memory_space<vmem>>, %arg5: memref<1x256x16xf32, #tpu.memory_space<vmem>>) attributes {dimension_semantics = [#tpu.dimension_semantics<parallel>], iteration_bounds = array<i64: 2>, scalar_prefetch = 1 : i64, scratch_operands = 0 : i64, tpu.core_type = #tpu.core_type<tc>, window_params = [{transform_indices = @transform_0, window_bounds = array<i64: 1, 256, 400>}, {transform_indices = @transform_1, window_bounds = array<i64: 1, 400, 16>}, {transform_indices = @transform_2, window_bounds = array<i64: 1, 1, 16>}, {transform_indices = @transform_3, window_bounds = array<i64: 1, 256, 16>}]} {
    %c0 = arith.constant 0 : index
    %c0_0 = arith.constant 0 : index
    %c0_1 = arith.constant 0 : index
    %0 = vector.load %arg2[%c0, %c0_0, %c0_1] : memref<1x256x400xbf16, #tpu.memory_space<vmem>>, vector<1x256x400xbf16>
    %1 = vector.shape_cast %0 : vector<1x256x400xbf16> to vector<256x400xbf16>
    %c0_2 = arith.constant 0 : index
    %c0_3 = arith.constant 0 : index
    %c0_4 = arith.constant 0 : index
    %2 = vector.load %arg3[%c0_2, %c0_3, %c0_4] : memref<1x400x16xbf16, #tpu.memory_space<vmem>>, vector<1x400x16xbf16>
    %3 = vector.shape_cast %2 : vector<1x400x16xbf16> to vector<400x16xbf16>
    %cst = arith.constant dense<0.000000e+00> : vector<256x16xf32>
    %4 = tpu.matmul %1, %3, %cst {dimension_numbers = #tpu.dot_dimension_numbers<[1], [0], [0], [1], [0, 0, 1, 1], [], []>} : vector<256x400xbf16>, vector<400x16xbf16>, vector<256x16xf32> -> vector<256x16xf32>
    %c0_5 = arith.constant 0 : index
    %c0_6 = arith.constant 0 : index
    %c0_7 = arith.constant 0 : index
    %5 = vector.load %arg4[%c0_5, %c0_6, %c0_7] : memref<1x1x16xf32, #tpu.memory_space<vmem>>, vector<1x1x16xf32>
    %6 = vector.shape_cast %5 : vector<1x1x16xf32> to vector<1x16xf32>
    %7 = vector.broadcast %6 : vector<1x16xf32> to vector<256x16xf32>
    %8 = arith.addf %4, %7 : vector<256x16xf32>
    %c0_8 = arith.constant 0 : index
    %c0_9 = arith.constant 0 : index
    %c0_10 = arith.constant 0 : index
    %9 = vector.load %arg5[%c0_8, %c0_9, %c0_10] : memref<1x256x16xf32, #tpu.memory_space<vmem>>, vector<1x256x16xf32>
    %10 = vector.shape_cast %9 : vector<1x256x16xf32> to vector<256x16xf32>
    %11 = vector.shape_cast %8 : vector<256x16xf32> to vector<1x256x16xf32>
    tpu.vector_store %arg5[%c0_8, %c0_9, %c0_10], %11 {strides = array<i32>} : memref<1x256x16xf32, #tpu.memory_space<vmem>>, vector<1x256x16xf32>,
    return
  }
  func.func @transform_0(%arg0: i32, %arg1: memref<2xi32, #tpu.memory_space<smem>>) -> (i32, i32, i32) {
    %c0_i32 = arith.constant 0 : i32
    %c0_i32_0 = arith.constant 0 : i32
    %c0_i32_1 = arith.constant 0 : i32
    return %arg0, %c0_i32, %c0_i32_0 : i32, i32, i32
  }
  func.func @transform_1(%arg0: i32, %arg1: memref<2xi32, #tpu.memory_space<smem>>) -> (i32, i32, i32) {
    %0 = arith.index_cast %arg0 : i32 to index
    %1 = memref.load %arg1[%0] : memref<2xi32, #tpu.memory_space<smem>>
    %c0_i32 = arith.constant 0 : i32
    %c0_i32_0 = arith.constant 0 : i32
    %c0_i32_1 = arith.constant 0 : i32
    return %1, %c0_i32, %c0_i32_0 : i32, i32, i32
  }
  func.func @transform_2(%arg0: i32, %arg1: memref<2xi32, #tpu.memory_space<smem>>) -> (i32, i32, i32) {
    %0 = arith.index_cast %arg0 : i32 to index
    %1 = memref.load %arg1[%0] : memref<2xi32, #tpu.memory_space<smem>>
    %c0_i32 = arith.constant 0 : i32
    %c0_i32_0 = arith.constant 0 : i32
    %c0_i32_1 = arith.constant 0 : i32
    return %1, %c0_i32, %c0_i32_0 : i32, i32, i32
  }
  func.func @transform_3(%arg0: i32, %arg1: memref<2xi32, #tpu.memory_space<smem>>) -> (i32, i32, i32) {
    %c0_i32 = arith.constant 0 : i32
    %c0_i32_0 = arith.constant 0 : i32
    %c0_i32_1 = arith.constant 0 : i32
    return %arg0, %c0_i32, %c0_i32_0 : i32, i32, i32
  }
}

module attributes {stable_mosaic.version = 11 : i64} {
  func.func @_bn_relu_kernel(%arg0: memref<512x16xf32, #tpu.memory_space<vmem>>, %arg1: memref<1x16xf32, #tpu.memory_space<vmem>>, %arg2: memref<1x16xf32, #tpu.memory_space<vmem>>, %arg3: memref<512x16xbf16, #tpu.memory_space<vmem>>) attributes {dimension_semantics = [], scalar_prefetch = 0 : i64, scratch_operands = 0 : i64, tpu.core_type = #tpu.core_type<tc>} {
    %c0 = arith.constant 0 : index
    %c0_0 = arith.constant 0 : index
    %0 = vector.load %arg0[%c0, %c0_0] : memref<512x16xf32, #tpu.memory_space<vmem>>, vector<512x16xf32>
    %cst = arith.constant dense<0.000000e+00> : vector<16xf32>
    %1 = vector.multi_reduction <add>, %0, %cst [0] : vector<512x16xf32> to vector<16xf32>
    %2 = vector.shape_cast %1 : vector<16xf32> to vector<1x16xf32>
    %cst_1 = arith.constant 5.120000e+02 : f32
    %3 = vector.broadcast %cst_1 : f32 to vector<1x16xf32>
    %4 = arith.divf %2, %3 : vector<1x16xf32>
    %5 = vector.broadcast %4 : vector<1x16xf32> to vector<512x16xf32>
    %6 = arith.subf %0, %5 : vector<512x16xf32>
    %7 = arith.mulf %6, %6 : vector<512x16xf32>
    %cst_2 = arith.constant dense<0.000000e+00> : vector<16xf32>
    %8 = vector.multi_reduction <add>, %7, %cst_2 [0] : vector<512x16xf32> to vector<16xf32>
    %9 = vector.shape_cast %8 : vector<16xf32> to vector<1x16xf32>
    %cst_3 = arith.constant 5.120000e+02 : f32
    %10 = vector.broadcast %cst_3 : f32 to vector<1x16xf32>
    %11 = arith.divf %9, %10 : vector<1x16xf32>
    %cst_4 = arith.constant 9.99999974E-6 : f32
    %12 = vector.broadcast %cst_4 : f32 to vector<1x16xf32>
    %13 = arith.addf %11, %12 : vector<1x16xf32>
    %14 = math.rsqrt %13 : vector<1x16xf32>
    %15 = vector.broadcast %4 : vector<1x16xf32> to vector<512x16xf32>
    %16 = arith.subf %0, %15 : vector<512x16xf32>
    %c0_5 = arith.constant 0 : index
    %c0_6 = arith.constant 0 : index
    %17 = vector.load %arg1[%c0_5, %c0_6] : memref<1x16xf32, #tpu.memory_space<vmem>>, vector<1x16xf32>
    %18 = arith.mulf %14, %17 : vector<1x16xf32>
    %19 = vector.broadcast %18 : vector<1x16xf32> to vector<512x16xf32>
    %20 = arith.mulf %16, %19 : vector<512x16xf32>
    %c0_7 = arith.constant 0 : index
    %c0_8 = arith.constant 0 : index
    %21 = vector.load %arg2[%c0_7, %c0_8] : memref<1x16xf32, #tpu.memory_space<vmem>>, vector<1x16xf32>
    %22 = vector.broadcast %21 : vector<1x16xf32> to vector<512x16xf32>
    %23 = arith.addf %20, %22 : vector<512x16xf32>
    %cst_9 = arith.constant 0.000000e+00 : f32
    %24 = vector.broadcast %cst_9 : f32 to vector<512x16xf32>
    %25 = arith.maximumf %23, %24 : vector<512x16xf32>
    %26 = arith.truncf %25 : vector<512x16xf32> to vector<512x16xbf16>
    %c0_10 = arith.constant 0 : index
    %c0_11 = arith.constant 0 : index
    %27 = vector.load %arg3[%c0_10, %c0_11] : memref<512x16xbf16, #tpu.memory_space<vmem>>, vector<512x16xbf16>
    tpu.vector_store %arg3[%c0_10, %c0_11], %26 {strides = array<i32>} : memref<512x16xbf16, #tpu.memory_space<vmem>>, vector<512x16xbf16>,
    return
  }
}

module attributes {stable_mosaic.version = 11 : i64} {
  func.func @_matmul_bias_kernel(%arg0: i32, %arg1: memref<128x16xbf16, #tpu.memory_space<vmem>>, %arg2: memref<16x16xbf16, #tpu.memory_space<vmem>>, %arg3: memref<1x16xf32, #tpu.memory_space<vmem>>, %arg4: memref<128x16xf32, #tpu.memory_space<vmem>>) attributes {dimension_semantics = [#tpu.dimension_semantics<parallel>], iteration_bounds = array<i64: 1>, scalar_prefetch = 0 : i64, scratch_operands = 0 : i64, tpu.core_type = #tpu.core_type<tc>, window_params = [{transform_indices = @transform_0, window_bounds = array<i64: 128, 16>}, {pipeline_mode = #tpu.pipeline_mode<synchronous>, transform_indices = @transform_1, window_bounds = array<i64: 16, 16>}, {pipeline_mode = #tpu.pipeline_mode<synchronous>, transform_indices = @transform_2, window_bounds = array<i64: 1, 16>}, {transform_indices = @transform_3, window_bounds = array<i64: 128, 16>}]} {
    %c0 = arith.constant 0 : index
    %c0_0 = arith.constant 0 : index
    %0 = vector.load %arg1[%c0, %c0_0] : memref<128x16xbf16, #tpu.memory_space<vmem>>, vector<128x16xbf16>
    %c0_1 = arith.constant 0 : index
    %c0_2 = arith.constant 0 : index
    %1 = vector.load %arg2[%c0_1, %c0_2] : memref<16x16xbf16, #tpu.memory_space<vmem>>, vector<16x16xbf16>
    %cst = arith.constant dense<0.000000e+00> : vector<128x16xf32>
    %2 = tpu.matmul %0, %1, %cst {dimension_numbers = #tpu.dot_dimension_numbers<[1], [0], [0], [1], [0, 0, 1, 1], [], []>} : vector<128x16xbf16>, vector<16x16xbf16>, vector<128x16xf32> -> vector<128x16xf32>
    %c0_3 = arith.constant 0 : index
    %c0_4 = arith.constant 0 : index
    %3 = vector.load %arg3[%c0_3, %c0_4] : memref<1x16xf32, #tpu.memory_space<vmem>>, vector<1x16xf32>
    %4 = vector.broadcast %3 : vector<1x16xf32> to vector<128x16xf32>
    %5 = arith.addf %2, %4 : vector<128x16xf32>
    %c0_5 = arith.constant 0 : index
    %c0_6 = arith.constant 0 : index
    %6 = vector.load %arg4[%c0_5, %c0_6] : memref<128x16xf32, #tpu.memory_space<vmem>>, vector<128x16xf32>
    tpu.vector_store %arg4[%c0_5, %c0_6], %5 {strides = array<i32>} : memref<128x16xf32, #tpu.memory_space<vmem>>, vector<128x16xf32>,
    return
  }
  func.func @transform_0(%arg0: i32) -> (i32, i32) {
    %c0_i32 = arith.constant 0 : i32
    %c0_i32_0 = arith.constant 0 : i32
    return %arg0, %c0_i32 : i32, i32
  }
  func.func @transform_1(%arg0: i32) -> (i32, i32) {
    %c0_i32 = arith.constant 0 : i32
    %c0_i32_0 = arith.constant 0 : i32
    %c0_i32_1 = arith.constant 0 : i32
    return %c0_i32, %c0_i32_0 : i32, i32
  }
  func.func @transform_2(%arg0: i32) -> (i32, i32) {
    %c0_i32 = arith.constant 0 : i32
    %c0_i32_0 = arith.constant 0 : i32
    %c0_i32_1 = arith.constant 0 : i32
    return %c0_i32, %c0_i32_0 : i32, i32
  }
  func.func @transform_3(%arg0: i32) -> (i32, i32) {
    %c0_i32 = arith.constant 0 : i32
    %c0_i32_0 = arith.constant 0 : i32
    return %arg0, %c0_i32 : i32, i32
  }
}

module attributes {stable_mosaic.version = 11 : i64} {
  func.func @_mixed_conv_res_kernel(%arg0: i32, %arg1: memref<2xi32, #tpu.memory_space<smem>>, %arg2: memref<1x256x400xbf16, #tpu.memory_space<vmem>>, %arg3: memref<1x400x16xbf16, #tpu.memory_space<vmem>>, %arg4: memref<1x1x16xf32, #tpu.memory_space<vmem>>, %arg5: memref<1x256x16xf32, #tpu.memory_space<vmem>>, %arg6: memref<1x256x16xf32, #tpu.memory_space<vmem>>) attributes {dimension_semantics = [#tpu.dimension_semantics<parallel>], iteration_bounds = array<i64: 2>, scalar_prefetch = 1 : i64, scratch_operands = 0 : i64, tpu.core_type = #tpu.core_type<tc>, window_params = [{transform_indices = @transform_0, window_bounds = array<i64: 1, 256, 400>}, {transform_indices = @transform_1, window_bounds = array<i64: 1, 400, 16>}, {transform_indices = @transform_2, window_bounds = array<i64: 1, 1, 16>}, {transform_indices = @transform_3, window_bounds = array<i64: 1, 256, 16>}, {transform_indices = @transform_4, window_bounds = array<i64: 1, 256, 16>}]} {
    %c0 = arith.constant 0 : index
    %c0_0 = arith.constant 0 : index
    %c0_1 = arith.constant 0 : index
    %0 = vector.load %arg2[%c0, %c0_0, %c0_1] : memref<1x256x400xbf16, #tpu.memory_space<vmem>>, vector<1x256x400xbf16>
    %1 = vector.shape_cast %0 : vector<1x256x400xbf16> to vector<256x400xbf16>
    %c0_2 = arith.constant 0 : index
    %c0_3 = arith.constant 0 : index
    %c0_4 = arith.constant 0 : index
    %2 = vector.load %arg3[%c0_2, %c0_3, %c0_4] : memref<1x400x16xbf16, #tpu.memory_space<vmem>>, vector<1x400x16xbf16>
    %3 = vector.shape_cast %2 : vector<1x400x16xbf16> to vector<400x16xbf16>
    %cst = arith.constant dense<0.000000e+00> : vector<256x16xf32>
    %4 = tpu.matmul %1, %3, %cst {dimension_numbers = #tpu.dot_dimension_numbers<[1], [0], [0], [1], [0, 0, 1, 1], [], []>} : vector<256x400xbf16>, vector<400x16xbf16>, vector<256x16xf32> -> vector<256x16xf32>
    %c0_5 = arith.constant 0 : index
    %c0_6 = arith.constant 0 : index
    %c0_7 = arith.constant 0 : index
    %5 = vector.load %arg4[%c0_5, %c0_6, %c0_7] : memref<1x1x16xf32, #tpu.memory_space<vmem>>, vector<1x1x16xf32>
    %6 = vector.shape_cast %5 : vector<1x1x16xf32> to vector<1x16xf32>
    %7 = vector.broadcast %6 : vector<1x16xf32> to vector<256x16xf32>
    %8 = arith.addf %4, %7 : vector<256x16xf32>
    %c0_8 = arith.constant 0 : index
    %c0_9 = arith.constant 0 : index
    %c0_10 = arith.constant 0 : index
    %9 = vector.load %arg5[%c0_8, %c0_9, %c0_10] : memref<1x256x16xf32, #tpu.memory_space<vmem>>, vector<1x256x16xf32>
    %10 = vector.shape_cast %9 : vector<1x256x16xf32> to vector<256x16xf32>
    %11 = arith.addf %8, %10 : vector<256x16xf32>
    %c0_11 = arith.constant 0 : index
    %c0_12 = arith.constant 0 : index
    %c0_13 = arith.constant 0 : index
    %12 = vector.load %arg6[%c0_11, %c0_12, %c0_13] : memref<1x256x16xf32, #tpu.memory_space<vmem>>, vector<1x256x16xf32>
    %13 = vector.shape_cast %12 : vector<1x256x16xf32> to vector<256x16xf32>
    %14 = vector.shape_cast %11 : vector<256x16xf32> to vector<1x256x16xf32>
    tpu.vector_store %arg6[%c0_11, %c0_12, %c0_13], %14 {strides = array<i32>} : memref<1x256x16xf32, #tpu.memory_space<vmem>>, vector<1x256x16xf32>,
    return
  }
  func.func @transform_0(%arg0: i32, %arg1: memref<2xi32, #tpu.memory_space<smem>>) -> (i32, i32, i32) {
    %c0_i32 = arith.constant 0 : i32
    %c0_i32_0 = arith.constant 0 : i32
    %c0_i32_1 = arith.constant 0 : i32
    return %arg0, %c0_i32, %c0_i32_0 : i32, i32, i32
  }
  func.func @transform_1(%arg0: i32, %arg1: memref<2xi32, #tpu.memory_space<smem>>) -> (i32, i32, i32) {
    %0 = arith.index_cast %arg0 : i32 to index
    %1 = memref.load %arg1[%0] : memref<2xi32, #tpu.memory_space<smem>>
    %c0_i32 = arith.constant 0 : i32
    %c0_i32_0 = arith.constant 0 : i32
    %c0_i32_1 = arith.constant 0 : i32
    return %1, %c0_i32, %c0_i32_0 : i32, i32, i32
  }
  func.func @transform_2(%arg0: i32, %arg1: memref<2xi32, #tpu.memory_space<smem>>) -> (i32, i32, i32) {
    %0 = arith.index_cast %arg0 : i32 to index
    %1 = memref.load %arg1[%0] : memref<2xi32, #tpu.memory_space<smem>>
    %c0_i32 = arith.constant 0 : i32
    %c0_i32_0 = arith.constant 0 : i32
    %c0_i32_1 = arith.constant 0 : i32
    return %1, %c0_i32, %c0_i32_0 : i32, i32, i32
  }
  func.func @transform_3(%arg0: i32, %arg1: memref<2xi32, #tpu.memory_space<smem>>) -> (i32, i32, i32) {
    %c0_i32 = arith.constant 0 : i32
    %c0_i32_0 = arith.constant 0 : i32
    %c0_i32_1 = arith.constant 0 : i32
    return %arg0, %c0_i32, %c0_i32_0 : i32, i32, i32
  }
  func.func @transform_4(%arg0: i32, %arg1: memref<2xi32, #tpu.memory_space<smem>>) -> (i32, i32, i32) {
    %c0_i32 = arith.constant 0 : i32
    %c0_i32_0 = arith.constant 0 : i32
    %c0_i32_1 = arith.constant 0 : i32
    return %arg0, %c0_i32, %c0_i32_0 : i32, i32, i32
  }
}

module attributes {stable_mosaic.version = 11 : i64} {
  func.func @_matmul_bias_tanh_kernel(%arg0: i32, %arg1: memref<512x144xbf16, #tpu.memory_space<vmem>>, %arg2: memref<144x3xbf16, #tpu.memory_space<vmem>>, %arg3: memref<1x3xf32, #tpu.memory_space<vmem>>, %arg4: memref<512x3xf32, #tpu.memory_space<vmem>>) attributes {dimension_semantics = [#tpu.dimension_semantics<parallel>], iteration_bounds = array<i64: 1>, scalar_prefetch = 0 : i64, scratch_operands = 0 : i64, tpu.core_type = #tpu.core_type<tc>, window_params = [{transform_indices = @transform_0, window_bounds = array<i64: 512, 144>}, {pipeline_mode = #tpu.pipeline_mode<synchronous>, transform_indices = @transform_1, window_bounds = array<i64: 144, 3>}, {pipeline_mode = #tpu.pipeline_mode<synchronous>, transform_indices = @transform_2, window_bounds = array<i64: 1, 3>}, {transform_indices = @transform_3, window_bounds = array<i64: 512, 3>}]} {
    %c0 = arith.constant 0 : index
    %c0_0 = arith.constant 0 : index
    %0 = vector.load %arg1[%c0, %c0_0] : memref<512x144xbf16, #tpu.memory_space<vmem>>, vector<512x144xbf16>
    %c0_1 = arith.constant 0 : index
    %c0_2 = arith.constant 0 : index
    %1 = vector.load %arg2[%c0_1, %c0_2] : memref<144x3xbf16, #tpu.memory_space<vmem>>, vector<144x3xbf16>
    %cst = arith.constant dense<0.000000e+00> : vector<512x3xf32>
    %2 = tpu.matmul %0, %1, %cst {dimension_numbers = #tpu.dot_dimension_numbers<[1], [0], [0], [1], [0, 0, 1, 1], [], []>} : vector<512x144xbf16>, vector<144x3xbf16>, vector<512x3xf32> -> vector<512x3xf32>
    %c0_3 = arith.constant 0 : index
    %c0_4 = arith.constant 0 : index
    %3 = vector.load %arg3[%c0_3, %c0_4] : memref<1x3xf32, #tpu.memory_space<vmem>>, vector<1x3xf32>
    %4 = vector.broadcast %3 : vector<1x3xf32> to vector<512x3xf32>
    %5 = arith.addf %2, %4 : vector<512x3xf32>
    %6 = math.tanh %5 : vector<512x3xf32>
    %c0_5 = arith.constant 0 : index
    %c0_6 = arith.constant 0 : index
    %7 = vector.load %arg4[%c0_5, %c0_6] : memref<512x3xf32, #tpu.memory_space<vmem>>, vector<512x3xf32>
    tpu.vector_store %arg4[%c0_5, %c0_6], %6 {strides = array<i32>} : memref<512x3xf32, #tpu.memory_space<vmem>>, vector<512x3xf32>,
    return
  }
  func.func @transform_0(%arg0: i32) -> (i32, i32) {
    %c0_i32 = arith.constant 0 : i32
    %c0_i32_0 = arith.constant 0 : i32
    return %arg0, %c0_i32 : i32, i32
  }
  func.func @transform_1(%arg0: i32) -> (i32, i32) {
    %c0_i32 = arith.constant 0 : i32
    %c0_i32_0 = arith.constant 0 : i32
    %c0_i32_1 = arith.constant 0 : i32
    return %c0_i32, %c0_i32_0 : i32, i32
  }
  func.func @transform_2(%arg0: i32) -> (i32, i32) {
    %c0_i32 = arith.constant 0 : i32
    %c0_i32_0 = arith.constant 0 : i32
    %c0_i32_1 = arith.constant 0 : i32
    return %c0_i32, %c0_i32_0 : i32, i32
  }
  func.func @transform_3(%arg0: i32) -> (i32, i32) {
    %c0_i32 = arith.constant 0 : i32
    %c0_i32_0 = arith.constant 0 : i32
    return %arg0, %c0_i32 : i32, i32
  }
}

</mosaic_0001>

<llo_original>
// kernel: path_aware_resnet_gen_forward.13
$region0: #{path_aware_resnet_gen_forward.13}
  #allocation0 [shape = 'u32[]', space=smem, size = 0x4, offset = 0x4, fixed_abs, tag = 'smem constant byte address 0x4 - core index']
  #allocation1 [shape = 'u32[72,128]{1,0:T(1,128)}', space=vmem, size = 0x9000, scoped, tag = 'internal scratch']
  %s0 = inlined_call_operand.vmem [shape: bf16[2,32], index: 0, kind: input, shape index: {}]
  %s1 = inlined_call_operand.hbm [shape: bf16[32,256], index: 1, kind: input, shape index: {}]
  %s2 = inlined_call_operand.vmem [shape: f32[1,256], index: 2, kind: input, shape index: {}]
  %s3 = inlined_call_operand.vmem [shape: f32[2,256], index: 3, kind: output, shape index: {}]
  %s4 = sld [smem:[#allocation0]]
  $region26: #{path_aware_resnet_gen_forward.13} parent=0
    _
  %s6 = ssub.s32 1, %s4
  %s7 = scalar_select 0, %s6, %s4
  $region1: #{path_aware_resnet_gen_forward.13} parent=0
    #allocation2 [shape = 'u8[16384]{0}', space=vmem, size = 0x4000, scoped, tag = 'input window, operand 1, single buffered']
    #allocation3 [shape = 's32[1]{0}', space=sflag, size = 0x4, scoped, tag = 'scoped memory for path_aware_resnet_gen_forward.13']
    %8 = vsyncpa [#allocation3], 0
    // Predicated region
    $region2: #{path_aware_resnet_gen_forward.13} parent=1 // pred_check
      _
    $region3: #{path_aware_resnet_gen_forward.13} parent=1 // pred_check_branch
      %10 = sbr.rel (0) target = $region5
    $region4: #{path_aware_resnet_gen_forward.13} parent=1 // pred_region
      _
    $region5: #{path_aware_resnet_gen_forward.13} parent=1 // pred_fallthru
      _
    // Predicated region
    $region6: #{path_aware_resnet_gen_forward.13} parent=1 // pred_check
      _
    $region7: #{path_aware_resnet_gen_forward.13} parent=1 // pred_check_branch
      %12 = sbr.rel (0) target = $region9
    $region8: #{path_aware_resnet_gen_forward.13} parent=1 // pred_region
      %14 = vsyncadd [#allocation3], 0
      %s15 = sshll.u32 %s1, 4
      %s16 = int_to_ptr.hbm [resolvable:$true] %s15
      %s17 = sshll.u32 [#allocation2], 4
      %s18 = int_to_ptr.vmem [resolvable:$true] %s17
      %23 = dma.hbm_to_vmem [thread:$0]  %s16, 512, %s18, [#allocation3], 128, 128, 8
    $region9: #{path_aware_resnet_gen_forward.13} parent=1 // pred_fallthru
      _
    // Predicated region
    $region10: #{path_aware_resnet_gen_forward.13} parent=1 // pred_check
      _
    $region11: #{path_aware_resnet_gen_forward.13} parent=1 // pred_check_branch
      %25 = sbr.rel (0) target = $region13
    $region12: #{path_aware_resnet_gen_forward.13} parent=1 // pred_region
      _
    $region13: #{path_aware_resnet_gen_forward.13} parent=1 // pred_fallthru
      _
    // Predicated region
    $region14: #{path_aware_resnet_gen_forward.13} parent=1 // pred_check
      _
    $region15: #{path_aware_resnet_gen_forward.13} parent=1 // pred_check_branch
      %27 = sbr.rel (0) target = $region17
    $region16: #{path_aware_resnet_gen_forward.13} parent=1 // pred_region
      %29 = dma.done [#allocation3], 512
    $region17: #{path_aware_resnet_gen_forward.13} parent=1 // pred_fallthru
      _
    %v31 = vld [vmem:[%s0] sm:$0x1]
    %v32 = vld [vmem:[#allocation2] sm:$0xff]
    %v33 = vld [vmem:[#allocation2 + $0x8] sm:$0xff]
    %v34 = vld [vmem:[#allocation2 + $0x10] sm:$0xff]
    %v35 = vld [vmem:[#allocation2 + $0x18] sm:$0xff]
    %v36 = vld [vmem:[%s2] sm:$0x3]
    %v38 = vperm.slane %v36, 0
    %v39 = vperm.slane %v36, 1
    %v46 = vunpack.c.l.b16 %v32
    %v47 = vunpack.c.h.b16 %v32
    %v48 = vunpack.c.l.b16 %v33
    %v49 = vunpack.c.h.b16 %v33
    %v50 = vunpack.c.l.b16 %v34
    %v51 = vunpack.c.h.b16 %v34
    %v52 = vunpack.c.l.b16 %v35
    %v53 = vunpack.c.h.b16 %v35
    %v54 = vpack.c.b16 %v48, %v46
    %v55 = vpack.c.b16 %v49, %v47
    %v56 = vpack.c.b16 %v52, %v50
    %v57 = vpack.c.b16 %v53, %v51
    %vm62 = vcmask 261120
    %v64 = vsel %vm62, %v31, 0
    %66 = vmatpush.bf16.msra.mxu0 0
    %67 = vmatpush.bf16.msra.mxu0 0
    %68 = vmatpush.bf16.msra.mxu0 0
    %69 = vmatpush.bf16.msra.mxu0 0
    %70 = vmatpush.bf16.msra.mxu0 0
    %71 = vmatpush.bf16.msra.mxu0 0
    %72 = vmatpush.bf16.msra.mxu0 %v56
    %73 = vmatpush.bf16.msra.mxu0 %v54
    %74 = vmatmul.bf16.gmra.mxu0 %v64
    %v75 = vpop.f32.mrf.mxu0
    %v76 = vadd.f32 %v38, %v75
    %v77 = vpop.f32.mrf.mxu0
    %78 = vdwg.mxu0
    %79 = vmatpush.bf16.msra.mxu0 0
    %80 = vmatpush.bf16.msra.mxu0 0
    %81 = vmatpush.bf16.msra.mxu0 0
    %82 = vmatpush.bf16.msra.mxu0 0
    %83 = vmatpush.bf16.msra.mxu0 0
    %84 = vmatpush.bf16.msra.mxu0 0
    %85 = vmatpush.bf16.msra.mxu0 %v57
    %86 = vmatpush.bf16.msra.mxu0 %v55
    %87 = vmatmul.bf16.gmra.mxu0 %v64
    %v88 = vpop.f32.mrf.mxu0
    %v89 = vadd.f32 %v39, %v88
    %v90 = vpop.f32.mrf.mxu0
    %91 = vdwg.mxu0
    %v94 = vrot.slane %v89, 6
    %vm95 = vcmask 1041408
    %v96 = vsel %vm95, %v76, %v94
    %98 = vst [vmem:[%s3] sm:$0xf] %v96
    // Predicated region
    $region18: #{path_aware_resnet_gen_forward.13} parent=1 // pred_check
      _
    $region19: #{path_aware_resnet_gen_forward.13} parent=1 // pred_check_branch
      %100 = sbr.rel (0) target = $region21
    $region20: #{path_aware_resnet_gen_forward.13} parent=1 // pred_region
      _
    $region21: #{path_aware_resnet_gen_forward.13} parent=1 // pred_fallthru
      _
    // Predicated region
    $region22: #{path_aware_resnet_gen_forward.13} parent=1 // pred_check
      _
    $region23: #{path_aware_resnet_gen_forward.13} parent=1 // pred_check_branch
      %102 = sbr.rel (0) target = $region25
    $region24: #{path_aware_resnet_gen_forward.13} parent=1 // pred_region
      _
    $region25: #{path_aware_resnet_gen_forward.13} parent=1 // pred_fallthru
      _
    %103 = vsyncpa [#allocation3], 1

// kernel: path_aware_resnet_gen_forward.14
$region0: #{path_aware_resnet_gen_forward.14}
  #allocation0 [shape = 'u32[]', space=smem, size = 0x4, offset = 0x4, fixed_abs, tag = 'smem constant byte address 0x4 - core index']
  #allocation1 [shape = 'u32[72,128]{1,0:T(1,128)}', space=vmem, size = 0x9000, scoped, tag = 'internal scratch']
  %s0 = inlined_call_operand.vmem [shape: f32[32,16], index: 0, kind: input, shape index: {}]
  %s1 = inlined_call_operand.vmem [shape: f32[1,16], index: 1, kind: input, shape index: {}]
  %s2 = inlined_call_operand.vmem [shape: f32[1,16], index: 2, kind: input, shape index: {}]
  %s3 = inlined_call_operand.vmem [shape: bf16[32,16], index: 3, kind: output, shape index: {}]
  %s4 = sld [smem:[#allocation0]]
  $region22: #{path_aware_resnet_gen_forward.14} parent=0
    _
  %s6 = ssub.s32 1, %s4
  %s7 = scalar_select 0, %s6, %s4
  // Predicated region
  $region2: #{path_aware_resnet_gen_forward.14} parent=0 // pred_check
    _
  $region3: #{path_aware_resnet_gen_forward.14} parent=0 // pred_check_branch
    %9 = sbr.rel (0) target = $region5
  $region4: #{path_aware_resnet_gen_forward.14} parent=0 // pred_region
    _
  $region5: #{path_aware_resnet_gen_forward.14} parent=0 // pred_fallthru
    _
  // Predicated region
  $region6: #{path_aware_resnet_gen_forward.14} parent=0 // pred_check
    _
  $region7: #{path_aware_resnet_gen_forward.14} parent=0 // pred_check_branch
    %11 = sbr.rel (0) target = $region9
  $region8: #{path_aware_resnet_gen_forward.14} parent=0 // pred_region
    _
  $region9: #{path_aware_resnet_gen_forward.14} parent=0 // pred_fallthru
    _
  // Predicated region
  $region10: #{path_aware_resnet_gen_forward.14} parent=0 // pred_check
    _
  $region11: #{path_aware_resnet_gen_forward.14} parent=0 // pred_check_branch
    %13 = sbr.rel (0) target = $region13
  $region12: #{path_aware_resnet_gen_forward.14} parent=0 // pred_region
    _
  $region13: #{path_aware_resnet_gen_forward.14} parent=0 // pred_fallthru
    _
  %v14 = vld [vmem:[%s0] sm:$0xff]
  %v15 = vld [vmem:[%s0 + $0x8] sm:$0xff]
  %v16 = vld [vmem:[%s0 + $0x10] sm:$0xff]
  %v17 = vld [vmem:[%s0 + $0x18] sm:$0xff]
  %vm18 = vcmask 130048
  %v19 = vsel %vm18, %v14, 0.0
  %v20 = vsel %vm18, %v15, 0.0
  %v21 = vadd.f32 %v19, %v20
  %v22 = vsel %vm18, %v16, 0.0
  %v23 = vadd.f32 %v21, %v22
  %v24 = vsel %vm18, %v17, 0.0
  %v25 = vadd.f32 %v23, %v24
  %v26 = vrot.slane %v25, 4
  %v27 = vadd.f32 %v25, %v26
  %v28 = vrot.slane %v27, 2
  %v29 = vadd.f32 %v27, %v28
  %v30 = vrot.slane %v29, 1
  %v31 = vadd.f32 %v29, %v30
  %v32 = vrcp.pop 32.0
  %v33 = vmul.f32 32.0, %v32
  %v34 = vsub.f32 1.0, %v33
  %v35 = vmul.f32 %v32, %v34
  %v36 = vadd.f32 %v32, %v35
  %vm37 = vweird.f32 %v32
  %v38 = vsel %vm37, %v32, %v36
  %v39 = vmul.f32 %v31, %v38
  %v40 = vsub.f32 %v14, %v39
  %v41 = vsub.f32 %v15, %v39
  %v42 = vsub.f32 %v16, %v39
  %v43 = vsub.f32 %v17, %v39
  %v44 = vmul.f32 %v40, %v40
  %v45 = vmul.f32 %v41, %v41
  %v46 = vmul.f32 %v42, %v42
  %v47 = vmul.f32 %v43, %v43
  %v48 = vsel %vm18, %v44, 0.0
  %v49 = vsel %vm18, %v45, 0.0
  %v50 = vadd.f32 %v48, %v49
  %v51 = vsel %vm18, %v46, 0.0
  %v52 = vadd.f32 %v50, %v51
  %v53 = vsel %vm18, %v47, 0.0
  %v54 = vadd.f32 %v52, %v53
  %v55 = vrot.slane %v54, 4
  %v56 = vadd.f32 %v54, %v55
  %v57 = vrot.slane %v56, 2
  %v58 = vadd.f32 %v56, %v57
  %v59 = vrot.slane %v58, 1
  %v60 = vadd.f32 %v58, %v59
  %v61 = vmul.f32 %v60, %v38
  %v62 = vadd.f32 %v61, 1e-05
  %v63 = vrsqrt.pop %v62
  %v64 = vmul.f32 %v63, %v62
  %v65 = vmul.f32 %v64, %v63
  %v66 = vmul.f32 0.5, %v65
  %v67 = vsub.f32 1.5, %v66
  %v68 = vmul.f32 %v63, %v67
  %vm69 = vweird.f32 %v62
  %vm70 = vweird.f32 %v63
  %vm71 = vmor %vm69, %vm70
  %v72 = vsel %vm71, %v63, %v68
  %v73 = vld [vmem:[%s1] sm:$0x1]
  %v74 = vmul.f32 %v72, %v73
  %v75 = vperm.slane %v74, 0
  %v76 = vmul.f32 %v40, %v75
  %v77 = vmul.f32 %v41, %v75
  %v78 = vmul.f32 %v42, %v75
  %v79 = vmul.f32 %v43, %v75
  %v80 = vld [vmem:[%s2] sm:$0x1]
  %v82 = vperm.slane %v80, 0
  %v84 = vadd.f32 %v76, %v82
  %v85 = vadd.f32 %v77, %v82
  %v86 = vadd.f32 %v78, %v82
  %v87 = vadd.f32 %v79, %v82
  %v88 = vmax.f32 %v84, 0.0
  %v89 = vmax.f32 %v85, 0.0
  %v90 = vmax.f32 %v86, 0.0
  %v91 = vmax.f32 %v87, 0.0
  %v92 = vpack.c.bf16 %v88, %v88
  %v93 = vpack.c.bf16 %v89, %v89
  %v94 = vpack.c.bf16 %v90, %v90
  %v95 = vpack.c.bf16 %v91, %v91
  %vm96 = vcmask 125952
  %97 = vst.msk [vmem:[%s3] sm:$0xf] %vm96, %v92
  %98 = vst.msk [vmem:[%s3 + $0x4] sm:$0xf] %vm96, %v93
  %99 = vst.msk [vmem:[%s3 + $0x8] sm:$0xf] %vm96, %v94
  %100 = vst.msk [vmem:[%s3 + $0xc] sm:$0xf] %vm96, %v95
  // Predicated region
  $region14: #{path_aware_resnet_gen_forward.14} parent=0 // pred_check
    _
  $region15: #{path_aware_resnet_gen_forward.14} parent=0 // pred_check_branch
    %102 = sbr.rel (0) target = $region17
  $region16: #{path_aware_resnet_gen_forward.14} parent=0 // pred_region
    _
  $region17: #{path_aware_resnet_gen_forward.14} parent=0 // pred_fallthru
    _
  // Predicated region
  $region18: #{path_aware_resnet_gen_forward.14} parent=0 // pred_check
    _
  $region19: #{path_aware_resnet_gen_forward.14} parent=0 // pred_check_branch
    %104 = sbr.rel (0) target = $region21
  $region20: #{path_aware_resnet_gen_forward.14} parent=0 // pred_region
    _
  $region21: #{path_aware_resnet_gen_forward.14} parent=0 // pred_fallthru
    _

// kernel: path_aware_resnet_gen_forward.17
$region0: #{path_aware_resnet_gen_forward.17}
  #allocation0 [shape = 'u32[]', space=smem, size = 0x4, offset = 0x4, fixed_abs, tag = 'smem constant byte address 0x4 - core index']
  #allocation1 [shape = 'u32[72,128]{1,0:T(1,128)}', space=vmem, size = 0x9000, scoped, tag = 'internal scratch']
  %s0 = inlined_call_operand.vmem [shape: f32[128,16], index: 0, kind: input, shape index: {}]
  %s1 = inlined_call_operand.vmem [shape: f32[1,16], index: 1, kind: input, shape index: {}]
  %s2 = inlined_call_operand.vmem [shape: f32[1,16], index: 2, kind: input, shape index: {}]
  %s3 = inlined_call_operand.vmem [shape: bf16[128,16], index: 3, kind: output, shape index: {}]
  %s4 = sld [smem:[#allocation0]]
  $region22: #{path_aware_resnet_gen_forward.17} parent=0
    _
  %s6 = ssub.s32 1, %s4
  %s7 = scalar_select 0, %s6, %s4
  // Predicated region
  $region2: #{path_aware_resnet_gen_forward.17} parent=0 // pred_check
    _
  $region3: #{path_aware_resnet_gen_forward.17} parent=0 // pred_check_branch
    %9 = sbr.rel (0) target = $region5
  $region4: #{path_aware_resnet_gen_forward.17} parent=0 // pred_region
    _
  $region5: #{path_aware_resnet_gen_forward.17} parent=0 // pred_fallthru
    _
  // Predicated region
  $region6: #{path_aware_resnet_gen_forward.17} parent=0 // pred_check
    _
  $region7: #{path_aware_resnet_gen_forward.17} parent=0 // pred_check_branch
    %11 = sbr.rel (0) target = $region9
  $region8: #{path_aware_resnet_gen_forward.17} parent=0 // pred_region
    _
  $region9: #{path_aware_resnet_gen_forward.17} parent=0 // pred_fallthru
    _
  // Predicated region
  $region10: #{path_aware_resnet_gen_forward.17} parent=0 // pred_check
    _
  $region11: #{path_aware_resnet_gen_forward.17} parent=0 // pred_check_branch
    %13 = sbr.rel (0) target = $region13
  $region12: #{path_aware_resnet_gen_forward.17} parent=0 // pred_region
    _
  $region13: #{path_aware_resnet_gen_forward.17} parent=0 // pred_fallthru
    _
  %v14 = vld [vmem:[%s0] sm:$0xff]
  %v15 = vld [vmem:[%s0 + $0x8] sm:$0xff]
  %v16 = vld [vmem:[%s0 + $0x10] sm:$0xff]
  %v17 = vld [vmem:[%s0 + $0x18] sm:$0xff]
  %v18 = vld [vmem:[%s0 + $0x20] sm:$0xff]
  %v19 = vld [vmem:[%s0 + $0x28] sm:$0xff]
  %v20 = vld [vmem:[%s0 + $0x30] sm:$0xff]
  %v21 = vld [vmem:[%s0 + $0x38] sm:$0xff]
  %v22 = vld [vmem:[%s0 + $0x40] sm:$0xff]
  %v23 = vld [vmem:[%s0 + $0x48] sm:$0xff]
  %v24 = vld [vmem:[%s0 + $0x50] sm:$0xff]
  %v25 = vld [vmem:[%s0 + $0x58] sm:$0xff]
  %v26 = vld [vmem:[%s0 + $0x60] sm:$0xff]
  %v27 = vld [vmem:[%s0 + $0x68] sm:$0xff]
  %v28 = vld [vmem:[%s0 + $0x70] sm:$0xff]
  %v29 = vld [vmem:[%s0 + $0x78] sm:$0xff]
  %vm30 = vcmask 130048
  %v31 = vsel %vm30, %v14, 0.0
  %v32 = vsel %vm30, %v15, 0.0
  %v33 = vadd.f32 %v31, %v32
  %v34 = vsel %vm30, %v16, 0.0
  %v35 = vadd.f32 %v33, %v34
  %v36 = vsel %vm30, %v17, 0.0
  %v37 = vadd.f32 %v35, %v36
  %v38 = vsel %vm30, %v18, 0.0
  %v39 = vadd.f32 %v37, %v38
  %v40 = vsel %vm30, %v19, 0.0
  %v41 = vadd.f32 %v39, %v40
  %v42 = vsel %vm30, %v20, 0.0
  %v43 = vadd.f32 %v41, %v42
  %v44 = vsel %vm30, %v21, 0.0
  %v45 = vadd.f32 %v43, %v44
  %v46 = vsel %vm30, %v22, 0.0
  %v47 = vadd.f32 %v45, %v46
  %v48 = vsel %vm30, %v23, 0.0
  %v49 = vadd.f32 %v47, %v48
  %v50 = vsel %vm30, %v24, 0.0
  %v51 = vadd.f32 %v49, %v50
  %v52 = vsel %vm30, %v25, 0.0
  %v53 = vadd.f32 %v51, %v52
  %v54 = vsel %vm30, %v26, 0.0
  %v55 = vadd.f32 %v53, %v54
  %v56 = vsel %vm30, %v27, 0.0
  %v57 = vadd.f32 %v55, %v56
  %v58 = vsel %vm30, %v28, 0.0
  %v59 = vadd.f32 %v57, %v58
  %v60 = vsel %vm30, %v29, 0.0
  %v61 = vadd.f32 %v59, %v60
  %v62 = vrot.slane %v61, 4
  %v63 = vadd.f32 %v61, %v62
  %v64 = vrot.slane %v63, 2
  %v65 = vadd.f32 %v63, %v64
  %v66 = vrot.slane %v65, 1
  %v67 = vadd.f32 %v65, %v66
  %v68 = vrcp.pop 128.0
  %v69 = vmul.f32 128.0, %v68
  %v70 = vsub.f32 1.0, %v69
  %v71 = vmul.f32 %v68, %v70
  %v72 = vadd.f32 %v68, %v71
  %vm73 = vweird.f32 %v68
  %v74 = vsel %vm73, %v68, %v72
  %v75 = vmul.f32 %v67, %v74
  %v76 = vsub.f32 %v14, %v75
  %v77 = vsub.f32 %v15, %v75
  %v78 = vsub.f32 %v16, %v75
  %v79 = vsub.f32 %v17, %v75
  %v80 = vsub.f32 %v18, %v75
  %v81 = vsub.f32 %v19, %v75
  %v82 = vsub.f32 %v20, %v75
  %v83 = vsub.f32 %v21, %v75
  %v84 = vsub.f32 %v22, %v75
  %v85 = vsub.f32 %v23, %v75
  %v86 = vsub.f32 %v24, %v75
  %v87 = vsub.f32 %v25, %v75
  %v88 = vsub.f32 %v26, %v75
  %v89 = vsub.f32 %v27, %v75
  %v90 = vsub.f32 %v28, %v75
  %v91 = vsub.f32 %v29, %v75
  %v92 = vmul.f32 %v76, %v76
  %v93 = vmul.f32 %v77, %v77
  %v94 = vmul.f32 %v78, %v78
  %v95 = vmul.f32 %v79, %v79
  %v96 = vmul.f32 %v80, %v80
  %v97 = vmul.f32 %v81, %v81
  %v98 = vmul.f32 %v82, %v82
  %v99 = vmul.f32 %v83, %v83
  %v100 = vmul.f32 %v84, %v84
  %v101 = vmul.f32 %v85, %v85
  %v102 = vmul.f32 %v86, %v86
  %v103 = vmul.f32 %v87, %v87
  %v104 = vmul.f32 %v88, %v88
  %v105 = vmul.f32 %v89, %v89
  %v106 = vmul.f32 %v90, %v90
  %v107 = vmul.f32 %v91, %v91
  %v108 = vsel %vm30, %v92, 0.0
  %v109 = vsel %vm30, %v93, 0.0
  %v110 = vadd.f32 %v108, %v109
  %v111 = vsel %vm30, %v94, 0.0
  %v112 = vadd.f32 %v110, %v111
  %v113 = vsel %vm30, %v95, 0.0
  %v114 = vadd.f32 %v112, %v113
  %v115 = vsel %vm30, %v96, 0.0
  %v116 = vadd.f32 %v114, %v115
  %v117 = vsel %vm30, %v97, 0.0
  %v118 = vadd.f32 %v116, %v117
  %v119 = vsel %vm30, %v98, 0.0
  %v120 = vadd.f32 %v118, %v119
  %v121 = vsel %vm30, %v99, 0.0
  %v122 = vadd.f32 %v120, %v121
  %v123 = vsel %vm30, %v100, 0.0
  %v124 = vadd.f32 %v122, %v123
  %v125 = vsel %vm30, %v101, 0.0
  %v126 = vadd.f32 %v124, %v125
  %v127 = vsel %vm30, %v102, 0.0
  %v128 = vadd.f32 %v126, %v127
  %v129 = vsel %vm30, %v103, 0.0
  %v130 = vadd.f32 %v128, %v129
  %v131 = vsel %vm30, %v104, 0.0
  %v132 = vadd.f32 %v130, %v131
  %v133 = vsel %vm30, %v105, 0.0
  %v134 = vadd.f32 %v132, %v133
  %v135 = vsel %vm30, %v106, 0.0
  %v136 = vadd.f32 %v134, %v135
  %v137 = vsel %vm30, %v107, 0.0
  %v138 = vadd.f32 %v136, %v137
  %v139 = vrot.slane %v138, 4
  %v140 = vadd.f32 %v138, %v139
  %v141 = vrot.slane %v140, 2
  %v142 = vadd.f32 %v140, %v141
  %v143 = vrot.slane %v142, 1
  %v144 = vadd.f32 %v142, %v143
  %v145 = vmul.f32 %v144, %v74
  %v146 = vadd.f32 %v145, 1e-05
  %v147 = vrsqrt.pop %v146
  %v148 = vmul.f32 %v147, %v146
  %v149 = vmul.f32 %v148, %v147
  %v150 = vmul.f32 0.5, %v149
  %v151 = vsub.f32 1.5, %v150
  %v152 = vmul.f32 %v147, %v151
  %vm153 = vweird.f32 %v146
  %vm154 = vweird.f32 %v147
  %vm155 = vmor %vm153, %vm154
  %v156 = vsel %vm155, %v147, %v152
  %v157 = vld [vmem:[%s1] sm:$0x1]
  %v158 = vmul.f32 %v156, %v157
  %v159 = vperm.slane %v158, 0
  %v160 = vmul.f32 %v76, %v159
  %v161 = vmul.f32 %v77, %v159
  %v162 = vmul.f32 %v78, %v159
  %v163 = vmul.f32 %v79, %v159
  %v164 = vmul.f32 %v80, %v159
  %v165 = vmul.f32 %v81, %v159
  %v166 = vmul.f32 %v82, %v159
  %v167 = vmul.f32 %v83, %v159
  %v168 = vmul.f32 %v84, %v159
  %v169 = vmul.f32 %v85, %v159
  %v170 = vmul.f32 %v86, %v159
  %v171 = vmul.f32 %v87, %v159
  %v172 = vmul.f32 %v88, %v159
  %v173 = vmul.f32 %v89, %v159
  %v174 = vmul.f32 %v90, %v159
  %v175 = vmul.f32 %v91, %v159
  %v176 = vld [vmem:[%s2] sm:$0x1]
  %v178 = vperm.slane %v176, 0
  %v180 = vadd.f32 %v160, %v178
  %v181 = vadd.f32 %v161, %v178
  %v182 = vadd.f32 %v162, %v178
  %v183 = vadd.f32 %v163, %v178
  %v184 = vadd.f32 %v164, %v178
  %v185 = vadd.f32 %v165, %v178
  %v186 = vadd.f32 %v166, %v178
  %v187 = vadd.f32 %v167, %v178
  %v188 = vadd.f32 %v168, %v178
  %v189 = vadd.f32 %v169, %v178
  %v190 = vadd.f32 %v170, %v178
  %v191 = vadd.f32 %v171, %v178
  %v192 = vadd.f32 %v172, %v178
  %v193 = vadd.f32 %v173, %v178
  %v194 = vadd.f32 %v174, %v178
  %v195 = vadd.f32 %v175, %v178
  %v196 = vmax.f32 %v180, 0.0
  %v197 = vmax.f32 %v181, 0.0
  %v198 = vmax.f32 %v182, 0.0
  %v199 = vmax.f32 %v183, 0.0
  %v200 = vmax.f32 %v184, 0.0
  %v201 = vmax.f32 %v185, 0.0
  %v202 = vmax.f32 %v186, 0.0
  %v203 = vmax.f32 %v187, 0.0
  %v204 = vmax.f32 %v188, 0.0
  %v205 = vmax.f32 %v189, 0.0
  %v206 = vmax.f32 %v190, 0.0
  %v207 = vmax.f32 %v191, 0.0
  %v208 = vmax.f32 %v192, 0.0
  %v209 = vmax.f32 %v193, 0.0
  %v210 = vmax.f32 %v194, 0.0
  %v211 = vmax.f32 %v195, 0.0
  %v212 = vpack.c.bf16 %v196, %v196
  %v213 = vpack.c.bf16 %v197, %v197
  %v214 = vpack.c.bf16 %v198, %v198
  %v215 = vpack.c.bf16 %v199, %v199
  %v216 = vpack.c.bf16 %v200, %v200
  %v217 = vpack.c.bf16 %v201, %v201
  %v218 = vpack.c.bf16 %v202, %v202
  %v219 = vpack.c.bf16 %v203, %v203
  %v220 = vpack.c.bf16 %v204, %v204
  %v221 = vpack.c.bf16 %v205, %v205
  %v222 = vpack.c.bf16 %v206, %v206
  %v223 = vpack.c.bf16 %v207, %v207
  %v224 = vpack.c.bf16 %v208, %v208
  %v225 = vpack.c.bf16 %v209, %v209
  %v226 = vpack.c.bf16 %v210, %v210
  %v227 = vpack.c.bf16 %v211, %v211
  %vm228 = vcmask 125952
  %229 = vst.msk [vmem:[%s3] sm:$0xf] %vm228, %v212
  %230 = vst.msk [vmem:[%s3 + $0x4] sm:$0xf] %vm228, %v213
  %231 = vst.msk [vmem:[%s3 + $0x8] sm:$0xf] %vm228, %v214
  %232 = vst.msk [vmem:[%s3 + $0xc] sm:$0xf] %vm228, %v215
  %233 = vst.msk [vmem:[%s3 + $0x10] sm:$0xf] %vm228, %v216
  %234 = vst.msk [vmem:[%s3 + $0x14] sm:$0xf] %vm228, %v217
  %235 = vst.msk [vmem:[%s3 + $0x18] sm:$0xf] %vm228, %v218
  %236 = vst.msk [vmem:[%s3 + $0x1c] sm:$0xf] %vm228, %v219
  %237 = vst.msk [vmem:[%s3 + $0x20] sm:$0xf] %vm228, %v220
  %238 = vst.msk [vmem:[%s3 + $0x24] sm:$0xf] %vm228, %v221
  %239 = vst.msk [vmem:[%s3 + $0x28] sm:$0xf] %vm228, %v222
  %240 = vst.msk [vmem:[%s3 + $0x2c] sm:$0xf] %vm228, %v223
  %241 = vst.msk [vmem:[%s3 + $0x30] sm:$0xf] %vm228, %v224
  %242 = vst.msk [vmem:[%s3 + $0x34] sm:$0xf] %vm228, %v225
  %243 = vst.msk [vmem:[%s3 + $0x38] sm:$0xf] %vm228, %v226
  %244 = vst.msk [vmem:[%s3 + $0x3c] sm:$0xf] %vm228, %v227
  // Predicated region
  $region14: #{path_aware_resnet_gen_forward.17} parent=0 // pred_check
    _
  $region15: #{path_aware_resnet_gen_forward.17} parent=0 // pred_check_branch
    %246 = sbr.rel (0) target = $region17
  $region16: #{path_aware_resnet_gen_forward.17} parent=0 // pred_region
    _
  $region17: #{path_aware_resnet_gen_forward.17} parent=0 // pred_fallthru
    _
  // Predicated region
  $region18: #{path_aware_resnet_gen_forward.17} parent=0 // pred_check
    _
  $region19: #{path_aware_resnet_gen_forward.17} parent=0 // pred_check_branch
    %248 = sbr.rel (0) target = $region21
  $region20: #{path_aware_resnet_gen_forward.17} parent=0 // pred_region
    _
  $region21: #{path_aware_resnet_gen_forward.17} parent=0 // pred_fallthru
    _

// kernel: path_aware_resnet_gen_forward.15
$region0: #{path_aware_resnet_gen_forward.15}
  #allocation0 [shape = 'u32[]', space=smem, size = 0x4, offset = 0x4, fixed_abs, tag = 'smem constant byte address 0x4 - core index']
  #allocation1 [shape = 'u32[72,128]{1,0:T(1,128)}', space=vmem, size = 0x9000, scoped, tag = 'internal scratch']
  #allocation2 [shape = 's32[1]{0}', space=sflag, size = 0x4, scoped, tag = 'scoped memory for path_aware_resnet_gen_forward.15']
  #allocation3 [shape = 'u8[512]{0}', space=smem, size = 0x200, scoped, tag = 'prefetched SMEM operand 0']
  %s0 = inlined_call_operand.vmem [shape: s32[2], index: 0, kind: input, shape index: {}]
  %s1 = inlined_call_operand.vmem [shape: bf16[2,64,400], index: 1, kind: input, shape index: {}]
  %s2 = inlined_call_operand.vmem [shape: bf16[3,400,16], index: 2, kind: input, shape index: {}]
  %s3 = inlined_call_operand.vmem [shape: f32[3,1,16], index: 3, kind: input, shape index: {}]
  %s4 = inlined_call_operand.vmem [shape: f32[2,64,16], index: 4, kind: output, shape index: {}]
  %s5 = sld [smem:[#allocation0]]
  $region45: #{path_aware_resnet_gen_forward.15} parent=0
    _
  %s7 = ssub.s32 1, %s5
  %s8 = scalar_select 0, %s7, %s5
  %s10 = sshll.u32 %s0, 4
  %s11 = int_to_ptr.vmem [resolvable:$true] %s10
  %13 = dma.vmem_to_smem %s11, 16, [#allocation3], [#allocation2]
  %15 = dma.done [#allocation2], 16
  %16 = sfence
  loop: start=0, step=1, limit=4
  $region2: #{path_aware_resnet_gen_forward.15} parent=0 // loop_pre_header
    _
  $region3: #{path_aware_resnet_gen_forward.15} parent=0 // loop_header
    %s18 = sphi 0, %s22
    %p19 = scmp.ge.s32.totalorder %s18, 4
    %s28 = sphi 0, %s30
    %s31 = sphi 0, %s28
    %s32 = sphi 0, %s31
    %s48 = sphi 0, %s32
    %s56 = sphi 0, %s58
    %s59 = sphi 0, %s56
    %s60 = sphi 0, %s59
    %s76 = sphi 0, %s60
    %s84 = sphi 0, %s86
    %s87 = sphi 0, %s84
    %s88 = sphi 0, %s87
    %s104 = sphi 0, %s88
    %s110 = sphi 0, %s112
    %s113 = sphi 0, %s110
    %s114 = sphi 0, %s113
    %s130 = sphi 0, %s114
  $region4: #{path_aware_resnet_gen_forward.15} parent=0 // loop_header_branch
    %21 = sbr.rel (%p19) target = $region8
  $region5: #{path_aware_resnet_gen_forward.15} parent=0 // loop_body
    %s23 = ssub.s32 %s18, 1
    %s24 = ssub.s32 %s18, 2
    %s25 = sadd.s32 %s18, 1
    %s26 = ssub.s32 %s18, %s25
    %p27 = scmp.eq.s32.totalorder %s26, 0
    %s29 = sadd.s32 %s28, 1
    %s30 = scalar_select %p27, %s28, %s29
    %p33 = pneg %p27
    %p34 = scmp.eq.s32.totalorder %s18, 1
    %p35 = por %p33, %p34
    %p36 = scmp.ne.s32.totalorder %s28, %s31
    %p37 = scmp.eq.s32.totalorder %s18, 0
    %p38 = por %p36, %p37
    %p39 = scmp.ne.s32.totalorder %s28, %s31
    %p40 = scmp.eq.s32.totalorder %s23, 1
    %p41 = por %p39, %p40
    %p42 = scmp.ne.s32.totalorder %s31, %s32
    %p43 = scmp.eq.s32.totalorder %s23, 0
    %p44 = por %p42, %p43
    %p45 = scmp.ne.s32.totalorder %s31, %s32
    %p46 = scmp.eq.s32.totalorder %s24, 1
    %p47 = por %p45, %p46
    %p49 = scmp.ne.s32.totalorder %s32, %s48
    %p50 = scmp.eq.s32.totalorder %s24, 0
    %p51 = por %p49, %p50
    %s52 = sld [smem:[#allocation3 + %s18]]
    %s53 = sld [smem:[#allocation3 + %s25]]
    %s54 = ssub.s32 %s52, %s53
    %p55 = scmp.eq.s32.totalorder %s54, 0
    %s57 = sadd.s32 %s56, 1
    %s58 = scalar_select %p55, %s56, %s57
    %p61 = pneg %p55
    %p62 = scmp.eq.s32.totalorder %s18, 1
    %p63 = por %p61, %p62
    %p64 = scmp.ne.s32.totalorder %s56, %s59
    %p65 = scmp.eq.s32.totalorder %s18, 0
    %p66 = por %p64, %p65
    %p67 = scmp.ne.s32.totalorder %s56, %s59
    %p68 = scmp.eq.s32.totalorder %s23, 1
    %p69 = por %p67, %p68
    %p70 = scmp.ne.s32.totalorder %s59, %s60
    %p71 = scmp.eq.s32.totalorder %s23, 0
    %p72 = por %p70, %p71
    %p73 = scmp.ne.s32.totalorder %s59, %s60
    %p74 = scmp.eq.s32.totalorder %s24, 1
    %p75 = por %p73, %p74
    %p77 = scmp.ne.s32.totalorder %s60, %s76
    %p78 = scmp.eq.s32.totalorder %s24, 0
    %p79 = por %p77, %p78
    %s80 = sld [smem:[#allocation3 + %s18]]
    %s81 = sld [smem:[#allocation3 + %s25]]
    %s82 = ssub.s32 %s80, %s81
    %p83 = scmp.eq.s32.totalorder %s82, 0
    %s85 = sadd.s32 %s84, 1
    %s86 = scalar_select %p83, %s84, %s85
    %p89 = pneg %p83
    %p90 = scmp.eq.s32.totalorder %s18, 1
    %p91 = por %p89, %p90
    %p92 = scmp.ne.s32.totalorder %s84, %s87
    %p93 = scmp.eq.s32.totalorder %s18, 0
    %p94 = por %p92, %p93
    %p95 = scmp.ne.s32.totalorder %s84, %s87
    %p96 = scmp.eq.s32.totalorder %s23, 1
    %p97 = por %p95, %p96
    %p98 = scmp.ne.s32.totalorder %s87, %s88
    %p99 = scmp.eq.s32.totalorder %s23, 0
    %p100 = por %p98, %p99
    %p101 = scmp.ne.s32.totalorder %s87, %s88
    %p102 = scmp.eq.s32.totalorder %s24, 1
    %p103 = por %p101, %p102
    %p105 = scmp.ne.s32.totalorder %s88, %s104
    %p106 = scmp.eq.s32.totalorder %s24, 0
    %p107 = por %p105, %p106
    %s108 = ssub.s32 %s18, %s25
    %p109 = scmp.eq.s32.totalorder %s108, 0
    %s111 = sadd.s32 %s110, 1
    %s112 = scalar_select %p109, %s110, %s111
    %p115 = pneg %p109
    %p116 = scmp.eq.s32.totalorder %s18, 1
    %p117 = por %p115, %p116
    %p118 = scmp.ne.s32.totalorder %s110, %s113
    %p119 = scmp.eq.s32.totalorder %s18, 0
    %p120 = por %p118, %p119
    %p121 = scmp.ne.s32.totalorder %s110, %s113
    %p122 = scmp.eq.s32.totalorder %s23, 1
    %p123 = por %p121, %p122
    %p124 = scmp.ne.s32.totalorder %s113, %s114
    %p125 = scmp.eq.s32.totalorder %s23, 0
    %p126 = por %p124, %p125
    %p127 = scmp.ne.s32.totalorder %s113, %s114
    %p128 = scmp.eq.s32.totalorder %s24, 1
    %p129 = por %p127, %p128
    %p131 = scmp.ne.s32.totalorder %s114, %s130
    %p132 = scmp.eq.s32.totalorder %s24, 0
    %p133 = por %p131, %p132
    %p134 = scmp.le.s32.totalorder 1, %s18
    %p135 = scmp.lt.s32.totalorder %s18, 3
    %p136 = pnand %p134, %p135
    %p137 = pneg %p136
    // Predicated region
    $region9: #{path_aware_resnet_gen_forward.15} parent=5 // pred_check
      _
    $region10: #{path_aware_resnet_gen_forward.15} parent=5 // pred_check_branch
      %139 = sbr.rel (%p136) target = $region12
    $region11: #{path_aware_resnet_gen_forward.15} parent=5 // pred_region
      %s140 = ssub.s32 %s18, 1
    $region12: #{path_aware_resnet_gen_forward.15} parent=5 // pred_fallthru
      _
    %p141 = scmp.lt.s32.totalorder %s18, 2
    // Predicated region
    $region13: #{path_aware_resnet_gen_forward.15} parent=5 // pred_check
      %p142 = pneg %p141
    $region14: #{path_aware_resnet_gen_forward.15} parent=5 // pred_check_branch
      %144 = sbr.rel (%p142) target = $region16
    $region15: #{path_aware_resnet_gen_forward.15} parent=5 // pred_region
      // Predicated region
      $region17: #{path_aware_resnet_gen_forward.15} parent=15 // pred_check
        %p145 = pneg %p38
      $region18: #{path_aware_resnet_gen_forward.15} parent=15 // pred_check_branch
        %147 = sbr.rel (%p145) target = $region20
      $region19: #{path_aware_resnet_gen_forward.15} parent=15 // pred_region
        %p148 = scmp.lt.s32.totalorder %s18, 1
        %s149 = scalar_select %p148, %s18, 1
        %s150 = smul.addr %s149, 32
        %s151 = smul.addr %s150, 4
        %s152 = scalar_lea.vmem %s1, %s151
      $region20: #{path_aware_resnet_gen_forward.15} parent=15 // pred_fallthru
        _
      // Predicated region
      $region21: #{path_aware_resnet_gen_forward.15} parent=15 // pred_check
        %p153 = pneg %p66
      $region22: #{path_aware_resnet_gen_forward.15} parent=15 // pred_check_branch
        %155 = sbr.rel (%p153) target = $region24
      $region23: #{path_aware_resnet_gen_forward.15} parent=15 // pred_region
        %s156 = sld [smem:[#allocation3 + %s18]]
        %p157 = scmp.lt.s32.totalorder %s156, 2
        %s158 = scalar_select %p157, %s156, 2
        %s159 = smul.addr %s158, 50
        %s160 = smul.addr %s159, 4
        %s161 = scalar_lea.vmem %s2, %s160
        %s162 = sld [smem:[#allocation3 + %s18]]
      $region24: #{path_aware_resnet_gen_forward.15} parent=15 // pred_fallthru
        _
      // Predicated region
      $region25: #{path_aware_resnet_gen_forward.15} parent=15 // pred_check
        %p163 = pneg %p94
      $region26: #{path_aware_resnet_gen_forward.15} parent=15 // pred_check_branch
        %165 = sbr.rel (%p163) target = $region28
      $region27: #{path_aware_resnet_gen_forward.15} parent=15 // pred_region
        %s166 = sld [smem:[#allocation3 + %s18]]
        %p167 = scmp.lt.s32.totalorder %s166, 2
        %s168 = scalar_select %p167, %s166, 2
        %s169 = scalar_lea.vmem %s3, %s168
        %s170 = sld [smem:[#allocation3 + %s18]]
      $region28: #{path_aware_resnet_gen_forward.15} parent=15 // pred_fallthru
        _
    $region16: #{path_aware_resnet_gen_forward.15} parent=5 // pred_fallthru
      _
    %p171 = scmp.le.s32.totalorder 1, %s18
    %p172 = scmp.lt.s32.totalorder %s18, 3
    %p173 = pnand %p171, %p172
    %p174 = pneg %p173
    // Predicated region
    $region29: #{path_aware_resnet_gen_forward.15} parent=5 // pred_check
      _
    $region30: #{path_aware_resnet_gen_forward.15} parent=5 // pred_check_branch
      %176 = sbr.rel (%p173) target = $region32
    $region31: #{path_aware_resnet_gen_forward.15} parent=5 // pred_region
      %s177 = ssub.s32 %s18, 1
      %p178 = scmp.lt.s32.totalorder %s23, 1
      %s179 = scalar_select %p178, %s23, 1
      %s180 = smul.addr %s179, 32
      %s181 = smul.addr %s180, 4
      %s182 = scalar_lea.vmem %s1, %s181
      %p183 = pneg %p44
      %p184 = pneg %p41
      %s185 = sld [smem:[#allocation3 + %s23]]
      %p186 = scmp.lt.s32.totalorder %s185, 2
      %s187 = scalar_select %p186, %s185, 2
      %s188 = smul.addr %s187, 50
      %s189 = smul.addr %s188, 4
      %s190 = scalar_lea.vmem %s2, %s189
      %p191 = pneg %p72
      %p192 = pneg %p69
      %s193 = sld [smem:[#allocation3 + %s23]]
      %p194 = scmp.lt.s32.totalorder %s193, 2
      %s195 = scalar_select %p194, %s193, 2
      %s196 = scalar_lea.vmem %s3, %s195
      %p197 = pneg %p100
      %p198 = pneg %p97
      %p199 = pneg %p126
      %p200 = pneg %p123
      %p201 = scmp.lt.s32.totalorder %s23, 1
      %s202 = scalar_select %p201, %s23, 1
      %s203 = smul.addr %s202, 8
      %s204 = smul.addr %s203, 8
      %s205 = scalar_lea.vmem %s4, %s204
      %p206 = scmp.lt.s32.totalorder %s23, 1
      %s207 = scalar_select %p206, %s23, 1
      %s208 = smul.addr %s207, 32
      %s209 = smul.addr %s208, 4
      %s210 = scalar_lea.vmem %s1, %s209
      %s211 = sld [smem:[#allocation3 + %s23]]
      %p212 = scmp.lt.s32.totalorder %s211, 2
      %s213 = scalar_select %p212, %s211, 2
      %s214 = smul.addr %s213, 50
      %s215 = smul.addr %s214, 4
      %s216 = scalar_lea.vmem %s2, %s215
      %s217 = sld [smem:[#allocation3 + %s23]]
      %s218 = sld [smem:[#allocation3 + %s23]]
      %p219 = scmp.lt.s32.totalorder %s218, 2
      %s220 = scalar_select %p219, %s218, 2
      %s221 = scalar_lea.vmem %s3, %s220
      %s222 = sld [smem:[#allocation3 + %s23]]
      %p223 = scmp.lt.s32.totalorder %s23, 1
      %s224 = scalar_select %p223, %s23, 1
      %s225 = smul.addr %s224, 8
      %s226 = smul.addr %s225, 8
      %s227 = scalar_lea.vmem %s4, %s226
      %v229 = vld [vmem:[%s210] sm:$0xff]
      %v230 = vld [vmem:[%s210 + $0x8] sm:$0xff]
      %v231 = vld [vmem:[%s210 + $0x10] sm:$0xff]
      %v232 = vld [vmem:[%s210 + $0x18] sm:$0xff]
      %v233 = vld [vmem:[%s210 + $0x20] sm:$0xff]
      %v234 = vld [vmem:[%s210 + $0x28] sm:$0xff]
      %v235 = vld [vmem:[%s210 + $0x30] sm:$0xff]
      %v236 = vld [vmem:[%s210 + $0x38] sm:$0xff]
      %v237 = vld [vmem:[%s210 + $0x40] sm:$0xff]
      %v238 = vld [vmem:[%s210 + $0x48] sm:$0xff]
      %v239 = vld [vmem:[%s210 + $0x50] sm:$0xff]
      %v240 = vld [vmem:[%s210 + $0x58] sm:$0xff]
      %v241 = vld [vmem:[%s210 + $0x60] sm:$0xff]
      %v242 = vld [vmem:[%s210 + $0x68] sm:$0xff]
      %v243 = vld [vmem:[%s210 + $0x70] sm:$0xff]
      %v244 = vld [vmem:[%s210 + $0x78] sm:$0xff]
      %v245 = vld [vmem:[%s216] sm:$0xf]
      %v246 = vld [vmem:[%s216 + $0x4] sm:$0xf]
      %v247 = vld [vmem:[%s216 + $0x8] sm:$0xf]
      %v248 = vld [vmem:[%s216 + $0xc] sm:$0xf]
      %v249 = vld [vmem:[%s216 + $0x10] sm:$0xf]
      %v250 = vld [vmem:[%s216 + $0x14] sm:$0xf]
      %v251 = vld [vmem:[%s216 + $0x18] sm:$0xf]
      %v252 = vld [vmem:[%s216 + $0x1c] sm:$0xf]
      %v253 = vld [vmem:[%s216 + $0x20] sm:$0xf]
      %v254 = vld [vmem:[%s216 + $0x24] sm:$0xf]
      %v255 = vld [vmem:[%s216 + $0x28] sm:$0xf]
      %v256 = vld [vmem:[%s216 + $0x2c] sm:$0xf]
      %v257 = vld [vmem:[%s216 + $0x30] sm:$0xf]
      %v258 = vld [vmem:[%s216 + $0x34] sm:$0xf]
      %v259 = vld [vmem:[%s216 + $0x38] sm:$0xf]
      %v260 = vld [vmem:[%s216 + $0x3c] sm:$0xf]
      %v261 = vld [vmem:[%s216 + $0x40] sm:$0xf]
      %v262 = vld [vmem:[%s216 + $0x44] sm:$0xf]
      %v263 = vld [vmem:[%s216 + $0x48] sm:$0xf]
      %v264 = vld [vmem:[%s216 + $0x4c] sm:$0xf]
      %v265 = vld [vmem:[%s216 + $0x50] sm:$0xf]
      %v266 = vld [vmem:[%s216 + $0x54] sm:$0xf]
      %v267 = vld [vmem:[%s216 + $0x58] sm:$0xf]
      %v268 = vld [vmem:[%s216 + $0x5c] sm:$0xf]
      %v269 = vld [vmem:[%s216 + $0x60] sm:$0xf]
      %v270 = vld [vmem:[%s216 + $0x64] sm:$0xf]
      %v271 = vld [vmem:[%s216 + $0x68] sm:$0xf]
      %v272 = vld [vmem:[%s216 + $0x6c] sm:$0xf]
      %v273 = vld [vmem:[%s216 + $0x70] sm:$0xf]
      %v274 = vld [vmem:[%s216 + $0x74] sm:$0xf]
      %v275 = vld [vmem:[%s216 + $0x78] sm:$0xf]
      %v276 = vld [vmem:[%s216 + $0x7c] sm:$0xf]
      %v277 = vld [vmem:[%s216 + $0x80] sm:$0xf]
      %v278 = vld [vmem:[%s216 + $0x84] sm:$0xf]
      %v279 = vld [vmem:[%s216 + $0x88] sm:$0xf]
      %v280 = vld [vmem:[%s216 + $0x8c] sm:$0xf]
      %v281 = vld [vmem:[%s216 + $0x90] sm:$0xf]
      %v282 = vld [vmem:[%s216 + $0x94] sm:$0xf]
      %v283 = vld [vmem:[%s216 + $0x98] sm:$0xf]
      %v284 = vld [vmem:[%s216 + $0x9c] sm:$0xf]
      %v285 = vld [vmem:[%s216 + $0xa0] sm:$0xf]
      %v286 = vld [vmem:[%s216 + $0xa4] sm:$0xf]
      %v287 = vld [vmem:[%s216 + $0xa8] sm:$0xf]
      %v288 = vld [vmem:[%s216 + $0xac] sm:$0xf]
      %v289 = vld [vmem:[%s216 + $0xb0] sm:$0xf]
      %v290 = vld [vmem:[%s216 + $0xb4] sm:$0xf]
      %v291 = vld [vmem:[%s216 + $0xb8] sm:$0xf]
      %v292 = vld [vmem:[%s216 + $0xbc] sm:$0xf]
      %v293 = vld [vmem:[%s216 + $0xc0] sm:$0xf]
      %v294 = vld [vmem:[%s216 + $0xc4] sm:$0xf]
      %v295 = vld [vmem:[%s221] sm:$0x1]
      %v297 = vperm.slane %v295, 0
      %v315 = vunpack.c.l.b16 %v229
      %v316 = vunpack.c.h.b16 %v229
      %v317 = vunpack.c.l.b16 %v230
      %v318 = vunpack.c.h.b16 %v230
      %v319 = vunpack.c.l.b16 %v231
      %v320 = vunpack.c.h.b16 %v231
      %v321 = vunpack.c.l.b16 %v232
      %v322 = vunpack.c.h.b16 %v232
      %v323 = vunpack.c.l.b16 %v233
      %v324 = vunpack.c.h.b16 %v233
      %v325 = vunpack.c.l.b16 %v234
      %v326 = vunpack.c.h.b16 %v234
      %v327 = vunpack.c.l.b16 %v235
      %v328 = vunpack.c.h.b16 %v235
      %v329 = vunpack.c.l.b16 %v236
      %v330 = vunpack.c.h.b16 %v236
      %v331 = vunpack.c.l.b16 %v237
      %v332 = vunpack.c.h.b16 %v237
      %v333 = vunpack.c.l.b16 %v238
      %v334 = vunpack.c.h.b16 %v238
      %v335 = vunpack.c.l.b16 %v239
      %v336 = vunpack.c.h.b16 %v239
      %v337 = vunpack.c.l.b16 %v240
      %v338 = vunpack.c.h.b16 %v240
      %v339 = vunpack.c.l.b16 %v241
      %v340 = vunpack.c.h.b16 %v241
      %v341 = vunpack.c.l.b16 %v242
      %v342 = vunpack.c.h.b16 %v242
      %v343 = vunpack.c.l.b16 %v243
      %v344 = vunpack.c.h.b16 %v243
      %v345 = vunpack.c.l.b16 %v244
      %v346 = vunpack.c.h.b16 %v244
      %v347 = vpack.c.b16 %v319, %v315
      %v348 = vpack.c.b16 %v320, %v316
      %v349 = vpack.c.b16 %v321, %v317
      %v350 = vpack.c.b16 %v322, %v318
      %v351 = vpack.c.b16 %v327, %v323
      %v352 = vpack.c.b16 %v328, %v324
      %v353 = vpack.c.b16 %v329, %v325
      %v354 = vpack.c.b16 %v330, %v326
      %v355 = vpack.c.b16 %v335, %v331
      %v356 = vpack.c.b16 %v336, %v332
      %v357 = vpack.c.b16 %v337, %v333
      %v358 = vpack.c.b16 %v338, %v334
      %v359 = vpack.c.b16 %v343, %v339
      %v360 = vpack.c.b16 %v344, %v340
      %v361 = vpack.c.b16 %v345, %v341
      %v362 = vpack.c.b16 %v346, %v342
      %v425 = vunpack.c.l.b16 %v245
      %v426 = vunpack.c.l.b16 %v246
      %v427 = vunpack.c.l.b16 %v247
      %v428 = vunpack.c.l.b16 %v248
      %v429 = vunpack.c.l.b16 %v249
      %v430 = vunpack.c.l.b16 %v250
      %v431 = vunpack.c.l.b16 %v251
      %v432 = vunpack.c.l.b16 %v252
      %v433 = vunpack.c.l.b16 %v253
      %v434 = vunpack.c.l.b16 %v254
      %v435 = vunpack.c.l.b16 %v255
      %v436 = vunpack.c.l.b16 %v256
      %v437 = vunpack.c.l.b16 %v257
      %v438 = vunpack.c.l.b16 %v258
      %v439 = vunpack.c.l.b16 %v259
      %v440 = vunpack.c.l.b16 %v260
      %v441 = vunpack.c.l.b16 %v261
      %v442 = vunpack.c.l.b16 %v262
      %v443 = vunpack.c.l.b16 %v263
      %v444 = vunpack.c.l.b16 %v264
      %v445 = vunpack.c.l.b16 %v265
      %v446 = vunpack.c.l.b16 %v266
      %v447 = vunpack.c.l.b16 %v267
      %v448 = vunpack.c.l.b16 %v268
      %v449 = vunpack.c.l.b16 %v269
      %v450 = vunpack.c.l.b16 %v270
      %v451 = vunpack.c.l.b16 %v271
      %v452 = vunpack.c.l.b16 %v272
      %v453 = vunpack.c.l.b16 %v273
      %v454 = vunpack.c.l.b16 %v274
      %v455 = vunpack.c.l.b16 %v275
      %v456 = vunpack.c.l.b16 %v276
      %v457 = vunpack.c.l.b16 %v277
      %v458 = vunpack.c.l.b16 %v278
      %v459 = vunpack.c.l.b16 %v279
      %v460 = vunpack.c.l.b16 %v280
      %v461 = vunpack.c.l.b16 %v281
      %v462 = vunpack.c.l.b16 %v282
      %v463 = vunpack.c.l.b16 %v283
      %v464 = vunpack.c.l.b16 %v284
      %v465 = vunpack.c.l.b16 %v285
      %v466 = vunpack.c.l.b16 %v286
      %v467 = vunpack.c.l.b16 %v287
      %v468 = vunpack.c.l.b16 %v288
      %v469 = vunpack.c.l.b16 %v289
      %v470 = vunpack.c.l.b16 %v290
      %v471 = vunpack.c.l.b16 %v291
      %v472 = vunpack.c.l.b16 %v292
      %v473 = vunpack.c.l.b16 %v293
      %v474 = vunpack.c.l.b16 %v294
      %v475 = vpack.c.b16 %v426, %v425
      %v476 = vpack.c.b16 %v428, %v427
      %v477 = vpack.c.b16 %v430, %v429
      %v478 = vpack.c.b16 %v432, %v431
      %v479 = vpack.c.b16 %v434, %v433
      %v480 = vpack.c.b16 %v436, %v435
      %v481 = vpack.c.b16 %v438, %v437
      %v482 = vpack.c.b16 %v440, %v439
      %v483 = vpack.c.b16 %v442, %v441
      %v484 = vpack.c.b16 %v444, %v443
      %v485 = vpack.c.b16 %v446, %v445
      %v486 = vpack.c.b16 %v448, %v447
      %v487 = vpack.c.b16 %v450, %v449
      %v488 = vpack.c.b16 %v452, %v451
      %v489 = vpack.c.b16 %v454, %v453
      %v490 = vpack.c.b16 %v456, %v455
      %v491 = vpack.c.b16 %v458, %v457
      %v492 = vpack.c.b16 %v460, %v459
      %v493 = vpack.c.b16 %v462, %v461
      %v494 = vpack.c.b16 %v464, %v463
      %v495 = vpack.c.b16 %v466, %v465
      %v496 = vpack.c.b16 %v468, %v467
      %v497 = vpack.c.b16 %v470, %v469
      %v498 = vpack.c.b16 %v472, %v471
      %v499 = vpack.c.b16 %v474, %v473
      %vm525 = vcmask 130048
      %v527 = vsel %vm525, %v350, 0
      %v530 = vsel %vm525, %v354, 0
      %v533 = vsel %vm525, %v358, 0
      %v536 = vsel %vm525, %v362, 0
      %538 = vmatpush.bf16.msra.mxu0 %v482
      %539 = vmatpush.bf16.msra.mxu0 %v481
      %540 = vmatpush.bf16.msra.mxu0 %v480
      %541 = vmatpush.bf16.msra.mxu0 %v479
      %542 = vmatpush.bf16.msra.mxu0 %v478
      %543 = vmatpush.bf16.msra.mxu0 %v477
      %544 = vmatpush.bf16.msra.mxu0 %v476
      %545 = vmatpush.bf16.msra.mxu0 %v475
      %546 = vmatmul.bf16.gmra.mxu0 %v347
      %v547 = vpop.f32.mrf.mxu0
      %v548 = vadd.f32 %v297, %v547
      %v549 = vpop.f32.mrf.mxu0
      %v550 = vadd.f32 %v297, %v549
      %551 = vmatmul.bf16.gmra.mxu0 %v351
      %v552 = vpop.f32.mrf.mxu0
      %v553 = vadd.f32 %v297, %v552
      %v554 = vpop.f32.mrf.mxu0
      %v555 = vadd.f32 %v297, %v554
      %556 = vmatmul.bf16.gmra.mxu0 %v355
      %v557 = vpop.f32.mrf.mxu0
      %v558 = vadd.f32 %v297, %v557
      %v559 = vpop.f32.mrf.mxu0
      %v560 = vadd.f32 %v297, %v559
      %561 = vmatmul.bf16.gmra.mxu0 %v359
      %v562 = vpop.f32.mrf.mxu0
      %v563 = vadd.f32 %v297, %v562
      %v564 = vpop.f32.mrf.mxu0
      %v565 = vadd.f32 %v297, %v564
      %566 = vdwg.mxu0
      %567 = vmatpush.bf16.msra.mxu0 %v490
      %568 = vmatpush.bf16.msra.mxu0 %v489
      %569 = vmatpush.bf16.msra.mxu0 %v488
      %570 = vmatpush.bf16.msra.mxu0 %v487
      %571 = vmatpush.bf16.msra.mxu0 %v486
      %572 = vmatpush.bf16.msra.mxu0 %v485
      %573 = vmatpush.bf16.msra.mxu0 %v484
      %574 = vmatpush.bf16.msra.mxu0 %v483
      %575 = vmatmul.bf16.gmra.mxu0 %v348
      %v576 = vpop.f32.mrf.mxu0
      %v577 = vadd.f32 %v548, %v576
      %v578 = vpop.f32.mrf.mxu0
      %v579 = vadd.f32 %v550, %v578
      %580 = vmatmul.bf16.gmra.mxu0 %v352
      %v581 = vpop.f32.mrf.mxu0
      %v582 = vadd.f32 %v553, %v581
      %v583 = vpop.f32.mrf.mxu0
      %v584 = vadd.f32 %v555, %v583
      %585 = vmatmul.bf16.gmra.mxu0 %v356
      %v586 = vpop.f32.mrf.mxu0
      %v587 = vadd.f32 %v558, %v586
      %v588 = vpop.f32.mrf.mxu0
      %v589 = vadd.f32 %v560, %v588
      %590 = vmatmul.bf16.gmra.mxu0 %v360
      %v591 = vpop.f32.mrf.mxu0
      %v592 = vadd.f32 %v563, %v591
      %v593 = vpop.f32.mrf.mxu0
      %v594 = vadd.f32 %v565, %v593
      %595 = vdwg.mxu0
      %596 = vmatpush.bf16.msra.mxu0 %v498
      %597 = vmatpush.bf16.msra.mxu0 %v497
      %598 = vmatpush.bf16.msra.mxu0 %v496
      %599 = vmatpush.bf16.msra.mxu0 %v495
      %600 = vmatpush.bf16.msra.mxu0 %v494
      %601 = vmatpush.bf16.msra.mxu0 %v493
      %602 = vmatpush.bf16.msra.mxu0 %v492
      %603 = vmatpush.bf16.msra.mxu0 %v491
      %604 = vmatmul.bf16.gmra.mxu0 %v349
      %v605 = vpop.f32.mrf.mxu0
      %v606 = vadd.f32 %v577, %v605
      %v607 = vpop.f32.mrf.mxu0
      %v608 = vadd.f32 %v579, %v607
      %609 = vmatmul.bf16.gmra.mxu0 %v353
      %v610 = vpop.f32.mrf.mxu0
      %v611 = vadd.f32 %v582, %v610
      %v612 = vpop.f32.mrf.mxu0
      %v613 = vadd.f32 %v584, %v612
      %614 = vmatmul.bf16.gmra.mxu0 %v357
      %v615 = vpop.f32.mrf.mxu0
      %v616 = vadd.f32 %v587, %v615
      %v617 = vpop.f32.mrf.mxu0
      %v618 = vadd.f32 %v589, %v617
      %619 = vmatmul.bf16.gmra.mxu0 %v361
      %v620 = vpop.f32.mrf.mxu0
      %v621 = vadd.f32 %v592, %v620
      %v622 = vpop.f32.mrf.mxu0
      %v623 = vadd.f32 %v594, %v622
      %624 = vdwg.mxu0
      %625 = vmatpush.bf16.msra.mxu0 0
      %626 = vmatpush.bf16.msra.mxu0 0
      %627 = vmatpush.bf16.msra.mxu0 0
      %628 = vmatpush.bf16.msra.mxu0 0
      %629 = vmatpush.bf16.msra.mxu0 0
      %630 = vmatpush.bf16.msra.mxu0 0
      %631 = vmatpush.bf16.msra.mxu0 0
      %632 = vmatpush.bf16.msra.mxu0 %v499
      %633 = vmatmul.bf16.gmra.mxu0 %v527
      %v634 = vpop.f32.mrf.mxu0
      %v635 = vadd.f32 %v606, %v634
      %v636 = vpop.f32.mrf.mxu0
      %v637 = vadd.f32 %v608, %v636
      %638 = vmatmul.bf16.gmra.mxu0 %v530
      %v639 = vpop.f32.mrf.mxu0
      %v640 = vadd.f32 %v611, %v639
      %v641 = vpop.f32.mrf.mxu0
      %v642 = vadd.f32 %v613, %v641
      %643 = vmatmul.bf16.gmra.mxu0 %v533
      %v644 = vpop.f32.mrf.mxu0
      %v645 = vadd.f32 %v616, %v644
      %v646 = vpop.f32.mrf.mxu0
      %v647 = vadd.f32 %v618, %v646
      %648 = vmatmul.bf16.gmra.mxu0 %v536
      %v649 = vpop.f32.mrf.mxu0
      %v650 = vadd.f32 %v621, %v649
      %v651 = vpop.f32.mrf.mxu0
      %v652 = vadd.f32 %v623, %v651
      %653 = vdwg.mxu0
      %654 = vst.msk [vmem:[%s227] sm:$0xff] %vm525, %v635
      %655 = vst.msk [vmem:[%s227 + $0x8] sm:$0xff] %vm525, %v637
      %656 = vst.msk [vmem:[%s227 + $0x10] sm:$0xff] %vm525, %v640
      %657 = vst.msk [vmem:[%s227 + $0x18] sm:$0xff] %vm525, %v642
      %658 = vst.msk [vmem:[%s227 + $0x20] sm:$0xff] %vm525, %v645
      %659 = vst.msk [vmem:[%s227 + $0x28] sm:$0xff] %vm525, %v647
      %660 = vst.msk [vmem:[%s227 + $0x30] sm:$0xff] %vm525, %v650
      %661 = vst.msk [vmem:[%s227 + $0x38] sm:$0xff] %vm525, %v652
      %p662 = scmp.lt.s32.totalorder %s23, 1
      %s663 = scalar_select %p662, %s23, 1
      %s664 = smul.addr %s663, 8
      %s665 = smul.addr %s664, 8
      %s666 = scalar_lea.vmem %s4, %s665
      // Predicated region
      $region33: #{path_aware_resnet_gen_forward.15} parent=31 // pred_check
        %p667 = pneg %p123
      $region34: #{path_aware_resnet_gen_forward.15} parent=31 // pred_check_branch
        %669 = sbr.rel (%p667) target = $region36
      $region35: #{path_aware_resnet_gen_forward.15} parent=31 // pred_region
        _
      $region36: #{path_aware_resnet_gen_forward.15} parent=31 // pred_fallthru
        _
    $region32: #{path_aware_resnet_gen_forward.15} parent=5 // pred_fallthru
      _
    %p670 = scmp.le.s32.totalorder 2, %s18
    // Predicated region
    $region37: #{path_aware_resnet_gen_forward.15} parent=5 // pred_check
      %p671 = pneg %p670
    $region38: #{path_aware_resnet_gen_forward.15} parent=5 // pred_check_branch
      %673 = sbr.rel (%p671) target = $region40
    $region39: #{path_aware_resnet_gen_forward.15} parent=5 // pred_region
      %s674 = ssub.s32 %s18, 2
      // Predicated region
      $region41: #{path_aware_resnet_gen_forward.15} parent=39 // pred_check
        %p675 = pneg %p129
      $region42: #{path_aware_resnet_gen_forward.15} parent=39 // pred_check_branch
        %677 = sbr.rel (%p675) target = $region44
      $region43: #{path_aware_resnet_gen_forward.15} parent=39 // pred_region
        %p678 = scmp.lt.s32.totalorder %s24, 1
        %s679 = scalar_select %p678, %s24, 1
        %s680 = smul.addr %s679, 8
        %s681 = smul.addr %s680, 8
        %s682 = scalar_lea.vmem %s4, %s681
      $region44: #{path_aware_resnet_gen_forward.15} parent=39 // pred_fallthru
        _
    $region40: #{path_aware_resnet_gen_forward.15} parent=5 // pred_fallthru
      _
  $region6: #{path_aware_resnet_gen_forward.15} parent=0 // loop_footer
    %s22 = sadd.s32 1, %s18
  $region7: #{path_aware_resnet_gen_forward.15} parent=0 // loop_footer_branch
    %17 = sbr.rel target = $region3
  $region8: #{path_aware_resnet_gen_forward.15} parent=0 // loop_exit
    _

// kernel: path_aware_resnet_gen_forward.16
$region0: #{path_aware_resnet_gen_forward.16}
  #allocation0 [shape = 'u32[]', space=smem, size = 0x4, offset = 0x4, fixed_abs, tag = 'smem constant byte address 0x4 - core index']
  #allocation1 [shape = 'u32[72,128]{1,0:T(1,128)}', space=vmem, size = 0x9000, scoped, tag = 'internal scratch']
  %s0 = inlined_call_operand.vmem [shape: bf16[32,16], index: 0, kind: input, shape index: {}]
  %s1 = inlined_call_operand.vmem [shape: bf16[16,16], index: 1, kind: input, shape index: {}]
  %s2 = inlined_call_operand.vmem [shape: f32[1,16], index: 2, kind: input, shape index: {}]
  %s3 = inlined_call_operand.vmem [shape: f32[32,16], index: 3, kind: output, shape index: {}]
  %s4 = sld [smem:[#allocation0]]
  $region22: #{path_aware_resnet_gen_forward.16} parent=0
    _
  %s6 = ssub.s32 1, %s4
  %s7 = scalar_select 0, %s6, %s4
  // Predicated region
  $region2: #{path_aware_resnet_gen_forward.16} parent=0 // pred_check
    _
  $region3: #{path_aware_resnet_gen_forward.16} parent=0 // pred_check_branch
    %9 = sbr.rel (0) target = $region5
  $region4: #{path_aware_resnet_gen_forward.16} parent=0 // pred_region
    _
  $region5: #{path_aware_resnet_gen_forward.16} parent=0 // pred_fallthru
    _
  // Predicated region
  $region6: #{path_aware_resnet_gen_forward.16} parent=0 // pred_check
    _
  $region7: #{path_aware_resnet_gen_forward.16} parent=0 // pred_check_branch
    %11 = sbr.rel (0) target = $region9
  $region8: #{path_aware_resnet_gen_forward.16} parent=0 // pred_region
    _
  $region9: #{path_aware_resnet_gen_forward.16} parent=0 // pred_fallthru
    _
  // Predicated region
  $region10: #{path_aware_resnet_gen_forward.16} parent=0 // pred_check
    _
  $region11: #{path_aware_resnet_gen_forward.16} parent=0 // pred_check_branch
    %13 = sbr.rel (0) target = $region13
  $region12: #{path_aware_resnet_gen_forward.16} parent=0 // pred_region
    _
  $region13: #{path_aware_resnet_gen_forward.16} parent=0 // pred_fallthru
    _
  %v15 = vld [vmem:[%s0] sm:$0xf]
  %v16 = vld [vmem:[%s0 + $0x4] sm:$0xf]
  %v17 = vld [vmem:[%s0 + $0x8] sm:$0xf]
  %v18 = vld [vmem:[%s0 + $0xc] sm:$0xf]
  %v19 = vld [vmem:[%s1] sm:$0xf]
  %v20 = vld [vmem:[%s1 + $0x4] sm:$0xf]
  %v21 = vld [vmem:[%s2] sm:$0x1]
  %v23 = vperm.slane %v21, 0
  %v29 = vunpack.c.l.b16 %v15
  %v30 = vunpack.c.l.b16 %v16
  %v31 = vunpack.c.l.b16 %v17
  %v32 = vunpack.c.l.b16 %v18
  %v33 = vpack.c.b16 %v30, %v29
  %v34 = vpack.c.b16 %v32, %v31
  %v37 = vunpack.c.l.b16 %v19
  %v38 = vunpack.c.l.b16 %v20
  %v39 = vpack.c.b16 %v38, %v37
  %vm41 = vcmask 130048
  %v43 = vsel %vm41, %v33, 0
  %v46 = vsel %vm41, %v34, 0
  %48 = vmatpush.bf16.msra.mxu0 0
  %49 = vmatpush.bf16.msra.mxu0 0
  %50 = vmatpush.bf16.msra.mxu0 0
  %51 = vmatpush.bf16.msra.mxu0 0
  %52 = vmatpush.bf16.msra.mxu0 0
  %53 = vmatpush.bf16.msra.mxu0 0
  %54 = vmatpush.bf16.msra.mxu0 0
  %55 = vmatpush.bf16.msra.mxu0 %v39
  %56 = vmatmul.bf16.gmra.mxu0 %v43
  %v57 = vpop.f32.mrf.mxu0
  %v58 = vadd.f32 %v23, %v57
  %v59 = vpop.f32.mrf.mxu0
  %v60 = vadd.f32 %v23, %v59
  %61 = vmatmul.bf16.gmra.mxu0 %v46
  %v62 = vpop.f32.mrf.mxu0
  %v63 = vadd.f32 %v23, %v62
  %v64 = vpop.f32.mrf.mxu0
  %v65 = vadd.f32 %v23, %v64
  %66 = vdwg.mxu0
  %67 = vst.msk [vmem:[%s3] sm:$0xff] %vm41, %v58
  %68 = vst.msk [vmem:[%s3 + $0x8] sm:$0xff] %vm41, %v60
  %69 = vst.msk [vmem:[%s3 + $0x10] sm:$0xff] %vm41, %v63
  %70 = vst.msk [vmem:[%s3 + $0x18] sm:$0xff] %vm41, %v65
  // Predicated region
  $region14: #{path_aware_resnet_gen_forward.16} parent=0 // pred_check
    _
  $region15: #{path_aware_resnet_gen_forward.16} parent=0 // pred_check_branch
    %72 = sbr.rel (0) target = $region17
  $region16: #{path_aware_resnet_gen_forward.16} parent=0 // pred_region
    _
  $region17: #{path_aware_resnet_gen_forward.16} parent=0 // pred_fallthru
    _
  // Predicated region
  $region18: #{path_aware_resnet_gen_forward.16} parent=0 // pred_check
    _
  $region19: #{path_aware_resnet_gen_forward.16} parent=0 // pred_check_branch
    %74 = sbr.rel (0) target = $region21
  $region20: #{path_aware_resnet_gen_forward.16} parent=0 // pred_region
    _
  $region21: #{path_aware_resnet_gen_forward.16} parent=0 // pred_fallthru
    _

// kernel: path_aware_resnet_gen_forward.18
$region0: #{path_aware_resnet_gen_forward.18}
  #allocation0 [shape = 'u32[]', space=smem, size = 0x4, offset = 0x4, fixed_abs, tag = 'smem constant byte address 0x4 - core index']
  #allocation1 [shape = 'u32[72,128]{1,0:T(1,128)}', space=vmem, size = 0x9000, scoped, tag = 'internal scratch']
  #allocation2 [shape = 's32[1]{0}', space=sflag, size = 0x4, scoped, tag = 'scoped memory for path_aware_resnet_gen_forward.18']
  #allocation3 [shape = 'u8[512]{0}', space=smem, size = 0x200, scoped, tag = 'prefetched SMEM operand 0']
  %s0 = inlined_call_operand.vmem [shape: s32[2], index: 0, kind: input, shape index: {}]
  %s1 = inlined_call_operand.vmem [shape: bf16[2,64,400], index: 1, kind: input, shape index: {}]
  %s2 = inlined_call_operand.vmem [shape: bf16[3,400,16], index: 2, kind: input, shape index: {}]
  %s3 = inlined_call_operand.vmem [shape: f32[3,1,16], index: 3, kind: input, shape index: {}]
  %s4 = inlined_call_operand.vmem [shape: f32[2,64,16], index: 4, kind: input, shape index: {}]
  %s5 = inlined_call_operand.vmem [shape: f32[2,64,16], index: 5, kind: output, shape index: {}]
  %s6 = sld [smem:[#allocation0]]
  $region49: #{path_aware_resnet_gen_forward.18} parent=0
    _
  %s8 = ssub.s32 1, %s6
  %s9 = scalar_select 0, %s8, %s6
  %s11 = sshll.u32 %s0, 4
  %s12 = int_to_ptr.vmem [resolvable:$true] %s11
  %14 = dma.vmem_to_smem %s12, 16, [#allocation3], [#allocation2]
  %16 = dma.done [#allocation2], 16
  %17 = sfence
  loop: start=0, step=1, limit=4
  $region2: #{path_aware_resnet_gen_forward.18} parent=0 // loop_pre_header
    _
  $region3: #{path_aware_resnet_gen_forward.18} parent=0 // loop_header
    %s19 = sphi 0, %s23
    %p20 = scmp.ge.s32.totalorder %s19, 4
    %s29 = sphi 0, %s31
    %s32 = sphi 0, %s29
    %s33 = sphi 0, %s32
    %s49 = sphi 0, %s33
    %s57 = sphi 0, %s59
    %s60 = sphi 0, %s57
    %s61 = sphi 0, %s60
    %s77 = sphi 0, %s61
    %s85 = sphi 0, %s87
    %s88 = sphi 0, %s85
    %s89 = sphi 0, %s88
    %s105 = sphi 0, %s89
    %s111 = sphi 0, %s113
    %s114 = sphi 0, %s111
    %s115 = sphi 0, %s114
    %s131 = sphi 0, %s115
    %s137 = sphi 0, %s139
    %s140 = sphi 0, %s137
    %s141 = sphi 0, %s140
    %s157 = sphi 0, %s141
  $region4: #{path_aware_resnet_gen_forward.18} parent=0 // loop_header_branch
    %22 = sbr.rel (%p20) target = $region8
  $region5: #{path_aware_resnet_gen_forward.18} parent=0 // loop_body
    %s24 = ssub.s32 %s19, 1
    %s25 = ssub.s32 %s19, 2
    %s26 = sadd.s32 %s19, 1
    %s27 = ssub.s32 %s19, %s26
    %p28 = scmp.eq.s32.totalorder %s27, 0
    %s30 = sadd.s32 %s29, 1
    %s31 = scalar_select %p28, %s29, %s30
    %p34 = pneg %p28
    %p35 = scmp.eq.s32.totalorder %s19, 1
    %p36 = por %p34, %p35
    %p37 = scmp.ne.s32.totalorder %s29, %s32
    %p38 = scmp.eq.s32.totalorder %s19, 0
    %p39 = por %p37, %p38
    %p40 = scmp.ne.s32.totalorder %s29, %s32
    %p41 = scmp.eq.s32.totalorder %s24, 1
    %p42 = por %p40, %p41
    %p43 = scmp.ne.s32.totalorder %s32, %s33
    %p44 = scmp.eq.s32.totalorder %s24, 0
    %p45 = por %p43, %p44
    %p46 = scmp.ne.s32.totalorder %s32, %s33
    %p47 = scmp.eq.s32.totalorder %s25, 1
    %p48 = por %p46, %p47
    %p50 = scmp.ne.s32.totalorder %s33, %s49
    %p51 = scmp.eq.s32.totalorder %s25, 0
    %p52 = por %p50, %p51
    %s53 = sld [smem:[#allocation3 + %s19]]
    %s54 = sld [smem:[#allocation3 + %s26]]
    %s55 = ssub.s32 %s53, %s54
    %p56 = scmp.eq.s32.totalorder %s55, 0
    %s58 = sadd.s32 %s57, 1
    %s59 = scalar_select %p56, %s57, %s58
    %p62 = pneg %p56
    %p63 = scmp.eq.s32.totalorder %s19, 1
    %p64 = por %p62, %p63
    %p65 = scmp.ne.s32.totalorder %s57, %s60
    %p66 = scmp.eq.s32.totalorder %s19, 0
    %p67 = por %p65, %p66
    %p68 = scmp.ne.s32.totalorder %s57, %s60
    %p69 = scmp.eq.s32.totalorder %s24, 1
    %p70 = por %p68, %p69
    %p71 = scmp.ne.s32.totalorder %s60, %s61
    %p72 = scmp.eq.s32.totalorder %s24, 0
    %p73 = por %p71, %p72
    %p74 = scmp.ne.s32.totalorder %s60, %s61
    %p75 = scmp.eq.s32.totalorder %s25, 1
    %p76 = por %p74, %p75
    %p78 = scmp.ne.s32.totalorder %s61, %s77
    %p79 = scmp.eq.s32.totalorder %s25, 0
    %p80 = por %p78, %p79
    %s81 = sld [smem:[#allocation3 + %s19]]
    %s82 = sld [smem:[#allocation3 + %s26]]
    %s83 = ssub.s32 %s81, %s82
    %p84 = scmp.eq.s32.totalorder %s83, 0
    %s86 = sadd.s32 %s85, 1
    %s87 = scalar_select %p84, %s85, %s86
    %p90 = pneg %p84
    %p91 = scmp.eq.s32.totalorder %s19, 1
    %p92 = por %p90, %p91
    %p93 = scmp.ne.s32.totalorder %s85, %s88
    %p94 = scmp.eq.s32.totalorder %s19, 0
    %p95 = por %p93, %p94
    %p96 = scmp.ne.s32.totalorder %s85, %s88
    %p97 = scmp.eq.s32.totalorder %s24, 1
    %p98 = por %p96, %p97
    %p99 = scmp.ne.s32.totalorder %s88, %s89
    %p100 = scmp.eq.s32.totalorder %s24, 0
    %p101 = por %p99, %p100
    %p102 = scmp.ne.s32.totalorder %s88, %s89
    %p103 = scmp.eq.s32.totalorder %s25, 1
    %p104 = por %p102, %p103
    %p106 = scmp.ne.s32.totalorder %s89, %s105
    %p107 = scmp.eq.s32.totalorder %s25, 0
    %p108 = por %p106, %p107
    %s109 = ssub.s32 %s19, %s26
    %p110 = scmp.eq.s32.totalorder %s109, 0
    %s112 = sadd.s32 %s111, 1
    %s113 = scalar_select %p110, %s111, %s112
    %p116 = pneg %p110
    %p117 = scmp.eq.s32.totalorder %s19, 1
    %p118 = por %p116, %p117
    %p119 = scmp.ne.s32.totalorder %s111, %s114
    %p120 = scmp.eq.s32.totalorder %s19, 0
    %p121 = por %p119, %p120
    %p122 = scmp.ne.s32.totalorder %s111, %s114
    %p123 = scmp.eq.s32.totalorder %s24, 1
    %p124 = por %p122, %p123
    %p125 = scmp.ne.s32.totalorder %s114, %s115
    %p126 = scmp.eq.s32.totalorder %s24, 0
    %p127 = por %p125, %p126
    %p128 = scmp.ne.s32.totalorder %s114, %s115
    %p129 = scmp.eq.s32.totalorder %s25, 1
    %p130 = por %p128, %p129
    %p132 = scmp.ne.s32.totalorder %s115, %s131
    %p133 = scmp.eq.s32.totalorder %s25, 0
    %p134 = por %p132, %p133
    %s135 = ssub.s32 %s19, %s26
    %p136 = scmp.eq.s32.totalorder %s135, 0
    %s138 = sadd.s32 %s137, 1
    %s139 = scalar_select %p136, %s137, %s138
    %p142 = pneg %p136
    %p143 = scmp.eq.s32.totalorder %s19, 1
    %p144 = por %p142, %p143
    %p145 = scmp.ne.s32.totalorder %s137, %s140
    %p146 = scmp.eq.s32.totalorder %s19, 0
    %p147 = por %p145, %p146
    %p148 = scmp.ne.s32.totalorder %s137, %s140
    %p149 = scmp.eq.s32.totalorder %s24, 1
    %p150 = por %p148, %p149
    %p151 = scmp.ne.s32.totalorder %s140, %s141
    %p152 = scmp.eq.s32.totalorder %s24, 0
    %p153 = por %p151, %p152
    %p154 = scmp.ne.s32.totalorder %s140, %s141
    %p155 = scmp.eq.s32.totalorder %s25, 1
    %p156 = por %p154, %p155
    %p158 = scmp.ne.s32.totalorder %s141, %s157
    %p159 = scmp.eq.s32.totalorder %s25, 0
    %p160 = por %p158, %p159
    %p161 = scmp.le.s32.totalorder 1, %s19
    %p162 = scmp.lt.s32.totalorder %s19, 3
    %p163 = pnand %p161, %p162
    %p164 = pneg %p163
    // Predicated region
    $region9: #{path_aware_resnet_gen_forward.18} parent=5 // pred_check
      _
    $region10: #{path_aware_resnet_gen_forward.18} parent=5 // pred_check_branch
      %166 = sbr.rel (%p163) target = $region12
    $region11: #{path_aware_resnet_gen_forward.18} parent=5 // pred_region
      %s167 = ssub.s32 %s19, 1
    $region12: #{path_aware_resnet_gen_forward.18} parent=5 // pred_fallthru
      _
    %p168 = scmp.lt.s32.totalorder %s19, 2
    // Predicated region
    $region13: #{path_aware_resnet_gen_forward.18} parent=5 // pred_check
      %p169 = pneg %p168
    $region14: #{path_aware_resnet_gen_forward.18} parent=5 // pred_check_branch
      %171 = sbr.rel (%p169) target = $region16
    $region15: #{path_aware_resnet_gen_forward.18} parent=5 // pred_region
      // Predicated region
      $region17: #{path_aware_resnet_gen_forward.18} parent=15 // pred_check
        %p172 = pneg %p39
      $region18: #{path_aware_resnet_gen_forward.18} parent=15 // pred_check_branch
        %174 = sbr.rel (%p172) target = $region20
      $region19: #{path_aware_resnet_gen_forward.18} parent=15 // pred_region
        %p175 = scmp.lt.s32.totalorder %s19, 1
        %s176 = scalar_select %p175, %s19, 1
        %s177 = smul.addr %s176, 32
        %s178 = smul.addr %s177, 4
        %s179 = scalar_lea.vmem %s1, %s178
      $region20: #{path_aware_resnet_gen_forward.18} parent=15 // pred_fallthru
        _
      // Predicated region
      $region21: #{path_aware_resnet_gen_forward.18} parent=15 // pred_check
        %p180 = pneg %p67
      $region22: #{path_aware_resnet_gen_forward.18} parent=15 // pred_check_branch
        %182 = sbr.rel (%p180) target = $region24
      $region23: #{path_aware_resnet_gen_forward.18} parent=15 // pred_region
        %s183 = sld [smem:[#allocation3 + %s19]]
        %p184 = scmp.lt.s32.totalorder %s183, 2
        %s185 = scalar_select %p184, %s183, 2
        %s186 = smul.addr %s185, 50
        %s187 = smul.addr %s186, 4
        %s188 = scalar_lea.vmem %s2, %s187
        %s189 = sld [smem:[#allocation3 + %s19]]
      $region24: #{path_aware_resnet_gen_forward.18} parent=15 // pred_fallthru
        _
      // Predicated region
      $region25: #{path_aware_resnet_gen_forward.18} parent=15 // pred_check
        %p190 = pneg %p95
      $region26: #{path_aware_resnet_gen_forward.18} parent=15 // pred_check_branch
        %192 = sbr.rel (%p190) target = $region28
      $region27: #{path_aware_resnet_gen_forward.18} parent=15 // pred_region
        %s193 = sld [smem:[#allocation3 + %s19]]
        %p194 = scmp.lt.s32.totalorder %s193, 2
        %s195 = scalar_select %p194, %s193, 2
        %s196 = scalar_lea.vmem %s3, %s195
        %s197 = sld [smem:[#allocation3 + %s19]]
      $region28: #{path_aware_resnet_gen_forward.18} parent=15 // pred_fallthru
        _
      // Predicated region
      $region29: #{path_aware_resnet_gen_forward.18} parent=15 // pred_check
        %p198 = pneg %p121
      $region30: #{path_aware_resnet_gen_forward.18} parent=15 // pred_check_branch
        %200 = sbr.rel (%p198) target = $region32
      $region31: #{path_aware_resnet_gen_forward.18} parent=15 // pred_region
        %p201 = scmp.lt.s32.totalorder %s19, 1
        %s202 = scalar_select %p201, %s19, 1
        %s203 = smul.addr %s202, 8
        %s204 = smul.addr %s203, 8
        %s205 = scalar_lea.vmem %s4, %s204
      $region32: #{path_aware_resnet_gen_forward.18} parent=15 // pred_fallthru
        _
    $region16: #{path_aware_resnet_gen_forward.18} parent=5 // pred_fallthru
      _
    %p206 = scmp.le.s32.totalorder 1, %s19
    %p207 = scmp.lt.s32.totalorder %s19, 3
    %p208 = pnand %p206, %p207
    %p209 = pneg %p208
    // Predicated region
    $region33: #{path_aware_resnet_gen_forward.18} parent=5 // pred_check
      _
    $region34: #{path_aware_resnet_gen_forward.18} parent=5 // pred_check_branch
      %211 = sbr.rel (%p208) target = $region36
    $region35: #{path_aware_resnet_gen_forward.18} parent=5 // pred_region
      %s212 = ssub.s32 %s19, 1
      %p213 = scmp.lt.s32.totalorder %s24, 1
      %s214 = scalar_select %p213, %s24, 1
      %s215 = smul.addr %s214, 32
      %s216 = smul.addr %s215, 4
      %s217 = scalar_lea.vmem %s1, %s216
      %p218 = pneg %p45
      %p219 = pneg %p42
      %s220 = sld [smem:[#allocation3 + %s24]]
      %p221 = scmp.lt.s32.totalorder %s220, 2
      %s222 = scalar_select %p221, %s220, 2
      %s223 = smul.addr %s222, 50
      %s224 = smul.addr %s223, 4
      %s225 = scalar_lea.vmem %s2, %s224
      %p226 = pneg %p73
      %p227 = pneg %p70
      %s228 = sld [smem:[#allocation3 + %s24]]
      %p229 = scmp.lt.s32.totalorder %s228, 2
      %s230 = scalar_select %p229, %s228, 2
      %s231 = scalar_lea.vmem %s3, %s230
      %p232 = pneg %p101
      %p233 = pneg %p98
      %p234 = scmp.lt.s32.totalorder %s24, 1
      %s235 = scalar_select %p234, %s24, 1
      %s236 = smul.addr %s235, 8
      %s237 = smul.addr %s236, 8
      %s238 = scalar_lea.vmem %s4, %s237
      %p239 = pneg %p127
      %p240 = pneg %p124
      %p241 = pneg %p153
      %p242 = pneg %p150
      %p243 = scmp.lt.s32.totalorder %s24, 1
      %s244 = scalar_select %p243, %s24, 1
      %s245 = smul.addr %s244, 8
      %s246 = smul.addr %s245, 8
      %s247 = scalar_lea.vmem %s5, %s246
      %p248 = scmp.lt.s32.totalorder %s24, 1
      %s249 = scalar_select %p248, %s24, 1
      %s250 = smul.addr %s249, 32
      %s251 = smul.addr %s250, 4
      %s252 = scalar_lea.vmem %s1, %s251
      %s253 = sld [smem:[#allocation3 + %s24]]
      %p254 = scmp.lt.s32.totalorder %s253, 2
      %s255 = scalar_select %p254, %s253, 2
      %s256 = smul.addr %s255, 50
      %s257 = smul.addr %s256, 4
      %s258 = scalar_lea.vmem %s2, %s257
      %s259 = sld [smem:[#allocation3 + %s24]]
      %s260 = sld [smem:[#allocation3 + %s24]]
      %p261 = scmp.lt.s32.totalorder %s260, 2
      %s262 = scalar_select %p261, %s260, 2
      %s263 = scalar_lea.vmem %s3, %s262
      %s264 = sld [smem:[#allocation3 + %s24]]
      %p265 = scmp.lt.s32.totalorder %s24, 1
      %s266 = scalar_select %p265, %s24, 1
      %s267 = smul.addr %s266, 8
      %s268 = smul.addr %s267, 8
      %s269 = scalar_lea.vmem %s4, %s268
      %p270 = scmp.lt.s32.totalorder %s24, 1
      %s271 = scalar_select %p270, %s24, 1
      %s272 = smul.addr %s271, 8
      %s273 = smul.addr %s272, 8
      %s274 = scalar_lea.vmem %s5, %s273
      %v276 = vld [vmem:[%s252] sm:$0xff]
      %v277 = vld [vmem:[%s252 + $0x8] sm:$0xff]
      %v278 = vld [vmem:[%s252 + $0x10] sm:$0xff]
      %v279 = vld [vmem:[%s252 + $0x18] sm:$0xff]
      %v280 = vld [vmem:[%s252 + $0x20] sm:$0xff]
      %v281 = vld [vmem:[%s252 + $0x28] sm:$0xff]
      %v282 = vld [vmem:[%s252 + $0x30] sm:$0xff]
      %v283 = vld [vmem:[%s252 + $0x38] sm:$0xff]
      %v284 = vld [vmem:[%s252 + $0x40] sm:$0xff]
      %v285 = vld [vmem:[%s252 + $0x48] sm:$0xff]
      %v286 = vld [vmem:[%s252 + $0x50] sm:$0xff]
      %v287 = vld [vmem:[%s252 + $0x58] sm:$0xff]
      %v288 = vld [vmem:[%s252 + $0x60] sm:$0xff]
      %v289 = vld [vmem:[%s252 + $0x68] sm:$0xff]
      %v290 = vld [vmem:[%s252 + $0x70] sm:$0xff]
      %v291 = vld [vmem:[%s252 + $0x78] sm:$0xff]
      %v292 = vld [vmem:[%s258] sm:$0xf]
      %v293 = vld [vmem:[%s258 + $0x4] sm:$0xf]
      %v294 = vld [vmem:[%s258 + $0x8] sm:$0xf]
      %v295 = vld [vmem:[%s258 + $0xc] sm:$0xf]
      %v296 = vld [vmem:[%s258 + $0x10] sm:$0xf]
      %v297 = vld [vmem:[%s258 + $0x14] sm:$0xf]
      %v298 = vld [vmem:[%s258 + $0x18] sm:$0xf]
      %v299 = vld [vmem:[%s258 + $0x1c] sm:$0xf]
      %v300 = vld [vmem:[%s258 + $0x20] sm:$0xf]
      %v301 = vld [vmem:[%s258 + $0x24] sm:$0xf]
      %v302 = vld [vmem:[%s258 + $0x28] sm:$0xf]
      %v303 = vld [vmem:[%s258 + $0x2c] sm:$0xf]
      %v304 = vld [vmem:[%s258 + $0x30] sm:$0xf]
      %v305 = vld [vmem:[%s258 + $0x34] sm:$0xf]
      %v306 = vld [vmem:[%s258 + $0x38] sm:$0xf]
      %v307 = vld [vmem:[%s258 + $0x3c] sm:$0xf]
      %v308 = vld [vmem:[%s258 + $0x40] sm:$0xf]
      %v309 = vld [vmem:[%s258 + $0x44] sm:$0xf]
      %v310 = vld [vmem:[%s258 + $0x48] sm:$0xf]
      %v311 = vld [vmem:[%s258 + $0x4c] sm:$0xf]
      %v312 = vld [vmem:[%s258 + $0x50] sm:$0xf]
      %v313 = vld [vmem:[%s258 + $0x54] sm:$0xf]
      %v314 = vld [vmem:[%s258 + $0x58] sm:$0xf]
      %v315 = vld [vmem:[%s258 + $0x5c] sm:$0xf]
      %v316 = vld [vmem:[%s258 + $0x60] sm:$0xf]
      %v317 = vld [vmem:[%s258 + $0x64] sm:$0xf]
      %v318 = vld [vmem:[%s258 + $0x68] sm:$0xf]
      %v319 = vld [vmem:[%s258 + $0x6c] sm:$0xf]
      %v320 = vld [vmem:[%s258 + $0x70] sm:$0xf]
      %v321 = vld [vmem:[%s258 + $0x74] sm:$0xf]
      %v322 = vld [vmem:[%s258 + $0x78] sm:$0xf]
      %v323 = vld [vmem:[%s258 + $0x7c] sm:$0xf]
      %v324 = vld [vmem:[%s258 + $0x80] sm:$0xf]
      %v325 = vld [vmem:[%s258 + $0x84] sm:$0xf]
      %v326 = vld [vmem:[%s258 + $0x88] sm:$0xf]
      %v327 = vld [vmem:[%s258 + $0x8c] sm:$0xf]
      %v328 = vld [vmem:[%s258 + $0x90] sm:$0xf]
      %v329 = vld [vmem:[%s258 + $0x94] sm:$0xf]
      %v330 = vld [vmem:[%s258 + $0x98] sm:$0xf]
      %v331 = vld [vmem:[%s258 + $0x9c] sm:$0xf]
      %v332 = vld [vmem:[%s258 + $0xa0] sm:$0xf]
      %v333 = vld [vmem:[%s258 + $0xa4] sm:$0xf]
      %v334 = vld [vmem:[%s258 + $0xa8] sm:$0xf]
      %v335 = vld [vmem:[%s258 + $0xac] sm:$0xf]
      %v336 = vld [vmem:[%s258 + $0xb0] sm:$0xf]
      %v337 = vld [vmem:[%s258 + $0xb4] sm:$0xf]
      %v338 = vld [vmem:[%s258 + $0xb8] sm:$0xf]
      %v339 = vld [vmem:[%s258 + $0xbc] sm:$0xf]
      %v340 = vld [vmem:[%s258 + $0xc0] sm:$0xf]
      %v341 = vld [vmem:[%s258 + $0xc4] sm:$0xf]
      %v342 = vld [vmem:[%s263] sm:$0x1]
      %v344 = vperm.slane %v342, 0
      %v362 = vunpack.c.l.b16 %v276
      %v363 = vunpack.c.h.b16 %v276
      %v364 = vunpack.c.l.b16 %v277
      %v365 = vunpack.c.h.b16 %v277
      %v366 = vunpack.c.l.b16 %v278
      %v367 = vunpack.c.h.b16 %v278
      %v368 = vunpack.c.l.b16 %v279
      %v369 = vunpack.c.h.b16 %v279
      %v370 = vunpack.c.l.b16 %v280
      %v371 = vunpack.c.h.b16 %v280
      %v372 = vunpack.c.l.b16 %v281
      %v373 = vunpack.c.h.b16 %v281
      %v374 = vunpack.c.l.b16 %v282
      %v375 = vunpack.c.h.b16 %v282
      %v376 = vunpack.c.l.b16 %v283
      %v377 = vunpack.c.h.b16 %v283
      %v378 = vunpack.c.l.b16 %v284
      %v379 = vunpack.c.h.b16 %v284
      %v380 = vunpack.c.l.b16 %v285
      %v381 = vunpack.c.h.b16 %v285
      %v382 = vunpack.c.l.b16 %v286
      %v383 = vunpack.c.h.b16 %v286
      %v384 = vunpack.c.l.b16 %v287
      %v385 = vunpack.c.h.b16 %v287
      %v386 = vunpack.c.l.b16 %v288
      %v387 = vunpack.c.h.b16 %v288
      %v388 = vunpack.c.l.b16 %v289
      %v389 = vunpack.c.h.b16 %v289
      %v390 = vunpack.c.l.b16 %v290
      %v391 = vunpack.c.h.b16 %v290
      %v392 = vunpack.c.l.b16 %v291
      %v393 = vunpack.c.h.b16 %v291
      %v394 = vpack.c.b16 %v366, %v362
      %v395 = vpack.c.b16 %v367, %v363
      %v396 = vpack.c.b16 %v368, %v364
      %v397 = vpack.c.b16 %v369, %v365
      %v398 = vpack.c.b16 %v374, %v370
      %v399 = vpack.c.b16 %v375, %v371
      %v400 = vpack.c.b16 %v376, %v372
      %v401 = vpack.c.b16 %v377, %v373
      %v402 = vpack.c.b16 %v382, %v378
      %v403 = vpack.c.b16 %v383, %v379
      %v404 = vpack.c.b16 %v384, %v380
      %v405 = vpack.c.b16 %v385, %v381
      %v406 = vpack.c.b16 %v390, %v386
      %v407 = vpack.c.b16 %v391, %v387
      %v408 = vpack.c.b16 %v392, %v388
      %v409 = vpack.c.b16 %v393, %v389
      %v472 = vunpack.c.l.b16 %v292
      %v473 = vunpack.c.l.b16 %v293
      %v474 = vunpack.c.l.b16 %v294
      %v475 = vunpack.c.l.b16 %v295
      %v476 = vunpack.c.l.b16 %v296
      %v477 = vunpack.c.l.b16 %v297
      %v478 = vunpack.c.l.b16 %v298
      %v479 = vunpack.c.l.b16 %v299
      %v480 = vunpack.c.l.b16 %v300
      %v481 = vunpack.c.l.b16 %v301
      %v482 = vunpack.c.l.b16 %v302
      %v483 = vunpack.c.l.b16 %v303
      %v484 = vunpack.c.l.b16 %v304
      %v485 = vunpack.c.l.b16 %v305
      %v486 = vunpack.c.l.b16 %v306
      %v487 = vunpack.c.l.b16 %v307
      %v488 = vunpack.c.l.b16 %v308
      %v489 = vunpack.c.l.b16 %v309
      %v490 = vunpack.c.l.b16 %v310
      %v491 = vunpack.c.l.b16 %v311
      %v492 = vunpack.c.l.b16 %v312
      %v493 = vunpack.c.l.b16 %v313
      %v494 = vunpack.c.l.b16 %v314
      %v495 = vunpack.c.l.b16 %v315
      %v496 = vunpack.c.l.b16 %v316
      %v497 = vunpack.c.l.b16 %v317
      %v498 = vunpack.c.l.b16 %v318
      %v499 = vunpack.c.l.b16 %v319
      %v500 = vunpack.c.l.b16 %v320
      %v501 = vunpack.c.l.b16 %v321
      %v502 = vunpack.c.l.b16 %v322
      %v503 = vunpack.c.l.b16 %v323
      %v504 = vunpack.c.l.b16 %v324
      %v505 = vunpack.c.l.b16 %v325
      %v506 = vunpack.c.l.b16 %v326
      %v507 = vunpack.c.l.b16 %v327
      %v508 = vunpack.c.l.b16 %v328
      %v509 = vunpack.c.l.b16 %v329
      %v510 = vunpack.c.l.b16 %v330
      %v511 = vunpack.c.l.b16 %v331
      %v512 = vunpack.c.l.b16 %v332
      %v513 = vunpack.c.l.b16 %v333
      %v514 = vunpack.c.l.b16 %v334
      %v515 = vunpack.c.l.b16 %v335
      %v516 = vunpack.c.l.b16 %v336
      %v517 = vunpack.c.l.b16 %v337
      %v518 = vunpack.c.l.b16 %v338
      %v519 = vunpack.c.l.b16 %v339
      %v520 = vunpack.c.l.b16 %v340
      %v521 = vunpack.c.l.b16 %v341
      %v522 = vpack.c.b16 %v473, %v472
      %v523 = vpack.c.b16 %v475, %v474
      %v524 = vpack.c.b16 %v477, %v476
      %v525 = vpack.c.b16 %v479, %v478
      %v526 = vpack.c.b16 %v481, %v480
      %v527 = vpack.c.b16 %v483, %v482
      %v528 = vpack.c.b16 %v485, %v484
      %v529 = vpack.c.b16 %v487, %v486
      %v530 = vpack.c.b16 %v489, %v488
      %v531 = vpack.c.b16 %v491, %v490
      %v532 = vpack.c.b16 %v493, %v492
      %v533 = vpack.c.b16 %v495, %v494
      %v534 = vpack.c.b16 %v497, %v496
      %v535 = vpack.c.b16 %v499, %v498
      %v536 = vpack.c.b16 %v501, %v500
      %v537 = vpack.c.b16 %v503, %v502
      %v538 = vpack.c.b16 %v505, %v504
      %v539 = vpack.c.b16 %v507, %v506
      %v540 = vpack.c.b16 %v509, %v508
      %v541 = vpack.c.b16 %v511, %v510
      %v542 = vpack.c.b16 %v513, %v512
      %v543 = vpack.c.b16 %v515, %v514
      %v544 = vpack.c.b16 %v517, %v516
      %v545 = vpack.c.b16 %v519, %v518
      %v546 = vpack.c.b16 %v521, %v520
      %vm572 = vcmask 130048
      %v574 = vsel %vm572, %v397, 0
      %v577 = vsel %vm572, %v401, 0
      %v580 = vsel %vm572, %v405, 0
      %v583 = vsel %vm572, %v409, 0
      %585 = vmatpush.bf16.msra.mxu0 %v529
      %586 = vmatpush.bf16.msra.mxu0 %v528
      %587 = vmatpush.bf16.msra.mxu0 %v527
      %588 = vmatpush.bf16.msra.mxu0 %v526
      %589 = vmatpush.bf16.msra.mxu0 %v525
      %590 = vmatpush.bf16.msra.mxu0 %v524
      %591 = vmatpush.bf16.msra.mxu0 %v523
      %592 = vmatpush.bf16.msra.mxu0 %v522
      %593 = vmatmul.bf16.gmra.mxu0 %v394
      %v594 = vpop.f32.mrf.mxu0
      %v595 = vadd.f32 %v344, %v594
      %v596 = vpop.f32.mrf.mxu0
      %v597 = vadd.f32 %v344, %v596
      %598 = vmatmul.bf16.gmra.mxu0 %v398
      %v599 = vpop.f32.mrf.mxu0
      %v600 = vadd.f32 %v344, %v599
      %v601 = vpop.f32.mrf.mxu0
      %v602 = vadd.f32 %v344, %v601
      %603 = vmatmul.bf16.gmra.mxu0 %v402
      %v604 = vpop.f32.mrf.mxu0
      %v605 = vadd.f32 %v344, %v604
      %v606 = vpop.f32.mrf.mxu0
      %v607 = vadd.f32 %v344, %v606
      %608 = vmatmul.bf16.gmra.mxu0 %v406
      %v609 = vpop.f32.mrf.mxu0
      %v610 = vadd.f32 %v344, %v609
      %v611 = vpop.f32.mrf.mxu0
      %v612 = vadd.f32 %v344, %v611
      %613 = vdwg.mxu0
      %614 = vmatpush.bf16.msra.mxu0 %v537
      %615 = vmatpush.bf16.msra.mxu0 %v536
      %616 = vmatpush.bf16.msra.mxu0 %v535
      %617 = vmatpush.bf16.msra.mxu0 %v534
      %618 = vmatpush.bf16.msra.mxu0 %v533
      %619 = vmatpush.bf16.msra.mxu0 %v532
      %620 = vmatpush.bf16.msra.mxu0 %v531
      %621 = vmatpush.bf16.msra.mxu0 %v530
      %622 = vmatmul.bf16.gmra.mxu0 %v395
      %v623 = vpop.f32.mrf.mxu0
      %v624 = vadd.f32 %v595, %v623
      %v625 = vpop.f32.mrf.mxu0
      %v626 = vadd.f32 %v597, %v625
      %627 = vmatmul.bf16.gmra.mxu0 %v399
      %v628 = vpop.f32.mrf.mxu0
      %v629 = vadd.f32 %v600, %v628
      %v630 = vpop.f32.mrf.mxu0
      %v631 = vadd.f32 %v602, %v630
      %632 = vmatmul.bf16.gmra.mxu0 %v403
      %v633 = vpop.f32.mrf.mxu0
      %v634 = vadd.f32 %v605, %v633
      %v635 = vpop.f32.mrf.mxu0
      %v636 = vadd.f32 %v607, %v635
      %637 = vmatmul.bf16.gmra.mxu0 %v407
      %v638 = vpop.f32.mrf.mxu0
      %v639 = vadd.f32 %v610, %v638
      %v640 = vpop.f32.mrf.mxu0
      %v641 = vadd.f32 %v612, %v640
      %642 = vdwg.mxu0
      %643 = vmatpush.bf16.msra.mxu0 %v545
      %644 = vmatpush.bf16.msra.mxu0 %v544
      %645 = vmatpush.bf16.msra.mxu0 %v543
      %646 = vmatpush.bf16.msra.mxu0 %v542
      %647 = vmatpush.bf16.msra.mxu0 %v541
      %648 = vmatpush.bf16.msra.mxu0 %v540
      %649 = vmatpush.bf16.msra.mxu0 %v539
      %650 = vmatpush.bf16.msra.mxu0 %v538
      %651 = vmatmul.bf16.gmra.mxu0 %v396
      %v652 = vpop.f32.mrf.mxu0
      %v653 = vadd.f32 %v624, %v652
      %v654 = vpop.f32.mrf.mxu0
      %v655 = vadd.f32 %v626, %v654
      %656 = vmatmul.bf16.gmra.mxu0 %v400
      %v657 = vpop.f32.mrf.mxu0
      %v658 = vadd.f32 %v629, %v657
      %v659 = vpop.f32.mrf.mxu0
      %v660 = vadd.f32 %v631, %v659
      %661 = vmatmul.bf16.gmra.mxu0 %v404
      %v662 = vpop.f32.mrf.mxu0
      %v663 = vadd.f32 %v634, %v662
      %v664 = vpop.f32.mrf.mxu0
      %v665 = vadd.f32 %v636, %v664
      %666 = vmatmul.bf16.gmra.mxu0 %v408
      %v667 = vpop.f32.mrf.mxu0
      %v668 = vadd.f32 %v639, %v667
      %v669 = vpop.f32.mrf.mxu0
      %v670 = vadd.f32 %v641, %v669
      %671 = vdwg.mxu0
      %672 = vmatpush.bf16.msra.mxu0 0
      %673 = vmatpush.bf16.msra.mxu0 0
      %674 = vmatpush.bf16.msra.mxu0 0
      %675 = vmatpush.bf16.msra.mxu0 0
      %676 = vmatpush.bf16.msra.mxu0 0
      %677 = vmatpush.bf16.msra.mxu0 0
      %678 = vmatpush.bf16.msra.mxu0 0
      %679 = vmatpush.bf16.msra.mxu0 %v546
      %680 = vmatmul.bf16.gmra.mxu0 %v574
      %v681 = vpop.f32.mrf.mxu0
      %v682 = vadd.f32 %v653, %v681
      %v683 = vpop.f32.mrf.mxu0
      %v684 = vadd.f32 %v655, %v683
      %685 = vmatmul.bf16.gmra.mxu0 %v577
      %v686 = vpop.f32.mrf.mxu0
      %v687 = vadd.f32 %v658, %v686
      %v688 = vpop.f32.mrf.mxu0
      %v689 = vadd.f32 %v660, %v688
      %690 = vmatmul.bf16.gmra.mxu0 %v580
      %v691 = vpop.f32.mrf.mxu0
      %v692 = vadd.f32 %v663, %v691
      %v693 = vpop.f32.mrf.mxu0
      %v694 = vadd.f32 %v665, %v693
      %695 = vmatmul.bf16.gmra.mxu0 %v583
      %v696 = vpop.f32.mrf.mxu0
      %v697 = vadd.f32 %v668, %v696
      %v698 = vpop.f32.mrf.mxu0
      %v699 = vadd.f32 %v670, %v698
      %700 = vdwg.mxu0
      %v701 = vld [vmem:[%s269] sm:$0xff]
      %v702 = vld [vmem:[%s269 + $0x8] sm:$0xff]
      %v703 = vld [vmem:[%s269 + $0x10] sm:$0xff]
      %v704 = vld [vmem:[%s269 + $0x18] sm:$0xff]
      %v705 = vld [vmem:[%s269 + $0x20] sm:$0xff]
      %v706 = vld [vmem:[%s269 + $0x28] sm:$0xff]
      %v707 = vld [vmem:[%s269 + $0x30] sm:$0xff]
      %v708 = vld [vmem:[%s269 + $0x38] sm:$0xff]
      %v709 = vadd.f32 %v682, %v701
      %v710 = vadd.f32 %v684, %v702
      %v711 = vadd.f32 %v687, %v703
      %v712 = vadd.f32 %v689, %v704
      %v713 = vadd.f32 %v692, %v705
      %v714 = vadd.f32 %v694, %v706
      %v715 = vadd.f32 %v697, %v707
      %v716 = vadd.f32 %v699, %v708
      %717 = vst.msk [vmem:[%s274] sm:$0xff] %vm572, %v709
      %718 = vst.msk [vmem:[%s274 + $0x8] sm:$0xff] %vm572, %v710
      %719 = vst.msk [vmem:[%s274 + $0x10] sm:$0xff] %vm572, %v711
      %720 = vst.msk [vmem:[%s274 + $0x18] sm:$0xff] %vm572, %v712
      %721 = vst.msk [vmem:[%s274 + $0x20] sm:$0xff] %vm572, %v713
      %722 = vst.msk [vmem:[%s274 + $0x28] sm:$0xff] %vm572, %v714
      %723 = vst.msk [vmem:[%s274 + $0x30] sm:$0xff] %vm572, %v715
      %724 = vst.msk [vmem:[%s274 + $0x38] sm:$0xff] %vm572, %v716
      %p725 = scmp.lt.s32.totalorder %s24, 1
      %s726 = scalar_select %p725, %s24, 1
      %s727 = smul.addr %s726, 8
      %s728 = smul.addr %s727, 8
      %s729 = scalar_lea.vmem %s5, %s728
      // Predicated region
      $region37: #{path_aware_resnet_gen_forward.18} parent=35 // pred_check
        %p730 = pneg %p150
      $region38: #{path_aware_resnet_gen_forward.18} parent=35 // pred_check_branch
        %732 = sbr.rel (%p730) target = $region40
      $region39: #{path_aware_resnet_gen_forward.18} parent=35 // pred_region
        _
      $region40: #{path_aware_resnet_gen_forward.18} parent=35 // pred_fallthru
        _
    $region36: #{path_aware_resnet_gen_forward.18} parent=5 // pred_fallthru
      _
    %p733 = scmp.le.s32.totalorder 2, %s19
    // Predicated region
    $region41: #{path_aware_resnet_gen_forward.18} parent=5 // pred_check
      %p734 = pneg %p733
    $region42: #{path_aware_resnet_gen_forward.18} parent=5 // pred_check_branch
      %736 = sbr.rel (%p734) target = $region44
    $region43: #{path_aware_resnet_gen_forward.18} parent=5 // pred_region
      %s737 = ssub.s32 %s19, 2
      // Predicated region
      $region45: #{path_aware_resnet_gen_forward.18} parent=43 // pred_check
        %p738 = pneg %p156
      $region46: #{path_aware_resnet_gen_forward.18} parent=43 // pred_check_branch
        %740 = sbr.rel (%p738) target = $region48
      $region47: #{path_aware_resnet_gen_forward.18} parent=43 // pred_region
        %p741 = scmp.lt.s32.totalorder %s25, 1
        %s742 = scalar_select %p741, %s25, 1
        %s743 = smul.addr %s742, 8
        %s744 = smul.addr %s743, 8
        %s745 = scalar_lea.vmem %s5, %s744
      $region48: #{path_aware_resnet_gen_forward.18} parent=43 // pred_fallthru
        _
    $region44: #{path_aware_resnet_gen_forward.18} parent=5 // pred_fallthru
      _
  $region6: #{path_aware_resnet_gen_forward.18} parent=0 // loop_footer
    %s23 = sadd.s32 1, %s19
  $region7: #{path_aware_resnet_gen_forward.18} parent=0 // loop_footer_branch
    %18 = sbr.rel target = $region3
  $region8: #{path_aware_resnet_gen_forward.18} parent=0 // loop_exit
    _

// kernel: path_aware_resnet_gen_forward.20
$region0: #{path_aware_resnet_gen_forward.20}
  #allocation0 [shape = 'u32[]', space=smem, size = 0x4, offset = 0x4, fixed_abs, tag = 'smem constant byte address 0x4 - core index']
  #allocation1 [shape = 'u32[72,128]{1,0:T(1,128)}', space=vmem, size = 0x9000, scoped, tag = 'internal scratch']
  #allocation2 [shape = 's32[1]{0}', space=sflag, size = 0x4, scoped, tag = 'scoped memory for path_aware_resnet_gen_forward.20']
  #allocation3 [shape = 'u8[512]{0}', space=smem, size = 0x200, scoped, tag = 'prefetched SMEM operand 0']
  %s0 = inlined_call_operand.vmem [shape: s32[2], index: 0, kind: input, shape index: {}]
  %s1 = inlined_call_operand.vmem [shape: bf16[2,256,400], index: 1, kind: input, shape index: {}]
  %s2 = inlined_call_operand.vmem [shape: bf16[3,400,16], index: 2, kind: input, shape index: {}]
  %s3 = inlined_call_operand.vmem [shape: f32[3,1,16], index: 3, kind: input, shape index: {}]
  %s4 = inlined_call_operand.vmem [shape: f32[2,256,16], index: 4, kind: output, shape index: {}]
  %s5 = sld [smem:[#allocation0]]
  $region45: #{path_aware_resnet_gen_forward.20} parent=0
    _
  %s7 = ssub.s32 1, %s5
  %s8 = scalar_select 0, %s7, %s5
  %s10 = sshll.u32 %s0, 4
  %s11 = int_to_ptr.vmem [resolvable:$true] %s10
  %13 = dma.vmem_to_smem %s11, 16, [#allocation3], [#allocation2]
  %15 = dma.done [#allocation2], 16
  %16 = sfence
  loop: start=0, step=1, limit=4
  $region2: #{path_aware_resnet_gen_forward.20} parent=0 // loop_pre_header
    _
  $region3: #{path_aware_resnet_gen_forward.20} parent=0 // loop_header
    %s18 = sphi 0, %s22
    %p19 = scmp.ge.s32.totalorder %s18, 4
    %s28 = sphi 0, %s30
    %s31 = sphi 0, %s28
    %s32 = sphi 0, %s31
    %s48 = sphi 0, %s32
    %s56 = sphi 0, %s58
    %s59 = sphi 0, %s56
    %s60 = sphi 0, %s59
    %s76 = sphi 0, %s60
    %s84 = sphi 0, %s86
    %s87 = sphi 0, %s84
    %s88 = sphi 0, %s87
    %s104 = sphi 0, %s88
    %s110 = sphi 0, %s112
    %s113 = sphi 0, %s110
    %s114 = sphi 0, %s113
    %s130 = sphi 0, %s114
  $region4: #{path_aware_resnet_gen_forward.20} parent=0 // loop_header_branch
    %21 = sbr.rel (%p19) target = $region8
  $region5: #{path_aware_resnet_gen_forward.20} parent=0 // loop_body
    %s23 = ssub.s32 %s18, 1
    %s24 = ssub.s32 %s18, 2
    %s25 = sadd.s32 %s18, 1
    %s26 = ssub.s32 %s18, %s25
    %p27 = scmp.eq.s32.totalorder %s26, 0
    %s29 = sadd.s32 %s28, 1
    %s30 = scalar_select %p27, %s28, %s29
    %p33 = pneg %p27
    %p34 = scmp.eq.s32.totalorder %s18, 1
    %p35 = por %p33, %p34
    %p36 = scmp.ne.s32.totalorder %s28, %s31
    %p37 = scmp.eq.s32.totalorder %s18, 0
    %p38 = por %p36, %p37
    %p39 = scmp.ne.s32.totalorder %s28, %s31
    %p40 = scmp.eq.s32.totalorder %s23, 1
    %p41 = por %p39, %p40
    %p42 = scmp.ne.s32.totalorder %s31, %s32
    %p43 = scmp.eq.s32.totalorder %s23, 0
    %p44 = por %p42, %p43
    %p45 = scmp.ne.s32.totalorder %s31, %s32
    %p46 = scmp.eq.s32.totalorder %s24, 1
    %p47 = por %p45, %p46
    %p49 = scmp.ne.s32.totalorder %s32, %s48
    %p50 = scmp.eq.s32.totalorder %s24, 0
    %p51 = por %p49, %p50
    %s52 = sld [smem:[#allocation3 + %s18]]
    %s53 = sld [smem:[#allocation3 + %s25]]
    %s54 = ssub.s32 %s52, %s53
    %p55 = scmp.eq.s32.totalorder %s54, 0
    %s57 = sadd.s32 %s56, 1
    %s58 = scalar_select %p55, %s56, %s57
    %p61 = pneg %p55
    %p62 = scmp.eq.s32.totalorder %s18, 1
    %p63 = por %p61, %p62
    %p64 = scmp.ne.s32.totalorder %s56, %s59
    %p65 = scmp.eq.s32.totalorder %s18, 0
    %p66 = por %p64, %p65
    %p67 = scmp.ne.s32.totalorder %s56, %s59
    %p68 = scmp.eq.s32.totalorder %s23, 1
    %p69 = por %p67, %p68
    %p70 = scmp.ne.s32.totalorder %s59, %s60
    %p71 = scmp.eq.s32.totalorder %s23, 0
    %p72 = por %p70, %p71
    %p73 = scmp.ne.s32.totalorder %s59, %s60
    %p74 = scmp.eq.s32.totalorder %s24, 1
    %p75 = por %p73, %p74
    %p77 = scmp.ne.s32.totalorder %s60, %s76
    %p78 = scmp.eq.s32.totalorder %s24, 0
    %p79 = por %p77, %p78
    %s80 = sld [smem:[#allocation3 + %s18]]
    %s81 = sld [smem:[#allocation3 + %s25]]
    %s82 = ssub.s32 %s80, %s81
    %p83 = scmp.eq.s32.totalorder %s82, 0
    %s85 = sadd.s32 %s84, 1
    %s86 = scalar_select %p83, %s84, %s85
    %p89 = pneg %p83
    %p90 = scmp.eq.s32.totalorder %s18, 1
    %p91 = por %p89, %p90
    %p92 = scmp.ne.s32.totalorder %s84, %s87
    %p93 = scmp.eq.s32.totalorder %s18, 0
    %p94 = por %p92, %p93
    %p95 = scmp.ne.s32.totalorder %s84, %s87
    %p96 = scmp.eq.s32.totalorder %s23, 1
    %p97 = por %p95, %p96
    %p98 = scmp.ne.s32.totalorder %s87, %s88
    %p99 = scmp.eq.s32.totalorder %s23, 0
    %p100 = por %p98, %p99
    %p101 = scmp.ne.s32.totalorder %s87, %s88
    %p102 = scmp.eq.s32.totalorder %s24, 1
    %p103 = por %p101, %p102
    %p105 = scmp.ne.s32.totalorder %s88, %s104
    %p106 = scmp.eq.s32.totalorder %s24, 0
    %p107 = por %p105, %p106
    %s108 = ssub.s32 %s18, %s25
    %p109 = scmp.eq.s32.totalorder %s108, 0
    %s111 = sadd.s32 %s110, 1
    %s112 = scalar_select %p109, %s110, %s111
    %p115 = pneg %p109
    %p116 = scmp.eq.s32.totalorder %s18, 1
    %p117 = por %p115, %p116
    %p118 = scmp.ne.s32.totalorder %s110, %s113
    %p119 = scmp.eq.s32.totalorder %s18, 0
    %p120 = por %p118, %p119
    %p121 = scmp.ne.s32.totalorder %s110, %s113
    %p122 = scmp.eq.s32.totalorder %s23, 1
    %p123 = por %p121, %p122
    %p124 = scmp.ne.s32.totalorder %s113, %s114
    %p125 = scmp.eq.s32.totalorder %s23, 0
    %p126 = por %p124, %p125
    %p127 = scmp.ne.s32.totalorder %s113, %s114
    %p128 = scmp.eq.s32.totalorder %s24, 1
    %p129 = por %p127, %p128
    %p131 = scmp.ne.s32.totalorder %s114, %s130
    %p132 = scmp.eq.s32.totalorder %s24, 0
    %p133 = por %p131, %p132
    %p134 = scmp.le.s32.totalorder 1, %s18
    %p135 = scmp.lt.s32.totalorder %s18, 3
    %p136 = pnand %p134, %p135
    %p137 = pneg %p136
    // Predicated region
    $region9: #{path_aware_resnet_gen_forward.20} parent=5 // pred_check
      _
    $region10: #{path_aware_resnet_gen_forward.20} parent=5 // pred_check_branch
      %139 = sbr.rel (%p136) target = $region12
    $region11: #{path_aware_resnet_gen_forward.20} parent=5 // pred_region
      %s140 = ssub.s32 %s18, 1
    $region12: #{path_aware_resnet_gen_forward.20} parent=5 // pred_fallthru
      _
    %p141 = scmp.lt.s32.totalorder %s18, 2
    // Predicated region
    $region13: #{path_aware_resnet_gen_forward.20} parent=5 // pred_check
      %p142 = pneg %p141
    $region14: #{path_aware_resnet_gen_forward.20} parent=5 // pred_check_branch
      %144 = sbr.rel (%p142) target = $region16
    $region15: #{path_aware_resnet_gen_forward.20} parent=5 // pred_region
      // Predicated region
      $region17: #{path_aware_resnet_gen_forward.20} parent=15 // pred_check
        %p145 = pneg %p38
      $region18: #{path_aware_resnet_gen_forward.20} parent=15 // pred_check_branch
        %147 = sbr.rel (%p145) target = $region20
      $region19: #{path_aware_resnet_gen_forward.20} parent=15 // pred_region
        %p148 = scmp.lt.s32.totalorder %s18, 1
        %s149 = scalar_select %p148, %s18, 1
        %s150 = smul.addr %s149, 128
        %s151 = smul.addr %s150, 4
        %s152 = scalar_lea.vmem %s1, %s151
      $region20: #{path_aware_resnet_gen_forward.20} parent=15 // pred_fallthru
        _
      // Predicated region
      $region21: #{path_aware_resnet_gen_forward.20} parent=15 // pred_check
        %p153 = pneg %p66
      $region22: #{path_aware_resnet_gen_forward.20} parent=15 // pred_check_branch
        %155 = sbr.rel (%p153) target = $region24
      $region23: #{path_aware_resnet_gen_forward.20} parent=15 // pred_region
        %s156 = sld [smem:[#allocation3 + %s18]]
        %p157 = scmp.lt.s32.totalorder %s156, 2
        %s158 = scalar_select %p157, %s156, 2
        %s159 = smul.addr %s158, 50
        %s160 = smul.addr %s159, 4
        %s161 = scalar_lea.vmem %s2, %s160
        %s162 = sld [smem:[#allocation3 + %s18]]
      $region24: #{path_aware_resnet_gen_forward.20} parent=15 // pred_fallthru
        _
      // Predicated region
      $region25: #{path_aware_resnet_gen_forward.20} parent=15 // pred_check
        %p163 = pneg %p94
      $region26: #{path_aware_resnet_gen_forward.20} parent=15 // pred_check_branch
        %165 = sbr.rel (%p163) target = $region28
      $region27: #{path_aware_resnet_gen_forward.20} parent=15 // pred_region
        %s166 = sld [smem:[#allocation3 + %s18]]
        %p167 = scmp.lt.s32.totalorder %s166, 2
        %s168 = scalar_select %p167, %s166, 2
        %s169 = scalar_lea.vmem %s3, %s168
        %s170 = sld [smem:[#allocation3 + %s18]]
      $region28: #{path_aware_resnet_gen_forward.20} parent=15 // pred_fallthru
        _
    $region16: #{path_aware_resnet_gen_forward.20} parent=5 // pred_fallthru
      _
    %p171 = scmp.le.s32.totalorder 1, %s18
    %p172 = scmp.lt.s32.totalorder %s18, 3
    %p173 = pnand %p171, %p172
    %p174 = pneg %p173
    // Predicated region
    $region29: #{path_aware_resnet_gen_forward.20} parent=5 // pred_check
      _
    $region30: #{path_aware_resnet_gen_forward.20} parent=5 // pred_check_branch
      %176 = sbr.rel (%p173) target = $region32
    $region31: #{path_aware_resnet_gen_forward.20} parent=5 // pred_region
      %s177 = ssub.s32 %s18, 1
      %p178 = scmp.lt.s32.totalorder %s23, 1
      %s179 = scalar_select %p178, %s23, 1
      %s180 = smul.addr %s179, 128
      %s181 = smul.addr %s180, 4
      %s182 = scalar_lea.vmem %s1, %s181
      %p183 = pneg %p44
      %p184 = pneg %p41
      %s185 = sld [smem:[#allocation3 + %s23]]
      %p186 = scmp.lt.s32.totalorder %s185, 2
      %s187 = scalar_select %p186, %s185, 2
      %s188 = smul.addr %s187, 50
      %s189 = smul.addr %s188, 4
      %s190 = scalar_lea.vmem %s2, %s189
      %p191 = pneg %p72
      %p192 = pneg %p69
      %s193 = sld [smem:[#allocation3 + %s23]]
      %p194 = scmp.lt.s32.totalorder %s193, 2
      %s195 = scalar_select %p194, %s193, 2
      %s196 = scalar_lea.vmem %s3, %s195
      %p197 = pneg %p100
      %p198 = pneg %p97
      %p199 = pneg %p126
      %p200 = pneg %p123
      %p201 = scmp.lt.s32.totalorder %s23, 1
      %s202 = scalar_select %p201, %s23, 1
      %s203 = smul.addr %s202, 32
      %s204 = smul.addr %s203, 8
      %s205 = scalar_lea.vmem %s4, %s204
      %p206 = scmp.lt.s32.totalorder %s23, 1
      %s207 = scalar_select %p206, %s23, 1
      %s208 = smul.addr %s207, 128
      %s209 = smul.addr %s208, 4
      %s210 = scalar_lea.vmem %s1, %s209
      %s211 = sld [smem:[#allocation3 + %s23]]
      %p212 = scmp.lt.s32.totalorder %s211, 2
      %s213 = scalar_select %p212, %s211, 2
      %s214 = smul.addr %s213, 50
      %s215 = smul.addr %s214, 4
      %s216 = scalar_lea.vmem %s2, %s215
      %s217 = sld [smem:[#allocation3 + %s23]]
      %s218 = sld [smem:[#allocation3 + %s23]]
      %p219 = scmp.lt.s32.totalorder %s218, 2
      %s220 = scalar_select %p219, %s218, 2
      %s221 = scalar_lea.vmem %s3, %s220
      %s222 = sld [smem:[#allocation3 + %s23]]
      %p223 = scmp.lt.s32.totalorder %s23, 1
      %s224 = scalar_select %p223, %s23, 1
      %s225 = smul.addr %s224, 32
      %s226 = smul.addr %s225, 8
      %s227 = scalar_lea.vmem %s4, %s226
      %v229 = vld [vmem:[%s210] sm:$0xff]
      %v230 = vld [vmem:[%s210 + $0x8] sm:$0xff]
      %v231 = vld [vmem:[%s210 + $0x10] sm:$0xff]
      %v232 = vld [vmem:[%s210 + $0x18] sm:$0xff]
      %v233 = vld [vmem:[%s210 + $0x20] sm:$0xff]
      %v234 = vld [vmem:[%s210 + $0x28] sm:$0xff]
      %v235 = vld [vmem:[%s210 + $0x30] sm:$0xff]
      %v236 = vld [vmem:[%s210 + $0x38] sm:$0xff]
      %v237 = vld [vmem:[%s210 + $0x40] sm:$0xff]
      %v238 = vld [vmem:[%s210 + $0x48] sm:$0xff]
      %v239 = vld [vmem:[%s210 + $0x50] sm:$0xff]
      %v240 = vld [vmem:[%s210 + $0x58] sm:$0xff]
      %v241 = vld [vmem:[%s210 + $0x60] sm:$0xff]
      %v242 = vld [vmem:[%s210 + $0x68] sm:$0xff]
      %v243 = vld [vmem:[%s210 + $0x70] sm:$0xff]
      %v244 = vld [vmem:[%s210 + $0x78] sm:$0xff]
      %v245 = vld [vmem:[%s210 + $0x80] sm:$0xff]
      %v246 = vld [vmem:[%s210 + $0x88] sm:$0xff]
      %v247 = vld [vmem:[%s210 + $0x90] sm:$0xff]
      %v248 = vld [vmem:[%s210 + $0x98] sm:$0xff]
      %v249 = vld [vmem:[%s210 + $0xa0] sm:$0xff]
      %v250 = vld [vmem:[%s210 + $0xa8] sm:$0xff]
      %v251 = vld [vmem:[%s210 + $0xb0] sm:$0xff]
      %v252 = vld [vmem:[%s210 + $0xb8] sm:$0xff]
      %v253 = vld [vmem:[%s210 + $0xc0] sm:$0xff]
      %v254 = vld [vmem:[%s210 + $0xc8] sm:$0xff]
      %v255 = vld [vmem:[%s210 + $0xd0] sm:$0xff]
      %v256 = vld [vmem:[%s210 + $0xd8] sm:$0xff]
      %v257 = vld [vmem:[%s210 + $0xe0] sm:$0xff]
      %v258 = vld [vmem:[%s210 + $0xe8] sm:$0xff]
      %v259 = vld [vmem:[%s210 + $0xf0] sm:$0xff]
      %v260 = vld [vmem:[%s210 + $0xf8] sm:$0xff]
      %v261 = vld [vmem:[%s210 + $0x100] sm:$0xff]
      %v262 = vld [vmem:[%s210 + $0x108] sm:$0xff]
      %v263 = vld [vmem:[%s210 + $0x110] sm:$0xff]
      %v264 = vld [vmem:[%s210 + $0x118] sm:$0xff]
      %v265 = vld [vmem:[%s210 + $0x120] sm:$0xff]
      %v266 = vld [vmem:[%s210 + $0x128] sm:$0xff]
      %v267 = vld [vmem:[%s210 + $0x130] sm:$0xff]
      %v268 = vld [vmem:[%s210 + $0x138] sm:$0xff]
      %v269 = vld [vmem:[%s210 + $0x140] sm:$0xff]
      %v270 = vld [vmem:[%s210 + $0x148] sm:$0xff]
      %v271 = vld [vmem:[%s210 + $0x150] sm:$0xff]
      %v272 = vld [vmem:[%s210 + $0x158] sm:$0xff]
      %v273 = vld [vmem:[%s210 + $0x160] sm:$0xff]
      %v274 = vld [vmem:[%s210 + $0x168] sm:$0xff]
      %v275 = vld [vmem:[%s210 + $0x170] sm:$0xff]
      %v276 = vld [vmem:[%s210 + $0x178] sm:$0xff]
      %v277 = vld [vmem:[%s210 + $0x180] sm:$0xff]
      %v278 = vld [vmem:[%s210 + $0x188] sm:$0xff]
      %v279 = vld [vmem:[%s210 + $0x190] sm:$0xff]
      %v280 = vld [vmem:[%s210 + $0x198] sm:$0xff]
      %v281 = vld [vmem:[%s210 + $0x1a0] sm:$0xff]
      %v282 = vld [vmem:[%s210 + $0x1a8] sm:$0xff]
      %v283 = vld [vmem:[%s210 + $0x1b0] sm:$0xff]
      %v284 = vld [vmem:[%s210 + $0x1b8] sm:$0xff]
      %v285 = vld [vmem:[%s210 + $0x1c0] sm:$0xff]
      %v286 = vld [vmem:[%s210 + $0x1c8] sm:$0xff]
      %v287 = vld [vmem:[%s210 + $0x1d0] sm:$0xff]
      %v288 = vld [vmem:[%s210 + $0x1d8] sm:$0xff]
      %v289 = vld [vmem:[%s210 + $0x1e0] sm:$0xff]
      %v290 = vld [vmem:[%s210 + $0x1e8] sm:$0xff]
      %v291 = vld [vmem:[%s210 + $0x1f0] sm:$0xff]
      %v292 = vld [vmem:[%s210 + $0x1f8] sm:$0xff]
      %v293 = vld [vmem:[%s216] sm:$0xf]
      %v294 = vld [vmem:[%s216 + $0x4] sm:$0xf]
      %v295 = vld [vmem:[%s216 + $0x8] sm:$0xf]
      %v296 = vld [vmem:[%s216 + $0xc] sm:$0xf]
      %v297 = vld [vmem:[%s216 + $0x10] sm:$0xf]
      %v298 = vld [vmem:[%s216 + $0x14] sm:$0xf]
      %v299 = vld [vmem:[%s216 + $0x18] sm:$0xf]
      %v300 = vld [vmem:[%s216 + $0x1c] sm:$0xf]
      %v301 = vld [vmem:[%s216 + $0x20] sm:$0xf]
      %v302 = vld [vmem:[%s216 + $0x24] sm:$0xf]
      %v303 = vld [vmem:[%s216 + $0x28] sm:$0xf]
      %v304 = vld [vmem:[%s216 + $0x2c] sm:$0xf]
      %v305 = vld [vmem:[%s216 + $0x30] sm:$0xf]
      %v306 = vld [vmem:[%s216 + $0x34] sm:$0xf]
      %v307 = vld [vmem:[%s216 + $0x38] sm:$0xf]
      %v308 = vld [vmem:[%s216 + $0x3c] sm:$0xf]
      %v309 = vld [vmem:[%s216 + $0x40] sm:$0xf]
      %v310 = vld [vmem:[%s216 + $0x44] sm:$0xf]
      %v311 = vld [vmem:[%s216 + $0x48] sm:$0xf]
      %v312 = vld [vmem:[%s216 + $0x4c] sm:$0xf]
      %v313 = vld [vmem:[%s216 + $0x50] sm:$0xf]
      %v314 = vld [vmem:[%s216 + $0x54] sm:$0xf]
      %v315 = vld [vmem:[%s216 + $0x58] sm:$0xf]
      %v316 = vld [vmem:[%s216 + $0x5c] sm:$0xf]
      %v317 = vld [vmem:[%s216 + $0x60] sm:$0xf]
      %v318 = vld [vmem:[%s216 + $0x64] sm:$0xf]
      %v319 = vld [vmem:[%s216 + $0x68] sm:$0xf]
      %v320 = vld [vmem:[%s216 + $0x6c] sm:$0xf]
      %v321 = vld [vmem:[%s216 + $0x70] sm:$0xf]
      %v322 = vld [vmem:[%s216 + $0x74] sm:$0xf]
      %v323 = vld [vmem:[%s216 + $0x78] sm:$0xf]
      %v324 = vld [vmem:[%s216 + $0x7c] sm:$0xf]
      %v325 = vld [vmem:[%s216 + $0x80] sm:$0xf]
      %v326 = vld [vmem:[%s216 + $0x84] sm:$0xf]
      %v327 = vld [vmem:[%s216 + $0x88] sm:$0xf]
      %v328 = vld [vmem:[%s216 + $0x8c] sm:$0xf]
      %v329 = vld [vmem:[%s216 + $0x90] sm:$0xf]
      %v330 = vld [vmem:[%s216 + $0x94] sm:$0xf]
      %v331 = vld [vmem:[%s216 + $0x98] sm:$0xf]
      %v332 = vld [vmem:[%s216 + $0x9c] sm:$0xf]
      %v333 = vld [vmem:[%s216 + $0xa0] sm:$0xf]
      %v334 = vld [vmem:[%s216 + $0xa4] sm:$0xf]
      %v335 = vld [vmem:[%s216 + $0xa8] sm:$0xf]
      %v336 = vld [vmem:[%s216 + $0xac] sm:$0xf]
      %v337 = vld [vmem:[%s216 + $0xb0] sm:$0xf]
      %v338 = vld [vmem:[%s216 + $0xb4] sm:$0xf]
      %v339 = vld [vmem:[%s216 + $0xb8] sm:$0xf]
      %v340 = vld [vmem:[%s216 + $0xbc] sm:$0xf]
      %v341 = vld [vmem:[%s216 + $0xc0] sm:$0xf]
      %v342 = vld [vmem:[%s216 + $0xc4] sm:$0xf]
      %v343 = vld [vmem:[%s221] sm:$0x1]
      %v345 = vperm.slane %v343, 0
      %v411 = vunpack.c.l.b16 %v229
      %v412 = vunpack.c.h.b16 %v229
      %v413 = vunpack.c.l.b16 %v230
      %v414 = vunpack.c.h.b16 %v230
      %v415 = vunpack.c.l.b16 %v231
      %v416 = vunpack.c.h.b16 %v231
      %v417 = vunpack.c.l.b16 %v232
      %v418 = vunpack.c.h.b16 %v232
      %v419 = vunpack.c.l.b16 %v233
      %v420 = vunpack.c.h.b16 %v233
      %v421 = vunpack.c.l.b16 %v234
      %v422 = vunpack.c.h.b16 %v234
      %v423 = vunpack.c.l.b16 %v235
      %v424 = vunpack.c.h.b16 %v235
      %v425 = vunpack.c.l.b16 %v236
      %v426 = vunpack.c.h.b16 %v236
      %v427 = vunpack.c.l.b16 %v237
      %v428 = vunpack.c.h.b16 %v237
      %v429 = vunpack.c.l.b16 %v238
      %v430 = vunpack.c.h.b16 %v238
      %v431 = vunpack.c.l.b16 %v239
      %v432 = vunpack.c.h.b16 %v239
      %v433 = vunpack.c.l.b16 %v240
      %v434 = vunpack.c.h.b16 %v240
      %v435 = vunpack.c.l.b16 %v241
      %v436 = vunpack.c.h.b16 %v241
      %v437 = vunpack.c.l.b16 %v242
      %v438 = vunpack.c.h.b16 %v242
      %v439 = vunpack.c.l.b16 %v243
      %v440 = vunpack.c.h.b16 %v243
      %v441 = vunpack.c.l.b16 %v244
      %v442 = vunpack.c.h.b16 %v244
      %v443 = vunpack.c.l.b16 %v245
      %v444 = vunpack.c.h.b16 %v245
      %v445 = vunpack.c.l.b16 %v246
      %v446 = vunpack.c.h.b16 %v246
      %v447 = vunpack.c.l.b16 %v247
      %v448 = vunpack.c.h.b16 %v247
      %v449 = vunpack.c.l.b16 %v248
      %v450 = vunpack.c.h.b16 %v248
      %v451 = vunpack.c.l.b16 %v249
      %v452 = vunpack.c.h.b16 %v249
      %v453 = vunpack.c.l.b16 %v250
      %v454 = vunpack.c.h.b16 %v250
      %v455 = vunpack.c.l.b16 %v251
      %v456 = vunpack.c.h.b16 %v251
      %v457 = vunpack.c.l.b16 %v252
      %v458 = vunpack.c.h.b16 %v252
      %v459 = vunpack.c.l.b16 %v253
      %v460 = vunpack.c.h.b16 %v253
      %v461 = vunpack.c.l.b16 %v254
      %v462 = vunpack.c.h.b16 %v254
      %v463 = vunpack.c.l.b16 %v255
      %v464 = vunpack.c.h.b16 %v255
      %v465 = vunpack.c.l.b16 %v256
      %v466 = vunpack.c.h.b16 %v256
      %v467 = vunpack.c.l.b16 %v257
      %v468 = vunpack.c.h.b16 %v257
      %v469 = vunpack.c.l.b16 %v258
      %v470 = vunpack.c.h.b16 %v258
      %v471 = vunpack.c.l.b16 %v259
      %v472 = vunpack.c.h.b16 %v259
      %v473 = vunpack.c.l.b16 %v260
      %v474 = vunpack.c.h.b16 %v260
      %v475 = vunpack.c.l.b16 %v261
      %v476 = vunpack.c.h.b16 %v261
      %v477 = vunpack.c.l.b16 %v262
      %v478 = vunpack.c.h.b16 %v262
      %v479 = vunpack.c.l.b16 %v263
      %v480 = vunpack.c.h.b16 %v263
      %v481 = vunpack.c.l.b16 %v264
      %v482 = vunpack.c.h.b16 %v264
      %v483 = vunpack.c.l.b16 %v265
      %v484 = vunpack.c.h.b16 %v265
      %v485 = vunpack.c.l.b16 %v266
      %v486 = vunpack.c.h.b16 %v266
      %v487 = vunpack.c.l.b16 %v267
      %v488 = vunpack.c.h.b16 %v267
      %v489 = vunpack.c.l.b16 %v268
      %v490 = vunpack.c.h.b16 %v268
      %v491 = vunpack.c.l.b16 %v269
      %v492 = vunpack.c.h.b16 %v269
      %v493 = vunpack.c.l.b16 %v270
      %v494 = vunpack.c.h.b16 %v270
      %v495 = vunpack.c.l.b16 %v271
      %v496 = vunpack.c.h.b16 %v271
      %v497 = vunpack.c.l.b16 %v272
      %v498 = vunpack.c.h.b16 %v272
      %v499 = vunpack.c.l.b16 %v273
      %v500 = vunpack.c.h.b16 %v273
      %v501 = vunpack.c.l.b16 %v274
      %v502 = vunpack.c.h.b16 %v274
      %v503 = vunpack.c.l.b16 %v275
      %v504 = vunpack.c.h.b16 %v275
      %v505 = vunpack.c.l.b16 %v276
      %v506 = vunpack.c.h.b16 %v276
      %v507 = vunpack.c.l.b16 %v277
      %v508 = vunpack.c.h.b16 %v277
      %v509 = vunpack.c.l.b16 %v278
      %v510 = vunpack.c.h.b16 %v278
      %v511 = vunpack.c.l.b16 %v279
      %v512 = vunpack.c.h.b16 %v279
      %v513 = vunpack.c.l.b16 %v280
      %v514 = vunpack.c.h.b16 %v280
      %v515 = vunpack.c.l.b16 %v281
      %v516 = vunpack.c.h.b16 %v281
      %v517 = vunpack.c.l.b16 %v282
      %v518 = vunpack.c.h.b16 %v282
      %v519 = vunpack.c.l.b16 %v283
      %v520 = vunpack.c.h.b16 %v283
      %v521 = vunpack.c.l.b16 %v284
      %v522 = vunpack.c.h.b16 %v284
      %v523 = vunpack.c.l.b16 %v285
      %v524 = vunpack.c.h.b16 %v285
      %v525 = vunpack.c.l.b16 %v286
      %v526 = vunpack.c.h.b16 %v286
      %v527 = vunpack.c.l.b16 %v287
      %v528 = vunpack.c.h.b16 %v287
      %v529 = vunpack.c.l.b16 %v288
      %v530 = vunpack.c.h.b16 %v288
      %v531 = vunpack.c.l.b16 %v289
      %v532 = vunpack.c.h.b16 %v289
      %v533 = vunpack.c.l.b16 %v290
      %v534 = vunpack.c.h.b16 %v290
      %v535 = vunpack.c.l.b16 %v291
      %v536 = vunpack.c.h.b16 %v291
      %v537 = vunpack.c.l.b16 %v292
      %v538 = vunpack.c.h.b16 %v292
      %v539 = vpack.c.b16 %v415, %v411
      %v540 = vpack.c.b16 %v416, %v412
      %v541 = vpack.c.b16 %v417, %v413
      %v542 = vpack.c.b16 %v418, %v414
      %v543 = vpack.c.b16 %v423, %v419
      %v544 = vpack.c.b16 %v424, %v420
      %v545 = vpack.c.b16 %v425, %v421
      %v546 = vpack.c.b16 %v426, %v422
      %v547 = vpack.c.b16 %v431, %v427
      %v548 = vpack.c.b16 %v432, %v428
      %v549 = vpack.c.b16 %v433, %v429
      %v550 = vpack.c.b16 %v434, %v430
      %v551 = vpack.c.b16 %v439, %v435
      %v552 = vpack.c.b16 %v440, %v436
      %v553 = vpack.c.b16 %v441, %v437
      %v554 = vpack.c.b16 %v442, %v438
      %v555 = vpack.c.b16 %v447, %v443
      %v556 = vpack.c.b16 %v448, %v444
      %v557 = vpack.c.b16 %v449, %v445
      %v558 = vpack.c.b16 %v450, %v446
      %v559 = vpack.c.b16 %v455, %v451
      %v560 = vpack.c.b16 %v456, %v452
      %v561 = vpack.c.b16 %v457, %v453
      %v562 = vpack.c.b16 %v458, %v454
      %v563 = vpack.c.b16 %v463, %v459
      %v564 = vpack.c.b16 %v464, %v460
      %v565 = vpack.c.b16 %v465, %v461
      %v566 = vpack.c.b16 %v466, %v462
      %v567 = vpack.c.b16 %v471, %v467
      %v568 = vpack.c.b16 %v472, %v468
      %v569 = vpack.c.b16 %v473, %v469
      %v570 = vpack.c.b16 %v474, %v470
      %v571 = vpack.c.b16 %v479, %v475
      %v572 = vpack.c.b16 %v480, %v476
      %v573 = vpack.c.b16 %v481, %v477
      %v574 = vpack.c.b16 %v482, %v478
      %v575 = vpack.c.b16 %v487, %v483
      %v576 = vpack.c.b16 %v488, %v484
      %v577 = vpack.c.b16 %v489, %v485
      %v578 = vpack.c.b16 %v490, %v486
      %v579 = vpack.c.b16 %v495, %v491
      %v580 = vpack.c.b16 %v496, %v492
      %v581 = vpack.c.b16 %v497, %v493
      %v582 = vpack.c.b16 %v498, %v494
      %v583 = vpack.c.b16 %v503, %v499
      %v584 = vpack.c.b16 %v504, %v500
      %v585 = vpack.c.b16 %v505, %v501
      %v586 = vpack.c.b16 %v506, %v502
      %v587 = vpack.c.b16 %v511, %v507
      %v588 = vpack.c.b16 %v512, %v508
      %v589 = vpack.c.b16 %v513, %v509
      %v590 = vpack.c.b16 %v514, %v510
      %v591 = vpack.c.b16 %v519, %v515
      %v592 = vpack.c.b16 %v520, %v516
      %v593 = vpack.c.b16 %v521, %v517
      %v594 = vpack.c.b16 %v522, %v518
      %v595 = vpack.c.b16 %v527, %v523
      %v596 = vpack.c.b16 %v528, %v524
      %v597 = vpack.c.b16 %v529, %v525
      %v598 = vpack.c.b16 %v530, %v526
      %v599 = vpack.c.b16 %v535, %v531
      %v600 = vpack.c.b16 %v536, %v532
      %v601 = vpack.c.b16 %v537, %v533
      %v602 = vpack.c.b16 %v538, %v534
      %v701 = vunpack.c.l.b16 %v293
      %v702 = vunpack.c.l.b16 %v294
      %v703 = vunpack.c.l.b16 %v295
      %v704 = vunpack.c.l.b16 %v296
      %v705 = vunpack.c.l.b16 %v297
      %v706 = vunpack.c.l.b16 %v298
      %v707 = vunpack.c.l.b16 %v299
      %v708 = vunpack.c.l.b16 %v300
      %v709 = vunpack.c.l.b16 %v301
      %v710 = vunpack.c.l.b16 %v302
      %v711 = vunpack.c.l.b16 %v303
      %v712 = vunpack.c.l.b16 %v304
      %v713 = vunpack.c.l.b16 %v305
      %v714 = vunpack.c.l.b16 %v306
      %v715 = vunpack.c.l.b16 %v307
      %v716 = vunpack.c.l.b16 %v308
      %v717 = vunpack.c.l.b16 %v309
      %v718 = vunpack.c.l.b16 %v310
      %v719 = vunpack.c.l.b16 %v311
      %v720 = vunpack.c.l.b16 %v312
      %v721 = vunpack.c.l.b16 %v313
      %v722 = vunpack.c.l.b16 %v314
      %v723 = vunpack.c.l.b16 %v315
      %v724 = vunpack.c.l.b16 %v316
      %v725 = vunpack.c.l.b16 %v317
      %v726 = vunpack.c.l.b16 %v318
      %v727 = vunpack.c.l.b16 %v319
      %v728 = vunpack.c.l.b16 %v320
      %v729 = vunpack.c.l.b16 %v321
      %v730 = vunpack.c.l.b16 %v322
      %v731 = vunpack.c.l.b16 %v323
      %v732 = vunpack.c.l.b16 %v324
      %v733 = vunpack.c.l.b16 %v325
      %v734 = vunpack.c.l.b16 %v326
      %v735 = vunpack.c.l.b16 %v327
      %v736 = vunpack.c.l.b16 %v328
      %v737 = vunpack.c.l.b16 %v329
      %v738 = vunpack.c.l.b16 %v330
      %v739 = vunpack.c.l.b16 %v331
      %v740 = vunpack.c.l.b16 %v332
      %v741 = vunpack.c.l.b16 %v333
      %v742 = vunpack.c.l.b16 %v334
      %v743 = vunpack.c.l.b16 %v335
      %v744 = vunpack.c.l.b16 %v336
      %v745 = vunpack.c.l.b16 %v337
      %v746 = vunpack.c.l.b16 %v338
      %v747 = vunpack.c.l.b16 %v339
      %v748 = vunpack.c.l.b16 %v340
      %v749 = vunpack.c.l.b16 %v341
      %v750 = vunpack.c.l.b16 %v342
      %v751 = vpack.c.b16 %v702, %v701
      %v752 = vpack.c.b16 %v704, %v703
      %v753 = vpack.c.b16 %v706, %v705
      %v754 = vpack.c.b16 %v708, %v707
      %v755 = vpack.c.b16 %v710, %v709
      %v756 = vpack.c.b16 %v712, %v711
      %v757 = vpack.c.b16 %v714, %v713
      %v758 = vpack.c.b16 %v716, %v715
      %v759 = vpack.c.b16 %v718, %v717
      %v760 = vpack.c.b16 %v720, %v719
      %v761 = vpack.c.b16 %v722, %v721
      %v762 = vpack.c.b16 %v724, %v723
      %v763 = vpack.c.b16 %v726, %v725
      %v764 = vpack.c.b16 %v728, %v727
      %v765 = vpack.c.b16 %v730, %v729
      %v766 = vpack.c.b16 %v732, %v731
      %v767 = vpack.c.b16 %v734, %v733
      %v768 = vpack.c.b16 %v736, %v735
      %v769 = vpack.c.b16 %v738, %v737
      %v770 = vpack.c.b16 %v740, %v739
      %v771 = vpack.c.b16 %v742, %v741
      %v772 = vpack.c.b16 %v744, %v743
      %v773 = vpack.c.b16 %v746, %v745
      %v774 = vpack.c.b16 %v748, %v747
      %v775 = vpack.c.b16 %v750, %v749
      %vm801 = vcmask 130048
      %v803 = vsel %vm801, %v542, 0
      %v806 = vsel %vm801, %v546, 0
      %v809 = vsel %vm801, %v550, 0
      %v812 = vsel %vm801, %v554, 0
      %v815 = vsel %vm801, %v558, 0
      %v818 = vsel %vm801, %v562, 0
      %v821 = vsel %vm801, %v566, 0
      %v824 = vsel %vm801, %v570, 0
      %v827 = vsel %vm801, %v574, 0
      %v830 = vsel %vm801, %v578, 0
      %v833 = vsel %vm801, %v582, 0
      %v836 = vsel %vm801, %v586, 0
      %v839 = vsel %vm801, %v590, 0
      %v842 = vsel %vm801, %v594, 0
      %v845 = vsel %vm801, %v598, 0
      %v848 = vsel %vm801, %v602, 0
      %850 = vmatpush.bf16.msra.mxu0 %v758
      %851 = vmatpush.bf16.msra.mxu0 %v757
      %852 = vmatpush.bf16.msra.mxu0 %v756
      %853 = vmatpush.bf16.msra.mxu0 %v755
      %854 = vmatpush.bf16.msra.mxu0 %v754
      %855 = vmatpush.bf16.msra.mxu0 %v753
      %856 = vmatpush.bf16.msra.mxu0 %v752
      %857 = vmatpush.bf16.msra.mxu0 %v751
      %858 = vmatmul.bf16.gmra.mxu0 %v539
      %v859 = vpop.f32.mrf.mxu0
      %v860 = vadd.f32 %v345, %v859
      %v861 = vpop.f32.mrf.mxu0
      %v862 = vadd.f32 %v345, %v861
      %863 = vmatmul.bf16.gmra.mxu0 %v543
      %v864 = vpop.f32.mrf.mxu0
      %v865 = vadd.f32 %v345, %v864
      %v866 = vpop.f32.mrf.mxu0
      %v867 = vadd.f32 %v345, %v866
      %868 = vmatmul.bf16.gmra.mxu0 %v547
      %v869 = vpop.f32.mrf.mxu0
      %v870 = vadd.f32 %v345, %v869
      %v871 = vpop.f32.mrf.mxu0
      %v872 = vadd.f32 %v345, %v871
      %873 = vmatmul.bf16.gmra.mxu0 %v551
      %v874 = vpop.f32.mrf.mxu0
      %v875 = vadd.f32 %v345, %v874
      %v876 = vpop.f32.mrf.mxu0
      %v877 = vadd.f32 %v345, %v876
      %878 = vmatmul.bf16.gmra.mxu0 %v555
      %v879 = vpop.f32.mrf.mxu0
      %v880 = vadd.f32 %v345, %v879
      %v881 = vpop.f32.mrf.mxu0
      %v882 = vadd.f32 %v345, %v881
      %883 = vmatmul.bf16.gmra.mxu0 %v559
      %v884 = vpop.f32.mrf.mxu0
      %v885 = vadd.f32 %v345, %v884
      %v886 = vpop.f32.mrf.mxu0
      %v887 = vadd.f32 %v345, %v886
      %888 = vmatmul.bf16.gmra.mxu0 %v563
      %v889 = vpop.f32.mrf.mxu0
      %v890 = vadd.f32 %v345, %v889
      %v891 = vpop.f32.mrf.mxu0
      %v892 = vadd.f32 %v345, %v891
      %893 = vmatmul.bf16.gmra.mxu0 %v567
      %v894 = vpop.f32.mrf.mxu0
      %v895 = vadd.f32 %v345, %v894
      %v896 = vpop.f32.mrf.mxu0
      %v897 = vadd.f32 %v345, %v896
      %898 = vmatmul.bf16.gmra.mxu0 %v571
      %v899 = vpop.f32.mrf.mxu0
      %v900 = vadd.f32 %v345, %v899
      %v901 = vpop.f32.mrf.mxu0
      %v902 = vadd.f32 %v345, %v901
      %903 = vmatmul.bf16.gmra.mxu0 %v575
      %v904 = vpop.f32.mrf.mxu0
      %v905 = vadd.f32 %v345, %v904
      %v906 = vpop.f32.mrf.mxu0
      %v907 = vadd.f32 %v345, %v906
      %908 = vmatmul.bf16.gmra.mxu0 %v579
      %v909 = vpop.f32.mrf.mxu0
      %v910 = vadd.f32 %v345, %v909
      %v911 = vpop.f32.mrf.mxu0
      %v912 = vadd.f32 %v345, %v911
      %913 = vmatmul.bf16.gmra.mxu0 %v583
      %v914 = vpop.f32.mrf.mxu0
      %v915 = vadd.f32 %v345, %v914
      %v916 = vpop.f32.mrf.mxu0
      %v917 = vadd.f32 %v345, %v916
      %918 = vmatmul.bf16.gmra.mxu0 %v587
      %v919 = vpop.f32.mrf.mxu0
      %v920 = vadd.f32 %v345, %v919
      %v921 = vpop.f32.mrf.mxu0
      %v922 = vadd.f32 %v345, %v921
      %923 = vmatmul.bf16.gmra.mxu0 %v591
      %v924 = vpop.f32.mrf.mxu0
      %v925 = vadd.f32 %v345, %v924
      %v926 = vpop.f32.mrf.mxu0
      %v927 = vadd.f32 %v345, %v926
      %928 = vmatmul.bf16.gmra.mxu0 %v595
      %v929 = vpop.f32.mrf.mxu0
      %v930 = vadd.f32 %v345, %v929
      %v931 = vpop.f32.mrf.mxu0
      %v932 = vadd.f32 %v345, %v931
      %933 = vmatmul.bf16.gmra.mxu0 %v599
      %v934 = vpop.f32.mrf.mxu0
      %v935 = vadd.f32 %v345, %v934
      %v936 = vpop.f32.mrf.mxu0
      %v937 = vadd.f32 %v345, %v936
      %938 = vdwg.mxu0
      %939 = vmatpush.bf16.msra.mxu0 %v766
      %940 = vmatpush.bf16.msra.mxu0 %v765
      %941 = vmatpush.bf16.msra.mxu0 %v764
      %942 = vmatpush.bf16.msra.mxu0 %v763
      %943 = vmatpush.bf16.msra.mxu0 %v762
      %944 = vmatpush.bf16.msra.mxu0 %v761
      %945 = vmatpush.bf16.msra.mxu0 %v760
      %946 = vmatpush.bf16.msra.mxu0 %v759
      %947 = vmatmul.bf16.gmra.mxu0 %v540
      %v948 = vpop.f32.mrf.mxu0
      %v949 = vadd.f32 %v860, %v948
      %v950 = vpop.f32.mrf.mxu0
      %v951 = vadd.f32 %v862, %v950
      %952 = vmatmul.bf16.gmra.mxu0 %v544
      %v953 = vpop.f32.mrf.mxu0
      %v954 = vadd.f32 %v865, %v953
      %v955 = vpop.f32.mrf.mxu0
      %v956 = vadd.f32 %v867, %v955
      %957 = vmatmul.bf16.gmra.mxu0 %v548
      %v958 = vpop.f32.mrf.mxu0
      %v959 = vadd.f32 %v870, %v958
      %v960 = vpop.f32.mrf.mxu0
      %v961 = vadd.f32 %v872, %v960
      %962 = vmatmul.bf16.gmra.mxu0 %v552
      %v963 = vpop.f32.mrf.mxu0
      %v964 = vadd.f32 %v875, %v963
      %v965 = vpop.f32.mrf.mxu0
      %v966 = vadd.f32 %v877, %v965
      %967 = vmatmul.bf16.gmra.mxu0 %v556
      %v968 = vpop.f32.mrf.mxu0
      %v969 = vadd.f32 %v880, %v968
      %v970 = vpop.f32.mrf.mxu0
      %v971 = vadd.f32 %v882, %v970
      %972 = vmatmul.bf16.gmra.mxu0 %v560
      %v973 = vpop.f32.mrf.mxu0
      %v974 = vadd.f32 %v885, %v973
      %v975 = vpop.f32.mrf.mxu0
      %v976 = vadd.f32 %v887, %v975
      %977 = vmatmul.bf16.gmra.mxu0 %v564
      %v978 = vpop.f32.mrf.mxu0
      %v979 = vadd.f32 %v890, %v978
      %v980 = vpop.f32.mrf.mxu0
      %v981 = vadd.f32 %v892, %v980
      %982 = vmatmul.bf16.gmra.mxu0 %v568
      %v983 = vpop.f32.mrf.mxu0
      %v984 = vadd.f32 %v895, %v983
      %v985 = vpop.f32.mrf.mxu0
      %v986 = vadd.f32 %v897, %v985
      %987 = vmatmul.bf16.gmra.mxu0 %v572
      %v988 = vpop.f32.mrf.mxu0
      %v989 = vadd.f32 %v900, %v988
      %v990 = vpop.f32.mrf.mxu0
      %v991 = vadd.f32 %v902, %v990
      %992 = vmatmul.bf16.gmra.mxu0 %v576
      %v993 = vpop.f32.mrf.mxu0
      %v994 = vadd.f32 %v905, %v993
      %v995 = vpop.f32.mrf.mxu0
      %v996 = vadd.f32 %v907, %v995
      %997 = vmatmul.bf16.gmra.mxu0 %v580
      %v998 = vpop.f32.mrf.mxu0
      %v999 = vadd.f32 %v910, %v998
      %v1000 = vpop.f32.mrf.mxu0
      %v1001 = vadd.f32 %v912, %v1000
      %1002 = vmatmul.bf16.gmra.mxu0 %v584
      %v1003 = vpop.f32.mrf.mxu0
      %v1004 = vadd.f32 %v915, %v1003
      %v1005 = vpop.f32.mrf.mxu0
      %v1006 = vadd.f32 %v917, %v1005
      %1007 = vmatmul.bf16.gmra.mxu0 %v588
      %v1008 = vpop.f32.mrf.mxu0
      %v1009 = vadd.f32 %v920, %v1008
      %v1010 = vpop.f32.mrf.mxu0
      %v1011 = vadd.f32 %v922, %v1010
      %1012 = vmatmul.bf16.gmra.mxu0 %v592
      %v1013 = vpop.f32.mrf.mxu0
      %v1014 = vadd.f32 %v925, %v1013
      %v1015 = vpop.f32.mrf.mxu0
      %v1016 = vadd.f32 %v927, %v1015
      %1017 = vmatmul.bf16.gmra.mxu0 %v596
      %v1018 = vpop.f32.mrf.mxu0
      %v1019 = vadd.f32 %v930, %v1018
      %v1020 = vpop.f32.mrf.mxu0
      %v1021 = vadd.f32 %v932, %v1020
      %1022 = vmatmul.bf16.gmra.mxu0 %v600
      %v1023 = vpop.f32.mrf.mxu0
      %v1024 = vadd.f32 %v935, %v1023
      %v1025 = vpop.f32.mrf.mxu0
      %v1026 = vadd.f32 %v937, %v1025
      %1027 = vdwg.mxu0
      %1028 = vmatpush.bf16.msra.mxu0 %v774
      %1029 = vmatpush.bf16.msra.mxu0 %v773
      %1030 = vmatpush.bf16.msra.mxu0 %v772
      %1031 = vmatpush.bf16.msra.mxu0 %v771
      %1032 = vmatpush.bf16.msra.mxu0 %v770
      %1033 = vmatpush.bf16.msra.mxu0 %v769
      %1034 = vmatpush.bf16.msra.mxu0 %v768
      %1035 = vmatpush.bf16.msra.mxu0 %v767
      %1036 = vmatmul.bf16.gmra.mxu0 %v541
      %v1037 = vpop.f32.mrf.mxu0
      %v1038 = vadd.f32 %v949, %v1037
      %v1039 = vpop.f32.mrf.mxu0
      %v1040 = vadd.f32 %v951, %v1039
      %1041 = vmatmul.bf16.gmra.mxu0 %v545
      %v1042 = vpop.f32.mrf.mxu0
      %v1043 = vadd.f32 %v954, %v1042
      %v1044 = vpop.f32.mrf.mxu0
      %v1045 = vadd.f32 %v956, %v1044
      %1046 = vmatmul.bf16.gmra.mxu0 %v549
      %v1047 = vpop.f32.mrf.mxu0
      %v1048 = vadd.f32 %v959, %v1047
      %v1049 = vpop.f32.mrf.mxu0
      %v1050 = vadd.f32 %v961, %v1049
      %1051 = vmatmul.bf16.gmra.mxu0 %v553
      %v1052 = vpop.f32.mrf.mxu0
      %v1053 = vadd.f32 %v964, %v1052
      %v1054 = vpop.f32.mrf.mxu0
      %v1055 = vadd.f32 %v966, %v1054
      %1056 = vmatmul.bf16.gmra.mxu0 %v557
      %v1057 = vpop.f32.mrf.mxu0
      %v1058 = vadd.f32 %v969, %v1057
      %v1059 = vpop.f32.mrf.mxu0
      %v1060 = vadd.f32 %v971, %v1059
      %1061 = vmatmul.bf16.gmra.mxu0 %v561
      %v1062 = vpop.f32.mrf.mxu0
      %v1063 = vadd.f32 %v974, %v1062
      %v1064 = vpop.f32.mrf.mxu0
      %v1065 = vadd.f32 %v976, %v1064
      %1066 = vmatmul.bf16.gmra.mxu0 %v565
      %v1067 = vpop.f32.mrf.mxu0
      %v1068 = vadd.f32 %v979, %v1067
      %v1069 = vpop.f32.mrf.mxu0
      %v1070 = vadd.f32 %v981, %v1069
      %1071 = vmatmul.bf16.gmra.mxu0 %v569
      %v1072 = vpop.f32.mrf.mxu0
      %v1073 = vadd.f32 %v984, %v1072
      %v1074 = vpop.f32.mrf.mxu0
      %v1075 = vadd.f32 %v986, %v1074
      %1076 = vmatmul.bf16.gmra.mxu0 %v573
      %v1077 = vpop.f32.mrf.mxu0
      %v1078 = vadd.f32 %v989, %v1077
      %v1079 = vpop.f32.mrf.mxu0
      %v1080 = vadd.f32 %v991, %v1079
      %1081 = vmatmul.bf16.gmra.mxu0 %v577
      %v1082 = vpop.f32.mrf.mxu0
      %v1083 = vadd.f32 %v994, %v1082
      %v1084 = vpop.f32.mrf.mxu0
      %v1085 = vadd.f32 %v996, %v1084
      %1086 = vmatmul.bf16.gmra.mxu0 %v581
      %v1087 = vpop.f32.mrf.mxu0
      %v1088 = vadd.f32 %v999, %v1087
      %v1089 = vpop.f32.mrf.mxu0
      %v1090 = vadd.f32 %v1001, %v1089
      %1091 = vmatmul.bf16.gmra.mxu0 %v585
      %v1092 = vpop.f32.mrf.mxu0
      %v1093 = vadd.f32 %v1004, %v1092
      %v1094 = vpop.f32.mrf.mxu0
      %v1095 = vadd.f32 %v1006, %v1094
      %1096 = vmatmul.bf16.gmra.mxu0 %v589
      %v1097 = vpop.f32.mrf.mxu0
      %v1098 = vadd.f32 %v1009, %v1097
      %v1099 = vpop.f32.mrf.mxu0
      %v1100 = vadd.f32 %v1011, %v1099
      %1101 = vmatmul.bf16.gmra.mxu0 %v593
      %v1102 = vpop.f32.mrf.mxu0
      %v1103 = vadd.f32 %v1014, %v1102
      %v1104 = vpop.f32.mrf.mxu0
      %v1105 = vadd.f32 %v1016, %v1104
      %1106 = vmatmul.bf16.gmra.mxu0 %v597
      %v1107 = vpop.f32.mrf.mxu0
      %v1108 = vadd.f32 %v1019, %v1107
      %v1109 = vpop.f32.mrf.mxu0
      %v1110 = vadd.f32 %v1021, %v1109
      %1111 = vmatmul.bf16.gmra.mxu0 %v601
      %v1112 = vpop.f32.mrf.mxu0
      %v1113 = vadd.f32 %v1024, %v1112
      %v1114 = vpop.f32.mrf.mxu0
      %v1115 = vadd.f32 %v1026, %v1114
      %1116 = vdwg.mxu0
      %1117 = vmatpush.bf16.msra.mxu0 0
      %1118 = vmatpush.bf16.msra.mxu0 0
      %1119 = vmatpush.bf16.msra.mxu0 0
      %1120 = vmatpush.bf16.msra.mxu0 0
      %1121 = vmatpush.bf16.msra.mxu0 0
      %1122 = vmatpush.bf16.msra.mxu0 0
      %1123 = vmatpush.bf16.msra.mxu0 0
      %1124 = vmatpush.bf16.msra.mxu0 %v775
      %1125 = vmatmul.bf16.gmra.mxu0 %v803
      %v1126 = vpop.f32.mrf.mxu0
      %v1127 = vadd.f32 %v1038, %v1126
      %v1128 = vpop.f32.mrf.mxu0
      %v1129 = vadd.f32 %v1040, %v1128
      %1130 = vmatmul.bf16.gmra.mxu0 %v806
      %v1131 = vpop.f32.mrf.mxu0
      %v1132 = vadd.f32 %v1043, %v1131
      %v1133 = vpop.f32.mrf.mxu0
      %v1134 = vadd.f32 %v1045, %v1133
      %1135 = vmatmul.bf16.gmra.mxu0 %v809
      %v1136 = vpop.f32.mrf.mxu0
      %v1137 = vadd.f32 %v1048, %v1136
      %v1138 = vpop.f32.mrf.mxu0
      %v1139 = vadd.f32 %v1050, %v1138
      %1140 = vmatmul.bf16.gmra.mxu0 %v812
      %v1141 = vpop.f32.mrf.mxu0
      %v1142 = vadd.f32 %v1053, %v1141
      %v1143 = vpop.f32.mrf.mxu0
      %v1144 = vadd.f32 %v1055, %v1143
      %1145 = vmatmul.bf16.gmra.mxu0 %v815
      %v1146 = vpop.f32.mrf.mxu0
      %v1147 = vadd.f32 %v1058, %v1146
      %v1148 = vpop.f32.mrf.mxu0
      %v1149 = vadd.f32 %v1060, %v1148
      %1150 = vmatmul.bf16.gmra.mxu0 %v818
      %v1151 = vpop.f32.mrf.mxu0
      %v1152 = vadd.f32 %v1063, %v1151
      %v1153 = vpop.f32.mrf.mxu0
      %v1154 = vadd.f32 %v1065, %v1153
      %1155 = vmatmul.bf16.gmra.mxu0 %v821
      %v1156 = vpop.f32.mrf.mxu0
      %v1157 = vadd.f32 %v1068, %v1156
      %v1158 = vpop.f32.mrf.mxu0
      %v1159 = vadd.f32 %v1070, %v1158
      %1160 = vmatmul.bf16.gmra.mxu0 %v824
      %v1161 = vpop.f32.mrf.mxu0
      %v1162 = vadd.f32 %v1073, %v1161
      %v1163 = vpop.f32.mrf.mxu0
      %v1164 = vadd.f32 %v1075, %v1163
      %1165 = vmatmul.bf16.gmra.mxu0 %v827
      %v1166 = vpop.f32.mrf.mxu0
      %v1167 = vadd.f32 %v1078, %v1166
      %v1168 = vpop.f32.mrf.mxu0
      %v1169 = vadd.f32 %v1080, %v1168
      %1170 = vmatmul.bf16.gmra.mxu0 %v830
      %v1171 = vpop.f32.mrf.mxu0
      %v1172 = vadd.f32 %v1083, %v1171
      %v1173 = vpop.f32.mrf.mxu0
      %v1174 = vadd.f32 %v1085, %v1173
      %1175 = vmatmul.bf16.gmra.mxu0 %v833
      %v1176 = vpop.f32.mrf.mxu0
      %v1177 = vadd.f32 %v1088, %v1176
      %v1178 = vpop.f32.mrf.mxu0
      %v1179 = vadd.f32 %v1090, %v1178
      %1180 = vmatmul.bf16.gmra.mxu0 %v836
      %v1181 = vpop.f32.mrf.mxu0
      %v1182 = vadd.f32 %v1093, %v1181
      %v1183 = vpop.f32.mrf.mxu0
      %v1184 = vadd.f32 %v1095, %v1183
      %1185 = vmatmul.bf16.gmra.mxu0 %v839
      %v1186 = vpop.f32.mrf.mxu0
      %v1187 = vadd.f32 %v1098, %v1186
      %v1188 = vpop.f32.mrf.mxu0
      %v1189 = vadd.f32 %v1100, %v1188
      %1190 = vmatmul.bf16.gmra.mxu0 %v842
      %v1191 = vpop.f32.mrf.mxu0
      %v1192 = vadd.f32 %v1103, %v1191
      %v1193 = vpop.f32.mrf.mxu0
      %v1194 = vadd.f32 %v1105, %v1193
      %1195 = vmatmul.bf16.gmra.mxu0 %v845
      %v1196 = vpop.f32.mrf.mxu0
      %v1197 = vadd.f32 %v1108, %v1196
      %v1198 = vpop.f32.mrf.mxu0
      %v1199 = vadd.f32 %v1110, %v1198
      %1200 = vmatmul.bf16.gmra.mxu0 %v848
      %v1201 = vpop.f32.mrf.mxu0
      %v1202 = vadd.f32 %v1113, %v1201
      %v1203 = vpop.f32.mrf.mxu0
      %v1204 = vadd.f32 %v1115, %v1203
      %1205 = vdwg.mxu0
      %1206 = vst.msk [vmem:[%s227] sm:$0xff] %vm801, %v1127
      %1207 = vst.msk [vmem:[%s227 + $0x8] sm:$0xff] %vm801, %v1129
      %1208 = vst.msk [vmem:[%s227 + $0x10] sm:$0xff] %vm801, %v1132
      %1209 = vst.msk [vmem:[%s227 + $0x18] sm:$0xff] %vm801, %v1134
      %1210 = vst.msk [vmem:[%s227 + $0x20] sm:$0xff] %vm801, %v1137
      %1211 = vst.msk [vmem:[%s227 + $0x28] sm:$0xff] %vm801, %v1139
      %1212 = vst.msk [vmem:[%s227 + $0x30] sm:$0xff] %vm801, %v1142
      %1213 = vst.msk [vmem:[%s227 + $0x38] sm:$0xff] %vm801, %v1144
      %1214 = vst.msk [vmem:[%s227 + $0x40] sm:$0xff] %vm801, %v1147
      %1215 = vst.msk [vmem:[%s227 + $0x48] sm:$0xff] %vm801, %v1149
      %1216 = vst.msk [vmem:[%s227 + $0x50] sm:$0xff] %vm801, %v1152
      %1217 = vst.msk [vmem:[%s227 + $0x58] sm:$0xff] %vm801, %v1154
      %1218 = vst.msk [vmem:[%s227 + $0x60] sm:$0xff] %vm801, %v1157
      %1219 = vst.msk [vmem:[%s227 + $0x68] sm:$0xff] %vm801, %v1159
      %1220 = vst.msk [vmem:[%s227 + $0x70] sm:$0xff] %vm801, %v1162
      %1221 = vst.msk [vmem:[%s227 + $0x78] sm:$0xff] %vm801, %v1164
      %1222 = vst.msk [vmem:[%s227 + $0x80] sm:$0xff] %vm801, %v1167
      %1223 = vst.msk [vmem:[%s227 + $0x88] sm:$0xff] %vm801, %v1169
      %1224 = vst.msk [vmem:[%s227 + $0x90] sm:$0xff] %vm801, %v1172
      %1225 = vst.msk [vmem:[%s227 + $0x98] sm:$0xff] %vm801, %v1174
      %1226 = vst.msk [vmem:[%s227 + $0xa0] sm:$0xff] %vm801, %v1177
      %1227 = vst.msk [vmem:[%s227 + $0xa8] sm:$0xff] %vm801, %v1179
      %1228 = vst.msk [vmem:[%s227 + $0xb0] sm:$0xff] %vm801, %v1182
      %1229 = vst.msk [vmem:[%s227 + $0xb8] sm:$0xff] %vm801, %v1184
      %1230 = vst.msk [vmem:[%s227 + $0xc0] sm:$0xff] %vm801, %v1187
      %1231 = vst.msk [vmem:[%s227 + $0xc8] sm:$0xff] %vm801, %v1189
      %1232 = vst.msk [vmem:[%s227 + $0xd0] sm:$0xff] %vm801, %v1192
      %1233 = vst.msk [vmem:[%s227 + $0xd8] sm:$0xff] %vm801, %v1194
      %1234 = vst.msk [vmem:[%s227 + $0xe0] sm:$0xff] %vm801, %v1197
      %1235 = vst.msk [vmem:[%s227 + $0xe8] sm:$0xff] %vm801, %v1199
      %1236 = vst.msk [vmem:[%s227 + $0xf0] sm:$0xff] %vm801, %v1202
      %1237 = vst.msk [vmem:[%s227 + $0xf8] sm:$0xff] %vm801, %v1204
      %p1238 = scmp.lt.s32.totalorder %s23, 1
      %s1239 = scalar_select %p1238, %s23, 1
      %s1240 = smul.addr %s1239, 32
      %s1241 = smul.addr %s1240, 8
      %s1242 = scalar_lea.vmem %s4, %s1241
      // Predicated region
      $region33: #{path_aware_resnet_gen_forward.20} parent=31 // pred_check
        %p1243 = pneg %p123
      $region34: #{path_aware_resnet_gen_forward.20} parent=31 // pred_check_branch
        %1245 = sbr.rel (%p1243) target = $region36
      $region35: #{path_aware_resnet_gen_forward.20} parent=31 // pred_region
        _
      $region36: #{path_aware_resnet_gen_forward.20} parent=31 // pred_fallthru
        _
    $region32: #{path_aware_resnet_gen_forward.20} parent=5 // pred_fallthru
      _
    %p1246 = scmp.le.s32.totalorder 2, %s18
    // Predicated region
    $region37: #{path_aware_resnet_gen_forward.20} parent=5 // pred_check
      %p1247 = pneg %p1246
    $region38: #{path_aware_resnet_gen_forward.20} parent=5 // pred_check_branch
      %1249 = sbr.rel (%p1247) target = $region40
    $region39: #{path_aware_resnet_gen_forward.20} parent=5 // pred_region
      %s1250 = ssub.s32 %s18, 2
      // Predicated region
      $region41: #{path_aware_resnet_gen_forward.20} parent=39 // pred_check
        %p1251 = pneg %p129
      $region42: #{path_aware_resnet_gen_forward.20} parent=39 // pred_check_branch
        %1253 = sbr.rel (%p1251) target = $region44
      $region43: #{path_aware_resnet_gen_forward.20} parent=39 // pred_region
        %p1254 = scmp.lt.s32.totalorder %s24, 1
        %s1255 = scalar_select %p1254, %s24, 1
        %s1256 = smul.addr %s1255, 32
        %s1257 = smul.addr %s1256, 8
        %s1258 = scalar_lea.vmem %s4, %s1257
      $region44: #{path_aware_resnet_gen_forward.20} parent=39 // pred_fallthru
        _
    $region40: #{path_aware_resnet_gen_forward.20} parent=5 // pred_fallthru
      _
  $region6: #{path_aware_resnet_gen_forward.20} parent=0 // loop_footer
    %s22 = sadd.s32 1, %s18
  $region7: #{path_aware_resnet_gen_forward.20} parent=0 // loop_footer_branch
    %17 = sbr.rel target = $region3
  $region8: #{path_aware_resnet_gen_forward.20} parent=0 // loop_exit
    _

// kernel: path_aware_resnet_gen_forward.21
$region0: #{path_aware_resnet_gen_forward.21}
  #allocation0 [shape = 'u32[]', space=smem, size = 0x4, offset = 0x4, fixed_abs, tag = 'smem constant byte address 0x4 - core index']
  #allocation1 [shape = 'u32[72,128]{1,0:T(1,128)}', space=vmem, size = 0x9000, scoped, tag = 'internal scratch']
  %s0 = inlined_call_operand.vmem [shape: bf16[128,16], index: 0, kind: input, shape index: {}]
  %s1 = inlined_call_operand.vmem [shape: bf16[16,16], index: 1, kind: input, shape index: {}]
  %s2 = inlined_call_operand.vmem [shape: f32[1,16], index: 2, kind: input, shape index: {}]
  %s3 = inlined_call_operand.vmem [shape: f32[128,16], index: 3, kind: output, shape index: {}]
  %s4 = sld [smem:[#allocation0]]
  $region22: #{path_aware_resnet_gen_forward.21} parent=0
    _
  %s6 = ssub.s32 1, %s4
  %s7 = scalar_select 0, %s6, %s4
  // Predicated region
  $region2: #{path_aware_resnet_gen_forward.21} parent=0 // pred_check
    _
  $region3: #{path_aware_resnet_gen_forward.21} parent=0 // pred_check_branch
    %9 = sbr.rel (0) target = $region5
  $region4: #{path_aware_resnet_gen_forward.21} parent=0 // pred_region
    _
  $region5: #{path_aware_resnet_gen_forward.21} parent=0 // pred_fallthru
    _
  // Predicated region
  $region6: #{path_aware_resnet_gen_forward.21} parent=0 // pred_check
    _
  $region7: #{path_aware_resnet_gen_forward.21} parent=0 // pred_check_branch
    %11 = sbr.rel (0) target = $region9
  $region8: #{path_aware_resnet_gen_forward.21} parent=0 // pred_region
    _
  $region9: #{path_aware_resnet_gen_forward.21} parent=0 // pred_fallthru
    _
  // Predicated region
  $region10: #{path_aware_resnet_gen_forward.21} parent=0 // pred_check
    _
  $region11: #{path_aware_resnet_gen_forward.21} parent=0 // pred_check_branch
    %13 = sbr.rel (0) target = $region13
  $region12: #{path_aware_resnet_gen_forward.21} parent=0 // pred_region
    _
  $region13: #{path_aware_resnet_gen_forward.21} parent=0 // pred_fallthru
    _
  %v15 = vld [vmem:[%s0] sm:$0xf]
  %v16 = vld [vmem:[%s0 + $0x4] sm:$0xf]
  %v17 = vld [vmem:[%s0 + $0x8] sm:$0xf]
  %v18 = vld [vmem:[%s0 + $0xc] sm:$0xf]
  %v19 = vld [vmem:[%s0 + $0x10] sm:$0xf]
  %v20 = vld [vmem:[%s0 + $0x14] sm:$0xf]
  %v21 = vld [vmem:[%s0 + $0x18] sm:$0xf]
  %v22 = vld [vmem:[%s0 + $0x1c] sm:$0xf]
  %v23 = vld [vmem:[%s0 + $0x20] sm:$0xf]
  %v24 = vld [vmem:[%s0 + $0x24] sm:$0xf]
  %v25 = vld [vmem:[%s0 + $0x28] sm:$0xf]
  %v26 = vld [vmem:[%s0 + $0x2c] sm:$0xf]
  %v27 = vld [vmem:[%s0 + $0x30] sm:$0xf]
  %v28 = vld [vmem:[%s0 + $0x34] sm:$0xf]
  %v29 = vld [vmem:[%s0 + $0x38] sm:$0xf]
  %v30 = vld [vmem:[%s0 + $0x3c] sm:$0xf]
  %v31 = vld [vmem:[%s1] sm:$0xf]
  %v32 = vld [vmem:[%s1 + $0x4] sm:$0xf]
  %v33 = vld [vmem:[%s2] sm:$0x1]
  %v35 = vperm.slane %v33, 0
  %v53 = vunpack.c.l.b16 %v15
  %v54 = vunpack.c.l.b16 %v16
  %v55 = vunpack.c.l.b16 %v17
  %v56 = vunpack.c.l.b16 %v18
  %v57 = vunpack.c.l.b16 %v19
  %v58 = vunpack.c.l.b16 %v20
  %v59 = vunpack.c.l.b16 %v21
  %v60 = vunpack.c.l.b16 %v22
  %v61 = vunpack.c.l.b16 %v23
  %v62 = vunpack.c.l.b16 %v24
  %v63 = vunpack.c.l.b16 %v25
  %v64 = vunpack.c.l.b16 %v26
  %v65 = vunpack.c.l.b16 %v27
  %v66 = vunpack.c.l.b16 %v28
  %v67 = vunpack.c.l.b16 %v29
  %v68 = vunpack.c.l.b16 %v30
  %v69 = vpack.c.b16 %v54, %v53
  %v70 = vpack.c.b16 %v56, %v55
  %v71 = vpack.c.b16 %v58, %v57
  %v72 = vpack.c.b16 %v60, %v59
  %v73 = vpack.c.b16 %v62, %v61
  %v74 = vpack.c.b16 %v64, %v63
  %v75 = vpack.c.b16 %v66, %v65
  %v76 = vpack.c.b16 %v68, %v67
  %v79 = vunpack.c.l.b16 %v31
  %v80 = vunpack.c.l.b16 %v32
  %v81 = vpack.c.b16 %v80, %v79
  %vm83 = vcmask 130048
  %v85 = vsel %vm83, %v69, 0
  %v88 = vsel %vm83, %v70, 0
  %v91 = vsel %vm83, %v71, 0
  %v94 = vsel %vm83, %v72, 0
  %v97 = vsel %vm83, %v73, 0
  %v100 = vsel %vm83, %v74, 0
  %v103 = vsel %vm83, %v75, 0
  %v106 = vsel %vm83, %v76, 0
  %108 = vmatpush.bf16.msra.mxu0 0
  %109 = vmatpush.bf16.msra.mxu0 0
  %110 = vmatpush.bf16.msra.mxu0 0
  %111 = vmatpush.bf16.msra.mxu0 0
  %112 = vmatpush.bf16.msra.mxu0 0
  %113 = vmatpush.bf16.msra.mxu0 0
  %114 = vmatpush.bf16.msra.mxu0 0
  %115 = vmatpush.bf16.msra.mxu0 %v81
  %116 = vmatmul.bf16.gmra.mxu0 %v85
  %v117 = vpop.f32.mrf.mxu0
  %v118 = vadd.f32 %v35, %v117
  %v119 = vpop.f32.mrf.mxu0
  %v120 = vadd.f32 %v35, %v119
  %121 = vmatmul.bf16.gmra.mxu0 %v88
  %v122 = vpop.f32.mrf.mxu0
  %v123 = vadd.f32 %v35, %v122
  %v124 = vpop.f32.mrf.mxu0
  %v125 = vadd.f32 %v35, %v124
  %126 = vmatmul.bf16.gmra.mxu0 %v91
  %v127 = vpop.f32.mrf.mxu0
  %v128 = vadd.f32 %v35, %v127
  %v129 = vpop.f32.mrf.mxu0
  %v130 = vadd.f32 %v35, %v129
  %131 = vmatmul.bf16.gmra.mxu0 %v94
  %v132 = vpop.f32.mrf.mxu0
  %v133 = vadd.f32 %v35, %v132
  %v134 = vpop.f32.mrf.mxu0
  %v135 = vadd.f32 %v35, %v134
  %136 = vmatmul.bf16.gmra.mxu0 %v97
  %v137 = vpop.f32.mrf.mxu0
  %v138 = vadd.f32 %v35, %v137
  %v139 = vpop.f32.mrf.mxu0
  %v140 = vadd.f32 %v35, %v139
  %141 = vmatmul.bf16.gmra.mxu0 %v100
  %v142 = vpop.f32.mrf.mxu0
  %v143 = vadd.f32 %v35, %v142
  %v144 = vpop.f32.mrf.mxu0
  %v145 = vadd.f32 %v35, %v144
  %146 = vmatmul.bf16.gmra.mxu0 %v103
  %v147 = vpop.f32.mrf.mxu0
  %v148 = vadd.f32 %v35, %v147
  %v149 = vpop.f32.mrf.mxu0
  %v150 = vadd.f32 %v35, %v149
  %151 = vmatmul.bf16.gmra.mxu0 %v106
  %v152 = vpop.f32.mrf.mxu0
  %v153 = vadd.f32 %v35, %v152
  %v154 = vpop.f32.mrf.mxu0
  %v155 = vadd.f32 %v35, %v154
  %156 = vdwg.mxu0
  %157 = vst.msk [vmem:[%s3] sm:$0xff] %vm83, %v118
  %158 = vst.msk [vmem:[%s3 + $0x8] sm:$0xff] %vm83, %v120
  %159 = vst.msk [vmem:[%s3 + $0x10] sm:$0xff] %vm83, %v123
  %160 = vst.msk [vmem:[%s3 + $0x18] sm:$0xff] %vm83, %v125
  %161 = vst.msk [vmem:[%s3 + $0x20] sm:$0xff] %vm83, %v128
  %162 = vst.msk [vmem:[%s3 + $0x28] sm:$0xff] %vm83, %v130
  %163 = vst.msk [vmem:[%s3 + $0x30] sm:$0xff] %vm83, %v133
  %164 = vst.msk [vmem:[%s3 + $0x38] sm:$0xff] %vm83, %v135
  %165 = vst.msk [vmem:[%s3 + $0x40] sm:$0xff] %vm83, %v138
  %166 = vst.msk [vmem:[%s3 + $0x48] sm:$0xff] %vm83, %v140
  %167 = vst.msk [vmem:[%s3 + $0x50] sm:$0xff] %vm83, %v143
  %168 = vst.msk [vmem:[%s3 + $0x58] sm:$0xff] %vm83, %v145
  %169 = vst.msk [vmem:[%s3 + $0x60] sm:$0xff] %vm83, %v148
  %170 = vst.msk [vmem:[%s3 + $0x68] sm:$0xff] %vm83, %v150
  %171 = vst.msk [vmem:[%s3 + $0x70] sm:$0xff] %vm83, %v153
  %172 = vst.msk [vmem:[%s3 + $0x78] sm:$0xff] %vm83, %v155
  // Predicated region
  $region14: #{path_aware_resnet_gen_forward.21} parent=0 // pred_check
    _
  $region15: #{path_aware_resnet_gen_forward.21} parent=0 // pred_check_branch
    %174 = sbr.rel (0) target = $region17
  $region16: #{path_aware_resnet_gen_forward.21} parent=0 // pred_region
    _
  $region17: #{path_aware_resnet_gen_forward.21} parent=0 // pred_fallthru
    _
  // Predicated region
  $region18: #{path_aware_resnet_gen_forward.21} parent=0 // pred_check
    _
  $region19: #{path_aware_resnet_gen_forward.21} parent=0 // pred_check_branch
    %176 = sbr.rel (0) target = $region21
  $region20: #{path_aware_resnet_gen_forward.21} parent=0 // pred_region
    _
  $region21: #{path_aware_resnet_gen_forward.21} parent=0 // pred_fallthru
    _

// kernel: path_aware_resnet_gen_forward.22
$region0: #{path_aware_resnet_gen_forward.22}
  #allocation0 [shape = 'u32[]', space=smem, size = 0x4, offset = 0x4, fixed_abs, tag = 'smem constant byte address 0x4 - core index']
  #allocation1 [shape = 'u32[72,128]{1,0:T(1,128)}', space=vmem, size = 0x9000, scoped, tag = 'internal scratch']
  %s0 = inlined_call_operand.vmem [shape: f32[512,16], index: 0, kind: input, shape index: {}]
  %s1 = inlined_call_operand.vmem [shape: f32[1,16], index: 1, kind: input, shape index: {}]
  %s2 = inlined_call_operand.vmem [shape: f32[1,16], index: 2, kind: input, shape index: {}]
  %s3 = inlined_call_operand.vmem [shape: bf16[512,16], index: 3, kind: output, shape index: {}]
  %s4 = sld [smem:[#allocation0]]
  $region22: #{path_aware_resnet_gen_forward.22} parent=0
    _
  %s6 = ssub.s32 1, %s4
  %s7 = scalar_select 0, %s6, %s4
  // Predicated region
  $region2: #{path_aware_resnet_gen_forward.22} parent=0 // pred_check
    _
  $region3: #{path_aware_resnet_gen_forward.22} parent=0 // pred_check_branch
    %9 = sbr.rel (0) target = $region5
  $region4: #{path_aware_resnet_gen_forward.22} parent=0 // pred_region
    _
  $region5: #{path_aware_resnet_gen_forward.22} parent=0 // pred_fallthru
    _
  // Predicated region
  $region6: #{path_aware_resnet_gen_forward.22} parent=0 // pred_check
    _
  $region7: #{path_aware_resnet_gen_forward.22} parent=0 // pred_check_branch
    %11 = sbr.rel (0) target = $region9
  $region8: #{path_aware_resnet_gen_forward.22} parent=0 // pred_region
    _
  $region9: #{path_aware_resnet_gen_forward.22} parent=0 // pred_fallthru
    _
  // Predicated region
  $region10: #{path_aware_resnet_gen_forward.22} parent=0 // pred_check
    _
  $region11: #{path_aware_resnet_gen_forward.22} parent=0 // pred_check_branch
    %13 = sbr.rel (0) target = $region13
  $region12: #{path_aware_resnet_gen_forward.22} parent=0 // pred_region
    _
  $region13: #{path_aware_resnet_gen_forward.22} parent=0 // pred_fallthru
    _
  %v14 = vld [vmem:[%s0] sm:$0xff]
  %v15 = vld [vmem:[%s0 + $0x8] sm:$0xff]
  %v16 = vld [vmem:[%s0 + $0x10] sm:$0xff]
  %v17 = vld [vmem:[%s0 + $0x18] sm:$0xff]
  %v18 = vld [vmem:[%s0 + $0x20] sm:$0xff]
  %v19 = vld [vmem:[%s0 + $0x28] sm:$0xff]
  %v20 = vld [vmem:[%s0 + $0x30] sm:$0xff]
  %v21 = vld [vmem:[%s0 + $0x38] sm:$0xff]
  %v22 = vld [vmem:[%s0 + $0x40] sm:$0xff]
  %v23 = vld [vmem:[%s0 + $0x48] sm:$0xff]
  %v24 = vld [vmem:[%s0 + $0x50] sm:$0xff]
  %v25 = vld [vmem:[%s0 + $0x58] sm:$0xff]
  %v26 = vld [vmem:[%s0 + $0x60] sm:$0xff]
  %v27 = vld [vmem:[%s0 + $0x68] sm:$0xff]
  %v28 = vld [vmem:[%s0 + $0x70] sm:$0xff]
  %v29 = vld [vmem:[%s0 + $0x78] sm:$0xff]
  %v30 = vld [vmem:[%s0 + $0x80] sm:$0xff]
  %v31 = vld [vmem:[%s0 + $0x88] sm:$0xff]
  %v32 = vld [vmem:[%s0 + $0x90] sm:$0xff]
  %v33 = vld [vmem:[%s0 + $0x98] sm:$0xff]
  %v34 = vld [vmem:[%s0 + $0xa0] sm:$0xff]
  %v35 = vld [vmem:[%s0 + $0xa8] sm:$0xff]
  %v36 = vld [vmem:[%s0 + $0xb0] sm:$0xff]
  %v37 = vld [vmem:[%s0 + $0xb8] sm:$0xff]
  %v38 = vld [vmem:[%s0 + $0xc0] sm:$0xff]
  %v39 = vld [vmem:[%s0 + $0xc8] sm:$0xff]
  %v40 = vld [vmem:[%s0 + $0xd0] sm:$0xff]
  %v41 = vld [vmem:[%s0 + $0xd8] sm:$0xff]
  %v42 = vld [vmem:[%s0 + $0xe0] sm:$0xff]
  %v43 = vld [vmem:[%s0 + $0xe8] sm:$0xff]
  %v44 = vld [vmem:[%s0 + $0xf0] sm:$0xff]
  %v45 = vld [vmem:[%s0 + $0xf8] sm:$0xff]
  %v46 = vld [vmem:[%s0 + $0x100] sm:$0xff]
  %v47 = vld [vmem:[%s0 + $0x108] sm:$0xff]
  %v48 = vld [vmem:[%s0 + $0x110] sm:$0xff]
  %v49 = vld [vmem:[%s0 + $0x118] sm:$0xff]
  %v50 = vld [vmem:[%s0 + $0x120] sm:$0xff]
  %v51 = vld [vmem:[%s0 + $0x128] sm:$0xff]
  %v52 = vld [vmem:[%s0 + $0x130] sm:$0xff]
  %v53 = vld [vmem:[%s0 + $0x138] sm:$0xff]
  %v54 = vld [vmem:[%s0 + $0x140] sm:$0xff]
  %v55 = vld [vmem:[%s0 + $0x148] sm:$0xff]
  %v56 = vld [vmem:[%s0 + $0x150] sm:$0xff]
  %v57 = vld [vmem:[%s0 + $0x158] sm:$0xff]
  %v58 = vld [vmem:[%s0 + $0x160] sm:$0xff]
  %v59 = vld [vmem:[%s0 + $0x168] sm:$0xff]
  %v60 = vld [vmem:[%s0 + $0x170] sm:$0xff]
  %v61 = vld [vmem:[%s0 + $0x178] sm:$0xff]
  %v62 = vld [vmem:[%s0 + $0x180] sm:$0xff]
  %v63 = vld [vmem:[%s0 + $0x188] sm:$0xff]
  %v64 = vld [vmem:[%s0 + $0x190] sm:$0xff]
  %v65 = vld [vmem:[%s0 + $0x198] sm:$0xff]
  %v66 = vld [vmem:[%s0 + $0x1a0] sm:$0xff]
  %v67 = vld [vmem:[%s0 + $0x1a8] sm:$0xff]
  %v68 = vld [vmem:[%s0 + $0x1b0] sm:$0xff]
  %v69 = vld [vmem:[%s0 + $0x1b8] sm:$0xff]
  %v70 = vld [vmem:[%s0 + $0x1c0] sm:$0xff]
  %v71 = vld [vmem:[%s0 + $0x1c8] sm:$0xff]
  %v72 = vld [vmem:[%s0 + $0x1d0] sm:$0xff]
  %v73 = vld [vmem:[%s0 + $0x1d8] sm:$0xff]
  %v74 = vld [vmem:[%s0 + $0x1e0] sm:$0xff]
  %v75 = vld [vmem:[%s0 + $0x1e8] sm:$0xff]
  %v76 = vld [vmem:[%s0 + $0x1f0] sm:$0xff]
  %v77 = vld [vmem:[%s0 + $0x1f8] sm:$0xff]
  %vm78 = vcmask 130048
  %v79 = vsel %vm78, %v14, 0.0
  %v80 = vsel %vm78, %v15, 0.0
  %v81 = vadd.f32 %v79, %v80
  %v82 = vsel %vm78, %v16, 0.0
  %v83 = vadd.f32 %v81, %v82
  %v84 = vsel %vm78, %v17, 0.0
  %v85 = vadd.f32 %v83, %v84
  %v86 = vsel %vm78, %v18, 0.0
  %v87 = vadd.f32 %v85, %v86
  %v88 = vsel %vm78, %v19, 0.0
  %v89 = vadd.f32 %v87, %v88
  %v90 = vsel %vm78, %v20, 0.0
  %v91 = vadd.f32 %v89, %v90
  %v92 = vsel %vm78, %v21, 0.0
  %v93 = vadd.f32 %v91, %v92
  %v94 = vsel %vm78, %v22, 0.0
  %v95 = vadd.f32 %v93, %v94
  %v96 = vsel %vm78, %v23, 0.0
  %v97 = vadd.f32 %v95, %v96
  %v98 = vsel %vm78, %v24, 0.0
  %v99 = vadd.f32 %v97, %v98
  %v100 = vsel %vm78, %v25, 0.0
  %v101 = vadd.f32 %v99, %v100
  %v102 = vsel %vm78, %v26, 0.0
  %v103 = vadd.f32 %v101, %v102
  %v104 = vsel %vm78, %v27, 0.0
  %v105 = vadd.f32 %v103, %v104
  %v106 = vsel %vm78, %v28, 0.0
  %v107 = vadd.f32 %v105, %v106
  %v108 = vsel %vm78, %v29, 0.0
  %v109 = vadd.f32 %v107, %v108
  %v110 = vsel %vm78, %v30, 0.0
  %v111 = vadd.f32 %v109, %v110
  %v112 = vsel %vm78, %v31, 0.0
  %v113 = vadd.f32 %v111, %v112
  %v114 = vsel %vm78, %v32, 0.0
  %v115 = vadd.f32 %v113, %v114
  %v116 = vsel %vm78, %v33, 0.0
  %v117 = vadd.f32 %v115, %v116
  %v118 = vsel %vm78, %v34, 0.0
  %v119 = vadd.f32 %v117, %v118
  %v120 = vsel %vm78, %v35, 0.0
  %v121 = vadd.f32 %v119, %v120
  %v122 = vsel %vm78, %v36, 0.0
  %v123 = vadd.f32 %v121, %v122
  %v124 = vsel %vm78, %v37, 0.0
  %v125 = vadd.f32 %v123, %v124
  %v126 = vsel %vm78, %v38, 0.0
  %v127 = vadd.f32 %v125, %v126
  %v128 = vsel %vm78, %v39, 0.0
  %v129 = vadd.f32 %v127, %v128
  %v130 = vsel %vm78, %v40, 0.0
  %v131 = vadd.f32 %v129, %v130
  %v132 = vsel %vm78, %v41, 0.0
  %v133 = vadd.f32 %v131, %v132
  %v134 = vsel %vm78, %v42, 0.0
  %v135 = vadd.f32 %v133, %v134
  %v136 = vsel %vm78, %v43, 0.0
  %v137 = vadd.f32 %v135, %v136
  %v138 = vsel %vm78, %v44, 0.0
  %v139 = vadd.f32 %v137, %v138
  %v140 = vsel %vm78, %v45, 0.0
  %v141 = vadd.f32 %v139, %v140
  %v142 = vsel %vm78, %v46, 0.0
  %v143 = vadd.f32 %v141, %v142
  %v144 = vsel %vm78, %v47, 0.0
  %v145 = vadd.f32 %v143, %v144
  %v146 = vsel %vm78, %v48, 0.0
  %v147 = vadd.f32 %v145, %v146
  %v148 = vsel %vm78, %v49, 0.0
  %v149 = vadd.f32 %v147, %v148
  %v150 = vsel %vm78, %v50, 0.0
  %v151 = vadd.f32 %v149, %v150
  %v152 = vsel %vm78, %v51, 0.0
  %v153 = vadd.f32 %v151, %v152
  %v154 = vsel %vm78, %v52, 0.0
  %v155 = vadd.f32 %v153, %v154
  %v156 = vsel %vm78, %v53, 0.0
  %v157 = vadd.f32 %v155, %v156
  %v158 = vsel %vm78, %v54, 0.0
  %v159 = vadd.f32 %v157, %v158
  %v160 = vsel %vm78, %v55, 0.0
  %v161 = vadd.f32 %v159, %v160
  %v162 = vsel %vm78, %v56, 0.0
  %v163 = vadd.f32 %v161, %v162
  %v164 = vsel %vm78, %v57, 0.0
  %v165 = vadd.f32 %v163, %v164
  %v166 = vsel %vm78, %v58, 0.0
  %v167 = vadd.f32 %v165, %v166
  %v168 = vsel %vm78, %v59, 0.0
  %v169 = vadd.f32 %v167, %v168
  %v170 = vsel %vm78, %v60, 0.0
  %v171 = vadd.f32 %v169, %v170
  %v172 = vsel %vm78, %v61, 0.0
  %v173 = vadd.f32 %v171, %v172
  %v174 = vsel %vm78, %v62, 0.0
  %v175 = vadd.f32 %v173, %v174
  %v176 = vsel %vm78, %v63, 0.0
  %v177 = vadd.f32 %v175, %v176
  %v178 = vsel %vm78, %v64, 0.0
  %v179 = vadd.f32 %v177, %v178
  %v180 = vsel %vm78, %v65, 0.0
  %v181 = vadd.f32 %v179, %v180
  %v182 = vsel %vm78, %v66, 0.0
  %v183 = vadd.f32 %v181, %v182
  %v184 = vsel %vm78, %v67, 0.0
  %v185 = vadd.f32 %v183, %v184
  %v186 = vsel %vm78, %v68, 0.0
  %v187 = vadd.f32 %v185, %v186
  %v188 = vsel %vm78, %v69, 0.0
  %v189 = vadd.f32 %v187, %v188
  %v190 = vsel %vm78, %v70, 0.0
  %v191 = vadd.f32 %v189, %v190
  %v192 = vsel %vm78, %v71, 0.0
  %v193 = vadd.f32 %v191, %v192
  %v194 = vsel %vm78, %v72, 0.0
  %v195 = vadd.f32 %v193, %v194
  %v196 = vsel %vm78, %v73, 0.0
  %v197 = vadd.f32 %v195, %v196
  %v198 = vsel %vm78, %v74, 0.0
  %v199 = vadd.f32 %v197, %v198
  %v200 = vsel %vm78, %v75, 0.0
  %v201 = vadd.f32 %v199, %v200
  %v202 = vsel %vm78, %v76, 0.0
  %v203 = vadd.f32 %v201, %v202
  %v204 = vsel %vm78, %v77, 0.0
  %v205 = vadd.f32 %v203, %v204
  %v206 = vrot.slane %v205, 4
  %v207 = vadd.f32 %v205, %v206
  %v208 = vrot.slane %v207, 2
  %v209 = vadd.f32 %v207, %v208
  %v210 = vrot.slane %v209, 1
  %v211 = vadd.f32 %v209, %v210
  %v212 = vrcp.pop 512.0
  %v213 = vmul.f32 512.0, %v212
  %v214 = vsub.f32 1.0, %v213
  %v215 = vmul.f32 %v212, %v214
  %v216 = vadd.f32 %v212, %v215
  %vm217 = vweird.f32 %v212
  %v218 = vsel %vm217, %v212, %v216
  %v219 = vmul.f32 %v211, %v218
  %v220 = vsub.f32 %v14, %v219
  %v221 = vsub.f32 %v15, %v219
  %v222 = vsub.f32 %v16, %v219
  %v223 = vsub.f32 %v17, %v219
  %v224 = vsub.f32 %v18, %v219
  %v225 = vsub.f32 %v19, %v219
  %v226 = vsub.f32 %v20, %v219
  %v227 = vsub.f32 %v21, %v219
  %v228 = vsub.f32 %v22, %v219
  %v229 = vsub.f32 %v23, %v219
  %v230 = vsub.f32 %v24, %v219
  %v231 = vsub.f32 %v25, %v219
  %v232 = vsub.f32 %v26, %v219
  %v233 = vsub.f32 %v27, %v219
  %v234 = vsub.f32 %v28, %v219
  %v235 = vsub.f32 %v29, %v219
  %v236 = vsub.f32 %v30, %v219
  %v237 = vsub.f32 %v31, %v219
  %v238 = vsub.f32 %v32, %v219
  %v239 = vsub.f32 %v33, %v219
  %v240 = vsub.f32 %v34, %v219
  %v241 = vsub.f32 %v35, %v219
  %v242 = vsub.f32 %v36, %v219
  %v243 = vsub.f32 %v37, %v219
  %v244 = vsub.f32 %v38, %v219
  %v245 = vsub.f32 %v39, %v219
  %v246 = vsub.f32 %v40, %v219
  %v247 = vsub.f32 %v41, %v219
  %v248 = vsub.f32 %v42, %v219
  %v249 = vsub.f32 %v43, %v219
  %v250 = vsub.f32 %v44, %v219
  %v251 = vsub.f32 %v45, %v219
  %v252 = vsub.f32 %v46, %v219
  %v253 = vsub.f32 %v47, %v219
  %v254 = vsub.f32 %v48, %v219
  %v255 = vsub.f32 %v49, %v219
  %v256 = vsub.f32 %v50, %v219
  %v257 = vsub.f32 %v51, %v219
  %v258 = vsub.f32 %v52, %v219
  %v259 = vsub.f32 %v53, %v219
  %v260 = vsub.f32 %v54, %v219
  %v261 = vsub.f32 %v55, %v219
  %v262 = vsub.f32 %v56, %v219
  %v263 = vsub.f32 %v57, %v219
  %v264 = vsub.f32 %v58, %v219
  %v265 = vsub.f32 %v59, %v219
  %v266 = vsub.f32 %v60, %v219
  %v267 = vsub.f32 %v61, %v219
  %v268 = vsub.f32 %v62, %v219
  %v269 = vsub.f32 %v63, %v219
  %v270 = vsub.f32 %v64, %v219
  %v271 = vsub.f32 %v65, %v219
  %v272 = vsub.f32 %v66, %v219
  %v273 = vsub.f32 %v67, %v219
  %v274 = vsub.f32 %v68, %v219
  %v275 = vsub.f32 %v69, %v219
  %v276 = vsub.f32 %v70, %v219
  %v277 = vsub.f32 %v71, %v219
  %v278 = vsub.f32 %v72, %v219
  %v279 = vsub.f32 %v73, %v219
  %v280 = vsub.f32 %v74, %v219
  %v281 = vsub.f32 %v75, %v219
  %v282 = vsub.f32 %v76, %v219
  %v283 = vsub.f32 %v77, %v219
  %v284 = vmul.f32 %v220, %v220
  %v285 = vmul.f32 %v221, %v221
  %v286 = vmul.f32 %v222, %v222
  %v287 = vmul.f32 %v223, %v223
  %v288 = vmul.f32 %v224, %v224
  %v289 = vmul.f32 %v225, %v225
  %v290 = vmul.f32 %v226, %v226
  %v291 = vmul.f32 %v227, %v227
  %v292 = vmul.f32 %v228, %v228
  %v293 = vmul.f32 %v229, %v229
  %v294 = vmul.f32 %v230, %v230
  %v295 = vmul.f32 %v231, %v231
  %v296 = vmul.f32 %v232, %v232
  %v297 = vmul.f32 %v233, %v233
  %v298 = vmul.f32 %v234, %v234
  %v299 = vmul.f32 %v235, %v235
  %v300 = vmul.f32 %v236, %v236
  %v301 = vmul.f32 %v237, %v237
  %v302 = vmul.f32 %v238, %v238
  %v303 = vmul.f32 %v239, %v239
  %v304 = vmul.f32 %v240, %v240
  %v305 = vmul.f32 %v241, %v241
  %v306 = vmul.f32 %v242, %v242
  %v307 = vmul.f32 %v243, %v243
  %v308 = vmul.f32 %v244, %v244
  %v309 = vmul.f32 %v245, %v245
  %v310 = vmul.f32 %v246, %v246
  %v311 = vmul.f32 %v247, %v247
  %v312 = vmul.f32 %v248, %v248
  %v313 = vmul.f32 %v249, %v249
  %v314 = vmul.f32 %v250, %v250
  %v315 = vmul.f32 %v251, %v251
  %v316 = vmul.f32 %v252, %v252
  %v317 = vmul.f32 %v253, %v253
  %v318 = vmul.f32 %v254, %v254
  %v319 = vmul.f32 %v255, %v255
  %v320 = vmul.f32 %v256, %v256
  %v321 = vmul.f32 %v257, %v257
  %v322 = vmul.f32 %v258, %v258
  %v323 = vmul.f32 %v259, %v259
  %v324 = vmul.f32 %v260, %v260
  %v325 = vmul.f32 %v261, %v261
  %v326 = vmul.f32 %v262, %v262
  %v327 = vmul.f32 %v263, %v263
  %v328 = vmul.f32 %v264, %v264
  %v329 = vmul.f32 %v265, %v265
  %v330 = vmul.f32 %v266, %v266
  %v331 = vmul.f32 %v267, %v267
  %v332 = vmul.f32 %v268, %v268
  %v333 = vmul.f32 %v269, %v269
  %v334 = vmul.f32 %v270, %v270
  %v335 = vmul.f32 %v271, %v271
  %v336 = vmul.f32 %v272, %v272
  %v337 = vmul.f32 %v273, %v273
  %v338 = vmul.f32 %v274, %v274
  %v339 = vmul.f32 %v275, %v275
  %v340 = vmul.f32 %v276, %v276
  %v341 = vmul.f32 %v277, %v277
  %v342 = vmul.f32 %v278, %v278
  %v343 = vmul.f32 %v279, %v279
  %v344 = vmul.f32 %v280, %v280
  %v345 = vmul.f32 %v281, %v281
  %v346 = vmul.f32 %v282, %v282
  %v347 = vmul.f32 %v283, %v283
  %v348 = vsel %vm78, %v284, 0.0
  %v349 = vsel %vm78, %v285, 0.0
  %v350 = vadd.f32 %v348, %v349
  %v351 = vsel %vm78, %v286, 0.0
  %v352 = vadd.f32 %v350, %v351
  %v353 = vsel %vm78, %v287, 0.0
  %v354 = vadd.f32 %v352, %v353
  %v355 = vsel %vm78, %v288, 0.0
  %v356 = vadd.f32 %v354, %v355
  %v357 = vsel %vm78, %v289, 0.0
  %v358 = vadd.f32 %v356, %v357
  %v359 = vsel %vm78, %v290, 0.0
  %v360 = vadd.f32 %v358, %v359
  %v361 = vsel %vm78, %v291, 0.0
  %v362 = vadd.f32 %v360, %v361
  %v363 = vsel %vm78, %v292, 0.0
  %v364 = vadd.f32 %v362, %v363
  %v365 = vsel %vm78, %v293, 0.0
  %v366 = vadd.f32 %v364, %v365
  %v367 = vsel %vm78, %v294, 0.0
  %v368 = vadd.f32 %v366, %v367
  %v369 = vsel %vm78, %v295, 0.0
  %v370 = vadd.f32 %v368, %v369
  %v371 = vsel %vm78, %v296, 0.0
  %v372 = vadd.f32 %v370, %v371
  %v373 = vsel %vm78, %v297, 0.0
  %v374 = vadd.f32 %v372, %v373
  %v375 = vsel %vm78, %v298, 0.0
  %v376 = vadd.f32 %v374, %v375
  %v377 = vsel %vm78, %v299, 0.0
  %v378 = vadd.f32 %v376, %v377
  %v379 = vsel %vm78, %v300, 0.0
  %v380 = vadd.f32 %v378, %v379
  %v381 = vsel %vm78, %v301, 0.0
  %v382 = vadd.f32 %v380, %v381
  %v383 = vsel %vm78, %v302, 0.0
  %v384 = vadd.f32 %v382, %v383
  %v385 = vsel %vm78, %v303, 0.0
  %v386 = vadd.f32 %v384, %v385
  %v387 = vsel %vm78, %v304, 0.0
  %v388 = vadd.f32 %v386, %v387
  %v389 = vsel %vm78, %v305, 0.0
  %v390 = vadd.f32 %v388, %v389
  %v391 = vsel %vm78, %v306, 0.0
  %v392 = vadd.f32 %v390, %v391
  %v393 = vsel %vm78, %v307, 0.0
  %v394 = vadd.f32 %v392, %v393
  %v395 = vsel %vm78, %v308, 0.0
  %v396 = vadd.f32 %v394, %v395
  %v397 = vsel %vm78, %v309, 0.0
  %v398 = vadd.f32 %v396, %v397
  %v399 = vsel %vm78, %v310, 0.0
  %v400 = vadd.f32 %v398, %v399
  %v401 = vsel %vm78, %v311, 0.0
  %v402 = vadd.f32 %v400, %v401
  %v403 = vsel %vm78, %v312, 0.0
  %v404 = vadd.f32 %v402, %v403
  %v405 = vsel %vm78, %v313, 0.0
  %v406 = vadd.f32 %v404, %v405
  %v407 = vsel %vm78, %v314, 0.0
  %v408 = vadd.f32 %v406, %v407
  %v409 = vsel %vm78, %v315, 0.0
  %v410 = vadd.f32 %v408, %v409
  %v411 = vsel %vm78, %v316, 0.0
  %v412 = vadd.f32 %v410, %v411
  %v413 = vsel %vm78, %v317, 0.0
  %v414 = vadd.f32 %v412, %v413
  %v415 = vsel %vm78, %v318, 0.0
  %v416 = vadd.f32 %v414, %v415
  %v417 = vsel %vm78, %v319, 0.0
  %v418 = vadd.f32 %v416, %v417
  %v419 = vsel %vm78, %v320, 0.0
  %v420 = vadd.f32 %v418, %v419
  %v421 = vsel %vm78, %v321, 0.0
  %v422 = vadd.f32 %v420, %v421
  %v423 = vsel %vm78, %v322, 0.0
  %v424 = vadd.f32 %v422, %v423
  %v425 = vsel %vm78, %v323, 0.0
  %v426 = vadd.f32 %v424, %v425
  %v427 = vsel %vm78, %v324, 0.0
  %v428 = vadd.f32 %v426, %v427
  %v429 = vsel %vm78, %v325, 0.0
  %v430 = vadd.f32 %v428, %v429
  %v431 = vsel %vm78, %v326, 0.0
  %v432 = vadd.f32 %v430, %v431
  %v433 = vsel %vm78, %v327, 0.0
  %v434 = vadd.f32 %v432, %v433
  %v435 = vsel %vm78, %v328, 0.0
  %v436 = vadd.f32 %v434, %v435
  %v437 = vsel %vm78, %v329, 0.0
  %v438 = vadd.f32 %v436, %v437
  %v439 = vsel %vm78, %v330, 0.0
  %v440 = vadd.f32 %v438, %v439
  %v441 = vsel %vm78, %v331, 0.0
  %v442 = vadd.f32 %v440, %v441
  %v443 = vsel %vm78, %v332, 0.0
  %v444 = vadd.f32 %v442, %v443
  %v445 = vsel %vm78, %v333, 0.0
  %v446 = vadd.f32 %v444, %v445
  %v447 = vsel %vm78, %v334, 0.0
  %v448 = vadd.f32 %v446, %v447
  %v449 = vsel %vm78, %v335, 0.0
  %v450 = vadd.f32 %v448, %v449
  %v451 = vsel %vm78, %v336, 0.0
  %v452 = vadd.f32 %v450, %v451
  %v453 = vsel %vm78, %v337, 0.0
  %v454 = vadd.f32 %v452, %v453
  %v455 = vsel %vm78, %v338, 0.0
  %v456 = vadd.f32 %v454, %v455
  %v457 = vsel %vm78, %v339, 0.0
  %v458 = vadd.f32 %v456, %v457
  %v459 = vsel %vm78, %v340, 0.0
  %v460 = vadd.f32 %v458, %v459
  %v461 = vsel %vm78, %v341, 0.0
  %v462 = vadd.f32 %v460, %v461
  %v463 = vsel %vm78, %v342, 0.0
  %v464 = vadd.f32 %v462, %v463
  %v465 = vsel %vm78, %v343, 0.0
  %v466 = vadd.f32 %v464, %v465
  %v467 = vsel %vm78, %v344, 0.0
  %v468 = vadd.f32 %v466, %v467
  %v469 = vsel %vm78, %v345, 0.0
  %v470 = vadd.f32 %v468, %v469
  %v471 = vsel %vm78, %v346, 0.0
  %v472 = vadd.f32 %v470, %v471
  %v473 = vsel %vm78, %v347, 0.0
  %v474 = vadd.f32 %v472, %v473
  %v475 = vrot.slane %v474, 4
  %v476 = vadd.f32 %v474, %v475
  %v477 = vrot.slane %v476, 2
  %v478 = vadd.f32 %v476, %v477
  %v479 = vrot.slane %v478, 1
  %v480 = vadd.f32 %v478, %v479
  %v481 = vmul.f32 %v480, %v218
  %v482 = vadd.f32 %v481, 1e-05
  %v483 = vrsqrt.pop %v482
  %v484 = vmul.f32 %v483, %v482
  %v485 = vmul.f32 %v484, %v483
  %v486 = vmul.f32 0.5, %v485
  %v487 = vsub.f32 1.5, %v486
  %v488 = vmul.f32 %v483, %v487
  %vm489 = vweird.f32 %v482
  %vm490 = vweird.f32 %v483
  %vm491 = vmor %vm489, %vm490
  %v492 = vsel %vm491, %v483, %v488
  %v493 = vld [vmem:[%s1] sm:$0x1]
  %v494 = vmul.f32 %v492, %v493
  %v495 = vperm.slane %v494, 0
  %v496 = vmul.f32 %v220, %v495
  %v497 = vmul.f32 %v221, %v495
  %v498 = vmul.f32 %v222, %v495
  %v499 = vmul.f32 %v223, %v495
  %v500 = vmul.f32 %v224, %v495
  %v501 = vmul.f32 %v225, %v495
  %v502 = vmul.f32 %v226, %v495
  %v503 = vmul.f32 %v227, %v495
  %v504 = vmul.f32 %v228, %v495
  %v505 = vmul.f32 %v229, %v495
  %v506 = vmul.f32 %v230, %v495
  %v507 = vmul.f32 %v231, %v495
  %v508 = vmul.f32 %v232, %v495
  %v509 = vmul.f32 %v233, %v495
  %v510 = vmul.f32 %v234, %v495
  %v511 = vmul.f32 %v235, %v495
  %v512 = vmul.f32 %v236, %v495
  %v513 = vmul.f32 %v237, %v495
  %v514 = vmul.f32 %v238, %v495
  %v515 = vmul.f32 %v239, %v495
  %v516 = vmul.f32 %v240, %v495
  %v517 = vmul.f32 %v241, %v495
  %v518 = vmul.f32 %v242, %v495
  %v519 = vmul.f32 %v243, %v495
  %v520 = vmul.f32 %v244, %v495
  %v521 = vmul.f32 %v245, %v495
  %v522 = vmul.f32 %v246, %v495
  %v523 = vmul.f32 %v247, %v495
  %v524 = vmul.f32 %v248, %v495
  %v525 = vmul.f32 %v249, %v495
  %v526 = vmul.f32 %v250, %v495
  %v527 = vmul.f32 %v251, %v495
  %v528 = vmul.f32 %v252, %v495
  %v529 = vmul.f32 %v253, %v495
  %v530 = vmul.f32 %v254, %v495
  %v531 = vmul.f32 %v255, %v495
  %v532 = vmul.f32 %v256, %v495
  %v533 = vmul.f32 %v257, %v495
  %v534 = vmul.f32 %v258, %v495
  %v535 = vmul.f32 %v259, %v495
  %v536 = vmul.f32 %v260, %v495
  %v537 = vmul.f32 %v261, %v495
  %v538 = vmul.f32 %v262, %v495
  %v539 = vmul.f32 %v263, %v495
  %v540 = vmul.f32 %v264, %v495
  %v541 = vmul.f32 %v265, %v495
  %v542 = vmul.f32 %v266, %v495
  %v543 = vmul.f32 %v267, %v495
  %v544 = vmul.f32 %v268, %v495
  %v545 = vmul.f32 %v269, %v495
  %v546 = vmul.f32 %v270, %v495
  %v547 = vmul.f32 %v271, %v495
  %v548 = vmul.f32 %v272, %v495
  %v549 = vmul.f32 %v273, %v495
  %v550 = vmul.f32 %v274, %v495
  %v551 = vmul.f32 %v275, %v495
  %v552 = vmul.f32 %v276, %v495
  %v553 = vmul.f32 %v277, %v495
  %v554 = vmul.f32 %v278, %v495
  %v555 = vmul.f32 %v279, %v495
  %v556 = vmul.f32 %v280, %v495
  %v557 = vmul.f32 %v281, %v495
  %v558 = vmul.f32 %v282, %v495
  %v559 = vmul.f32 %v283, %v495
  %v560 = vld [vmem:[%s2] sm:$0x1]
  %v562 = vperm.slane %v560, 0
  %v564 = vadd.f32 %v496, %v562
  %v565 = vadd.f32 %v497, %v562
  %v566 = vadd.f32 %v498, %v562
  %v567 = vadd.f32 %v499, %v562
  %v568 = vadd.f32 %v500, %v562
  %v569 = vadd.f32 %v501, %v562
  %v570 = vadd.f32 %v502, %v562
  %v571 = vadd.f32 %v503, %v562
  %v572 = vadd.f32 %v504, %v562
  %v573 = vadd.f32 %v505, %v562
  %v574 = vadd.f32 %v506, %v562
  %v575 = vadd.f32 %v507, %v562
  %v576 = vadd.f32 %v508, %v562
  %v577 = vadd.f32 %v509, %v562
  %v578 = vadd.f32 %v510, %v562
  %v579 = vadd.f32 %v511, %v562
  %v580 = vadd.f32 %v512, %v562
  %v581 = vadd.f32 %v513, %v562
  %v582 = vadd.f32 %v514, %v562
  %v583 = vadd.f32 %v515, %v562
  %v584 = vadd.f32 %v516, %v562
  %v585 = vadd.f32 %v517, %v562
  %v586 = vadd.f32 %v518, %v562
  %v587 = vadd.f32 %v519, %v562
  %v588 = vadd.f32 %v520, %v562
  %v589 = vadd.f32 %v521, %v562
  %v590 = vadd.f32 %v522, %v562
  %v591 = vadd.f32 %v523, %v562
  %v592 = vadd.f32 %v524, %v562
  %v593 = vadd.f32 %v525, %v562
  %v594 = vadd.f32 %v526, %v562
  %v595 = vadd.f32 %v527, %v562
  %v596 = vadd.f32 %v528, %v562
  %v597 = vadd.f32 %v529, %v562
  %v598 = vadd.f32 %v530, %v562
  %v599 = vadd.f32 %v531, %v562
  %v600 = vadd.f32 %v532, %v562
  %v601 = vadd.f32 %v533, %v562
  %v602 = vadd.f32 %v534, %v562
  %v603 = vadd.f32 %v535, %v562
  %v604 = vadd.f32 %v536, %v562
  %v605 = vadd.f32 %v537, %v562
  %v606 = vadd.f32 %v538, %v562
  %v607 = vadd.f32 %v539, %v562
  %v608 = vadd.f32 %v540, %v562
  %v609 = vadd.f32 %v541, %v562
  %v610 = vadd.f32 %v542, %v562
  %v611 = vadd.f32 %v543, %v562
  %v612 = vadd.f32 %v544, %v562
  %v613 = vadd.f32 %v545, %v562
  %v614 = vadd.f32 %v546, %v562
  %v615 = vadd.f32 %v547, %v562
  %v616 = vadd.f32 %v548, %v562
  %v617 = vadd.f32 %v549, %v562
  %v618 = vadd.f32 %v550, %v562
  %v619 = vadd.f32 %v551, %v562
  %v620 = vadd.f32 %v552, %v562
  %v621 = vadd.f32 %v553, %v562
  %v622 = vadd.f32 %v554, %v562
  %v623 = vadd.f32 %v555, %v562
  %v624 = vadd.f32 %v556, %v562
  %v625 = vadd.f32 %v557, %v562
  %v626 = vadd.f32 %v558, %v562
  %v627 = vadd.f32 %v559, %v562
  %v628 = vmax.f32 %v564, 0.0
  %v629 = vmax.f32 %v565, 0.0
  %v630 = vmax.f32 %v566, 0.0
  %v631 = vmax.f32 %v567, 0.0
  %v632 = vmax.f32 %v568, 0.0
  %v633 = vmax.f32 %v569, 0.0
  %v634 = vmax.f32 %v570, 0.0
  %v635 = vmax.f32 %v571, 0.0
  %v636 = vmax.f32 %v572, 0.0
  %v637 = vmax.f32 %v573, 0.0
  %v638 = vmax.f32 %v574, 0.0
  %v639 = vmax.f32 %v575, 0.0
  %v640 = vmax.f32 %v576, 0.0
  %v641 = vmax.f32 %v577, 0.0
  %v642 = vmax.f32 %v578, 0.0
  %v643 = vmax.f32 %v579, 0.0
  %v644 = vmax.f32 %v580, 0.0
  %v645 = vmax.f32 %v581, 0.0
  %v646 = vmax.f32 %v582, 0.0
  %v647 = vmax.f32 %v583, 0.0
  %v648 = vmax.f32 %v584, 0.0
  %v649 = vmax.f32 %v585, 0.0
  %v650 = vmax.f32 %v586, 0.0
  %v651 = vmax.f32 %v587, 0.0
  %v652 = vmax.f32 %v588, 0.0
  %v653 = vmax.f32 %v589, 0.0
  %v654 = vmax.f32 %v590, 0.0
  %v655 = vmax.f32 %v591, 0.0
  %v656 = vmax.f32 %v592, 0.0
  %v657 = vmax.f32 %v593, 0.0
  %v658 = vmax.f32 %v594, 0.0
  %v659 = vmax.f32 %v595, 0.0
  %v660 = vmax.f32 %v596, 0.0
  %v661 = vmax.f32 %v597, 0.0
  %v662 = vmax.f32 %v598, 0.0
  %v663 = vmax.f32 %v599, 0.0
  %v664 = vmax.f32 %v600, 0.0
  %v665 = vmax.f32 %v601, 0.0
  %v666 = vmax.f32 %v602, 0.0
  %v667 = vmax.f32 %v603, 0.0
  %v668 = vmax.f32 %v604, 0.0
  %v669 = vmax.f32 %v605, 0.0
  %v670 = vmax.f32 %v606, 0.0
  %v671 = vmax.f32 %v607, 0.0
  %v672 = vmax.f32 %v608, 0.0
  %v673 = vmax.f32 %v609, 0.0
  %v674 = vmax.f32 %v610, 0.0
  %v675 = vmax.f32 %v611, 0.0
  %v676 = vmax.f32 %v612, 0.0
  %v677 = vmax.f32 %v613, 0.0
  %v678 = vmax.f32 %v614, 0.0
  %v679 = vmax.f32 %v615, 0.0
  %v680 = vmax.f32 %v616, 0.0
  %v681 = vmax.f32 %v617, 0.0
  %v682 = vmax.f32 %v618, 0.0
  %v683 = vmax.f32 %v619, 0.0
  %v684 = vmax.f32 %v620, 0.0
  %v685 = vmax.f32 %v621, 0.0
  %v686 = vmax.f32 %v622, 0.0
  %v687 = vmax.f32 %v623, 0.0
  %v688 = vmax.f32 %v624, 0.0
  %v689 = vmax.f32 %v625, 0.0
  %v690 = vmax.f32 %v626, 0.0
  %v691 = vmax.f32 %v627, 0.0
  %v692 = vpack.c.bf16 %v628, %v628
  %v693 = vpack.c.bf16 %v629, %v629
  %v694 = vpack.c.bf16 %v630, %v630
  %v695 = vpack.c.bf16 %v631, %v631
  %v696 = vpack.c.bf16 %v632, %v632
  %v697 = vpack.c.bf16 %v633, %v633
  %v698 = vpack.c.bf16 %v634, %v634
  %v699 = vpack.c.bf16 %v635, %v635
  %v700 = vpack.c.bf16 %v636, %v636
  %v701 = vpack.c.bf16 %v637, %v637
  %v702 = vpack.c.bf16 %v638, %v638
  %v703 = vpack.c.bf16 %v639, %v639
  %v704 = vpack.c.bf16 %v640, %v640
  %v705 = vpack.c.bf16 %v641, %v641
  %v706 = vpack.c.bf16 %v642, %v642
  %v707 = vpack.c.bf16 %v643, %v643
  %v708 = vpack.c.bf16 %v644, %v644
  %v709 = vpack.c.bf16 %v645, %v645
  %v710 = vpack.c.bf16 %v646, %v646
  %v711 = vpack.c.bf16 %v647, %v647
  %v712 = vpack.c.bf16 %v648, %v648
  %v713 = vpack.c.bf16 %v649, %v649
  %v714 = vpack.c.bf16 %v650, %v650
  %v715 = vpack.c.bf16 %v651, %v651
  %v716 = vpack.c.bf16 %v652, %v652
  %v717 = vpack.c.bf16 %v653, %v653
  %v718 = vpack.c.bf16 %v654, %v654
  %v719 = vpack.c.bf16 %v655, %v655
  %v720 = vpack.c.bf16 %v656, %v656
  %v721 = vpack.c.bf16 %v657, %v657
  %v722 = vpack.c.bf16 %v658, %v658
  %v723 = vpack.c.bf16 %v659, %v659
  %v724 = vpack.c.bf16 %v660, %v660
  %v725 = vpack.c.bf16 %v661, %v661
  %v726 = vpack.c.bf16 %v662, %v662
  %v727 = vpack.c.bf16 %v663, %v663
  %v728 = vpack.c.bf16 %v664, %v664
  %v729 = vpack.c.bf16 %v665, %v665
  %v730 = vpack.c.bf16 %v666, %v666
  %v731 = vpack.c.bf16 %v667, %v667
  %v732 = vpack.c.bf16 %v668, %v668
  %v733 = vpack.c.bf16 %v669, %v669
  %v734 = vpack.c.bf16 %v670, %v670
  %v735 = vpack.c.bf16 %v671, %v671
  %v736 = vpack.c.bf16 %v672, %v672
  %v737 = vpack.c.bf16 %v673, %v673
  %v738 = vpack.c.bf16 %v674, %v674
  %v739 = vpack.c.bf16 %v675, %v675
  %v740 = vpack.c.bf16 %v676, %v676
  %v741 = vpack.c.bf16 %v677, %v677
  %v742 = vpack.c.bf16 %v678, %v678
  %v743 = vpack.c.bf16 %v679, %v679
  %v744 = vpack.c.bf16 %v680, %v680
  %v745 = vpack.c.bf16 %v681, %v681
  %v746 = vpack.c.bf16 %v682, %v682
  %v747 = vpack.c.bf16 %v683, %v683
  %v748 = vpack.c.bf16 %v684, %v684
  %v749 = vpack.c.bf16 %v685, %v685
  %v750 = vpack.c.bf16 %v686, %v686
  %v751 = vpack.c.bf16 %v687, %v687
  %v752 = vpack.c.bf16 %v688, %v688
  %v753 = vpack.c.bf16 %v689, %v689
  %v754 = vpack.c.bf16 %v690, %v690
  %v755 = vpack.c.bf16 %v691, %v691
  %vm756 = vcmask 125952
  %757 = vst.msk [vmem:[%s3] sm:$0xf] %vm756, %v692
  %758 = vst.msk [vmem:[%s3 + $0x4] sm:$0xf] %vm756, %v693
  %759 = vst.msk [vmem:[%s3 + $0x8] sm:$0xf] %vm756, %v694
  %760 = vst.msk [vmem:[%s3 + $0xc] sm:$0xf] %vm756, %v695
  %761 = vst.msk [vmem:[%s3 + $0x10] sm:$0xf] %vm756, %v696
  %762 = vst.msk [vmem:[%s3 + $0x14] sm:$0xf] %vm756, %v697
  %763 = vst.msk [vmem:[%s3 + $0x18] sm:$0xf] %vm756, %v698
  %764 = vst.msk [vmem:[%s3 + $0x1c] sm:$0xf] %vm756, %v699
  %765 = vst.msk [vmem:[%s3 + $0x20] sm:$0xf] %vm756, %v700
  %766 = vst.msk [vmem:[%s3 + $0x24] sm:$0xf] %vm756, %v701
  %767 = vst.msk [vmem:[%s3 + $0x28] sm:$0xf] %vm756, %v702
  %768 = vst.msk [vmem:[%s3 + $0x2c] sm:$0xf] %vm756, %v703
  %769 = vst.msk [vmem:[%s3 + $0x30] sm:$0xf] %vm756, %v704
  %770 = vst.msk [vmem:[%s3 + $0x34] sm:$0xf] %vm756, %v705
  %771 = vst.msk [vmem:[%s3 + $0x38] sm:$0xf] %vm756, %v706
  %772 = vst.msk [vmem:[%s3 + $0x3c] sm:$0xf] %vm756, %v707
  %773 = vst.msk [vmem:[%s3 + $0x40] sm:$0xf] %vm756, %v708
  %774 = vst.msk [vmem:[%s3 + $0x44] sm:$0xf] %vm756, %v709
  %775 = vst.msk [vmem:[%s3 + $0x48] sm:$0xf] %vm756, %v710
  %776 = vst.msk [vmem:[%s3 + $0x4c] sm:$0xf] %vm756, %v711
  %777 = vst.msk [vmem:[%s3 + $0x50] sm:$0xf] %vm756, %v712
  %778 = vst.msk [vmem:[%s3 + $0x54] sm:$0xf] %vm756, %v713
  %779 = vst.msk [vmem:[%s3 + $0x58] sm:$0xf] %vm756, %v714
  %780 = vst.msk [vmem:[%s3 + $0x5c] sm:$0xf] %vm756, %v715
  %781 = vst.msk [vmem:[%s3 + $0x60] sm:$0xf] %vm756, %v716
  %782 = vst.msk [vmem:[%s3 + $0x64] sm:$0xf] %vm756, %v717
  %783 = vst.msk [vmem:[%s3 + $0x68] sm:$0xf] %vm756, %v718
  %784 = vst.msk [vmem:[%s3 + $0x6c] sm:$0xf] %vm756, %v719
  %785 = vst.msk [vmem:[%s3 + $0x70] sm:$0xf] %vm756, %v720
  %786 = vst.msk [vmem:[%s3 + $0x74] sm:$0xf] %vm756, %v721
  %787 = vst.msk [vmem:[%s3 + $0x78] sm:$0xf] %vm756, %v722
  %788 = vst.msk [vmem:[%s3 + $0x7c] sm:$0xf] %vm756, %v723
  %789 = vst.msk [vmem:[%s3 + $0x80] sm:$0xf] %vm756, %v724
  %790 = vst.msk [vmem:[%s3 + $0x84] sm:$0xf] %vm756, %v725
  %791 = vst.msk [vmem:[%s3 + $0x88] sm:$0xf] %vm756, %v726
  %792 = vst.msk [vmem:[%s3 + $0x8c] sm:$0xf] %vm756, %v727
  %793 = vst.msk [vmem:[%s3 + $0x90] sm:$0xf] %vm756, %v728
  %794 = vst.msk [vmem:[%s3 + $0x94] sm:$0xf] %vm756, %v729
  %795 = vst.msk [vmem:[%s3 + $0x98] sm:$0xf] %vm756, %v730
  %796 = vst.msk [vmem:[%s3 + $0x9c] sm:$0xf] %vm756, %v731
  %797 = vst.msk [vmem:[%s3 + $0xa0] sm:$0xf] %vm756, %v732
  %798 = vst.msk [vmem:[%s3 + $0xa4] sm:$0xf] %vm756, %v733
  %799 = vst.msk [vmem:[%s3 + $0xa8] sm:$0xf] %vm756, %v734
  %800 = vst.msk [vmem:[%s3 + $0xac] sm:$0xf] %vm756, %v735
  %801 = vst.msk [vmem:[%s3 + $0xb0] sm:$0xf] %vm756, %v736
  %802 = vst.msk [vmem:[%s3 + $0xb4] sm:$0xf] %vm756, %v737
  %803 = vst.msk [vmem:[%s3 + $0xb8] sm:$0xf] %vm756, %v738
  %804 = vst.msk [vmem:[%s3 + $0xbc] sm:$0xf] %vm756, %v739
  %805 = vst.msk [vmem:[%s3 + $0xc0] sm:$0xf] %vm756, %v740
  %806 = vst.msk [vmem:[%s3 + $0xc4] sm:$0xf] %vm756, %v741
  %807 = vst.msk [vmem:[%s3 + $0xc8] sm:$0xf] %vm756, %v742
  %808 = vst.msk [vmem:[%s3 + $0xcc] sm:$0xf] %vm756, %v743
  %809 = vst.msk [vmem:[%s3 + $0xd0] sm:$0xf] %vm756, %v744
  %810 = vst.msk [vmem:[%s3 + $0xd4] sm:$0xf] %vm756, %v745
  %811 = vst.msk [vmem:[%s3 + $0xd8] sm:$0xf] %vm756, %v746
  %812 = vst.msk [vmem:[%s3 + $0xdc] sm:$0xf] %vm756, %v747
  %813 = vst.msk [vmem:[%s3 + $0xe0] sm:$0xf] %vm756, %v748
  %814 = vst.msk [vmem:[%s3 + $0xe4] sm:$0xf] %vm756, %v749
  %815 = vst.msk [vmem:[%s3 + $0xe8] sm:$0xf] %vm756, %v750
  %816 = vst.msk [vmem:[%s3 + $0xec] sm:$0xf] %vm756, %v751
  %817 = vst.msk [vmem:[%s3 + $0xf0] sm:$0xf] %vm756, %v752
  %818 = vst.msk [vmem:[%s3 + $0xf4] sm:$0xf] %vm756, %v753
  %819 = vst.msk [vmem:[%s3 + $0xf8] sm:$0xf] %vm756, %v754
  %820 = vst.msk [vmem:[%s3 + $0xfc] sm:$0xf] %vm756, %v755
  // Predicated region
  $region14: #{path_aware_resnet_gen_forward.22} parent=0 // pred_check
    _
  $region15: #{path_aware_resnet_gen_forward.22} parent=0 // pred_check_branch
    %822 = sbr.rel (0) target = $region17
  $region16: #{path_aware_resnet_gen_forward.22} parent=0 // pred_region
    _
  $region17: #{path_aware_resnet_gen_forward.22} parent=0 // pred_fallthru
    _
  // Predicated region
  $region18: #{path_aware_resnet_gen_forward.22} parent=0 // pred_check
    _
  $region19: #{path_aware_resnet_gen_forward.22} parent=0 // pred_check_branch
    %824 = sbr.rel (0) target = $region21
  $region20: #{path_aware_resnet_gen_forward.22} parent=0 // pred_region
    _
  $region21: #{path_aware_resnet_gen_forward.22} parent=0 // pred_fallthru
    _

// kernel: path_aware_resnet_gen_forward.23
$region0: #{path_aware_resnet_gen_forward.23}
  #allocation0 [shape = 'u32[]', space=smem, size = 0x4, offset = 0x4, fixed_abs, tag = 'smem constant byte address 0x4 - core index']
  #allocation1 [shape = 'u32[72,128]{1,0:T(1,128)}', space=vmem, size = 0x9000, scoped, tag = 'internal scratch']
  #allocation2 [shape = 's32[1]{0}', space=sflag, size = 0x4, scoped, tag = 'scoped memory for path_aware_resnet_gen_forward.23']
  #allocation3 [shape = 'u8[512]{0}', space=smem, size = 0x200, scoped, tag = 'prefetched SMEM operand 0']
  %s0 = inlined_call_operand.vmem [shape: s32[2], index: 0, kind: input, shape index: {}]
  %s1 = inlined_call_operand.vmem [shape: bf16[2,256,400], index: 1, kind: input, shape index: {}]
  %s2 = inlined_call_operand.vmem [shape: bf16[3,400,16], index: 2, kind: input, shape index: {}]
  %s3 = inlined_call_operand.vmem [shape: f32[3,1,16], index: 3, kind: input, shape index: {}]
  %s4 = inlined_call_operand.vmem [shape: f32[2,256,16], index: 4, kind: input, shape index: {}]
  %s5 = inlined_call_operand.vmem [shape: f32[2,256,16], index: 5, kind: output, shape index: {}]
  %s6 = sld [smem:[#allocation0]]
  $region49: #{path_aware_resnet_gen_forward.23} parent=0
    _
  %s8 = ssub.s32 1, %s6
  %s9 = scalar_select 0, %s8, %s6
  %s11 = sshll.u32 %s0, 4
  %s12 = int_to_ptr.vmem [resolvable:$true] %s11
  %14 = dma.vmem_to_smem %s12, 16, [#allocation3], [#allocation2]
  %16 = dma.done [#allocation2], 16
  %17 = sfence
  loop: start=0, step=1, limit=4
  $region2: #{path_aware_resnet_gen_forward.23} parent=0 // loop_pre_header
    _
  $region3: #{path_aware_resnet_gen_forward.23} parent=0 // loop_header
    %s19 = sphi 0, %s23
    %p20 = scmp.ge.s32.totalorder %s19, 4
    %s29 = sphi 0, %s31
    %s32 = sphi 0, %s29
    %s33 = sphi 0, %s32
    %s49 = sphi 0, %s33
    %s57 = sphi 0, %s59
    %s60 = sphi 0, %s57
    %s61 = sphi 0, %s60
    %s77 = sphi 0, %s61
    %s85 = sphi 0, %s87
    %s88 = sphi 0, %s85
    %s89 = sphi 0, %s88
    %s105 = sphi 0, %s89
    %s111 = sphi 0, %s113
    %s114 = sphi 0, %s111
    %s115 = sphi 0, %s114
    %s131 = sphi 0, %s115
    %s137 = sphi 0, %s139
    %s140 = sphi 0, %s137
    %s141 = sphi 0, %s140
    %s157 = sphi 0, %s141
  $region4: #{path_aware_resnet_gen_forward.23} parent=0 // loop_header_branch
    %22 = sbr.rel (%p20) target = $region8
  $region5: #{path_aware_resnet_gen_forward.23} parent=0 // loop_body
    %s24 = ssub.s32 %s19, 1
    %s25 = ssub.s32 %s19, 2
    %s26 = sadd.s32 %s19, 1
    %s27 = ssub.s32 %s19, %s26
    %p28 = scmp.eq.s32.totalorder %s27, 0
    %s30 = sadd.s32 %s29, 1
    %s31 = scalar_select %p28, %s29, %s30
    %p34 = pneg %p28
    %p35 = scmp.eq.s32.totalorder %s19, 1
    %p36 = por %p34, %p35
    %p37 = scmp.ne.s32.totalorder %s29, %s32
    %p38 = scmp.eq.s32.totalorder %s19, 0
    %p39 = por %p37, %p38
    %p40 = scmp.ne.s32.totalorder %s29, %s32
    %p41 = scmp.eq.s32.totalorder %s24, 1
    %p42 = por %p40, %p41
    %p43 = scmp.ne.s32.totalorder %s32, %s33
    %p44 = scmp.eq.s32.totalorder %s24, 0
    %p45 = por %p43, %p44
    %p46 = scmp.ne.s32.totalorder %s32, %s33
    %p47 = scmp.eq.s32.totalorder %s25, 1
    %p48 = por %p46, %p47
    %p50 = scmp.ne.s32.totalorder %s33, %s49
    %p51 = scmp.eq.s32.totalorder %s25, 0
    %p52 = por %p50, %p51
    %s53 = sld [smem:[#allocation3 + %s19]]
    %s54 = sld [smem:[#allocation3 + %s26]]
    %s55 = ssub.s32 %s53, %s54
    %p56 = scmp.eq.s32.totalorder %s55, 0
    %s58 = sadd.s32 %s57, 1
    %s59 = scalar_select %p56, %s57, %s58
    %p62 = pneg %p56
    %p63 = scmp.eq.s32.totalorder %s19, 1
    %p64 = por %p62, %p63
    %p65 = scmp.ne.s32.totalorder %s57, %s60
    %p66 = scmp.eq.s32.totalorder %s19, 0
    %p67 = por %p65, %p66
    %p68 = scmp.ne.s32.totalorder %s57, %s60
    %p69 = scmp.eq.s32.totalorder %s24, 1
    %p70 = por %p68, %p69
    %p71 = scmp.ne.s32.totalorder %s60, %s61
    %p72 = scmp.eq.s32.totalorder %s24, 0
    %p73 = por %p71, %p72
    %p74 = scmp.ne.s32.totalorder %s60, %s61
    %p75 = scmp.eq.s32.totalorder %s25, 1
    %p76 = por %p74, %p75
    %p78 = scmp.ne.s32.totalorder %s61, %s77
    %p79 = scmp.eq.s32.totalorder %s25, 0
    %p80 = por %p78, %p79
    %s81 = sld [smem:[#allocation3 + %s19]]
    %s82 = sld [smem:[#allocation3 + %s26]]
    %s83 = ssub.s32 %s81, %s82
    %p84 = scmp.eq.s32.totalorder %s83, 0
    %s86 = sadd.s32 %s85, 1
    %s87 = scalar_select %p84, %s85, %s86
    %p90 = pneg %p84
    %p91 = scmp.eq.s32.totalorder %s19, 1
    %p92 = por %p90, %p91
    %p93 = scmp.ne.s32.totalorder %s85, %s88
    %p94 = scmp.eq.s32.totalorder %s19, 0
    %p95 = por %p93, %p94
    %p96 = scmp.ne.s32.totalorder %s85, %s88
    %p97 = scmp.eq.s32.totalorder %s24, 1
    %p98 = por %p96, %p97
    %p99 = scmp.ne.s32.totalorder %s88, %s89
    %p100 = scmp.eq.s32.totalorder %s24, 0
    %p101 = por %p99, %p100
    %p102 = scmp.ne.s32.totalorder %s88, %s89
    %p103 = scmp.eq.s32.totalorder %s25, 1
    %p104 = por %p102, %p103
    %p106 = scmp.ne.s32.totalorder %s89, %s105
    %p107 = scmp.eq.s32.totalorder %s25, 0
    %p108 = por %p106, %p107
    %s109 = ssub.s32 %s19, %s26
    %p110 = scmp.eq.s32.totalorder %s109, 0
    %s112 = sadd.s32 %s111, 1
    %s113 = scalar_select %p110, %s111, %s112
    %p116 = pneg %p110
    %p117 = scmp.eq.s32.totalorder %s19, 1
    %p118 = por %p116, %p117
    %p119 = scmp.ne.s32.totalorder %s111, %s114
    %p120 = scmp.eq.s32.totalorder %s19, 0
    %p121 = por %p119, %p120
    %p122 = scmp.ne.s32.totalorder %s111, %s114
    %p123 = scmp.eq.s32.totalorder %s24, 1
    %p124 = por %p122, %p123
    %p125 = scmp.ne.s32.totalorder %s114, %s115
    %p126 = scmp.eq.s32.totalorder %s24, 0
    %p127 = por %p125, %p126
    %p128 = scmp.ne.s32.totalorder %s114, %s115
    %p129 = scmp.eq.s32.totalorder %s25, 1
    %p130 = por %p128, %p129
    %p132 = scmp.ne.s32.totalorder %s115, %s131
    %p133 = scmp.eq.s32.totalorder %s25, 0
    %p134 = por %p132, %p133
    %s135 = ssub.s32 %s19, %s26
    %p136 = scmp.eq.s32.totalorder %s135, 0
    %s138 = sadd.s32 %s137, 1
    %s139 = scalar_select %p136, %s137, %s138
    %p142 = pneg %p136
    %p143 = scmp.eq.s32.totalorder %s19, 1
    %p144 = por %p142, %p143
    %p145 = scmp.ne.s32.totalorder %s137, %s140
    %p146 = scmp.eq.s32.totalorder %s19, 0
    %p147 = por %p145, %p146
    %p148 = scmp.ne.s32.totalorder %s137, %s140
    %p149 = scmp.eq.s32.totalorder %s24, 1
    %p150 = por %p148, %p149
    %p151 = scmp.ne.s32.totalorder %s140, %s141
    %p152 = scmp.eq.s32.totalorder %s24, 0
    %p153 = por %p151, %p152
    %p154 = scmp.ne.s32.totalorder %s140, %s141
    %p155 = scmp.eq.s32.totalorder %s25, 1
    %p156 = por %p154, %p155
    %p158 = scmp.ne.s32.totalorder %s141, %s157
    %p159 = scmp.eq.s32.totalorder %s25, 0
    %p160 = por %p158, %p159
    %p161 = scmp.le.s32.totalorder 1, %s19
    %p162 = scmp.lt.s32.totalorder %s19, 3
    %p163 = pnand %p161, %p162
    %p164 = pneg %p163
    // Predicated region
    $region9: #{path_aware_resnet_gen_forward.23} parent=5 // pred_check
      _
    $region10: #{path_aware_resnet_gen_forward.23} parent=5 // pred_check_branch
      %166 = sbr.rel (%p163) target = $region12
    $region11: #{path_aware_resnet_gen_forward.23} parent=5 // pred_region
      %s167 = ssub.s32 %s19, 1
    $region12: #{path_aware_resnet_gen_forward.23} parent=5 // pred_fallthru
      _
    %p168 = scmp.lt.s32.totalorder %s19, 2
    // Predicated region
    $region13: #{path_aware_resnet_gen_forward.23} parent=5 // pred_check
      %p169 = pneg %p168
    $region14: #{path_aware_resnet_gen_forward.23} parent=5 // pred_check_branch
      %171 = sbr.rel (%p169) target = $region16
    $region15: #{path_aware_resnet_gen_forward.23} parent=5 // pred_region
      // Predicated region
      $region17: #{path_aware_resnet_gen_forward.23} parent=15 // pred_check
        %p172 = pneg %p39
      $region18: #{path_aware_resnet_gen_forward.23} parent=15 // pred_check_branch
        %174 = sbr.rel (%p172) target = $region20
      $region19: #{path_aware_resnet_gen_forward.23} parent=15 // pred_region
        %p175 = scmp.lt.s32.totalorder %s19, 1
        %s176 = scalar_select %p175, %s19, 1
        %s177 = smul.addr %s176, 128
        %s178 = smul.addr %s177, 4
        %s179 = scalar_lea.vmem %s1, %s178
      $region20: #{path_aware_resnet_gen_forward.23} parent=15 // pred_fallthru
        _
      // Predicated region
      $region21: #{path_aware_resnet_gen_forward.23} parent=15 // pred_check
        %p180 = pneg %p67
      $region22: #{path_aware_resnet_gen_forward.23} parent=15 // pred_check_branch
        %182 = sbr.rel (%p180) target = $region24
      $region23: #{path_aware_resnet_gen_forward.23} parent=15 // pred_region
        %s183 = sld [smem:[#allocation3 + %s19]]
        %p184 = scmp.lt.s32.totalorder %s183, 2
        %s185 = scalar_select %p184, %s183, 2
        %s186 = smul.addr %s185, 50
        %s187 = smul.addr %s186, 4
        %s188 = scalar_lea.vmem %s2, %s187
        %s189 = sld [smem:[#allocation3 + %s19]]
      $region24: #{path_aware_resnet_gen_forward.23} parent=15 // pred_fallthru
        _
      // Predicated region
      $region25: #{path_aware_resnet_gen_forward.23} parent=15 // pred_check
        %p190 = pneg %p95
      $region26: #{path_aware_resnet_gen_forward.23} parent=15 // pred_check_branch
        %192 = sbr.rel (%p190) target = $region28
      $region27: #{path_aware_resnet_gen_forward.23} parent=15 // pred_region
        %s193 = sld [smem:[#allocation3 + %s19]]
        %p194 = scmp.lt.s32.totalorder %s193, 2
        %s195 = scalar_select %p194, %s193, 2
        %s196 = scalar_lea.vmem %s3, %s195
        %s197 = sld [smem:[#allocation3 + %s19]]
      $region28: #{path_aware_resnet_gen_forward.23} parent=15 // pred_fallthru
        _
      // Predicated region
      $region29: #{path_aware_resnet_gen_forward.23} parent=15 // pred_check
        %p198 = pneg %p121
      $region30: #{path_aware_resnet_gen_forward.23} parent=15 // pred_check_branch
        %200 = sbr.rel (%p198) target = $region32
      $region31: #{path_aware_resnet_gen_forward.23} parent=15 // pred_region
        %p201 = scmp.lt.s32.totalorder %s19, 1
        %s202 = scalar_select %p201, %s19, 1
        %s203 = smul.addr %s202, 32
        %s204 = smul.addr %s203, 8
        %s205 = scalar_lea.vmem %s4, %s204
      $region32: #{path_aware_resnet_gen_forward.23} parent=15 // pred_fallthru
        _
    $region16: #{path_aware_resnet_gen_forward.23} parent=5 // pred_fallthru
      _
    %p206 = scmp.le.s32.totalorder 1, %s19
    %p207 = scmp.lt.s32.totalorder %s19, 3
    %p208 = pnand %p206, %p207
    %p209 = pneg %p208
    // Predicated region
    $region33: #{path_aware_resnet_gen_forward.23} parent=5 // pred_check
      _
    $region34: #{path_aware_resnet_gen_forward.23} parent=5 // pred_check_branch
      %211 = sbr.rel (%p208) target = $region36
    $region35: #{path_aware_resnet_gen_forward.23} parent=5 // pred_region
      %s212 = ssub.s32 %s19, 1
      %p213 = scmp.lt.s32.totalorder %s24, 1
      %s214 = scalar_select %p213, %s24, 1
      %s215 = smul.addr %s214, 128
      %s216 = smul.addr %s215, 4
      %s217 = scalar_lea.vmem %s1, %s216
      %p218 = pneg %p45
      %p219 = pneg %p42
      %s220 = sld [smem:[#allocation3 + %s24]]
      %p221 = scmp.lt.s32.totalorder %s220, 2
      %s222 = scalar_select %p221, %s220, 2
      %s223 = smul.addr %s222, 50
      %s224 = smul.addr %s223, 4
      %s225 = scalar_lea.vmem %s2, %s224
      %p226 = pneg %p73
      %p227 = pneg %p70
      %s228 = sld [smem:[#allocation3 + %s24]]
      %p229 = scmp.lt.s32.totalorder %s228, 2
      %s230 = scalar_select %p229, %s228, 2
      %s231 = scalar_lea.vmem %s3, %s230
      %p232 = pneg %p101
      %p233 = pneg %p98
      %p234 = scmp.lt.s32.totalorder %s24, 1
      %s235 = scalar_select %p234, %s24, 1
      %s236 = smul.addr %s235, 32
      %s237 = smul.addr %s236, 8
      %s238 = scalar_lea.vmem %s4, %s237
      %p239 = pneg %p127
      %p240 = pneg %p124
      %p241 = pneg %p153
      %p242 = pneg %p150
      %p243 = scmp.lt.s32.totalorder %s24, 1
      %s244 = scalar_select %p243, %s24, 1
      %s245 = smul.addr %s244, 32
      %s246 = smul.addr %s245, 8
      %s247 = scalar_lea.vmem %s5, %s246
      %p248 = scmp.lt.s32.totalorder %s24, 1
      %s249 = scalar_select %p248, %s24, 1
      %s250 = smul.addr %s249, 128
      %s251 = smul.addr %s250, 4
      %s252 = scalar_lea.vmem %s1, %s251
      %s253 = sld [smem:[#allocation3 + %s24]]
      %p254 = scmp.lt.s32.totalorder %s253, 2
      %s255 = scalar_select %p254, %s253, 2
      %s256 = smul.addr %s255, 50
      %s257 = smul.addr %s256, 4
      %s258 = scalar_lea.vmem %s2, %s257
      %s259 = sld [smem:[#allocation3 + %s24]]
      %s260 = sld [smem:[#allocation3 + %s24]]
      %p261 = scmp.lt.s32.totalorder %s260, 2
      %s262 = scalar_select %p261, %s260, 2
      %s263 = scalar_lea.vmem %s3, %s262
      %s264 = sld [smem:[#allocation3 + %s24]]
      %p265 = scmp.lt.s32.totalorder %s24, 1
      %s266 = scalar_select %p265, %s24, 1
      %s267 = smul.addr %s266, 32
      %s268 = smul.addr %s267, 8
      %s269 = scalar_lea.vmem %s4, %s268
      %p270 = scmp.lt.s32.totalorder %s24, 1
      %s271 = scalar_select %p270, %s24, 1
      %s272 = smul.addr %s271, 32
      %s273 = smul.addr %s272, 8
      %s274 = scalar_lea.vmem %s5, %s273
      %v276 = vld [vmem:[%s252] sm:$0xff]
      %v277 = vld [vmem:[%s252 + $0x8] sm:$0xff]
      %v278 = vld [vmem:[%s252 + $0x10] sm:$0xff]
      %v279 = vld [vmem:[%s252 + $0x18] sm:$0xff]
      %v280 = vld [vmem:[%s252 + $0x20] sm:$0xff]
      %v281 = vld [vmem:[%s252 + $0x28] sm:$0xff]
      %v282 = vld [vmem:[%s252 + $0x30] sm:$0xff]
      %v283 = vld [vmem:[%s252 + $0x38] sm:$0xff]
      %v284 = vld [vmem:[%s252 + $0x40] sm:$0xff]
      %v285 = vld [vmem:[%s252 + $0x48] sm:$0xff]
      %v286 = vld [vmem:[%s252 + $0x50] sm:$0xff]
      %v287 = vld [vmem:[%s252 + $0x58] sm:$0xff]
      %v288 = vld [vmem:[%s252 + $0x60] sm:$0xff]
      %v289 = vld [vmem:[%s252 + $0x68] sm:$0xff]
      %v290 = vld [vmem:[%s252 + $0x70] sm:$0xff]
      %v291 = vld [vmem:[%s252 + $0x78] sm:$0xff]
      %v292 = vld [vmem:[%s252 + $0x80] sm:$0xff]
      %v293 = vld [vmem:[%s252 + $0x88] sm:$0xff]
      %v294 = vld [vmem:[%s252 + $0x90] sm:$0xff]
      %v295 = vld [vmem:[%s252 + $0x98] sm:$0xff]
      %v296 = vld [vmem:[%s252 + $0xa0] sm:$0xff]
      %v297 = vld [vmem:[%s252 + $0xa8] sm:$0xff]
      %v298 = vld [vmem:[%s252 + $0xb0] sm:$0xff]
      %v299 = vld [vmem:[%s252 + $0xb8] sm:$0xff]
      %v300 = vld [vmem:[%s252 + $0xc0] sm:$0xff]
      %v301 = vld [vmem:[%s252 + $0xc8] sm:$0xff]
      %v302 = vld [vmem:[%s252 + $0xd0] sm:$0xff]
      %v303 = vld [vmem:[%s252 + $0xd8] sm:$0xff]
      %v304 = vld [vmem:[%s252 + $0xe0] sm:$0xff]
      %v305 = vld [vmem:[%s252 + $0xe8] sm:$0xff]
      %v306 = vld [vmem:[%s252 + $0xf0] sm:$0xff]
      %v307 = vld [vmem:[%s252 + $0xf8] sm:$0xff]
      %v308 = vld [vmem:[%s252 + $0x100] sm:$0xff]
      %v309 = vld [vmem:[%s252 + $0x108] sm:$0xff]
      %v310 = vld [vmem:[%s252 + $0x110] sm:$0xff]
      %v311 = vld [vmem:[%s252 + $0x118] sm:$0xff]
      %v312 = vld [vmem:[%s252 + $0x120] sm:$0xff]
      %v313 = vld [vmem:[%s252 + $0x128] sm:$0xff]
      %v314 = vld [vmem:[%s252 + $0x130] sm:$0xff]
      %v315 = vld [vmem:[%s252 + $0x138] sm:$0xff]
      %v316 = vld [vmem:[%s252 + $0x140] sm:$0xff]
      %v317 = vld [vmem:[%s252 + $0x148] sm:$0xff]
      %v318 = vld [vmem:[%s252 + $0x150] sm:$0xff]
      %v319 = vld [vmem:[%s252 + $0x158] sm:$0xff]
      %v320 = vld [vmem:[%s252 + $0x160] sm:$0xff]
      %v321 = vld [vmem:[%s252 + $0x168] sm:$0xff]
      %v322 = vld [vmem:[%s252 + $0x170] sm:$0xff]
      %v323 = vld [vmem:[%s252 + $0x178] sm:$0xff]
      %v324 = vld [vmem:[%s252 + $0x180] sm:$0xff]
      %v325 = vld [vmem:[%s252 + $0x188] sm:$0xff]
      %v326 = vld [vmem:[%s252 + $0x190] sm:$0xff]
      %v327 = vld [vmem:[%s252 + $0x198] sm:$0xff]
      %v328 = vld [vmem:[%s252 + $0x1a0] sm:$0xff]
      %v329 = vld [vmem:[%s252 + $0x1a8] sm:$0xff]
      %v330 = vld [vmem:[%s252 + $0x1b0] sm:$0xff]
      %v331 = vld [vmem:[%s252 + $0x1b8] sm:$0xff]
      %v332 = vld [vmem:[%s252 + $0x1c0] sm:$0xff]
      %v333 = vld [vmem:[%s252 + $0x1c8] sm:$0xff]
      %v334 = vld [vmem:[%s252 + $0x1d0] sm:$0xff]
      %v335 = vld [vmem:[%s252 + $0x1d8] sm:$0xff]
      %v336 = vld [vmem:[%s252 + $0x1e0] sm:$0xff]
      %v337 = vld [vmem:[%s252 + $0x1e8] sm:$0xff]
      %v338 = vld [vmem:[%s252 + $0x1f0] sm:$0xff]
      %v339 = vld [vmem:[%s252 + $0x1f8] sm:$0xff]
      %v340 = vld [vmem:[%s258] sm:$0xf]
      %v341 = vld [vmem:[%s258 + $0x4] sm:$0xf]
      %v342 = vld [vmem:[%s258 + $0x8] sm:$0xf]
      %v343 = vld [vmem:[%s258 + $0xc] sm:$0xf]
      %v344 = vld [vmem:[%s258 + $0x10] sm:$0xf]
      %v345 = vld [vmem:[%s258 + $0x14] sm:$0xf]
      %v346 = vld [vmem:[%s258 + $0x18] sm:$0xf]
      %v347 = vld [vmem:[%s258 + $0x1c] sm:$0xf]
      %v348 = vld [vmem:[%s258 + $0x20] sm:$0xf]
      %v349 = vld [vmem:[%s258 + $0x24] sm:$0xf]
      %v350 = vld [vmem:[%s258 + $0x28] sm:$0xf]
      %v351 = vld [vmem:[%s258 + $0x2c] sm:$0xf]
      %v352 = vld [vmem:[%s258 + $0x30] sm:$0xf]
      %v353 = vld [vmem:[%s258 + $0x34] sm:$0xf]
      %v354 = vld [vmem:[%s258 + $0x38] sm:$0xf]
      %v355 = vld [vmem:[%s258 + $0x3c] sm:$0xf]
      %v356 = vld [vmem:[%s258 + $0x40] sm:$0xf]
      %v357 = vld [vmem:[%s258 + $0x44] sm:$0xf]
      %v358 = vld [vmem:[%s258 + $0x48] sm:$0xf]
      %v359 = vld [vmem:[%s258 + $0x4c] sm:$0xf]
      %v360 = vld [vmem:[%s258 + $0x50] sm:$0xf]
      %v361 = vld [vmem:[%s258 + $0x54] sm:$0xf]
      %v362 = vld [vmem:[%s258 + $0x58] sm:$0xf]
      %v363 = vld [vmem:[%s258 + $0x5c] sm:$0xf]
      %v364 = vld [vmem:[%s258 + $0x60] sm:$0xf]
      %v365 = vld [vmem:[%s258 + $0x64] sm:$0xf]
      %v366 = vld [vmem:[%s258 + $0x68] sm:$0xf]
      %v367 = vld [vmem:[%s258 + $0x6c] sm:$0xf]
      %v368 = vld [vmem:[%s258 + $0x70] sm:$0xf]
      %v369 = vld [vmem:[%s258 + $0x74] sm:$0xf]
      %v370 = vld [vmem:[%s258 + $0x78] sm:$0xf]
      %v371 = vld [vmem:[%s258 + $0x7c] sm:$0xf]
      %v372 = vld [vmem:[%s258 + $0x80] sm:$0xf]
      %v373 = vld [vmem:[%s258 + $0x84] sm:$0xf]
      %v374 = vld [vmem:[%s258 + $0x88] sm:$0xf]
      %v375 = vld [vmem:[%s258 + $0x8c] sm:$0xf]
      %v376 = vld [vmem:[%s258 + $0x90] sm:$0xf]
      %v377 = vld [vmem:[%s258 + $0x94] sm:$0xf]
      %v378 = vld [vmem:[%s258 + $0x98] sm:$0xf]
      %v379 = vld [vmem:[%s258 + $0x9c] sm:$0xf]
      %v380 = vld [vmem:[%s258 + $0xa0] sm:$0xf]
      %v381 = vld [vmem:[%s258 + $0xa4] sm:$0xf]
      %v382 = vld [vmem:[%s258 + $0xa8] sm:$0xf]
      %v383 = vld [vmem:[%s258 + $0xac] sm:$0xf]
      %v384 = vld [vmem:[%s258 + $0xb0] sm:$0xf]
      %v385 = vld [vmem:[%s258 + $0xb4] sm:$0xf]
      %v386 = vld [vmem:[%s258 + $0xb8] sm:$0xf]
      %v387 = vld [vmem:[%s258 + $0xbc] sm:$0xf]
      %v388 = vld [vmem:[%s258 + $0xc0] sm:$0xf]
      %v389 = vld [vmem:[%s258 + $0xc4] sm:$0xf]
      %v390 = vld [vmem:[%s263] sm:$0x1]
      %v392 = vperm.slane %v390, 0
      %v458 = vunpack.c.l.b16 %v276
      %v459 = vunpack.c.h.b16 %v276
      %v460 = vunpack.c.l.b16 %v277
      %v461 = vunpack.c.h.b16 %v277
      %v462 = vunpack.c.l.b16 %v278
      %v463 = vunpack.c.h.b16 %v278
      %v464 = vunpack.c.l.b16 %v279
      %v465 = vunpack.c.h.b16 %v279
      %v466 = vunpack.c.l.b16 %v280
      %v467 = vunpack.c.h.b16 %v280
      %v468 = vunpack.c.l.b16 %v281
      %v469 = vunpack.c.h.b16 %v281
      %v470 = vunpack.c.l.b16 %v282
      %v471 = vunpack.c.h.b16 %v282
      %v472 = vunpack.c.l.b16 %v283
      %v473 = vunpack.c.h.b16 %v283
      %v474 = vunpack.c.l.b16 %v284
      %v475 = vunpack.c.h.b16 %v284
      %v476 = vunpack.c.l.b16 %v285
      %v477 = vunpack.c.h.b16 %v285
      %v478 = vunpack.c.l.b16 %v286
      %v479 = vunpack.c.h.b16 %v286
      %v480 = vunpack.c.l.b16 %v287
      %v481 = vunpack.c.h.b16 %v287
      %v482 = vunpack.c.l.b16 %v288
      %v483 = vunpack.c.h.b16 %v288
      %v484 = vunpack.c.l.b16 %v289
      %v485 = vunpack.c.h.b16 %v289
      %v486 = vunpack.c.l.b16 %v290
      %v487 = vunpack.c.h.b16 %v290
      %v488 = vunpack.c.l.b16 %v291
      %v489 = vunpack.c.h.b16 %v291
      %v490 = vunpack.c.l.b16 %v292
      %v491 = vunpack.c.h.b16 %v292
      %v492 = vunpack.c.l.b16 %v293
      %v493 = vunpack.c.h.b16 %v293
      %v494 = vunpack.c.l.b16 %v294
      %v495 = vunpack.c.h.b16 %v294
      %v496 = vunpack.c.l.b16 %v295
      %v497 = vunpack.c.h.b16 %v295
      %v498 = vunpack.c.l.b16 %v296
      %v499 = vunpack.c.h.b16 %v296
      %v500 = vunpack.c.l.b16 %v297
      %v501 = vunpack.c.h.b16 %v297
      %v502 = vunpack.c.l.b16 %v298
      %v503 = vunpack.c.h.b16 %v298
      %v504 = vunpack.c.l.b16 %v299
      %v505 = vunpack.c.h.b16 %v299
      %v506 = vunpack.c.l.b16 %v300
      %v507 = vunpack.c.h.b16 %v300
      %v508 = vunpack.c.l.b16 %v301
      %v509 = vunpack.c.h.b16 %v301
      %v510 = vunpack.c.l.b16 %v302
      %v511 = vunpack.c.h.b16 %v302
      %v512 = vunpack.c.l.b16 %v303
      %v513 = vunpack.c.h.b16 %v303
      %v514 = vunpack.c.l.b16 %v304
      %v515 = vunpack.c.h.b16 %v304
      %v516 = vunpack.c.l.b16 %v305
      %v517 = vunpack.c.h.b16 %v305
      %v518 = vunpack.c.l.b16 %v306
      %v519 = vunpack.c.h.b16 %v306
      %v520 = vunpack.c.l.b16 %v307
      %v521 = vunpack.c.h.b16 %v307
      %v522 = vunpack.c.l.b16 %v308
      %v523 = vunpack.c.h.b16 %v308
      %v524 = vunpack.c.l.b16 %v309
      %v525 = vunpack.c.h.b16 %v309
      %v526 = vunpack.c.l.b16 %v310
      %v527 = vunpack.c.h.b16 %v310
      %v528 = vunpack.c.l.b16 %v311
      %v529 = vunpack.c.h.b16 %v311
      %v530 = vunpack.c.l.b16 %v312
      %v531 = vunpack.c.h.b16 %v312
      %v532 = vunpack.c.l.b16 %v313
      %v533 = vunpack.c.h.b16 %v313
      %v534 = vunpack.c.l.b16 %v314
      %v535 = vunpack.c.h.b16 %v314
      %v536 = vunpack.c.l.b16 %v315
      %v537 = vunpack.c.h.b16 %v315
      %v538 = vunpack.c.l.b16 %v316
      %v539 = vunpack.c.h.b16 %v316
      %v540 = vunpack.c.l.b16 %v317
      %v541 = vunpack.c.h.b16 %v317
      %v542 = vunpack.c.l.b16 %v318
      %v543 = vunpack.c.h.b16 %v318
      %v544 = vunpack.c.l.b16 %v319
      %v545 = vunpack.c.h.b16 %v319
      %v546 = vunpack.c.l.b16 %v320
      %v547 = vunpack.c.h.b16 %v320
      %v548 = vunpack.c.l.b16 %v321
      %v549 = vunpack.c.h.b16 %v321
      %v550 = vunpack.c.l.b16 %v322
      %v551 = vunpack.c.h.b16 %v322
      %v552 = vunpack.c.l.b16 %v323
      %v553 = vunpack.c.h.b16 %v323
      %v554 = vunpack.c.l.b16 %v324
      %v555 = vunpack.c.h.b16 %v324
      %v556 = vunpack.c.l.b16 %v325
      %v557 = vunpack.c.h.b16 %v325
      %v558 = vunpack.c.l.b16 %v326
      %v559 = vunpack.c.h.b16 %v326
      %v560 = vunpack.c.l.b16 %v327
      %v561 = vunpack.c.h.b16 %v327
      %v562 = vunpack.c.l.b16 %v328
      %v563 = vunpack.c.h.b16 %v328
      %v564 = vunpack.c.l.b16 %v329
      %v565 = vunpack.c.h.b16 %v329
      %v566 = vunpack.c.l.b16 %v330
      %v567 = vunpack.c.h.b16 %v330
      %v568 = vunpack.c.l.b16 %v331
      %v569 = vunpack.c.h.b16 %v331
      %v570 = vunpack.c.l.b16 %v332
      %v571 = vunpack.c.h.b16 %v332
      %v572 = vunpack.c.l.b16 %v333
      %v573 = vunpack.c.h.b16 %v333
      %v574 = vunpack.c.l.b16 %v334
      %v575 = vunpack.c.h.b16 %v334
      %v576 = vunpack.c.l.b16 %v335
      %v577 = vunpack.c.h.b16 %v335
      %v578 = vunpack.c.l.b16 %v336
      %v579 = vunpack.c.h.b16 %v336
      %v580 = vunpack.c.l.b16 %v337
      %v581 = vunpack.c.h.b16 %v337
      %v582 = vunpack.c.l.b16 %v338
      %v583 = vunpack.c.h.b16 %v338
      %v584 = vunpack.c.l.b16 %v339
      %v585 = vunpack.c.h.b16 %v339
      %v586 = vpack.c.b16 %v462, %v458
      %v587 = vpack.c.b16 %v463, %v459
      %v588 = vpack.c.b16 %v464, %v460
      %v589 = vpack.c.b16 %v465, %v461
      %v590 = vpack.c.b16 %v470, %v466
      %v591 = vpack.c.b16 %v471, %v467
      %v592 = vpack.c.b16 %v472, %v468
      %v593 = vpack.c.b16 %v473, %v469
      %v594 = vpack.c.b16 %v478, %v474
      %v595 = vpack.c.b16 %v479, %v475
      %v596 = vpack.c.b16 %v480, %v476
      %v597 = vpack.c.b16 %v481, %v477
      %v598 = vpack.c.b16 %v486, %v482
      %v599 = vpack.c.b16 %v487, %v483
      %v600 = vpack.c.b16 %v488, %v484
      %v601 = vpack.c.b16 %v489, %v485
      %v602 = vpack.c.b16 %v494, %v490
      %v603 = vpack.c.b16 %v495, %v491
      %v604 = vpack.c.b16 %v496, %v492
      %v605 = vpack.c.b16 %v497, %v493
      %v606 = vpack.c.b16 %v502, %v498
      %v607 = vpack.c.b16 %v503, %v499
      %v608 = vpack.c.b16 %v504, %v500
      %v609 = vpack.c.b16 %v505, %v501
      %v610 = vpack.c.b16 %v510, %v506
      %v611 = vpack.c.b16 %v511, %v507
      %v612 = vpack.c.b16 %v512, %v508
      %v613 = vpack.c.b16 %v513, %v509
      %v614 = vpack.c.b16 %v518, %v514
      %v615 = vpack.c.b16 %v519, %v515
      %v616 = vpack.c.b16 %v520, %v516
      %v617 = vpack.c.b16 %v521, %v517
      %v618 = vpack.c.b16 %v526, %v522
      %v619 = vpack.c.b16 %v527, %v523
      %v620 = vpack.c.b16 %v528, %v524
      %v621 = vpack.c.b16 %v529, %v525
      %v622 = vpack.c.b16 %v534, %v530
      %v623 = vpack.c.b16 %v535, %v531
      %v624 = vpack.c.b16 %v536, %v532
      %v625 = vpack.c.b16 %v537, %v533
      %v626 = vpack.c.b16 %v542, %v538
      %v627 = vpack.c.b16 %v543, %v539
      %v628 = vpack.c.b16 %v544, %v540
      %v629 = vpack.c.b16 %v545, %v541
      %v630 = vpack.c.b16 %v550, %v546
      %v631 = vpack.c.b16 %v551, %v547
      %v632 = vpack.c.b16 %v552, %v548
      %v633 = vpack.c.b16 %v553, %v549
      %v634 = vpack.c.b16 %v558, %v554
      %v635 = vpack.c.b16 %v559, %v555
      %v636 = vpack.c.b16 %v560, %v556
      %v637 = vpack.c.b16 %v561, %v557
      %v638 = vpack.c.b16 %v566, %v562
      %v639 = vpack.c.b16 %v567, %v563
      %v640 = vpack.c.b16 %v568, %v564
      %v641 = vpack.c.b16 %v569, %v565
      %v642 = vpack.c.b16 %v574, %v570
      %v643 = vpack.c.b16 %v575, %v571
      %v644 = vpack.c.b16 %v576, %v572
      %v645 = vpack.c.b16 %v577, %v573
      %v646 = vpack.c.b16 %v582, %v578
      %v647 = vpack.c.b16 %v583, %v579
      %v648 = vpack.c.b16 %v584, %v580
      %v649 = vpack.c.b16 %v585, %v581
      %v748 = vunpack.c.l.b16 %v340
      %v749 = vunpack.c.l.b16 %v341
      %v750 = vunpack.c.l.b16 %v342
      %v751 = vunpack.c.l.b16 %v343
      %v752 = vunpack.c.l.b16 %v344
      %v753 = vunpack.c.l.b16 %v345
      %v754 = vunpack.c.l.b16 %v346
      %v755 = vunpack.c.l.b16 %v347
      %v756 = vunpack.c.l.b16 %v348
      %v757 = vunpack.c.l.b16 %v349
      %v758 = vunpack.c.l.b16 %v350
      %v759 = vunpack.c.l.b16 %v351
      %v760 = vunpack.c.l.b16 %v352
      %v761 = vunpack.c.l.b16 %v353
      %v762 = vunpack.c.l.b16 %v354
      %v763 = vunpack.c.l.b16 %v355
      %v764 = vunpack.c.l.b16 %v356
      %v765 = vunpack.c.l.b16 %v357
      %v766 = vunpack.c.l.b16 %v358
      %v767 = vunpack.c.l.b16 %v359
      %v768 = vunpack.c.l.b16 %v360
      %v769 = vunpack.c.l.b16 %v361
      %v770 = vunpack.c.l.b16 %v362
      %v771 = vunpack.c.l.b16 %v363
      %v772 = vunpack.c.l.b16 %v364
      %v773 = vunpack.c.l.b16 %v365
      %v774 = vunpack.c.l.b16 %v366
      %v775 = vunpack.c.l.b16 %v367
      %v776 = vunpack.c.l.b16 %v368
      %v777 = vunpack.c.l.b16 %v369
      %v778 = vunpack.c.l.b16 %v370
      %v779 = vunpack.c.l.b16 %v371
      %v780 = vunpack.c.l.b16 %v372
      %v781 = vunpack.c.l.b16 %v373
      %v782 = vunpack.c.l.b16 %v374
      %v783 = vunpack.c.l.b16 %v375
      %v784 = vunpack.c.l.b16 %v376
      %v785 = vunpack.c.l.b16 %v377
      %v786 = vunpack.c.l.b16 %v378
      %v787 = vunpack.c.l.b16 %v379
      %v788 = vunpack.c.l.b16 %v380
      %v789 = vunpack.c.l.b16 %v381
      %v790 = vunpack.c.l.b16 %v382
      %v791 = vunpack.c.l.b16 %v383
      %v792 = vunpack.c.l.b16 %v384
      %v793 = vunpack.c.l.b16 %v385
      %v794 = vunpack.c.l.b16 %v386
      %v795 = vunpack.c.l.b16 %v387
      %v796 = vunpack.c.l.b16 %v388
      %v797 = vunpack.c.l.b16 %v389
      %v798 = vpack.c.b16 %v749, %v748
      %v799 = vpack.c.b16 %v751, %v750
      %v800 = vpack.c.b16 %v753, %v752
      %v801 = vpack.c.b16 %v755, %v754
      %v802 = vpack.c.b16 %v757, %v756
      %v803 = vpack.c.b16 %v759, %v758
      %v804 = vpack.c.b16 %v761, %v760
      %v805 = vpack.c.b16 %v763, %v762
      %v806 = vpack.c.b16 %v765, %v764
      %v807 = vpack.c.b16 %v767, %v766
      %v808 = vpack.c.b16 %v769, %v768
      %v809 = vpack.c.b16 %v771, %v770
      %v810 = vpack.c.b16 %v773, %v772
      %v811 = vpack.c.b16 %v775, %v774
      %v812 = vpack.c.b16 %v777, %v776
      %v813 = vpack.c.b16 %v779, %v778
      %v814 = vpack.c.b16 %v781, %v780
      %v815 = vpack.c.b16 %v783, %v782
      %v816 = vpack.c.b16 %v785, %v784
      %v817 = vpack.c.b16 %v787, %v786
      %v818 = vpack.c.b16 %v789, %v788
      %v819 = vpack.c.b16 %v791, %v790
      %v820 = vpack.c.b16 %v793, %v792
      %v821 = vpack.c.b16 %v795, %v794
      %v822 = vpack.c.b16 %v797, %v796
      %vm848 = vcmask 130048
      %v850 = vsel %vm848, %v589, 0
      %v853 = vsel %vm848, %v593, 0
      %v856 = vsel %vm848, %v597, 0
      %v859 = vsel %vm848, %v601, 0
      %v862 = vsel %vm848, %v605, 0
      %v865 = vsel %vm848, %v609, 0
      %v868 = vsel %vm848, %v613, 0
      %v871 = vsel %vm848, %v617, 0
      %v874 = vsel %vm848, %v621, 0
      %v877 = vsel %vm848, %v625, 0
      %v880 = vsel %vm848, %v629, 0
      %v883 = vsel %vm848, %v633, 0
      %v886 = vsel %vm848, %v637, 0
      %v889 = vsel %vm848, %v641, 0
      %v892 = vsel %vm848, %v645, 0
      %v895 = vsel %vm848, %v649, 0
      %897 = vmatpush.bf16.msra.mxu0 %v805
      %898 = vmatpush.bf16.msra.mxu0 %v804
      %899 = vmatpush.bf16.msra.mxu0 %v803
      %900 = vmatpush.bf16.msra.mxu0 %v802
      %901 = vmatpush.bf16.msra.mxu0 %v801
      %902 = vmatpush.bf16.msra.mxu0 %v800
      %903 = vmatpush.bf16.msra.mxu0 %v799
      %904 = vmatpush.bf16.msra.mxu0 %v798
      %905 = vmatmul.bf16.gmra.mxu0 %v586
      %v906 = vpop.f32.mrf.mxu0
      %v907 = vadd.f32 %v392, %v906
      %v908 = vpop.f32.mrf.mxu0
      %v909 = vadd.f32 %v392, %v908
      %910 = vmatmul.bf16.gmra.mxu0 %v590
      %v911 = vpop.f32.mrf.mxu0
      %v912 = vadd.f32 %v392, %v911
      %v913 = vpop.f32.mrf.mxu0
      %v914 = vadd.f32 %v392, %v913
      %915 = vmatmul.bf16.gmra.mxu0 %v594
      %v916 = vpop.f32.mrf.mxu0
      %v917 = vadd.f32 %v392, %v916
      %v918 = vpop.f32.mrf.mxu0
      %v919 = vadd.f32 %v392, %v918
      %920 = vmatmul.bf16.gmra.mxu0 %v598
      %v921 = vpop.f32.mrf.mxu0
      %v922 = vadd.f32 %v392, %v921
      %v923 = vpop.f32.mrf.mxu0
      %v924 = vadd.f32 %v392, %v923
      %925 = vmatmul.bf16.gmra.mxu0 %v602
      %v926 = vpop.f32.mrf.mxu0
      %v927 = vadd.f32 %v392, %v926
      %v928 = vpop.f32.mrf.mxu0
      %v929 = vadd.f32 %v392, %v928
      %930 = vmatmul.bf16.gmra.mxu0 %v606
      %v931 = vpop.f32.mrf.mxu0
      %v932 = vadd.f32 %v392, %v931
      %v933 = vpop.f32.mrf.mxu0
      %v934 = vadd.f32 %v392, %v933
      %935 = vmatmul.bf16.gmra.mxu0 %v610
      %v936 = vpop.f32.mrf.mxu0
      %v937 = vadd.f32 %v392, %v936
      %v938 = vpop.f32.mrf.mxu0
      %v939 = vadd.f32 %v392, %v938
      %940 = vmatmul.bf16.gmra.mxu0 %v614
      %v941 = vpop.f32.mrf.mxu0
      %v942 = vadd.f32 %v392, %v941
      %v943 = vpop.f32.mrf.mxu0
      %v944 = vadd.f32 %v392, %v943
      %945 = vmatmul.bf16.gmra.mxu0 %v618
      %v946 = vpop.f32.mrf.mxu0
      %v947 = vadd.f32 %v392, %v946
      %v948 = vpop.f32.mrf.mxu0
      %v949 = vadd.f32 %v392, %v948
      %950 = vmatmul.bf16.gmra.mxu0 %v622
      %v951 = vpop.f32.mrf.mxu0
      %v952 = vadd.f32 %v392, %v951
      %v953 = vpop.f32.mrf.mxu0
      %v954 = vadd.f32 %v392, %v953
      %955 = vmatmul.bf16.gmra.mxu0 %v626
      %v956 = vpop.f32.mrf.mxu0
      %v957 = vadd.f32 %v392, %v956
      %v958 = vpop.f32.mrf.mxu0
      %v959 = vadd.f32 %v392, %v958
      %960 = vmatmul.bf16.gmra.mxu0 %v630
      %v961 = vpop.f32.mrf.mxu0
      %v962 = vadd.f32 %v392, %v961
      %v963 = vpop.f32.mrf.mxu0
      %v964 = vadd.f32 %v392, %v963
      %965 = vmatmul.bf16.gmra.mxu0 %v634
      %v966 = vpop.f32.mrf.mxu0
      %v967 = vadd.f32 %v392, %v966
      %v968 = vpop.f32.mrf.mxu0
      %v969 = vadd.f32 %v392, %v968
      %970 = vmatmul.bf16.gmra.mxu0 %v638
      %v971 = vpop.f32.mrf.mxu0
      %v972 = vadd.f32 %v392, %v971
      %v973 = vpop.f32.mrf.mxu0
      %v974 = vadd.f32 %v392, %v973
      %975 = vmatmul.bf16.gmra.mxu0 %v642
      %v976 = vpop.f32.mrf.mxu0
      %v977 = vadd.f32 %v392, %v976
      %v978 = vpop.f32.mrf.mxu0
      %v979 = vadd.f32 %v392, %v978
      %980 = vmatmul.bf16.gmra.mxu0 %v646
      %v981 = vpop.f32.mrf.mxu0
      %v982 = vadd.f32 %v392, %v981
      %v983 = vpop.f32.mrf.mxu0
      %v984 = vadd.f32 %v392, %v983
      %985 = vdwg.mxu0
      %986 = vmatpush.bf16.msra.mxu0 %v813
      %987 = vmatpush.bf16.msra.mxu0 %v812
      %988 = vmatpush.bf16.msra.mxu0 %v811
      %989 = vmatpush.bf16.msra.mxu0 %v810
      %990 = vmatpush.bf16.msra.mxu0 %v809
      %991 = vmatpush.bf16.msra.mxu0 %v808
      %992 = vmatpush.bf16.msra.mxu0 %v807
      %993 = vmatpush.bf16.msra.mxu0 %v806
      %994 = vmatmul.bf16.gmra.mxu0 %v587
      %v995 = vpop.f32.mrf.mxu0
      %v996 = vadd.f32 %v907, %v995
      %v997 = vpop.f32.mrf.mxu0
      %v998 = vadd.f32 %v909, %v997
      %999 = vmatmul.bf16.gmra.mxu0 %v591
      %v1000 = vpop.f32.mrf.mxu0
      %v1001 = vadd.f32 %v912, %v1000
      %v1002 = vpop.f32.mrf.mxu0
      %v1003 = vadd.f32 %v914, %v1002
      %1004 = vmatmul.bf16.gmra.mxu0 %v595
      %v1005 = vpop.f32.mrf.mxu0
      %v1006 = vadd.f32 %v917, %v1005
      %v1007 = vpop.f32.mrf.mxu0
      %v1008 = vadd.f32 %v919, %v1007
      %1009 = vmatmul.bf16.gmra.mxu0 %v599
      %v1010 = vpop.f32.mrf.mxu0
      %v1011 = vadd.f32 %v922, %v1010
      %v1012 = vpop.f32.mrf.mxu0
      %v1013 = vadd.f32 %v924, %v1012
      %1014 = vmatmul.bf16.gmra.mxu0 %v603
      %v1015 = vpop.f32.mrf.mxu0
      %v1016 = vadd.f32 %v927, %v1015
      %v1017 = vpop.f32.mrf.mxu0
      %v1018 = vadd.f32 %v929, %v1017
      %1019 = vmatmul.bf16.gmra.mxu0 %v607
      %v1020 = vpop.f32.mrf.mxu0
      %v1021 = vadd.f32 %v932, %v1020
      %v1022 = vpop.f32.mrf.mxu0
      %v1023 = vadd.f32 %v934, %v1022
      %1024 = vmatmul.bf16.gmra.mxu0 %v611
      %v1025 = vpop.f32.mrf.mxu0
      %v1026 = vadd.f32 %v937, %v1025
      %v1027 = vpop.f32.mrf.mxu0
      %v1028 = vadd.f32 %v939, %v1027
      %1029 = vmatmul.bf16.gmra.mxu0 %v615
      %v1030 = vpop.f32.mrf.mxu0
      %v1031 = vadd.f32 %v942, %v1030
      %v1032 = vpop.f32.mrf.mxu0
      %v1033 = vadd.f32 %v944, %v1032
      %1034 = vmatmul.bf16.gmra.mxu0 %v619
      %v1035 = vpop.f32.mrf.mxu0
      %v1036 = vadd.f32 %v947, %v1035
      %v1037 = vpop.f32.mrf.mxu0
      %v1038 = vadd.f32 %v949, %v1037
      %1039 = vmatmul.bf16.gmra.mxu0 %v623
      %v1040 = vpop.f32.mrf.mxu0
      %v1041 = vadd.f32 %v952, %v1040
      %v1042 = vpop.f32.mrf.mxu0
      %v1043 = vadd.f32 %v954, %v1042
      %1044 = vmatmul.bf16.gmra.mxu0 %v627
      %v1045 = vpop.f32.mrf.mxu0
      %v1046 = vadd.f32 %v957, %v1045
      %v1047 = vpop.f32.mrf.mxu0
      %v1048 = vadd.f32 %v959, %v1047
      %1049 = vmatmul.bf16.gmra.mxu0 %v631
      %v1050 = vpop.f32.mrf.mxu0
      %v1051 = vadd.f32 %v962, %v1050
      %v1052 = vpop.f32.mrf.mxu0
      %v1053 = vadd.f32 %v964, %v1052
      %1054 = vmatmul.bf16.gmra.mxu0 %v635
      %v1055 = vpop.f32.mrf.mxu0
      %v1056 = vadd.f32 %v967, %v1055
      %v1057 = vpop.f32.mrf.mxu0
      %v1058 = vadd.f32 %v969, %v1057
      %1059 = vmatmul.bf16.gmra.mxu0 %v639
      %v1060 = vpop.f32.mrf.mxu0
      %v1061 = vadd.f32 %v972, %v1060
      %v1062 = vpop.f32.mrf.mxu0
      %v1063 = vadd.f32 %v974, %v1062
      %1064 = vmatmul.bf16.gmra.mxu0 %v643
      %v1065 = vpop.f32.mrf.mxu0
      %v1066 = vadd.f32 %v977, %v1065
      %v1067 = vpop.f32.mrf.mxu0
      %v1068 = vadd.f32 %v979, %v1067
      %1069 = vmatmul.bf16.gmra.mxu0 %v647
      %v1070 = vpop.f32.mrf.mxu0
      %v1071 = vadd.f32 %v982, %v1070
      %v1072 = vpop.f32.mrf.mxu0
      %v1073 = vadd.f32 %v984, %v1072
      %1074 = vdwg.mxu0
      %1075 = vmatpush.bf16.msra.mxu0 %v821
      %1076 = vmatpush.bf16.msra.mxu0 %v820
      %1077 = vmatpush.bf16.msra.mxu0 %v819
      %1078 = vmatpush.bf16.msra.mxu0 %v818
      %1079 = vmatpush.bf16.msra.mxu0 %v817
      %1080 = vmatpush.bf16.msra.mxu0 %v816
      %1081 = vmatpush.bf16.msra.mxu0 %v815
      %1082 = vmatpush.bf16.msra.mxu0 %v814
      %1083 = vmatmul.bf16.gmra.mxu0 %v588
      %v1084 = vpop.f32.mrf.mxu0
      %v1085 = vadd.f32 %v996, %v1084
      %v1086 = vpop.f32.mrf.mxu0
      %v1087 = vadd.f32 %v998, %v1086
      %1088 = vmatmul.bf16.gmra.mxu0 %v592
      %v1089 = vpop.f32.mrf.mxu0
      %v1090 = vadd.f32 %v1001, %v1089
      %v1091 = vpop.f32.mrf.mxu0
      %v1092 = vadd.f32 %v1003, %v1091
      %1093 = vmatmul.bf16.gmra.mxu0 %v596
      %v1094 = vpop.f32.mrf.mxu0
      %v1095 = vadd.f32 %v1006, %v1094
      %v1096 = vpop.f32.mrf.mxu0
      %v1097 = vadd.f32 %v1008, %v1096
      %1098 = vmatmul.bf16.gmra.mxu0 %v600
      %v1099 = vpop.f32.mrf.mxu0
      %v1100 = vadd.f32 %v1011, %v1099
      %v1101 = vpop.f32.mrf.mxu0
      %v1102 = vadd.f32 %v1013, %v1101
      %1103 = vmatmul.bf16.gmra.mxu0 %v604
      %v1104 = vpop.f32.mrf.mxu0
      %v1105 = vadd.f32 %v1016, %v1104
      %v1106 = vpop.f32.mrf.mxu0
      %v1107 = vadd.f32 %v1018, %v1106
      %1108 = vmatmul.bf16.gmra.mxu0 %v608
      %v1109 = vpop.f32.mrf.mxu0
      %v1110 = vadd.f32 %v1021, %v1109
      %v1111 = vpop.f32.mrf.mxu0
      %v1112 = vadd.f32 %v1023, %v1111
      %1113 = vmatmul.bf16.gmra.mxu0 %v612
      %v1114 = vpop.f32.mrf.mxu0
      %v1115 = vadd.f32 %v1026, %v1114
      %v1116 = vpop.f32.mrf.mxu0
      %v1117 = vadd.f32 %v1028, %v1116
      %1118 = vmatmul.bf16.gmra.mxu0 %v616
      %v1119 = vpop.f32.mrf.mxu0
      %v1120 = vadd.f32 %v1031, %v1119
      %v1121 = vpop.f32.mrf.mxu0
      %v1122 = vadd.f32 %v1033, %v1121
      %1123 = vmatmul.bf16.gmra.mxu0 %v620
      %v1124 = vpop.f32.mrf.mxu0
      %v1125 = vadd.f32 %v1036, %v1124
      %v1126 = vpop.f32.mrf.mxu0
      %v1127 = vadd.f32 %v1038, %v1126
      %1128 = vmatmul.bf16.gmra.mxu0 %v624
      %v1129 = vpop.f32.mrf.mxu0
      %v1130 = vadd.f32 %v1041, %v1129
      %v1131 = vpop.f32.mrf.mxu0
      %v1132 = vadd.f32 %v1043, %v1131
      %1133 = vmatmul.bf16.gmra.mxu0 %v628
      %v1134 = vpop.f32.mrf.mxu0
      %v1135 = vadd.f32 %v1046, %v1134
      %v1136 = vpop.f32.mrf.mxu0
      %v1137 = vadd.f32 %v1048, %v1136
      %1138 = vmatmul.bf16.gmra.mxu0 %v632
      %v1139 = vpop.f32.mrf.mxu0
      %v1140 = vadd.f32 %v1051, %v1139
      %v1141 = vpop.f32.mrf.mxu0
      %v1142 = vadd.f32 %v1053, %v1141
      %1143 = vmatmul.bf16.gmra.mxu0 %v636
      %v1144 = vpop.f32.mrf.mxu0
      %v1145 = vadd.f32 %v1056, %v1144
      %v1146 = vpop.f32.mrf.mxu0
      %v1147 = vadd.f32 %v1058, %v1146
      %1148 = vmatmul.bf16.gmra.mxu0 %v640
      %v1149 = vpop.f32.mrf.mxu0
      %v1150 = vadd.f32 %v1061, %v1149
      %v1151 = vpop.f32.mrf.mxu0
      %v1152 = vadd.f32 %v1063, %v1151
      %1153 = vmatmul.bf16.gmra.mxu0 %v644
      %v1154 = vpop.f32.mrf.mxu0
      %v1155 = vadd.f32 %v1066, %v1154
      %v1156 = vpop.f32.mrf.mxu0
      %v1157 = vadd.f32 %v1068, %v1156
      %1158 = vmatmul.bf16.gmra.mxu0 %v648
      %v1159 = vpop.f32.mrf.mxu0
      %v1160 = vadd.f32 %v1071, %v1159
      %v1161 = vpop.f32.mrf.mxu0
      %v1162 = vadd.f32 %v1073, %v1161
      %1163 = vdwg.mxu0
      %1164 = vmatpush.bf16.msra.mxu0 0
      %1165 = vmatpush.bf16.msra.mxu0 0
      %1166 = vmatpush.bf16.msra.mxu0 0
      %1167 = vmatpush.bf16.msra.mxu0 0
      %1168 = vmatpush.bf16.msra.mxu0 0
      %1169 = vmatpush.bf16.msra.mxu0 0
      %1170 = vmatpush.bf16.msra.mxu0 0
      %1171 = vmatpush.bf16.msra.mxu0 %v822
      %1172 = vmatmul.bf16.gmra.mxu0 %v850
      %v1173 = vpop.f32.mrf.mxu0
      %v1174 = vadd.f32 %v1085, %v1173
      %v1175 = vpop.f32.mrf.mxu0
      %v1176 = vadd.f32 %v1087, %v1175
      %1177 = vmatmul.bf16.gmra.mxu0 %v853
      %v1178 = vpop.f32.mrf.mxu0
      %v1179 = vadd.f32 %v1090, %v1178
      %v1180 = vpop.f32.mrf.mxu0
      %v1181 = vadd.f32 %v1092, %v1180
      %1182 = vmatmul.bf16.gmra.mxu0 %v856
      %v1183 = vpop.f32.mrf.mxu0
      %v1184 = vadd.f32 %v1095, %v1183
      %v1185 = vpop.f32.mrf.mxu0
      %v1186 = vadd.f32 %v1097, %v1185
      %1187 = vmatmul.bf16.gmra.mxu0 %v859
      %v1188 = vpop.f32.mrf.mxu0
      %v1189 = vadd.f32 %v1100, %v1188
      %v1190 = vpop.f32.mrf.mxu0
      %v1191 = vadd.f32 %v1102, %v1190
      %1192 = vmatmul.bf16.gmra.mxu0 %v862
      %v1193 = vpop.f32.mrf.mxu0
      %v1194 = vadd.f32 %v1105, %v1193
      %v1195 = vpop.f32.mrf.mxu0
      %v1196 = vadd.f32 %v1107, %v1195
      %1197 = vmatmul.bf16.gmra.mxu0 %v865
      %v1198 = vpop.f32.mrf.mxu0
      %v1199 = vadd.f32 %v1110, %v1198
      %v1200 = vpop.f32.mrf.mxu0
      %v1201 = vadd.f32 %v1112, %v1200
      %1202 = vmatmul.bf16.gmra.mxu0 %v868
      %v1203 = vpop.f32.mrf.mxu0
      %v1204 = vadd.f32 %v1115, %v1203
      %v1205 = vpop.f32.mrf.mxu0
      %v1206 = vadd.f32 %v1117, %v1205
      %1207 = vmatmul.bf16.gmra.mxu0 %v871
      %v1208 = vpop.f32.mrf.mxu0
      %v1209 = vadd.f32 %v1120, %v1208
      %v1210 = vpop.f32.mrf.mxu0
      %v1211 = vadd.f32 %v1122, %v1210
      %1212 = vmatmul.bf16.gmra.mxu0 %v874
      %v1213 = vpop.f32.mrf.mxu0
      %v1214 = vadd.f32 %v1125, %v1213
      %v1215 = vpop.f32.mrf.mxu0
      %v1216 = vadd.f32 %v1127, %v1215
      %1217 = vmatmul.bf16.gmra.mxu0 %v877
      %v1218 = vpop.f32.mrf.mxu0
      %v1219 = vadd.f32 %v1130, %v1218
      %v1220 = vpop.f32.mrf.mxu0
      %v1221 = vadd.f32 %v1132, %v1220
      %1222 = vmatmul.bf16.gmra.mxu0 %v880
      %v1223 = vpop.f32.mrf.mxu0
      %v1224 = vadd.f32 %v1135, %v1223
      %v1225 = vpop.f32.mrf.mxu0
      %v1226 = vadd.f32 %v1137, %v1225
      %1227 = vmatmul.bf16.gmra.mxu0 %v883
      %v1228 = vpop.f32.mrf.mxu0
      %v1229 = vadd.f32 %v1140, %v1228
      %v1230 = vpop.f32.mrf.mxu0
      %v1231 = vadd.f32 %v1142, %v1230
      %1232 = vmatmul.bf16.gmra.mxu0 %v886
      %v1233 = vpop.f32.mrf.mxu0
      %v1234 = vadd.f32 %v1145, %v1233
      %v1235 = vpop.f32.mrf.mxu0
      %v1236 = vadd.f32 %v1147, %v1235
      %1237 = vmatmul.bf16.gmra.mxu0 %v889
      %v1238 = vpop.f32.mrf.mxu0
      %v1239 = vadd.f32 %v1150, %v1238
      %v1240 = vpop.f32.mrf.mxu0
      %v1241 = vadd.f32 %v1152, %v1240
      %1242 = vmatmul.bf16.gmra.mxu0 %v892
      %v1243 = vpop.f32.mrf.mxu0
      %v1244 = vadd.f32 %v1155, %v1243
      %v1245 = vpop.f32.mrf.mxu0
      %v1246 = vadd.f32 %v1157, %v1245
      %1247 = vmatmul.bf16.gmra.mxu0 %v895
      %v1248 = vpop.f32.mrf.mxu0
      %v1249 = vadd.f32 %v1160, %v1248
      %v1250 = vpop.f32.mrf.mxu0
      %v1251 = vadd.f32 %v1162, %v1250
      %1252 = vdwg.mxu0
      %v1253 = vld [vmem:[%s269] sm:$0xff]
      %v1254 = vld [vmem:[%s269 + $0x8] sm:$0xff]
      %v1255 = vld [vmem:[%s269 + $0x10] sm:$0xff]
      %v1256 = vld [vmem:[%s269 + $0x18] sm:$0xff]
      %v1257 = vld [vmem:[%s269 + $0x20] sm:$0xff]
      %v1258 = vld [vmem:[%s269 + $0x28] sm:$0xff]
      %v1259 = vld [vmem:[%s269 + $0x30] sm:$0xff]
      %v1260 = vld [vmem:[%s269 + $0x38] sm:$0xff]
      %v1261 = vld [vmem:[%s269 + $0x40] sm:$0xff]
      %v1262 = vld [vmem:[%s269 + $0x48] sm:$0xff]
      %v1263 = vld [vmem:[%s269 + $0x50] sm:$0xff]
      %v1264 = vld [vmem:[%s269 + $0x58] sm:$0xff]
      %v1265 = vld [vmem:[%s269 + $0x60] sm:$0xff]
      %v1266 = vld [vmem:[%s269 + $0x68] sm:$0xff]
      %v1267 = vld [vmem:[%s269 + $0x70] sm:$0xff]
      %v1268 = vld [vmem:[%s269 + $0x78] sm:$0xff]
      %v1269 = vld [vmem:[%s269 + $0x80] sm:$0xff]
      %v1270 = vld [vmem:[%s269 + $0x88] sm:$0xff]
      %v1271 = vld [vmem:[%s269 + $0x90] sm:$0xff]
      %v1272 = vld [vmem:[%s269 + $0x98] sm:$0xff]
      %v1273 = vld [vmem:[%s269 + $0xa0] sm:$0xff]
      %v1274 = vld [vmem:[%s269 + $0xa8] sm:$0xff]
      %v1275 = vld [vmem:[%s269 + $0xb0] sm:$0xff]
      %v1276 = vld [vmem:[%s269 + $0xb8] sm:$0xff]
      %v1277 = vld [vmem:[%s269 + $0xc0] sm:$0xff]
      %v1278 = vld [vmem:[%s269 + $0xc8] sm:$0xff]
      %v1279 = vld [vmem:[%s269 + $0xd0] sm:$0xff]
      %v1280 = vld [vmem:[%s269 + $0xd8] sm:$0xff]
      %v1281 = vld [vmem:[%s269 + $0xe0] sm:$0xff]
      %v1282 = vld [vmem:[%s269 + $0xe8] sm:$0xff]
      %v1283 = vld [vmem:[%s269 + $0xf0] sm:$0xff]
      %v1284 = vld [vmem:[%s269 + $0xf8] sm:$0xff]
      %v1285 = vadd.f32 %v1174, %v1253
      %v1286 = vadd.f32 %v1176, %v1254
      %v1287 = vadd.f32 %v1179, %v1255
      %v1288 = vadd.f32 %v1181, %v1256
      %v1289 = vadd.f32 %v1184, %v1257
      %v1290 = vadd.f32 %v1186, %v1258
      %v1291 = vadd.f32 %v1189, %v1259
      %v1292 = vadd.f32 %v1191, %v1260
      %v1293 = vadd.f32 %v1194, %v1261
      %v1294 = vadd.f32 %v1196, %v1262
      %v1295 = vadd.f32 %v1199, %v1263
      %v1296 = vadd.f32 %v1201, %v1264
      %v1297 = vadd.f32 %v1204, %v1265
      %v1298 = vadd.f32 %v1206, %v1266
      %v1299 = vadd.f32 %v1209, %v1267
      %v1300 = vadd.f32 %v1211, %v1268
      %v1301 = vadd.f32 %v1214, %v1269
      %v1302 = vadd.f32 %v1216, %v1270
      %v1303 = vadd.f32 %v1219, %v1271
      %v1304 = vadd.f32 %v1221, %v1272
      %v1305 = vadd.f32 %v1224, %v1273
      %v1306 = vadd.f32 %v1226, %v1274
      %v1307 = vadd.f32 %v1229, %v1275
      %v1308 = vadd.f32 %v1231, %v1276
      %v1309 = vadd.f32 %v1234, %v1277
      %v1310 = vadd.f32 %v1236, %v1278
      %v1311 = vadd.f32 %v1239, %v1279
      %v1312 = vadd.f32 %v1241, %v1280
      %v1313 = vadd.f32 %v1244, %v1281
      %v1314 = vadd.f32 %v1246, %v1282
      %v1315 = vadd.f32 %v1249, %v1283
      %v1316 = vadd.f32 %v1251, %v1284
      %1317 = vst.msk [vmem:[%s274] sm:$0xff] %vm848, %v1285
      %1318 = vst.msk [vmem:[%s274 + $0x8] sm:$0xff] %vm848, %v1286
      %1319 = vst.msk [vmem:[%s274 + $0x10] sm:$0xff] %vm848, %v1287
      %1320 = vst.msk [vmem:[%s274 + $0x18] sm:$0xff] %vm848, %v1288
      %1321 = vst.msk [vmem:[%s274 + $0x20] sm:$0xff] %vm848, %v1289
      %1322 = vst.msk [vmem:[%s274 + $0x28] sm:$0xff] %vm848, %v1290
      %1323 = vst.msk [vmem:[%s274 + $0x30] sm:$0xff] %vm848, %v1291
      %1324 = vst.msk [vmem:[%s274 + $0x38] sm:$0xff] %vm848, %v1292
      %1325 = vst.msk [vmem:[%s274 + $0x40] sm:$0xff] %vm848, %v1293
      %1326 = vst.msk [vmem:[%s274 + $0x48] sm:$0xff] %vm848, %v1294
      %1327 = vst.msk [vmem:[%s274 + $0x50] sm:$0xff] %vm848, %v1295
      %1328 = vst.msk [vmem:[%s274 + $0x58] sm:$0xff] %vm848, %v1296
      %1329 = vst.msk [vmem:[%s274 + $0x60] sm:$0xff] %vm848, %v1297
      %1330 = vst.msk [vmem:[%s274 + $0x68] sm:$0xff] %vm848, %v1298
      %1331 = vst.msk [vmem:[%s274 + $0x70] sm:$0xff] %vm848, %v1299
      %1332 = vst.msk [vmem:[%s274 + $0x78] sm:$0xff] %vm848, %v1300
      %1333 = vst.msk [vmem:[%s274 + $0x80] sm:$0xff] %vm848, %v1301
      %1334 = vst.msk [vmem:[%s274 + $0x88] sm:$0xff] %vm848, %v1302
      %1335 = vst.msk [vmem:[%s274 + $0x90] sm:$0xff] %vm848, %v1303
      %1336 = vst.msk [vmem:[%s274 + $0x98] sm:$0xff] %vm848, %v1304
      %1337 = vst.msk [vmem:[%s274 + $0xa0] sm:$0xff] %vm848, %v1305
      %1338 = vst.msk [vmem:[%s274 + $0xa8] sm:$0xff] %vm848, %v1306
      %1339 = vst.msk [vmem:[%s274 + $0xb0] sm:$0xff] %vm848, %v1307
      %1340 = vst.msk [vmem:[%s274 + $0xb8] sm:$0xff] %vm848, %v1308
      %1341 = vst.msk [vmem:[%s274 + $0xc0] sm:$0xff] %vm848, %v1309
      %1342 = vst.msk [vmem:[%s274 + $0xc8] sm:$0xff] %vm848, %v1310
      %1343 = vst.msk [vmem:[%s274 + $0xd0] sm:$0xff] %vm848, %v1311
      %1344 = vst.msk [vmem:[%s274 + $0xd8] sm:$0xff] %vm848, %v1312
      %1345 = vst.msk [vmem:[%s274 + $0xe0] sm:$0xff] %vm848, %v1313
      %1346 = vst.msk [vmem:[%s274 + $0xe8] sm:$0xff] %vm848, %v1314
      %1347 = vst.msk [vmem:[%s274 + $0xf0] sm:$0xff] %vm848, %v1315
      %1348 = vst.msk [vmem:[%s274 + $0xf8] sm:$0xff] %vm848, %v1316
      %p1349 = scmp.lt.s32.totalorder %s24, 1
      %s1350 = scalar_select %p1349, %s24, 1
      %s1351 = smul.addr %s1350, 32
      %s1352 = smul.addr %s1351, 8
      %s1353 = scalar_lea.vmem %s5, %s1352
      // Predicated region
      $region37: #{path_aware_resnet_gen_forward.23} parent=35 // pred_check
        %p1354 = pneg %p150
      $region38: #{path_aware_resnet_gen_forward.23} parent=35 // pred_check_branch
        %1356 = sbr.rel (%p1354) target = $region40
      $region39: #{path_aware_resnet_gen_forward.23} parent=35 // pred_region
        _
      $region40: #{path_aware_resnet_gen_forward.23} parent=35 // pred_fallthru
        _
    $region36: #{path_aware_resnet_gen_forward.23} parent=5 // pred_fallthru
      _
    %p1357 = scmp.le.s32.totalorder 2, %s19
    // Predicated region
    $region41: #{path_aware_resnet_gen_forward.23} parent=5 // pred_check
      %p1358 = pneg %p1357
    $region42: #{path_aware_resnet_gen_forward.23} parent=5 // pred_check_branch
      %1360 = sbr.rel (%p1358) target = $region44
    $region43: #{path_aware_resnet_gen_forward.23} parent=5 // pred_region
      %s1361 = ssub.s32 %s19, 2
      // Predicated region
      $region45: #{path_aware_resnet_gen_forward.23} parent=43 // pred_check
        %p1362 = pneg %p156
      $region46: #{path_aware_resnet_gen_forward.23} parent=43 // pred_check_branch
        %1364 = sbr.rel (%p1362) target = $region48
      $region47: #{path_aware_resnet_gen_forward.23} parent=43 // pred_region
        %p1365 = scmp.lt.s32.totalorder %s25, 1
        %s1366 = scalar_select %p1365, %s25, 1
        %s1367 = smul.addr %s1366, 32
        %s1368 = smul.addr %s1367, 8
        %s1369 = scalar_lea.vmem %s5, %s1368
      $region48: #{path_aware_resnet_gen_forward.23} parent=43 // pred_fallthru
        _
    $region44: #{path_aware_resnet_gen_forward.23} parent=5 // pred_fallthru
      _
  $region6: #{path_aware_resnet_gen_forward.23} parent=0 // loop_footer
    %s23 = sadd.s32 1, %s19
  $region7: #{path_aware_resnet_gen_forward.23} parent=0 // loop_footer_branch
    %18 = sbr.rel target = $region3
  $region8: #{path_aware_resnet_gen_forward.23} parent=0 // loop_exit
    _

// kernel: path_aware_resnet_gen_forward.25
$region0: #{path_aware_resnet_gen_forward.25}
  #allocation0 [shape = 'u32[]', space=smem, size = 0x4, offset = 0x4, fixed_abs, tag = 'smem constant byte address 0x4 - core index']
  #allocation1 [shape = 'u32[72,128]{1,0:T(1,128)}', space=vmem, size = 0x9000, scoped, tag = 'internal scratch']
  %s0 = inlined_call_operand.vmem [shape: bf16[512,144], index: 0, kind: input, shape index: {}]
  %s1 = inlined_call_operand.vmem [shape: bf16[144,3], index: 1, kind: input, shape index: {}]
  %s2 = inlined_call_operand.vmem [shape: f32[1,3], index: 2, kind: input, shape index: {}]
  %s3 = inlined_call_operand.vmem [shape: f32[512,3], index: 3, kind: output, shape index: {}]
  %s4 = sld [smem:[#allocation0]]
  $region22: #{path_aware_resnet_gen_forward.25} parent=0
    _
  %s6 = ssub.s32 1, %s4
  %s7 = scalar_select 0, %s6, %s4
  // Predicated region
  $region2: #{path_aware_resnet_gen_forward.25} parent=0 // pred_check
    _
  $region3: #{path_aware_resnet_gen_forward.25} parent=0 // pred_check_branch
    %9 = sbr.rel (0) target = $region5
  $region4: #{path_aware_resnet_gen_forward.25} parent=0 // pred_region
    _
  $region5: #{path_aware_resnet_gen_forward.25} parent=0 // pred_fallthru
    _
  // Predicated region
  $region6: #{path_aware_resnet_gen_forward.25} parent=0 // pred_check
    _
  $region7: #{path_aware_resnet_gen_forward.25} parent=0 // pred_check_branch
    %11 = sbr.rel (0) target = $region9
  $region8: #{path_aware_resnet_gen_forward.25} parent=0 // pred_region
    _
  $region9: #{path_aware_resnet_gen_forward.25} parent=0 // pred_fallthru
    _
  // Predicated region
  $region10: #{path_aware_resnet_gen_forward.25} parent=0 // pred_check
    _
  $region11: #{path_aware_resnet_gen_forward.25} parent=0 // pred_check_branch
    %13 = sbr.rel (0) target = $region13
  $region12: #{path_aware_resnet_gen_forward.25} parent=0 // pred_region
    _
  $region13: #{path_aware_resnet_gen_forward.25} parent=0 // pred_fallthru
    _
  %v15 = vld [vmem:[%s0] sm:$0xff]
  %v16 = vld [vmem:[%s0 + $0x8] sm:$0xff]
  %v17 = vld [vmem:[%s0 + $0x10] sm:$0xff]
  %v18 = vld [vmem:[%s0 + $0x18] sm:$0xff]
  %v19 = vld [vmem:[%s0 + $0x20] sm:$0xff]
  %v20 = vld [vmem:[%s0 + $0x28] sm:$0xff]
  %v21 = vld [vmem:[%s0 + $0x30] sm:$0xff]
  %v22 = vld [vmem:[%s0 + $0x38] sm:$0xff]
  %v23 = vld [vmem:[%s0 + $0x40] sm:$0xff]
  %v24 = vld [vmem:[%s0 + $0x48] sm:$0xff]
  %v25 = vld [vmem:[%s0 + $0x50] sm:$0xff]
  %v26 = vld [vmem:[%s0 + $0x58] sm:$0xff]
  %v27 = vld [vmem:[%s0 + $0x60] sm:$0xff]
  %v28 = vld [vmem:[%s0 + $0x68] sm:$0xff]
  %v29 = vld [vmem:[%s0 + $0x70] sm:$0xff]
  %v30 = vld [vmem:[%s0 + $0x78] sm:$0xff]
  %v31 = vld [vmem:[%s0 + $0x80] sm:$0xff]
  %v32 = vld [vmem:[%s0 + $0x88] sm:$0xff]
  %v33 = vld [vmem:[%s0 + $0x90] sm:$0xff]
  %v34 = vld [vmem:[%s0 + $0x98] sm:$0xff]
  %v35 = vld [vmem:[%s0 + $0xa0] sm:$0xff]
  %v36 = vld [vmem:[%s0 + $0xa8] sm:$0xff]
  %v37 = vld [vmem:[%s0 + $0xb0] sm:$0xff]
  %v38 = vld [vmem:[%s0 + $0xb8] sm:$0xff]
  %v39 = vld [vmem:[%s0 + $0xc0] sm:$0xff]
  %v40 = vld [vmem:[%s0 + $0xc8] sm:$0xff]
  %v41 = vld [vmem:[%s0 + $0xd0] sm:$0xff]
  %v42 = vld [vmem:[%s0 + $0xd8] sm:$0xff]
  %v43 = vld [vmem:[%s0 + $0xe0] sm:$0xff]
  %v44 = vld [vmem:[%s0 + $0xe8] sm:$0xff]
  %v45 = vld [vmem:[%s0 + $0xf0] sm:$0xff]
  %v46 = vld [vmem:[%s0 + $0xf8] sm:$0xff]
  %v47 = vld [vmem:[%s0 + $0x100] sm:$0xff]
  %v48 = vld [vmem:[%s0 + $0x108] sm:$0xff]
  %v49 = vld [vmem:[%s0 + $0x110] sm:$0xff]
  %v50 = vld [vmem:[%s0 + $0x118] sm:$0xff]
  %v51 = vld [vmem:[%s0 + $0x120] sm:$0xff]
  %v52 = vld [vmem:[%s0 + $0x128] sm:$0xff]
  %v53 = vld [vmem:[%s0 + $0x130] sm:$0xff]
  %v54 = vld [vmem:[%s0 + $0x138] sm:$0xff]
  %v55 = vld [vmem:[%s0 + $0x140] sm:$0xff]
  %v56 = vld [vmem:[%s0 + $0x148] sm:$0xff]
  %v57 = vld [vmem:[%s0 + $0x150] sm:$0xff]
  %v58 = vld [vmem:[%s0 + $0x158] sm:$0xff]
  %v59 = vld [vmem:[%s0 + $0x160] sm:$0xff]
  %v60 = vld [vmem:[%s0 + $0x168] sm:$0xff]
  %v61 = vld [vmem:[%s0 + $0x170] sm:$0xff]
  %v62 = vld [vmem:[%s0 + $0x178] sm:$0xff]
  %v63 = vld [vmem:[%s0 + $0x180] sm:$0xff]
  %v64 = vld [vmem:[%s0 + $0x188] sm:$0xff]
  %v65 = vld [vmem:[%s0 + $0x190] sm:$0xff]
  %v66 = vld [vmem:[%s0 + $0x198] sm:$0xff]
  %v67 = vld [vmem:[%s0 + $0x1a0] sm:$0xff]
  %v68 = vld [vmem:[%s0 + $0x1a8] sm:$0xff]
  %v69 = vld [vmem:[%s0 + $0x1b0] sm:$0xff]
  %v70 = vld [vmem:[%s0 + $0x1b8] sm:$0xff]
  %v71 = vld [vmem:[%s0 + $0x1c0] sm:$0xff]
  %v72 = vld [vmem:[%s0 + $0x1c8] sm:$0xff]
  %v73 = vld [vmem:[%s0 + $0x1d0] sm:$0xff]
  %v74 = vld [vmem:[%s0 + $0x1d8] sm:$0xff]
  %v75 = vld [vmem:[%s0 + $0x1e0] sm:$0xff]
  %v76 = vld [vmem:[%s0 + $0x1e8] sm:$0xff]
  %v77 = vld [vmem:[%s0 + $0x1f0] sm:$0xff]
  %v78 = vld [vmem:[%s0 + $0x1f8] sm:$0xff]
  %v79 = vld [vmem:[%s1] sm:$0xf]
  %v80 = vld [vmem:[%s1 + $0x4] sm:$0xf]
  %v81 = vld [vmem:[%s1 + $0x8] sm:$0xf]
  %v82 = vld [vmem:[%s1 + $0xc] sm:$0xf]
  %v83 = vld [vmem:[%s1 + $0x10] sm:$0xf]
  %v84 = vld [vmem:[%s1 + $0x14] sm:$0xf]
  %v85 = vld [vmem:[%s1 + $0x18] sm:$0xf]
  %v86 = vld [vmem:[%s1 + $0x1c] sm:$0xf]
  %v87 = vld [vmem:[%s1 + $0x20] sm:$0xf]
  %v88 = vld [vmem:[%s1 + $0x24] sm:$0xf]
  %v89 = vld [vmem:[%s1 + $0x28] sm:$0xf]
  %v90 = vld [vmem:[%s1 + $0x2c] sm:$0xf]
  %v91 = vld [vmem:[%s1 + $0x30] sm:$0xf]
  %v92 = vld [vmem:[%s1 + $0x34] sm:$0xf]
  %v93 = vld [vmem:[%s1 + $0x38] sm:$0xf]
  %v94 = vld [vmem:[%s1 + $0x3c] sm:$0xf]
  %v95 = vld [vmem:[%s1 + $0x40] sm:$0xf]
  %v96 = vld [vmem:[%s1 + $0x44] sm:$0xf]
  %v97 = vld [vmem:[%s2] sm:$0x1]
  %v99 = vperm.slane %v97, 0
  %v165 = vunpack.c.l.b16 %v15
  %v166 = vunpack.c.h.b16 %v15
  %v167 = vunpack.c.l.b16 %v16
  %v168 = vunpack.c.h.b16 %v16
  %v169 = vunpack.c.l.b16 %v17
  %v170 = vunpack.c.h.b16 %v17
  %v171 = vunpack.c.l.b16 %v18
  %v172 = vunpack.c.h.b16 %v18
  %v173 = vunpack.c.l.b16 %v19
  %v174 = vunpack.c.h.b16 %v19
  %v175 = vunpack.c.l.b16 %v20
  %v176 = vunpack.c.h.b16 %v20
  %v177 = vunpack.c.l.b16 %v21
  %v178 = vunpack.c.h.b16 %v21
  %v179 = vunpack.c.l.b16 %v22
  %v180 = vunpack.c.h.b16 %v22
  %v181 = vunpack.c.l.b16 %v23
  %v182 = vunpack.c.h.b16 %v23
  %v183 = vunpack.c.l.b16 %v24
  %v184 = vunpack.c.h.b16 %v24
  %v185 = vunpack.c.l.b16 %v25
  %v186 = vunpack.c.h.b16 %v25
  %v187 = vunpack.c.l.b16 %v26
  %v188 = vunpack.c.h.b16 %v26
  %v189 = vunpack.c.l.b16 %v27
  %v190 = vunpack.c.h.b16 %v27
  %v191 = vunpack.c.l.b16 %v28
  %v192 = vunpack.c.h.b16 %v28
  %v193 = vunpack.c.l.b16 %v29
  %v194 = vunpack.c.h.b16 %v29
  %v195 = vunpack.c.l.b16 %v30
  %v196 = vunpack.c.h.b16 %v30
  %v197 = vunpack.c.l.b16 %v31
  %v198 = vunpack.c.h.b16 %v31
  %v199 = vunpack.c.l.b16 %v32
  %v200 = vunpack.c.h.b16 %v32
  %v201 = vunpack.c.l.b16 %v33
  %v202 = vunpack.c.h.b16 %v33
  %v203 = vunpack.c.l.b16 %v34
  %v204 = vunpack.c.h.b16 %v34
  %v205 = vunpack.c.l.b16 %v35
  %v206 = vunpack.c.h.b16 %v35
  %v207 = vunpack.c.l.b16 %v36
  %v208 = vunpack.c.h.b16 %v36
  %v209 = vunpack.c.l.b16 %v37
  %v210 = vunpack.c.h.b16 %v37
  %v211 = vunpack.c.l.b16 %v38
  %v212 = vunpack.c.h.b16 %v38
  %v213 = vunpack.c.l.b16 %v39
  %v214 = vunpack.c.h.b16 %v39
  %v215 = vunpack.c.l.b16 %v40
  %v216 = vunpack.c.h.b16 %v40
  %v217 = vunpack.c.l.b16 %v41
  %v218 = vunpack.c.h.b16 %v41
  %v219 = vunpack.c.l.b16 %v42
  %v220 = vunpack.c.h.b16 %v42
  %v221 = vunpack.c.l.b16 %v43
  %v222 = vunpack.c.h.b16 %v43
  %v223 = vunpack.c.l.b16 %v44
  %v224 = vunpack.c.h.b16 %v44
  %v225 = vunpack.c.l.b16 %v45
  %v226 = vunpack.c.h.b16 %v45
  %v227 = vunpack.c.l.b16 %v46
  %v228 = vunpack.c.h.b16 %v46
  %v229 = vunpack.c.l.b16 %v47
  %v230 = vunpack.c.h.b16 %v47
  %v231 = vunpack.c.l.b16 %v48
  %v232 = vunpack.c.h.b16 %v48
  %v233 = vunpack.c.l.b16 %v49
  %v234 = vunpack.c.h.b16 %v49
  %v235 = vunpack.c.l.b16 %v50
  %v236 = vunpack.c.h.b16 %v50
  %v237 = vunpack.c.l.b16 %v51
  %v238 = vunpack.c.h.b16 %v51
  %v239 = vunpack.c.l.b16 %v52
  %v240 = vunpack.c.h.b16 %v52
  %v241 = vunpack.c.l.b16 %v53
  %v242 = vunpack.c.h.b16 %v53
  %v243 = vunpack.c.l.b16 %v54
  %v244 = vunpack.c.h.b16 %v54
  %v245 = vunpack.c.l.b16 %v55
  %v246 = vunpack.c.h.b16 %v55
  %v247 = vunpack.c.l.b16 %v56
  %v248 = vunpack.c.h.b16 %v56
  %v249 = vunpack.c.l.b16 %v57
  %v250 = vunpack.c.h.b16 %v57
  %v251 = vunpack.c.l.b16 %v58
  %v252 = vunpack.c.h.b16 %v58
  %v253 = vunpack.c.l.b16 %v59
  %v254 = vunpack.c.h.b16 %v59
  %v255 = vunpack.c.l.b16 %v60
  %v256 = vunpack.c.h.b16 %v60
  %v257 = vunpack.c.l.b16 %v61
  %v258 = vunpack.c.h.b16 %v61
  %v259 = vunpack.c.l.b16 %v62
  %v260 = vunpack.c.h.b16 %v62
  %v261 = vunpack.c.l.b16 %v63
  %v262 = vunpack.c.h.b16 %v63
  %v263 = vunpack.c.l.b16 %v64
  %v264 = vunpack.c.h.b16 %v64
  %v265 = vunpack.c.l.b16 %v65
  %v266 = vunpack.c.h.b16 %v65
  %v267 = vunpack.c.l.b16 %v66
  %v268 = vunpack.c.h.b16 %v66
  %v269 = vunpack.c.l.b16 %v67
  %v270 = vunpack.c.h.b16 %v67
  %v271 = vunpack.c.l.b16 %v68
  %v272 = vunpack.c.h.b16 %v68
  %v273 = vunpack.c.l.b16 %v69
  %v274 = vunpack.c.h.b16 %v69
  %v275 = vunpack.c.l.b16 %v70
  %v276 = vunpack.c.h.b16 %v70
  %v277 = vunpack.c.l.b16 %v71
  %v278 = vunpack.c.h.b16 %v71
  %v279 = vunpack.c.l.b16 %v72
  %v280 = vunpack.c.h.b16 %v72
  %v281 = vunpack.c.l.b16 %v73
  %v282 = vunpack.c.h.b16 %v73
  %v283 = vunpack.c.l.b16 %v74
  %v284 = vunpack.c.h.b16 %v74
  %v285 = vunpack.c.l.b16 %v75
  %v286 = vunpack.c.h.b16 %v75
  %v287 = vunpack.c.l.b16 %v76
  %v288 = vunpack.c.h.b16 %v76
  %v289 = vunpack.c.l.b16 %v77
  %v290 = vunpack.c.h.b16 %v77
  %v291 = vunpack.c.l.b16 %v78
  %v292 = vunpack.c.h.b16 %v78
  %v293 = vpack.c.b16 %v167, %v165
  %v294 = vpack.c.b16 %v168, %v166
  %v295 = vpack.c.b16 %v171, %v169
  %v296 = vpack.c.b16 %v172, %v170
  %v297 = vpack.c.b16 %v175, %v173
  %v298 = vpack.c.b16 %v176, %v174
  %v299 = vpack.c.b16 %v179, %v177
  %v300 = vpack.c.b16 %v180, %v178
  %v301 = vpack.c.b16 %v183, %v181
  %v302 = vpack.c.b16 %v184, %v182
  %v303 = vpack.c.b16 %v187, %v185
  %v304 = vpack.c.b16 %v188, %v186
  %v305 = vpack.c.b16 %v191, %v189
  %v306 = vpack.c.b16 %v192, %v190
  %v307 = vpack.c.b16 %v195, %v193
  %v308 = vpack.c.b16 %v196, %v194
  %v309 = vpack.c.b16 %v199, %v197
  %v310 = vpack.c.b16 %v200, %v198
  %v311 = vpack.c.b16 %v203, %v201
  %v312 = vpack.c.b16 %v204, %v202
  %v313 = vpack.c.b16 %v207, %v205
  %v314 = vpack.c.b16 %v208, %v206
  %v315 = vpack.c.b16 %v211, %v209
  %v316 = vpack.c.b16 %v212, %v210
  %v317 = vpack.c.b16 %v215, %v213
  %v318 = vpack.c.b16 %v216, %v214
  %v319 = vpack.c.b16 %v219, %v217
  %v320 = vpack.c.b16 %v220, %v218
  %v321 = vpack.c.b16 %v223, %v221
  %v322 = vpack.c.b16 %v224, %v222
  %v323 = vpack.c.b16 %v227, %v225
  %v324 = vpack.c.b16 %v228, %v226
  %v325 = vpack.c.b16 %v231, %v229
  %v326 = vpack.c.b16 %v232, %v230
  %v327 = vpack.c.b16 %v235, %v233
  %v328 = vpack.c.b16 %v236, %v234
  %v329 = vpack.c.b16 %v239, %v237
  %v330 = vpack.c.b16 %v240, %v238
  %v331 = vpack.c.b16 %v243, %v241
  %v332 = vpack.c.b16 %v244, %v242
  %v333 = vpack.c.b16 %v247, %v245
  %v334 = vpack.c.b16 %v248, %v246
  %v335 = vpack.c.b16 %v251, %v249
  %v336 = vpack.c.b16 %v252, %v250
  %v337 = vpack.c.b16 %v255, %v253
  %v338 = vpack.c.b16 %v256, %v254
  %v339 = vpack.c.b16 %v259, %v257
  %v340 = vpack.c.b16 %v260, %v258
  %v341 = vpack.c.b16 %v263, %v261
  %v342 = vpack.c.b16 %v264, %v262
  %v343 = vpack.c.b16 %v267, %v265
  %v344 = vpack.c.b16 %v268, %v266
  %v345 = vpack.c.b16 %v271, %v269
  %v346 = vpack.c.b16 %v272, %v270
  %v347 = vpack.c.b16 %v275, %v273
  %v348 = vpack.c.b16 %v276, %v274
  %v349 = vpack.c.b16 %v279, %v277
  %v350 = vpack.c.b16 %v280, %v278
  %v351 = vpack.c.b16 %v283, %v281
  %v352 = vpack.c.b16 %v284, %v282
  %v353 = vpack.c.b16 %v287, %v285
  %v354 = vpack.c.b16 %v288, %v286
  %v355 = vpack.c.b16 %v291, %v289
  %v356 = vpack.c.b16 %v292, %v290
  %v407 = vunpack.c.l.b16 %v79
  %v408 = vunpack.c.l.b16 %v80
  %v409 = vunpack.c.l.b16 %v81
  %v410 = vunpack.c.l.b16 %v82
  %v411 = vunpack.c.l.b16 %v83
  %v412 = vunpack.c.l.b16 %v84
  %v413 = vunpack.c.l.b16 %v85
  %v414 = vunpack.c.l.b16 %v86
  %v415 = vunpack.c.l.b16 %v87
  %v416 = vunpack.c.l.b16 %v88
  %v417 = vunpack.c.l.b16 %v89
  %v418 = vunpack.c.l.b16 %v90
  %v419 = vunpack.c.l.b16 %v91
  %v420 = vunpack.c.l.b16 %v92
  %v421 = vunpack.c.l.b16 %v93
  %v422 = vunpack.c.l.b16 %v94
  %v423 = vunpack.c.l.b16 %v95
  %v424 = vunpack.c.l.b16 %v96
  %v425 = vpack.c.b16 %v408, %v407
  %v426 = vpack.c.b16 %v410, %v409
  %v427 = vpack.c.b16 %v412, %v411
  %v428 = vpack.c.b16 %v414, %v413
  %v429 = vpack.c.b16 %v416, %v415
  %v430 = vpack.c.b16 %v418, %v417
  %v431 = vpack.c.b16 %v420, %v419
  %v432 = vpack.c.b16 %v422, %v421
  %v433 = vpack.c.b16 %v424, %v423
  %vm443 = vcmask 130048
  %v445 = vsel %vm443, %v294, 0
  %v448 = vsel %vm443, %v296, 0
  %v451 = vsel %vm443, %v298, 0
  %v454 = vsel %vm443, %v300, 0
  %v457 = vsel %vm443, %v302, 0
  %v460 = vsel %vm443, %v304, 0
  %v463 = vsel %vm443, %v306, 0
  %v466 = vsel %vm443, %v308, 0
  %v469 = vsel %vm443, %v310, 0
  %v472 = vsel %vm443, %v312, 0
  %v475 = vsel %vm443, %v314, 0
  %v478 = vsel %vm443, %v316, 0
  %v481 = vsel %vm443, %v318, 0
  %v484 = vsel %vm443, %v320, 0
  %v487 = vsel %vm443, %v322, 0
  %v490 = vsel %vm443, %v324, 0
  %v493 = vsel %vm443, %v326, 0
  %v496 = vsel %vm443, %v328, 0
  %v499 = vsel %vm443, %v330, 0
  %v502 = vsel %vm443, %v332, 0
  %v505 = vsel %vm443, %v334, 0
  %v508 = vsel %vm443, %v336, 0
  %v511 = vsel %vm443, %v338, 0
  %v514 = vsel %vm443, %v340, 0
  %v517 = vsel %vm443, %v342, 0
  %v520 = vsel %vm443, %v344, 0
  %v523 = vsel %vm443, %v346, 0
  %v526 = vsel %vm443, %v348, 0
  %v529 = vsel %vm443, %v350, 0
  %v532 = vsel %vm443, %v352, 0
  %v535 = vsel %vm443, %v354, 0
  %v538 = vsel %vm443, %v356, 0
  %540 = vmatpush.bf16.msra.mxu0 %v432
  %541 = vmatpush.bf16.msra.mxu0 %v431
  %542 = vmatpush.bf16.msra.mxu0 %v430
  %543 = vmatpush.bf16.msra.mxu0 %v429
  %544 = vmatpush.bf16.msra.mxu0 %v428
  %545 = vmatpush.bf16.msra.mxu0 %v427
  %546 = vmatpush.bf16.msra.mxu0 %v426
  %547 = vmatpush.bf16.msra.mxu0 %v425
  %548 = vmatmul.bf16.gmra.mxu0 %v293
  %v549 = vpop.f32.mrf.mxu0
  %v550 = vadd.f32 %v99, %v549
  %v551 = vpop.f32.mrf.mxu0
  %v552 = vadd.f32 %v99, %v551
  %553 = vmatmul.bf16.gmra.mxu0 %v295
  %v554 = vpop.f32.mrf.mxu0
  %v555 = vadd.f32 %v99, %v554
  %v556 = vpop.f32.mrf.mxu0
  %v557 = vadd.f32 %v99, %v556
  %558 = vmatmul.bf16.gmra.mxu0 %v297
  %v559 = vpop.f32.mrf.mxu0
  %v560 = vadd.f32 %v99, %v559
  %v561 = vpop.f32.mrf.mxu0
  %v562 = vadd.f32 %v99, %v561
  %563 = vmatmul.bf16.gmra.mxu0 %v299
  %v564 = vpop.f32.mrf.mxu0
  %v565 = vadd.f32 %v99, %v564
  %v566 = vpop.f32.mrf.mxu0
  %v567 = vadd.f32 %v99, %v566
  %568 = vmatmul.bf16.gmra.mxu0 %v301
  %v569 = vpop.f32.mrf.mxu0
  %v570 = vadd.f32 %v99, %v569
  %v571 = vpop.f32.mrf.mxu0
  %v572 = vadd.f32 %v99, %v571
  %573 = vmatmul.bf16.gmra.mxu0 %v303
  %v574 = vpop.f32.mrf.mxu0
  %v575 = vadd.f32 %v99, %v574
  %v576 = vpop.f32.mrf.mxu0
  %v577 = vadd.f32 %v99, %v576
  %578 = vmatmul.bf16.gmra.mxu0 %v305
  %v579 = vpop.f32.mrf.mxu0
  %v580 = vadd.f32 %v99, %v579
  %v581 = vpop.f32.mrf.mxu0
  %v582 = vadd.f32 %v99, %v581
  %583 = vmatmul.bf16.gmra.mxu0 %v307
  %v584 = vpop.f32.mrf.mxu0
  %v585 = vadd.f32 %v99, %v584
  %v586 = vpop.f32.mrf.mxu0
  %v587 = vadd.f32 %v99, %v586
  %588 = vmatmul.bf16.gmra.mxu0 %v309
  %v589 = vpop.f32.mrf.mxu0
  %v590 = vadd.f32 %v99, %v589
  %v591 = vpop.f32.mrf.mxu0
  %v592 = vadd.f32 %v99, %v591
  %593 = vmatmul.bf16.gmra.mxu0 %v311
  %v594 = vpop.f32.mrf.mxu0
  %v595 = vadd.f32 %v99, %v594
  %v596 = vpop.f32.mrf.mxu0
  %v597 = vadd.f32 %v99, %v596
  %598 = vmatmul.bf16.gmra.mxu0 %v313
  %v599 = vpop.f32.mrf.mxu0
  %v600 = vadd.f32 %v99, %v599
  %v601 = vpop.f32.mrf.mxu0
  %v602 = vadd.f32 %v99, %v601
  %603 = vmatmul.bf16.gmra.mxu0 %v315
  %v604 = vpop.f32.mrf.mxu0
  %v605 = vadd.f32 %v99, %v604
  %v606 = vpop.f32.mrf.mxu0
  %v607 = vadd.f32 %v99, %v606
  %608 = vmatmul.bf16.gmra.mxu0 %v317
  %v609 = vpop.f32.mrf.mxu0
  %v610 = vadd.f32 %v99, %v609
  %v611 = vpop.f32.mrf.mxu0
  %v612 = vadd.f32 %v99, %v611
  %613 = vmatmul.bf16.gmra.mxu0 %v319
  %v614 = vpop.f32.mrf.mxu0
  %v615 = vadd.f32 %v99, %v614
  %v616 = vpop.f32.mrf.mxu0
  %v617 = vadd.f32 %v99, %v616
  %618 = vmatmul.bf16.gmra.mxu0 %v321
  %v619 = vpop.f32.mrf.mxu0
  %v620 = vadd.f32 %v99, %v619
  %v621 = vpop.f32.mrf.mxu0
  %v622 = vadd.f32 %v99, %v621
  %623 = vmatmul.bf16.gmra.mxu0 %v323
  %v624 = vpop.f32.mrf.mxu0
  %v625 = vadd.f32 %v99, %v624
  %v626 = vpop.f32.mrf.mxu0
  %v627 = vadd.f32 %v99, %v626
  %628 = vmatmul.bf16.gmra.mxu0 %v325
  %v629 = vpop.f32.mrf.mxu0
  %v630 = vadd.f32 %v99, %v629
  %v631 = vpop.f32.mrf.mxu0
  %v632 = vadd.f32 %v99, %v631
  %633 = vmatmul.bf16.gmra.mxu0 %v327
  %v634 = vpop.f32.mrf.mxu0
  %v635 = vadd.f32 %v99, %v634
  %v636 = vpop.f32.mrf.mxu0
  %v637 = vadd.f32 %v99, %v636
  %638 = vmatmul.bf16.gmra.mxu0 %v329
  %v639 = vpop.f32.mrf.mxu0
  %v640 = vadd.f32 %v99, %v639
  %v641 = vpop.f32.mrf.mxu0
  %v642 = vadd.f32 %v99, %v641
  %643 = vmatmul.bf16.gmra.mxu0 %v331
  %v644 = vpop.f32.mrf.mxu0
  %v645 = vadd.f32 %v99, %v644
  %v646 = vpop.f32.mrf.mxu0
  %v647 = vadd.f32 %v99, %v646
  %648 = vmatmul.bf16.gmra.mxu0 %v333
  %v649 = vpop.f32.mrf.mxu0
  %v650 = vadd.f32 %v99, %v649
  %v651 = vpop.f32.mrf.mxu0
  %v652 = vadd.f32 %v99, %v651
  %653 = vmatmul.bf16.gmra.mxu0 %v335
  %v654 = vpop.f32.mrf.mxu0
  %v655 = vadd.f32 %v99, %v654
  %v656 = vpop.f32.mrf.mxu0
  %v657 = vadd.f32 %v99, %v656
  %658 = vmatmul.bf16.gmra.mxu0 %v337
  %v659 = vpop.f32.mrf.mxu0
  %v660 = vadd.f32 %v99, %v659
  %v661 = vpop.f32.mrf.mxu0
  %v662 = vadd.f32 %v99, %v661
  %663 = vmatmul.bf16.gmra.mxu0 %v339
  %v664 = vpop.f32.mrf.mxu0
  %v665 = vadd.f32 %v99, %v664
  %v666 = vpop.f32.mrf.mxu0
  %v667 = vadd.f32 %v99, %v666
  %668 = vmatmul.bf16.gmra.mxu0 %v341
  %v669 = vpop.f32.mrf.mxu0
  %v670 = vadd.f32 %v99, %v669
  %v671 = vpop.f32.mrf.mxu0
  %v672 = vadd.f32 %v99, %v671
  %673 = vmatmul.bf16.gmra.mxu0 %v343
  %v674 = vpop.f32.mrf.mxu0
  %v675 = vadd.f32 %v99, %v674
  %v676 = vpop.f32.mrf.mxu0
  %v677 = vadd.f32 %v99, %v676
  %678 = vmatmul.bf16.gmra.mxu0 %v345
  %v679 = vpop.f32.mrf.mxu0
  %v680 = vadd.f32 %v99, %v679
  %v681 = vpop.f32.mrf.mxu0
  %v682 = vadd.f32 %v99, %v681
  %683 = vmatmul.bf16.gmra.mxu0 %v347
  %v684 = vpop.f32.mrf.mxu0
  %v685 = vadd.f32 %v99, %v684
  %v686 = vpop.f32.mrf.mxu0
  %v687 = vadd.f32 %v99, %v686
  %688 = vmatmul.bf16.gmra.mxu0 %v349
  %v689 = vpop.f32.mrf.mxu0
  %v690 = vadd.f32 %v99, %v689
  %v691 = vpop.f32.mrf.mxu0
  %v692 = vadd.f32 %v99, %v691
  %693 = vmatmul.bf16.gmra.mxu0 %v351
  %v694 = vpop.f32.mrf.mxu0
  %v695 = vadd.f32 %v99, %v694
  %v696 = vpop.f32.mrf.mxu0
  %v697 = vadd.f32 %v99, %v696
  %698 = vmatmul.bf16.gmra.mxu0 %v353
  %v699 = vpop.f32.mrf.mxu0
  %v700 = vadd.f32 %v99, %v699
  %v701 = vpop.f32.mrf.mxu0
  %v702 = vadd.f32 %v99, %v701
  %703 = vmatmul.bf16.gmra.mxu0 %v355
  %v704 = vpop.f32.mrf.mxu0
  %v705 = vadd.f32 %v99, %v704
  %v706 = vpop.f32.mrf.mxu0
  %v707 = vadd.f32 %v99, %v706
  %708 = vdwg.mxu0
  %709 = vmatpush.bf16.msra.mxu0 0
  %710 = vmatpush.bf16.msra.mxu0 0
  %711 = vmatpush.bf16.msra.mxu0 0
  %712 = vmatpush.bf16.msra.mxu0 0
  %713 = vmatpush.bf16.msra.mxu0 0
  %714 = vmatpush.bf16.msra.mxu0 0
  %715 = vmatpush.bf16.msra.mxu0 0
  %716 = vmatpush.bf16.msra.mxu0 %v433
  %717 = vmatmul.bf16.gmra.mxu0 %v445
  %v718 = vpop.f32.mrf.mxu0
  %v719 = vadd.f32 %v550, %v718
  %v720 = vpop.f32.mrf.mxu0
  %v721 = vadd.f32 %v552, %v720
  %722 = vmatmul.bf16.gmra.mxu0 %v448
  %v723 = vpop.f32.mrf.mxu0
  %v724 = vadd.f32 %v555, %v723
  %v725 = vpop.f32.mrf.mxu0
  %v726 = vadd.f32 %v557, %v725
  %727 = vmatmul.bf16.gmra.mxu0 %v451
  %v728 = vpop.f32.mrf.mxu0
  %v729 = vadd.f32 %v560, %v728
  %v730 = vpop.f32.mrf.mxu0
  %v731 = vadd.f32 %v562, %v730
  %732 = vmatmul.bf16.gmra.mxu0 %v454
  %v733 = vpop.f32.mrf.mxu0
  %v734 = vadd.f32 %v565, %v733
  %v735 = vpop.f32.mrf.mxu0
  %v736 = vadd.f32 %v567, %v735
  %737 = vmatmul.bf16.gmra.mxu0 %v457
  %v738 = vpop.f32.mrf.mxu0
  %v739 = vadd.f32 %v570, %v738
  %v740 = vpop.f32.mrf.mxu0
  %v741 = vadd.f32 %v572, %v740
  %742 = vmatmul.bf16.gmra.mxu0 %v460
  %v743 = vpop.f32.mrf.mxu0
  %v744 = vadd.f32 %v575, %v743
  %v745 = vpop.f32.mrf.mxu0
  %v746 = vadd.f32 %v577, %v745
  %747 = vmatmul.bf16.gmra.mxu0 %v463
  %v748 = vpop.f32.mrf.mxu0
  %v749 = vadd.f32 %v580, %v748
  %v750 = vpop.f32.mrf.mxu0
  %v751 = vadd.f32 %v582, %v750
  %752 = vmatmul.bf16.gmra.mxu0 %v466
  %v753 = vpop.f32.mrf.mxu0
  %v754 = vadd.f32 %v585, %v753
  %v755 = vpop.f32.mrf.mxu0
  %v756 = vadd.f32 %v587, %v755
  %757 = vmatmul.bf16.gmra.mxu0 %v469
  %v758 = vpop.f32.mrf.mxu0
  %v759 = vadd.f32 %v590, %v758
  %v760 = vpop.f32.mrf.mxu0
  %v761 = vadd.f32 %v592, %v760
  %762 = vmatmul.bf16.gmra.mxu0 %v472
  %v763 = vpop.f32.mrf.mxu0
  %v764 = vadd.f32 %v595, %v763
  %v765 = vpop.f32.mrf.mxu0
  %v766 = vadd.f32 %v597, %v765
  %767 = vmatmul.bf16.gmra.mxu0 %v475
  %v768 = vpop.f32.mrf.mxu0
  %v769 = vadd.f32 %v600, %v768
  %v770 = vpop.f32.mrf.mxu0
  %v771 = vadd.f32 %v602, %v770
  %772 = vmatmul.bf16.gmra.mxu0 %v478
  %v773 = vpop.f32.mrf.mxu0
  %v774 = vadd.f32 %v605, %v773
  %v775 = vpop.f32.mrf.mxu0
  %v776 = vadd.f32 %v607, %v775
  %777 = vmatmul.bf16.gmra.mxu0 %v481
  %v778 = vpop.f32.mrf.mxu0
  %v779 = vadd.f32 %v610, %v778
  %v780 = vpop.f32.mrf.mxu0
  %v781 = vadd.f32 %v612, %v780
  %782 = vmatmul.bf16.gmra.mxu0 %v484
  %v783 = vpop.f32.mrf.mxu0
  %v784 = vadd.f32 %v615, %v783
  %v785 = vpop.f32.mrf.mxu0
  %v786 = vadd.f32 %v617, %v785
  %787 = vmatmul.bf16.gmra.mxu0 %v487
  %v788 = vpop.f32.mrf.mxu0
  %v789 = vadd.f32 %v620, %v788
  %v790 = vpop.f32.mrf.mxu0
  %v791 = vadd.f32 %v622, %v790
  %792 = vmatmul.bf16.gmra.mxu0 %v490
  %v793 = vpop.f32.mrf.mxu0
  %v794 = vadd.f32 %v625, %v793
  %v795 = vpop.f32.mrf.mxu0
  %v796 = vadd.f32 %v627, %v795
  %797 = vmatmul.bf16.gmra.mxu0 %v493
  %v798 = vpop.f32.mrf.mxu0
  %v799 = vadd.f32 %v630, %v798
  %v800 = vpop.f32.mrf.mxu0
  %v801 = vadd.f32 %v632, %v800
  %802 = vmatmul.bf16.gmra.mxu0 %v496
  %v803 = vpop.f32.mrf.mxu0
  %v804 = vadd.f32 %v635, %v803
  %v805 = vpop.f32.mrf.mxu0
  %v806 = vadd.f32 %v637, %v805
  %807 = vmatmul.bf16.gmra.mxu0 %v499
  %v808 = vpop.f32.mrf.mxu0
  %v809 = vadd.f32 %v640, %v808
  %v810 = vpop.f32.mrf.mxu0
  %v811 = vadd.f32 %v642, %v810
  %812 = vmatmul.bf16.gmra.mxu0 %v502
  %v813 = vpop.f32.mrf.mxu0
  %v814 = vadd.f32 %v645, %v813
  %v815 = vpop.f32.mrf.mxu0
  %v816 = vadd.f32 %v647, %v815
  %817 = vmatmul.bf16.gmra.mxu0 %v505
  %v818 = vpop.f32.mrf.mxu0
  %v819 = vadd.f32 %v650, %v818
  %v820 = vpop.f32.mrf.mxu0
  %v821 = vadd.f32 %v652, %v820
  %822 = vmatmul.bf16.gmra.mxu0 %v508
  %v823 = vpop.f32.mrf.mxu0
  %v824 = vadd.f32 %v655, %v823
  %v825 = vpop.f32.mrf.mxu0
  %v826 = vadd.f32 %v657, %v825
  %827 = vmatmul.bf16.gmra.mxu0 %v511
  %v828 = vpop.f32.mrf.mxu0
  %v829 = vadd.f32 %v660, %v828
  %v830 = vpop.f32.mrf.mxu0
  %v831 = vadd.f32 %v662, %v830
  %832 = vmatmul.bf16.gmra.mxu0 %v514
  %v833 = vpop.f32.mrf.mxu0
  %v834 = vadd.f32 %v665, %v833
  %v835 = vpop.f32.mrf.mxu0
  %v836 = vadd.f32 %v667, %v835
  %837 = vmatmul.bf16.gmra.mxu0 %v517
  %v838 = vpop.f32.mrf.mxu0
  %v839 = vadd.f32 %v670, %v838
  %v840 = vpop.f32.mrf.mxu0
  %v841 = vadd.f32 %v672, %v840
  %842 = vmatmul.bf16.gmra.mxu0 %v520
  %v843 = vpop.f32.mrf.mxu0
  %v844 = vadd.f32 %v675, %v843
  %v845 = vpop.f32.mrf.mxu0
  %v846 = vadd.f32 %v677, %v845
  %847 = vmatmul.bf16.gmra.mxu0 %v523
  %v848 = vpop.f32.mrf.mxu0
  %v849 = vadd.f32 %v680, %v848
  %v850 = vpop.f32.mrf.mxu0
  %v851 = vadd.f32 %v682, %v850
  %852 = vmatmul.bf16.gmra.mxu0 %v526
  %v853 = vpop.f32.mrf.mxu0
  %v854 = vadd.f32 %v685, %v853
  %v855 = vpop.f32.mrf.mxu0
  %v856 = vadd.f32 %v687, %v855
  %857 = vmatmul.bf16.gmra.mxu0 %v529
  %v858 = vpop.f32.mrf.mxu0
  %v859 = vadd.f32 %v690, %v858
  %v860 = vpop.f32.mrf.mxu0
  %v861 = vadd.f32 %v692, %v860
  %862 = vmatmul.bf16.gmra.mxu0 %v532
  %v863 = vpop.f32.mrf.mxu0
  %v864 = vadd.f32 %v695, %v863
  %v865 = vpop.f32.mrf.mxu0
  %v866 = vadd.f32 %v697, %v865
  %867 = vmatmul.bf16.gmra.mxu0 %v535
  %v868 = vpop.f32.mrf.mxu0
  %v869 = vadd.f32 %v700, %v868
  %v870 = vpop.f32.mrf.mxu0
  %v871 = vadd.f32 %v702, %v870
  %872 = vmatmul.bf16.gmra.mxu0 %v538
  %v873 = vpop.f32.mrf.mxu0
  %v874 = vadd.f32 %v705, %v873
  %v875 = vpop.f32.mrf.mxu0
  %v876 = vadd.f32 %v707, %v875
  %877 = vdwg.mxu0
  %v878 = vtanh.pop %v719
  %v879 = vtanh.pop %v721
  %v880 = vtanh.pop %v724
  %v881 = vtanh.pop %v726
  %v882 = vtanh.pop %v729
  %v883 = vtanh.pop %v731
  %v884 = vtanh.pop %v734
  %v885 = vtanh.pop %v736
  %v886 = vtanh.pop %v739
  %v887 = vtanh.pop %v741
  %v888 = vtanh.pop %v744
  %v889 = vtanh.pop %v746
  %v890 = vtanh.pop %v749
  %v891 = vtanh.pop %v751
  %v892 = vtanh.pop %v754
  %v893 = vtanh.pop %v756
  %v894 = vtanh.pop %v759
  %v895 = vtanh.pop %v761
  %v896 = vtanh.pop %v764
  %v897 = vtanh.pop %v766
  %v898 = vtanh.pop %v769
  %v899 = vtanh.pop %v771
  %v900 = vtanh.pop %v774
  %v901 = vtanh.pop %v776
  %v902 = vtanh.pop %v779
  %v903 = vtanh.pop %v781
  %v904 = vtanh.pop %v784
  %v905 = vtanh.pop %v786
  %v906 = vtanh.pop %v789
  %v907 = vtanh.pop %v791
  %v908 = vtanh.pop %v794
  %v909 = vtanh.pop %v796
  %v910 = vtanh.pop %v799
  %v911 = vtanh.pop %v801
  %v912 = vtanh.pop %v804
  %v913 = vtanh.pop %v806
  %v914 = vtanh.pop %v809
  %v915 = vtanh.pop %v811
  %v916 = vtanh.pop %v814
  %v917 = vtanh.pop %v816
  %v918 = vtanh.pop %v819
  %v919 = vtanh.pop %v821
  %v920 = vtanh.pop %v824
  %v921 = vtanh.pop %v826
  %v922 = vtanh.pop %v829
  %v923 = vtanh.pop %v831
  %v924 = vtanh.pop %v834
  %v925 = vtanh.pop %v836
  %v926 = vtanh.pop %v839
  %v927 = vtanh.pop %v841
  %v928 = vtanh.pop %v844
  %v929 = vtanh.pop %v846
  %v930 = vtanh.pop %v849
  %v931 = vtanh.pop %v851
  %v932 = vtanh.pop %v854
  %v933 = vtanh.pop %v856
  %v934 = vtanh.pop %v859
  %v935 = vtanh.pop %v861
  %v936 = vtanh.pop %v864
  %v937 = vtanh.pop %v866
  %v938 = vtanh.pop %v869
  %v939 = vtanh.pop %v871
  %v940 = vtanh.pop %v874
  %v941 = vtanh.pop %v876
  %vm942 = vcmask 23552
  %943 = vst.msk [vmem:[%s3] sm:$0xff] %vm942, %v878
  %944 = vst.msk [vmem:[%s3 + $0x8] sm:$0xff] %vm942, %v879
  %945 = vst.msk [vmem:[%s3 + $0x10] sm:$0xff] %vm942, %v880
  %946 = vst.msk [vmem:[%s3 + $0x18] sm:$0xff] %vm942, %v881
  %947 = vst.msk [vmem:[%s3 + $0x20] sm:$0xff] %vm942, %v882
  %948 = vst.msk [vmem:[%s3 + $0x28] sm:$0xff] %vm942, %v883
  %949 = vst.msk [vmem:[%s3 + $0x30] sm:$0xff] %vm942, %v884
  %950 = vst.msk [vmem:[%s3 + $0x38] sm:$0xff] %vm942, %v885
  %951 = vst.msk [vmem:[%s3 + $0x40] sm:$0xff] %vm942, %v886
  %952 = vst.msk [vmem:[%s3 + $0x48] sm:$0xff] %vm942, %v887
  %953 = vst.msk [vmem:[%s3 + $0x50] sm:$0xff] %vm942, %v888
  %954 = vst.msk [vmem:[%s3 + $0x58] sm:$0xff] %vm942, %v889
  %955 = vst.msk [vmem:[%s3 + $0x60] sm:$0xff] %vm942, %v890
  %956 = vst.msk [vmem:[%s3 + $0x68] sm:$0xff] %vm942, %v891
  %957 = vst.msk [vmem:[%s3 + $0x70] sm:$0xff] %vm942, %v892
  %958 = vst.msk [vmem:[%s3 + $0x78] sm:$0xff] %vm942, %v893
  %959 = vst.msk [vmem:[%s3 + $0x80] sm:$0xff] %vm942, %v894
  %960 = vst.msk [vmem:[%s3 + $0x88] sm:$0xff] %vm942, %v895
  %961 = vst.msk [vmem:[%s3 + $0x90] sm:$0xff] %vm942, %v896
  %962 = vst.msk [vmem:[%s3 + $0x98] sm:$0xff] %vm942, %v897
  %963 = vst.msk [vmem:[%s3 + $0xa0] sm:$0xff] %vm942, %v898
  %964 = vst.msk [vmem:[%s3 + $0xa8] sm:$0xff] %vm942, %v899
  %965 = vst.msk [vmem:[%s3 + $0xb0] sm:$0xff] %vm942, %v900
  %966 = vst.msk [vmem:[%s3 + $0xb8] sm:$0xff] %vm942, %v901
  %967 = vst.msk [vmem:[%s3 + $0xc0] sm:$0xff] %vm942, %v902
  %968 = vst.msk [vmem:[%s3 + $0xc8] sm:$0xff] %vm942, %v903
  %969 = vst.msk [vmem:[%s3 + $0xd0] sm:$0xff] %vm942, %v904
  %970 = vst.msk [vmem:[%s3 + $0xd8] sm:$0xff] %vm942, %v905
  %971 = vst.msk [vmem:[%s3 + $0xe0] sm:$0xff] %vm942, %v906
  %972 = vst.msk [vmem:[%s3 + $0xe8] sm:$0xff] %vm942, %v907
  %973 = vst.msk [vmem:[%s3 + $0xf0] sm:$0xff] %vm942, %v908
  %974 = vst.msk [vmem:[%s3 + $0xf8] sm:$0xff] %vm942, %v909
  %975 = vst.msk [vmem:[%s3 + $0x100] sm:$0xff] %vm942, %v910
  %976 = vst.msk [vmem:[%s3 + $0x108] sm:$0xff] %vm942, %v911
  %977 = vst.msk [vmem:[%s3 + $0x110] sm:$0xff] %vm942, %v912
  %978 = vst.msk [vmem:[%s3 + $0x118] sm:$0xff] %vm942, %v913
  %979 = vst.msk [vmem:[%s3 + $0x120] sm:$0xff] %vm942, %v914
  %980 = vst.msk [vmem:[%s3 + $0x128] sm:$0xff] %vm942, %v915
  %981 = vst.msk [vmem:[%s3 + $0x130] sm:$0xff] %vm942, %v916
  %982 = vst.msk [vmem:[%s3 + $0x138] sm:$0xff] %vm942, %v917
  %983 = vst.msk [vmem:[%s3 + $0x140] sm:$0xff] %vm942, %v918
  %984 = vst.msk [vmem:[%s3 + $0x148] sm:$0xff] %vm942, %v919
  %985 = vst.msk [vmem:[%s3 + $0x150] sm:$0xff] %vm942, %v920
  %986 = vst.msk [vmem:[%s3 + $0x158] sm:$0xff] %vm942, %v921
  %987 = vst.msk [vmem:[%s3 + $0x160] sm:$0xff] %vm942, %v922
  %988 = vst.msk [vmem:[%s3 + $0x168] sm:$0xff] %vm942, %v923
  %989 = vst.msk [vmem:[%s3 + $0x170] sm:$0xff] %vm942, %v924
  %990 = vst.msk [vmem:[%s3 + $0x178] sm:$0xff] %vm942, %v925
  %991 = vst.msk [vmem:[%s3 + $0x180] sm:$0xff] %vm942, %v926
  %992 = vst.msk [vmem:[%s3 + $0x188] sm:$0xff] %vm942, %v927
  %993 = vst.msk [vmem:[%s3 + $0x190] sm:$0xff] %vm942, %v928
  %994 = vst.msk [vmem:[%s3 + $0x198] sm:$0xff] %vm942, %v929
  %995 = vst.msk [vmem:[%s3 + $0x1a0] sm:$0xff] %vm942, %v930
  %996 = vst.msk [vmem:[%s3 + $0x1a8] sm:$0xff] %vm942, %v931
  %997 = vst.msk [vmem:[%s3 + $0x1b0] sm:$0xff] %vm942, %v932
  %998 = vst.msk [vmem:[%s3 + $0x1b8] sm:$0xff] %vm942, %v933
  %999 = vst.msk [vmem:[%s3 + $0x1c0] sm:$0xff] %vm942, %v934
  %1000 = vst.msk [vmem:[%s3 + $0x1c8] sm:$0xff] %vm942, %v935
  %1001 = vst.msk [vmem:[%s3 + $0x1d0] sm:$0xff] %vm942, %v936
  %1002 = vst.msk [vmem:[%s3 + $0x1d8] sm:$0xff] %vm942, %v937
  %1003 = vst.msk [vmem:[%s3 + $0x1e0] sm:$0xff] %vm942, %v938
  %1004 = vst.msk [vmem:[%s3 + $0x1e8] sm:$0xff] %vm942, %v939
  %1005 = vst.msk [vmem:[%s3 + $0x1f0] sm:$0xff] %vm942, %v940
  %1006 = vst.msk [vmem:[%s3 + $0x1f8] sm:$0xff] %vm942, %v941
  // Predicated region
  $region14: #{path_aware_resnet_gen_forward.25} parent=0 // pred_check
    _
  $region15: #{path_aware_resnet_gen_forward.25} parent=0 // pred_check_branch
    %1008 = sbr.rel (0) target = $region17
  $region16: #{path_aware_resnet_gen_forward.25} parent=0 // pred_region
    _
  $region17: #{path_aware_resnet_gen_forward.25} parent=0 // pred_fallthru
    _
  // Predicated region
  $region18: #{path_aware_resnet_gen_forward.25} parent=0 // pred_check
    _
  $region19: #{path_aware_resnet_gen_forward.25} parent=0 // pred_check_branch
    %1010 = sbr.rel (0) target = $region21
  $region20: #{path_aware_resnet_gen_forward.25} parent=0 // pred_region
    _
  $region21: #{path_aware_resnet_gen_forward.25} parent=0 // pred_fallthru
    _

</llo_original>
